<compile_context>
chip_gen: v6e
topology: v6e:2x2x1
jax: 0.10.0
libtpu: 0.0.40
codegen_flags: <defaults>
</compile_context>

<pallas_src>
import functools
import math

import jax
import jax.numpy as jnp
from jax.experimental import pallas as pl
from jax.experimental.pallas import tpu as pltpu


# --------------------------------- helpers ---------------------------------------
def _layernorm(x, gamma, beta, eps=1e-5):
    # f32 math (rsqrt maps to the EUP).
    mu = jnp.mean(x, axis=-1, keepdims=True)
    xc = x - mu
    var = jnp.mean(xc * xc, axis=-1, keepdims=True)
    return xc * jax.lax.rsqrt(var + eps) * gamma + beta


def _mxu(a, b):
    """MXU matmul with f32 accumulation; operands are expected to be bf16 already."""
    return jnp.dot(a, b, preferred_element_type=jnp.float32)


# ------------------------------ fused model kernel --------------------------------
def _seq2vec_kernel(x_ref, w_in_ref, b_in_ref,
                    wq_ref, bq_ref, wk_ref, bk_ref, wv_ref, bv_ref,
                    wo_ref, bo_ref,
                    w1_ref, b1_ref, w2_ref, b2_ref,
                    g1_ref, beta1_ref, g2_ref, beta2_ref,
                    w_out_ref, b_out_ref,
                    o_ref, *, batch_tile, seq, num_heads, num_layers, ff_chunk):
    bt, s, nh = batch_tile, seq, num_heads
    n = bt * s                                          # rows handled this grid step

    # ---- input Linear; x arrives already bf16, batch+seq folded into matmul M ----
    h = _mxu(x_ref[...], w_in_ref[...]) + b_in_ref[...]     # (n, H) f32
    hidden = h.shape[-1]
    hd = hidden // nh
    dff = w1_ref.shape[-1]

    for l in range(num_layers):                         # static unroll (2 layers)
        last = l == num_layers - 1
        h_bf = h.astype(jnp.bfloat16)                   # cast once, reused 3x

        # ---- multi-head self-attention (post-norm).  1/sqrt(hd) is folded into
        #      wq/bq at init, so no extra scaling pass here. ----
        q = (_mxu(h_bf, wq_ref[l]) + bq_ref[l]).astype(jnp.bfloat16)
        k = (_mxu(h_bf, wk_ref[l]) + bk_ref[l]).astype(jnp.bfloat16)
        v = (_mxu(h_bf, wv_ref[l]) + bv_ref[l]).astype(jnp.bfloat16)

        def split_heads(t):
            # (n, H) -> (nh*bt, s, hd): heads moved to the leading (batch) axis via
            # lane slices + a cheap major-axis concat (minor dim never changes).
            parts = [t[:, hh * hd:(hh + 1) * hd].reshape(1, bt, s, hd)
                     for hh in range(nh)]
            return jnp.concatenate(parts, axis=0).reshape(nh * bt, s, hd)

        qh, kh, vh = split_heads(q), split_heads(k), split_heads(v)

        # Single head-batched score / softmax / context block (f32 softmax math).
        sc = jnp.einsum('bqd,bkd->bqk', qh, kh,
                        preferred_element_type=jnp.float32)        # (nh*bt, s, s)
        sc = sc - jnp.max(sc, axis=-1, keepdims=True)
        p = jnp.exp(sc)
        p = p * pl.reciprocal(jnp.sum(p, axis=-1, keepdims=True), approx=True)
        ctx = jnp.einsum('bqk,bkd->bqd', p.astype(jnp.bfloat16), vh,
                         preferred_element_type=jnp.float32)       # (nh*bt, s, hd)

        # heads -> lanes once, then a single context @ Wo matmul.
        ctx = ctx.reshape(nh, n, hd)                               # major-only reshape
        ctx_cat = jnp.concatenate([ctx[hh] for hh in range(nh)], axis=-1)   # (n, H)
        attn = _mxu(ctx_cat.astype(jnp.bfloat16), wo_ref[l]) + bo_ref[l]

        y = h + attn                                               # (n, H) f32
        if last:
            # Only token 0 of each batch element feeds the output Linear; slice
            # BEFORE LayerNorm1 so LN1/FFN/LN2 of the last layer run on bt rows.
            y = y.reshape(bt, s, hidden)[:, 0:1, :].reshape(bt, hidden)
        x1 = _layernorm(y, g1_ref[l], beta1_ref[l])
        x1_bf = x1.astype(jnp.bfloat16)

        # ---- feed-forward (relu), chunked over dim_feedforward to bound the live
        #      intermediate; relu output stays bf16 between the two matmuls. ----
        ff = None
        for c in range(0, dff, ff_chunk):
            f_c = jnp.maximum(
                _mxu(x1_bf, w1_ref[l, :, c:c + ff_chunk]) + b1_ref[l, :, c:c + ff_chunk],
                0.0)
            part = _mxu(f_c.astype(jnp.bfloat16), w2_ref[l, c:c + ff_chunk, :])
            ff = part if ff is None else ff + part
        ff = ff + b2_ref[l]
        h = _layernorm(x1 + ff, g2_ref[l], beta2_ref[l])

    # ---- output Linear on the (bt, H) token-0 rows ----
    # TODO(synk): optionally pad out_size to 128 lanes for an unmasked output store.
    o_ref[...] = (_mxu(h.astype(jnp.bfloat16), w_out_ref[...]) + b_out_ref[...]
                  ).astype(o_ref.dtype)


# ---------------------------- VMEM / tiling heuristics ------------------------------
def _vmem_limit_bytes():
    """Per-generation scoped-VMEM limit: ~96 MiB on v5e/v6e (128 MiB physical),
    ~48 MiB on v7x-class parts (64 MiB physical)."""
    phys = None
    try:
        phys = getattr(pltpu.get_tpu_info(), "vmem_capacity_bytes", None)
    except Exception:
        phys = None
    if phys is None:
        try:
            kind = jax.devices()[0].device_kind.lower()
        except Exception:
            kind = ""
        phys = 64 * 2 ** 20 if "7" in kind else 128 * 2 ** 20
    return 96 * 2 ** 20 if phys >= 128 * 2 ** 20 else 48 * 2 ** 20


def _pick_batch_tile(b, s, in_size, hidden, dff, num_heads, ff_chunk, out_size,
                     weight_bytes, budget):
    """Largest legal batch tile whose activations + (single-buffered) weights fit the
    VMEM budget, preferring grid >= 2 (megacore sharding + DMA/compute overlap)."""
    def act_bytes(bt):
        n = bt * s
        slab = 6 * n * hidden * 4                       # h, q, k, v, ctx, x1/ff acc (f32-ish)
        scores = 2 * num_heads * bt * s * s * 4         # scores + probs (f32)
        ffn = n * ff_chunk * 4                          # chunked FFN intermediate
        io = 2 * (n * in_size * 2 + bt * max(out_size, 128) * 4)   # double-buffered I/O
        return slab + scores + ffn + io

    legal = [t for t in range(1, b + 1)
             if b % t == 0 and (t == b or t % 8 == 0)]   # (8,128) rule for partial blocks
    fits = [t for t in legal if weight_bytes + act_bytes(t) <= budget]
    if not fits:
        fits = [min(legal)]
    multi = [t for t in fits if b // t >= 2]
    return max(multi) if multi else max(fits)


# --------------------------------- wrapper ----------------------------------------
def seq2vec_trans(params, x, num_heads=8, batch_tile=None, ff_chunk=None):
    b, s, in_size = x.shape
    hidden = params["w_in"].shape[1]
    out_size = params["w_out"].shape[1]
    dff = params["w1"].shape[-1]
    num_layers = params["wq"].shape[0]
    assert hidden % num_heads == 0

    if ff_chunk is None:
        ff_chunk = 512 if dff % 512 == 0 else dff
    assert dff % ff_chunk == 0

    weights = (params["w_in"], params["b_in"],
               params["wq"], params["bq"], params["wk"], params["bk"],
               params["wv"], params["bv"], params["wo"], params["bo"],
               params["w1"], params["b1"], params["w2"], params["b2"],
               params["g1"], params["beta1"], params["g2"], params["beta2"],
               params["w_out"], params["b_out"])
    weight_bytes = sum(int(a.size) * a.dtype.itemsize for a in weights)

    vmem_limit = _vmem_limit_bytes()
    if batch_tile is None:
        batch_tile = _pick_batch_tile(b, s, in_size, hidden, dff, num_heads,
                                      ff_chunk, out_size, weight_bytes,
                                      int(vmem_limit * 0.75))
    assert b % batch_tile == 0
    if batch_tile != b:
        # Non-full blocks must satisfy the (8, 128) sublane rule.
        assert batch_tile % 8 == 0 and (batch_tile * s) % 8 == 0, (
            "batch_tile < batch must be a multiple of 8")
    grid = (b // batch_tile,)

    # bf16 input: halves the only per-step HBM->VMEM activation DMA (the input
    # Linear runs in bf16 on the MXU anyway).
    x2 = x.reshape(b * s, in_size).astype(jnp.bfloat16)

    def invariant(a):
        # Grid-invariant, single-buffered weight block (no double-buffer VMEM cost).
        return pl.BlockSpec(a.shape, lambda i, nd=a.ndim: (0,) * nd,
                            pipeline_mode=pl.Buffered(1))

    kernel = functools.partial(_seq2vec_kernel, batch_tile=batch_tile, seq=s,
                               num_heads=num_heads, num_layers=num_layers,
                               ff_chunk=ff_chunk)

    return pl.pallas_call(
        kernel,
        out_shape=jax.ShapeDtypeStruct((b, out_size), x.dtype),
        grid=grid,
        in_specs=[pl.BlockSpec((batch_tile * s, in_size), lambda i: (i, 0))]
                 + [invariant(a) for a in weights],
        out_specs=pl.BlockSpec((batch_tile, out_size), lambda i: (i, 0)),
        compiler_params=pltpu.CompilerParams(
            dimension_semantics=("parallel",),   # v7x megacore sharding when grid > 1
            vmem_limit_bytes=vmem_limit,
        ),
    )(x2, *weights)


# ------------------------------ parameter creation --------------------------------
def init_params(key, input_size, hidden_size, output_size, num_layers=2,
                num_heads=8, dim_feedforward=2048, matmul_dtype=jnp.bfloat16):
    assert hidden_size % num_heads == 0
    keys = jax.random.split(key, 2 + num_layers)

    def dense(k, fan_in, fan_out):
        bound = 1.0 / math.sqrt(fan_in)
        kw, kb = jax.random.split(k)
        w = jax.random.uniform(kw, (fan_in, fan_out), jnp.float32, -bound, bound)
        bb = jax.random.uniform(kb, (1, fan_out), jnp.float32, -bound, bound)
        return w, bb

    w_in, b_in = dense(keys[0], input_size, hidden_size)
    w_out, b_out = dense(keys[1], hidden_size, output_size)

    per_layer = {name: [] for name in ("wq", "bq", "wk", "bk", "wv", "bv",
                                       "wo", "bo", "w1", "b1", "w2", "b2")}
    for l in range(num_layers):
        lk = jax.random.split(keys[2 + l], 6)
        wq, bq = dense(lk[0], hidden_size, hidden_size)
        wk, bk = dense(lk[1], hidden_size, hidden_size)
        wv, bv = dense(lk[2], hidden_size, hidden_size)
        wo, bo = dense(lk[3], hidden_size, hidden_size)
        w1, b1 = dense(lk[4], hidden_size, dim_feedforward)
        w2, b2 = dense(lk[5], dim_feedforward, hidden_size)
        for name, val in (("wq", wq), ("bq", bq), ("wk", wk), ("bk", bk),
                          ("wv", wv), ("bv", bv), ("wo", wo), ("bo", bo),
                          ("w1", w1), ("b1", b1), ("w2", w2), ("b2", b2)):
            per_layer[name].append(val)

    params = dict(w_in=w_in, b_in=b_in, w_out=w_out, b_out=b_out)
    for name, vals in per_layer.items():
        params[name] = jnp.stack(vals, axis=0)                     # (L, ...)
    params["g1"] = jnp.ones((num_layers, 1, hidden_size), jnp.float32)
    params["beta1"] = jnp.zeros((num_layers, 1, hidden_size), jnp.float32)
    params["g2"] = jnp.ones((num_layers, 1, hidden_size), jnp.float32)
    params["beta2"] = jnp.zeros((num_layers, 1, hidden_size), jnp.float32)

    # Fold the attention 1/sqrt(head_dim) scale into wq/bq (PyTorch scales q after
    # the in-projection, so scaling both weight and bias is equivalent).  Done in
    # f32 before the bf16 cast.
    scale = 1.0 / math.sqrt(hidden_size // num_heads)
    params["wq"] = params["wq"] * scale
    params["bq"] = params["bq"] * scale

    # Store matmul weights in bf16 for the MXU (halves weight DMA/VMEM); biases and
    # LayerNorm params stay f32 — softmax/LayerNorm math stays f32 inside the kernel.
    # TODO(synk): on v7x the large weights could additionally be stored fp8.
    for name in ("w_in", "w_out", "wq", "wk", "wv", "wo", "w1", "w2"):
        params[name] = params[name].astype(matmul_dtype)
    return params


# ----------------------------------- demo ------------------------------------------
if __name__ == "__main__":
    B, S = 2, 8
    input_size, hidden_size, output_size = 16, 64, 8   # hidden divisible by nhead=8

    key = jax.random.PRNGKey(0)
    k_x, k_p = jax.random.split(key)
    x = jax.random.normal(k_x, (B, S, input_size), jnp.float32)
    params = init_params(k_p, input_size, hidden_size, output_size)

    out = seq2vec_trans(params, x)
    out = jax.block_until_ready(out)
    assert out.shape == (B, output_size)
    assert bool(jnp.all(jnp.isfinite(out)))
    print("KERNEL_OK")
</pallas_src>

<mosaic_0001>
module attributes {stable_mosaic.version = 11 : i64} {
  func.func @_seq2vec_kernel(%arg0: i32, %arg1: memref<16x16xbf16, #tpu.memory_space<vmem>>, %arg2: memref<16x64xbf16, #tpu.memory_space<vmem>>, %arg3: memref<1x64xf32, #tpu.memory_space<vmem>>, %arg4: memref<2x64x64xbf16, #tpu.memory_space<vmem>>, %arg5: memref<2x1x64xf32, #tpu.memory_space<vmem>>, %arg6: memref<2x64x64xbf16, #tpu.memory_space<vmem>>, %arg7: memref<2x1x64xf32, #tpu.memory_space<vmem>>, %arg8: memref<2x64x64xbf16, #tpu.memory_space<vmem>>, %arg9: memref<2x1x64xf32, #tpu.memory_space<vmem>>, %arg10: memref<2x64x64xbf16, #tpu.memory_space<vmem>>, %arg11: memref<2x1x64xf32, #tpu.memory_space<vmem>>, %arg12: memref<2x64x2048xbf16, #tpu.memory_space<vmem>>, %arg13: memref<2x1x2048xf32, #tpu.memory_space<vmem>>, %arg14: memref<2x2048x64xbf16, #tpu.memory_space<vmem>>, %arg15: memref<2x1x64xf32, #tpu.memory_space<vmem>>, %arg16: memref<2x1x64xf32, #tpu.memory_space<vmem>>, %arg17: memref<2x1x64xf32, #tpu.memory_space<vmem>>, %arg18: memref<2x1x64xf32, #tpu.memory_space<vmem>>, %arg19: memref<2x1x64xf32, #tpu.memory_space<vmem>>, %arg20: memref<64x8xbf16, #tpu.memory_space<vmem>>, %arg21: memref<1x8xf32, #tpu.memory_space<vmem>>, %arg22: memref<2x8xf32, #tpu.memory_space<vmem>>) attributes {dimension_semantics = [#tpu.dimension_semantics<parallel>], iteration_bounds = array<i64: 1>, scalar_prefetch = 0 : i64, scratch_operands = 0 : i64, tpu.core_type = #tpu.core_type<tc>, window_params = [{transform_indices = @transform_0, window_bounds = array<i64: 16, 16>}, {pipeline_mode = #tpu.pipeline_mode<synchronous>, transform_indices = @transform_1, window_bounds = array<i64: 16, 64>}, {pipeline_mode = #tpu.pipeline_mode<synchronous>, transform_indices = @transform_2, window_bounds = array<i64: 1, 64>}, {pipeline_mode = #tpu.pipeline_mode<synchronous>, transform_indices = @transform_3, window_bounds = array<i64: 2, 64, 64>}, {pipeline_mode = #tpu.pipeline_mode<synchronous>, transform_indices = @transform_4, window_bounds = array<i64: 2, 1, 64>}, {pipeline_mode = #tpu.pipeline_mode<synchronous>, transform_indices = @transform_5, window_bounds = array<i64: 2, 64, 64>}, {pipeline_mode = #tpu.pipeline_mode<synchronous>, transform_indices = @transform_6, window_bounds = array<i64: 2, 1, 64>}, {pipeline_mode = #tpu.pipeline_mode<synchronous>, transform_indices = @transform_7, window_bounds = array<i64: 2, 64, 64>}, {pipeline_mode = #tpu.pipeline_mode<synchronous>, transform_indices = @transform_8, window_bounds = array<i64: 2, 1, 64>}, {pipeline_mode = #tpu.pipeline_mode<synchronous>, transform_indices = @transform_9, window_bounds = array<i64: 2, 64, 64>}, {pipeline_mode = #tpu.pipeline_mode<synchronous>, transform_indices = @transform_10, window_bounds = array<i64: 2, 1, 64>}, {pipeline_mode = #tpu.pipeline_mode<synchronous>, transform_indices = @transform_11, window_bounds = array<i64: 2, 64, 2048>}, {pipeline_mode = #tpu.pipeline_mode<synchronous>, transform_indices = @transform_12, window_bounds = array<i64: 2, 1, 2048>}, {pipeline_mode = #tpu.pipeline_mode<synchronous>, transform_indices = @transform_13, window_bounds = array<i64: 2, 2048, 64>}, {pipeline_mode = #tpu.pipeline_mode<synchronous>, transform_indices = @transform_14, window_bounds = array<i64: 2, 1, 64>}, {pipeline_mode = #tpu.pipeline_mode<synchronous>, transform_indices = @transform_15, window_bounds = array<i64: 2, 1, 64>}, {pipeline_mode = #tpu.pipeline_mode<synchronous>, transform_indices = @transform_16, window_bounds = array<i64: 2, 1, 64>}, {pipeline_mode = #tpu.pipeline_mode<synchronous>, transform_indices = @transform_17, window_bounds = array<i64: 2, 1, 64>}, {pipeline_mode = #tpu.pipeline_mode<synchronous>, transform_indices = @transform_18, window_bounds = array<i64: 2, 1, 64>}, {pipeline_mode = #tpu.pipeline_mode<synchronous>, transform_indices = @transform_19, window_bounds = array<i64: 64, 8>}, {pipeline_mode = #tpu.pipeline_mode<synchronous>, transform_indices = @transform_20, window_bounds = array<i64: 1, 8>}, {transform_indices = @transform_21, window_bounds = array<i64: 2, 8>}]} {
    %c0 = arith.constant 0 : index
    %c0_0 = arith.constant 0 : index
    %0 = vector.load %arg1[%c0, %c0_0] : memref<16x16xbf16, #tpu.memory_space<vmem>>, vector<16x16xbf16>
    %c0_1 = arith.constant 0 : index
    %c0_2 = arith.constant 0 : index
    %1 = vector.load %arg2[%c0_1, %c0_2] : memref<16x64xbf16, #tpu.memory_space<vmem>>, vector<16x64xbf16>
    %cst = arith.constant dense<0.000000e+00> : vector<16x64xf32>
    %2 = tpu.matmul %0, %1, %cst {dimension_numbers = #tpu.dot_dimension_numbers<[1], [0], [0], [1], [0, 0, 1, 1], [], []>} : vector<16x16xbf16>, vector<16x64xbf16>, vector<16x64xf32> -> vector<16x64xf32>
    %c0_3 = arith.constant 0 : index
    %c0_4 = arith.constant 0 : index
    %3 = vector.load %arg3[%c0_3, %c0_4] : memref<1x64xf32, #tpu.memory_space<vmem>>, vector<1x64xf32>
    %4 = vector.broadcast %3 : vector<1x64xf32> to vector<16x64xf32>
    %5 = arith.addf %2, %4 : vector<16x64xf32>
    %6 = arith.truncf %5 : vector<16x64xf32> to vector<16x64xbf16>
    %c0_5 = arith.constant 0 : index
    %c0_6 = arith.constant 0 : index
    %c0_7 = arith.constant 0 : index
    %7 = vector.load %arg4[%c0_5, %c0_6, %c0_7] : memref<2x64x64xbf16, #tpu.memory_space<vmem>>, vector<1x64x64xbf16>
    %8 = vector.shape_cast %7 : vector<1x64x64xbf16> to vector<64x64xbf16>
    %cst_8 = arith.constant dense<0.000000e+00> : vector<16x64xf32>
    %9 = tpu.matmul %6, %8, %cst_8 {dimension_numbers = #tpu.dot_dimension_numbers<[1], [0], [0], [1], [0, 0, 1, 1], [], []>} : vector<16x64xbf16>, vector<64x64xbf16>, vector<16x64xf32> -> vector<16x64xf32>
    %c0_9 = arith.constant 0 : index
    %c0_10 = arith.constant 0 : index
    %c0_11 = arith.constant 0 : index
    %10 = vector.load %arg5[%c0_9, %c0_10, %c0_11] : memref<2x1x64xf32, #tpu.memory_space<vmem>>, vector<1x1x64xf32>
    %11 = vector.shape_cast %10 : vector<1x1x64xf32> to vector<1x64xf32>
    %12 = vector.broadcast %11 : vector<1x64xf32> to vector<16x64xf32>
    %13 = arith.addf %9, %12 : vector<16x64xf32>
    %14 = arith.truncf %13 : vector<16x64xf32> to vector<16x64xbf16>
    %c0_12 = arith.constant 0 : index
    %c0_13 = arith.constant 0 : index
    %c0_14 = arith.constant 0 : index
    %15 = vector.load %arg6[%c0_12, %c0_13, %c0_14] : memref<2x64x64xbf16, #tpu.memory_space<vmem>>, vector<1x64x64xbf16>
    %16 = vector.shape_cast %15 : vector<1x64x64xbf16> to vector<64x64xbf16>
    %cst_15 = arith.constant dense<0.000000e+00> : vector<16x64xf32>
    %17 = tpu.matmul %6, %16, %cst_15 {dimension_numbers = #tpu.dot_dimension_numbers<[1], [0], [0], [1], [0, 0, 1, 1], [], []>} : vector<16x64xbf16>, vector<64x64xbf16>, vector<16x64xf32> -> vector<16x64xf32>
    %c0_16 = arith.constant 0 : index
    %c0_17 = arith.constant 0 : index
    %c0_18 = arith.constant 0 : index
    %18 = vector.load %arg7[%c0_16, %c0_17, %c0_18] : memref<2x1x64xf32, #tpu.memory_space<vmem>>, vector<1x1x64xf32>
    %19 = vector.shape_cast %18 : vector<1x1x64xf32> to vector<1x64xf32>
    %20 = vector.broadcast %19 : vector<1x64xf32> to vector<16x64xf32>
    %21 = arith.addf %17, %20 : vector<16x64xf32>
    %22 = arith.truncf %21 : vector<16x64xf32> to vector<16x64xbf16>
    %c0_19 = arith.constant 0 : index
    %c0_20 = arith.constant 0 : index
    %c0_21 = arith.constant 0 : index
    %23 = vector.load %arg8[%c0_19, %c0_20, %c0_21] : memref<2x64x64xbf16, #tpu.memory_space<vmem>>, vector<1x64x64xbf16>
    %24 = vector.shape_cast %23 : vector<1x64x64xbf16> to vector<64x64xbf16>
    %cst_22 = arith.constant dense<0.000000e+00> : vector<16x64xf32>
    %25 = tpu.matmul %6, %24, %cst_22 {dimension_numbers = #tpu.dot_dimension_numbers<[1], [0], [0], [1], [0, 0, 1, 1], [], []>} : vector<16x64xbf16>, vector<64x64xbf16>, vector<16x64xf32> -> vector<16x64xf32>
    %c0_23 = arith.constant 0 : index
    %c0_24 = arith.constant 0 : index
    %c0_25 = arith.constant 0 : index
    %26 = vector.load %arg9[%c0_23, %c0_24, %c0_25] : memref<2x1x64xf32, #tpu.memory_space<vmem>>, vector<1x1x64xf32>
    %27 = vector.shape_cast %26 : vector<1x1x64xf32> to vector<1x64xf32>
    %28 = vector.broadcast %27 : vector<1x64xf32> to vector<16x64xf32>
    %29 = arith.addf %25, %28 : vector<16x64xf32>
    %30 = arith.truncf %29 : vector<16x64xf32> to vector<16x64xbf16>
    %31 = vector.extract_strided_slice %14 {offsets = [0, 0], sizes = [16, 8], strides = [1, 1]} : vector<16x64xbf16> to vector<16x8xbf16>
    %32 = vector.shape_cast %31 : vector<16x8xbf16> to vector<1x2x8x8xbf16>
    %33 = vector.extract_strided_slice %14 {offsets = [0, 8], sizes = [16, 8], strides = [1, 1]} : vector<16x64xbf16> to vector<16x8xbf16>
    %34 = vector.shape_cast %33 : vector<16x8xbf16> to vector<1x2x8x8xbf16>
    %35 = vector.extract_strided_slice %14 {offsets = [0, 16], sizes = [16, 8], strides = [1, 1]} : vector<16x64xbf16> to vector<16x8xbf16>
    %36 = vector.shape_cast %35 : vector<16x8xbf16> to vector<1x2x8x8xbf16>
    %37 = vector.extract_strided_slice %14 {offsets = [0, 24], sizes = [16, 8], strides = [1, 1]} : vector<16x64xbf16> to vector<16x8xbf16>
    %38 = vector.shape_cast %37 : vector<16x8xbf16> to vector<1x2x8x8xbf16>
    %39 = vector.extract_strided_slice %14 {offsets = [0, 32], sizes = [16, 8], strides = [1, 1]} : vector<16x64xbf16> to vector<16x8xbf16>
    %40 = vector.shape_cast %39 : vector<16x8xbf16> to vector<1x2x8x8xbf16>
    %41 = vector.extract_strided_slice %14 {offsets = [0, 40], sizes = [16, 8], strides = [1, 1]} : vector<16x64xbf16> to vector<16x8xbf16>
    %42 = vector.shape_cast %41 : vector<16x8xbf16> to vector<1x2x8x8xbf16>
    %43 = vector.extract_strided_slice %14 {offsets = [0, 48], sizes = [16, 8], strides = [1, 1]} : vector<16x64xbf16> to vector<16x8xbf16>
    %44 = vector.shape_cast %43 : vector<16x8xbf16> to vector<1x2x8x8xbf16>
    %45 = vector.extract_strided_slice %14 {offsets = [0, 56], sizes = [16, 8], strides = [1, 1]} : vector<16x64xbf16> to vector<16x8xbf16>
    %46 = vector.shape_cast %45 : vector<16x8xbf16> to vector<1x2x8x8xbf16>
    %47 = tpu.concatenate %32, %34, %36, %38, %40, %42, %44, %46 in 0 : vector<1x2x8x8xbf16>, vector<1x2x8x8xbf16>, vector<1x2x8x8xbf16>, vector<1x2x8x8xbf16>, vector<1x2x8x8xbf16>, vector<1x2x8x8xbf16>, vector<1x2x8x8xbf16>, vector<1x2x8x8xbf16> -> vector<8x2x8x8xbf16>
    %48 = vector.shape_cast %47 : vector<8x2x8x8xbf16> to vector<16x8x8xbf16>
    %49 = vector.extract_strided_slice %22 {offsets = [0, 0], sizes = [16, 8], strides = [1, 1]} : vector<16x64xbf16> to vector<16x8xbf16>
    %50 = vector.shape_cast %49 : vector<16x8xbf16> to vector<1x2x8x8xbf16>
    %51 = vector.extract_strided_slice %22 {offsets = [0, 8], sizes = [16, 8], strides = [1, 1]} : vector<16x64xbf16> to vector<16x8xbf16>
    %52 = vector.shape_cast %51 : vector<16x8xbf16> to vector<1x2x8x8xbf16>
    %53 = vector.extract_strided_slice %22 {offsets = [0, 16], sizes = [16, 8], strides = [1, 1]} : vector<16x64xbf16> to vector<16x8xbf16>
    %54 = vector.shape_cast %53 : vector<16x8xbf16> to vector<1x2x8x8xbf16>
    %55 = vector.extract_strided_slice %22 {offsets = [0, 24], sizes = [16, 8], strides = [1, 1]} : vector<16x64xbf16> to vector<16x8xbf16>
    %56 = vector.shape_cast %55 : vector<16x8xbf16> to vector<1x2x8x8xbf16>
    %57 = vector.extract_strided_slice %22 {offsets = [0, 32], sizes = [16, 8], strides = [1, 1]} : vector<16x64xbf16> to vector<16x8xbf16>
    %58 = vector.shape_cast %57 : vector<16x8xbf16> to vector<1x2x8x8xbf16>
    %59 = vector.extract_strided_slice %22 {offsets = [0, 40], sizes = [16, 8], strides = [1, 1]} : vector<16x64xbf16> to vector<16x8xbf16>
    %60 = vector.shape_cast %59 : vector<16x8xbf16> to vector<1x2x8x8xbf16>
    %61 = vector.extract_strided_slice %22 {offsets = [0, 48], sizes = [16, 8], strides = [1, 1]} : vector<16x64xbf16> to vector<16x8xbf16>
    %62 = vector.shape_cast %61 : vector<16x8xbf16> to vector<1x2x8x8xbf16>
    %63 = vector.extract_strided_slice %22 {offsets = [0, 56], sizes = [16, 8], strides = [1, 1]} : vector<16x64xbf16> to vector<16x8xbf16>
    %64 = vector.shape_cast %63 : vector<16x8xbf16> to vector<1x2x8x8xbf16>
    %65 = tpu.concatenate %50, %52, %54, %56, %58, %60, %62, %64 in 0 : vector<1x2x8x8xbf16>, vector<1x2x8x8xbf16>, vector<1x2x8x8xbf16>, vector<1x2x8x8xbf16>, vector<1x2x8x8xbf16>, vector<1x2x8x8xbf16>, vector<1x2x8x8xbf16>, vector<1x2x8x8xbf16> -> vector<8x2x8x8xbf16>
    %66 = vector.shape_cast %65 : vector<8x2x8x8xbf16> to vector<16x8x8xbf16>
    %67 = vector.extract_strided_slice %30 {offsets = [0, 0], sizes = [16, 8], strides = [1, 1]} : vector<16x64xbf16> to vector<16x8xbf16>
    %68 = vector.shape_cast %67 : vector<16x8xbf16> to vector<1x2x8x8xbf16>
    %69 = vector.extract_strided_slice %30 {offsets = [0, 8], sizes = [16, 8], strides = [1, 1]} : vector<16x64xbf16> to vector<16x8xbf16>
    %70 = vector.shape_cast %69 : vector<16x8xbf16> to vector<1x2x8x8xbf16>
    %71 = vector.extract_strided_slice %30 {offsets = [0, 16], sizes = [16, 8], strides = [1, 1]} : vector<16x64xbf16> to vector<16x8xbf16>
    %72 = vector.shape_cast %71 : vector<16x8xbf16> to vector<1x2x8x8xbf16>
    %73 = vector.extract_strided_slice %30 {offsets = [0, 24], sizes = [16, 8], strides = [1, 1]} : vector<16x64xbf16> to vector<16x8xbf16>
    %74 = vector.shape_cast %73 : vector<16x8xbf16> to vector<1x2x8x8xbf16>
    %75 = vector.extract_strided_slice %30 {offsets = [0, 32], sizes = [16, 8], strides = [1, 1]} : vector<16x64xbf16> to vector<16x8xbf16>
    %76 = vector.shape_cast %75 : vector<16x8xbf16> to vector<1x2x8x8xbf16>
    %77 = vector.extract_strided_slice %30 {offsets = [0, 40], sizes = [16, 8], strides = [1, 1]} : vector<16x64xbf16> to vector<16x8xbf16>
    %78 = vector.shape_cast %77 : vector<16x8xbf16> to vector<1x2x8x8xbf16>
    %79 = vector.extract_strided_slice %30 {offsets = [0, 48], sizes = [16, 8], strides = [1, 1]} : vector<16x64xbf16> to vector<16x8xbf16>
    %80 = vector.shape_cast %79 : vector<16x8xbf16> to vector<1x2x8x8xbf16>
    %81 = vector.extract_strided_slice %30 {offsets = [0, 56], sizes = [16, 8], strides = [1, 1]} : vector<16x64xbf16> to vector<16x8xbf16>
    %82 = vector.shape_cast %81 : vector<16x8xbf16> to vector<1x2x8x8xbf16>
    %83 = tpu.concatenate %68, %70, %72, %74, %76, %78, %80, %82 in 0 : vector<1x2x8x8xbf16>, vector<1x2x8x8xbf16>, vector<1x2x8x8xbf16>, vector<1x2x8x8xbf16>, vector<1x2x8x8xbf16>, vector<1x2x8x8xbf16>, vector<1x2x8x8xbf16>, vector<1x2x8x8xbf16> -> vector<8x2x8x8xbf16>
    %84 = vector.shape_cast %83 : vector<8x2x8x8xbf16> to vector<16x8x8xbf16>
    "tpu.trace_start"() <{level = 10 : i32, message = "bqd,bkd->bqk"}> : () -> ()
    %cst_26 = arith.constant dense<0.000000e+00> : vector<16x8x8xf32>
    %85 = tpu.matmul %48, %66, %cst_26 {dimension_numbers = #tpu.dot_dimension_numbers<[2], [2], [1], [1], [0, 0, 0, 1, 1, 1], [0], [0]>} : vector<16x8x8xbf16>, vector<16x8x8xbf16>, vector<16x8x8xf32> -> vector<16x8x8xf32>
    "tpu.trace_stop"() : () -> ()
    %cst_27 = arith.constant dense<0xFF800000> : vector<16x8xf32>
    %86 = vector.multi_reduction <maximumf>, %85, %cst_27 [2] : vector<16x8x8xf32> to vector<16x8xf32>
    %87 = vector.shape_cast %86 : vector<16x8xf32> to vector<16x8x1xf32>
    %88 = vector.broadcast %87 : vector<16x8x1xf32> to vector<16x8x8xf32>
    %89 = arith.subf %85, %88 : vector<16x8x8xf32>
    %90 = math.exp %89 : vector<16x8x8xf32>
    %cst_28 = arith.constant dense<0.000000e+00> : vector<16x8xf32>
    %91 = vector.multi_reduction <add>, %90, %cst_28 [2] : vector<16x8x8xf32> to vector<16x8xf32>
    %92 = vector.shape_cast %91 : vector<16x8xf32> to vector<16x8x1xf32>
    %93 = tpu.reciprocal %92 {approx = true} : vector<16x8x1xf32> -> vector<16x8x1xf32>
    %94 = vector.broadcast %93 : vector<16x8x1xf32> to vector<16x8x8xf32>
    %95 = arith.mulf %90, %94 : vector<16x8x8xf32>
    %96 = arith.truncf %95 : vector<16x8x8xf32> to vector<16x8x8xbf16>
    "tpu.trace_start"() <{level = 10 : i32, message = "bqk,bkd->bqd"}> : () -> ()
    %cst_29 = arith.constant dense<0.000000e+00> : vector<16x8x8xf32>
    %97 = tpu.matmul %96, %84, %cst_29 {dimension_numbers = #tpu.dot_dimension_numbers<[2], [1], [1], [2], [0, 0, 0, 1, 1, 2], [0], [0]>} : vector<16x8x8xbf16>, vector<16x8x8xbf16>, vector<16x8x8xf32> -> vector<16x8x8xf32>
    "tpu.trace_stop"() : () -> ()
    %98 = vector.shape_cast %97 : vector<16x8x8xf32> to vector<8x16x8xf32>
    %99 = vector.extract_strided_slice %98 {offsets = [0, 0, 0], sizes = [1, 16, 8], strides = [1, 1, 1]} : vector<8x16x8xf32> to vector<1x16x8xf32>
    %100 = vector.shape_cast %99 : vector<1x16x8xf32> to vector<16x8xf32>
    %101 = vector.extract_strided_slice %98 {offsets = [1, 0, 0], sizes = [1, 16, 8], strides = [1, 1, 1]} : vector<8x16x8xf32> to vector<1x16x8xf32>
    %102 = vector.shape_cast %101 : vector<1x16x8xf32> to vector<16x8xf32>
    %103 = vector.extract_strided_slice %98 {offsets = [2, 0, 0], sizes = [1, 16, 8], strides = [1, 1, 1]} : vector<8x16x8xf32> to vector<1x16x8xf32>
    %104 = vector.shape_cast %103 : vector<1x16x8xf32> to vector<16x8xf32>
    %105 = vector.extract_strided_slice %98 {offsets = [3, 0, 0], sizes = [1, 16, 8], strides = [1, 1, 1]} : vector<8x16x8xf32> to vector<1x16x8xf32>
    %106 = vector.shape_cast %105 : vector<1x16x8xf32> to vector<16x8xf32>
    %107 = vector.extract_strided_slice %98 {offsets = [4, 0, 0], sizes = [1, 16, 8], strides = [1, 1, 1]} : vector<8x16x8xf32> to vector<1x16x8xf32>
    %108 = vector.shape_cast %107 : vector<1x16x8xf32> to vector<16x8xf32>
    %109 = vector.extract_strided_slice %98 {offsets = [5, 0, 0], sizes = [1, 16, 8], strides = [1, 1, 1]} : vector<8x16x8xf32> to vector<1x16x8xf32>
    %110 = vector.shape_cast %109 : vector<1x16x8xf32> to vector<16x8xf32>
    %111 = vector.extract_strided_slice %98 {offsets = [6, 0, 0], sizes = [1, 16, 8], strides = [1, 1, 1]} : vector<8x16x8xf32> to vector<1x16x8xf32>
    %112 = vector.shape_cast %111 : vector<1x16x8xf32> to vector<16x8xf32>
    %113 = vector.extract_strided_slice %98 {offsets = [7, 0, 0], sizes = [1, 16, 8], strides = [1, 1, 1]} : vector<8x16x8xf32> to vector<1x16x8xf32>
    %114 = vector.shape_cast %113 : vector<1x16x8xf32> to vector<16x8xf32>
    %115 = tpu.concatenate %100, %102, %104, %106, %108, %110, %112, %114 in 1 : vector<16x8xf32>, vector<16x8xf32>, vector<16x8xf32>, vector<16x8xf32>, vector<16x8xf32>, vector<16x8xf32>, vector<16x8xf32>, vector<16x8xf32> -> vector<16x64xf32>
    %116 = arith.truncf %115 : vector<16x64xf32> to vector<16x64xbf16>
    %c0_30 = arith.constant 0 : index
    %c0_31 = arith.constant 0 : index
    %c0_32 = arith.constant 0 : index
    %117 = vector.load %arg10[%c0_30, %c0_31, %c0_32] : memref<2x64x64xbf16, #tpu.memory_space<vmem>>, vector<1x64x64xbf16>
    %118 = vector.shape_cast %117 : vector<1x64x64xbf16> to vector<64x64xbf16>
    %cst_33 = arith.constant dense<0.000000e+00> : vector<16x64xf32>
    %119 = tpu.matmul %116, %118, %cst_33 {dimension_numbers = #tpu.dot_dimension_numbers<[1], [0], [0], [1], [0, 0, 1, 1], [], []>} : vector<16x64xbf16>, vector<64x64xbf16>, vector<16x64xf32> -> vector<16x64xf32>
    %c0_34 = arith.constant 0 : index
    %c0_35 = arith.constant 0 : index
    %c0_36 = arith.constant 0 : index
    %120 = vector.load %arg11[%c0_34, %c0_35, %c0_36] : memref<2x1x64xf32, #tpu.memory_space<vmem>>, vector<1x1x64xf32>
    %121 = vector.shape_cast %120 : vector<1x1x64xf32> to vector<1x64xf32>
    %122 = vector.broadcast %121 : vector<1x64xf32> to vector<16x64xf32>
    %123 = arith.addf %119, %122 : vector<16x64xf32>
    %124 = arith.addf %5, %123 : vector<16x64xf32>
    %c0_37 = arith.constant 0 : index
    %c0_38 = arith.constant 0 : index
    %c0_39 = arith.constant 0 : index
    %125 = vector.load %arg16[%c0_37, %c0_38, %c0_39] : memref<2x1x64xf32, #tpu.memory_space<vmem>>, vector<1x1x64xf32>
    %126 = vector.shape_cast %125 : vector<1x1x64xf32> to vector<1x64xf32>
    %c0_40 = arith.constant 0 : index
    %c0_41 = arith.constant 0 : index
    %c0_42 = arith.constant 0 : index
    %127 = vector.load %arg17[%c0_40, %c0_41, %c0_42] : memref<2x1x64xf32, #tpu.memory_space<vmem>>, vector<1x1x64xf32>
    %128 = vector.shape_cast %127 : vector<1x1x64xf32> to vector<1x64xf32>
    %cst_43 = arith.constant dense<0.000000e+00> : vector<16xf32>
    %129 = vector.multi_reduction <add>, %124, %cst_43 [1] : vector<16x64xf32> to vector<16xf32>
    %130 = vector.shape_cast %129 : vector<16xf32> to vector<16x1xf32>
    %cst_44 = arith.constant 6.400000e+01 : f32
    %131 = vector.broadcast %cst_44 : f32 to vector<16x1xf32>
    %132 = arith.divf %130, %131 : vector<16x1xf32>
    %133 = vector.broadcast %132 : vector<16x1xf32> to vector<16x64xf32>
    %134 = arith.subf %124, %133 : vector<16x64xf32>
    %135 = arith.mulf %134, %134 : vector<16x64xf32>
    %cst_45 = arith.constant dense<0.000000e+00> : vector<16xf32>
    %136 = vector.multi_reduction <add>, %135, %cst_45 [1] : vector<16x64xf32> to vector<16xf32>
    %137 = vector.shape_cast %136 : vector<16xf32> to vector<16x1xf32>
    %cst_46 = arith.constant 6.400000e+01 : f32
    %138 = vector.broadcast %cst_46 : f32 to vector<16x1xf32>
    %139 = arith.divf %137, %138 : vector<16x1xf32>
    %cst_47 = arith.constant 9.99999974E-6 : f32
    %140 = vector.broadcast %cst_47 : f32 to vector<16x1xf32>
    %141 = arith.addf %139, %140 : vector<16x1xf32>
    %142 = math.rsqrt %141 : vector<16x1xf32>
    %143 = vector.broadcast %142 : vector<16x1xf32> to vector<16x64xf32>
    %144 = arith.mulf %134, %143 : vector<16x64xf32>
    %145 = vector.broadcast %126 : vector<1x64xf32> to vector<16x64xf32>
    %146 = arith.mulf %144, %145 : vector<16x64xf32>
    %147 = vector.broadcast %128 : vector<1x64xf32> to vector<16x64xf32>
    %148 = arith.addf %146, %147 : vector<16x64xf32>
    %149 = arith.truncf %148 : vector<16x64xf32> to vector<16x64xbf16>
    %c0_48 = arith.constant 0 : index
    %c0_49 = arith.constant 0 : index
    %c0_50 = arith.constant 0 : index
    %150 = vector.load %arg12[%c0_48, %c0_49, %c0_50] : memref<2x64x2048xbf16, #tpu.memory_space<vmem>>, vector<1x64x512xbf16>
    %151 = vector.shape_cast %150 : vector<1x64x512xbf16> to vector<64x512xbf16>
    %cst_51 = arith.constant dense<0.000000e+00> : vector<16x512xf32>
    %152 = tpu.matmul %149, %151, %cst_51 {dimension_numbers = #tpu.dot_dimension_numbers<[1], [0], [0], [1], [0, 0, 1, 1], [], []>} : vector<16x64xbf16>, vector<64x512xbf16>, vector<16x512xf32> -> vector<16x512xf32>
    %c0_52 = arith.constant 0 : index
    %c0_53 = arith.constant 0 : index
    %c0_54 = arith.constant 0 : index
    %153 = vector.load %arg13[%c0_52, %c0_53, %c0_54] : memref<2x1x2048xf32, #tpu.memory_space<vmem>>, vector<1x1x512xf32>
    %154 = vector.shape_cast %153 : vector<1x1x512xf32> to vector<1x512xf32>
    %155 = vector.broadcast %154 : vector<1x512xf32> to vector<16x512xf32>
    %156 = arith.addf %152, %155 : vector<16x512xf32>
    %cst_55 = arith.constant 0.000000e+00 : f32
    %157 = vector.broadcast %cst_55 : f32 to vector<16x512xf32>
    %158 = arith.maximumf %156, %157 : vector<16x512xf32>
    %159 = arith.truncf %158 : vector<16x512xf32> to vector<16x512xbf16>
    %c0_56 = arith.constant 0 : index
    %c0_57 = arith.constant 0 : index
    %c0_58 = arith.constant 0 : index
    %160 = vector.load %arg14[%c0_56, %c0_57, %c0_58] : memref<2x2048x64xbf16, #tpu.memory_space<vmem>>, vector<1x512x64xbf16>
    %161 = vector.shape_cast %160 : vector<1x512x64xbf16> to vector<512x64xbf16>
    %cst_59 = arith.constant dense<0.000000e+00> : vector<16x64xf32>
    %162 = tpu.matmul %159, %161, %cst_59 {dimension_numbers = #tpu.dot_dimension_numbers<[1], [0], [0], [1], [0, 0, 1, 1], [], []>} : vector<16x512xbf16>, vector<512x64xbf16>, vector<16x64xf32> -> vector<16x64xf32>
    %c0_60 = arith.constant 0 : index
    %c0_61 = arith.constant 0 : index
    %c512 = arith.constant 512 : index
    %163 = vector.load %arg12[%c0_60, %c0_61, %c512] : memref<2x64x2048xbf16, #tpu.memory_space<vmem>>, vector<1x64x512xbf16>
    %164 = vector.shape_cast %163 : vector<1x64x512xbf16> to vector<64x512xbf16>
    %cst_62 = arith.constant dense<0.000000e+00> : vector<16x512xf32>
    %165 = tpu.matmul %149, %164, %cst_62 {dimension_numbers = #tpu.dot_dimension_numbers<[1], [0], [0], [1], [0, 0, 1, 1], [], []>} : vector<16x64xbf16>, vector<64x512xbf16>, vector<16x512xf32> -> vector<16x512xf32>
    %c0_63 = arith.constant 0 : index
    %c0_64 = arith.constant 0 : index
    %c512_65 = arith.constant 512 : index
    %166 = vector.load %arg13[%c0_63, %c0_64, %c512_65] : memref<2x1x2048xf32, #tpu.memory_space<vmem>>, vector<1x1x512xf32>
    %167 = vector.shape_cast %166 : vector<1x1x512xf32> to vector<1x512xf32>
    %168 = vector.broadcast %167 : vector<1x512xf32> to vector<16x512xf32>
    %169 = arith.addf %165, %168 : vector<16x512xf32>
    %cst_66 = arith.constant 0.000000e+00 : f32
    %170 = vector.broadcast %cst_66 : f32 to vector<16x512xf32>
    %171 = arith.maximumf %169, %170 : vector<16x512xf32>
    %172 = arith.truncf %171 : vector<16x512xf32> to vector<16x512xbf16>
    %c0_67 = arith.constant 0 : index
    %c512_68 = arith.constant 512 : index
    %c0_69 = arith.constant 0 : index
    %173 = vector.load %arg14[%c0_67, %c512_68, %c0_69] : memref<2x2048x64xbf16, #tpu.memory_space<vmem>>, vector<1x512x64xbf16>
    %174 = vector.shape_cast %173 : vector<1x512x64xbf16> to vector<512x64xbf16>
    %cst_70 = arith.constant dense<0.000000e+00> : vector<16x64xf32>
    %175 = tpu.matmul %172, %174, %cst_70 {dimension_numbers = #tpu.dot_dimension_numbers<[1], [0], [0], [1], [0, 0, 1, 1], [], []>} : vector<16x512xbf16>, vector<512x64xbf16>, vector<16x64xf32> -> vector<16x64xf32>
    %176 = arith.addf %162, %175 : vector<16x64xf32>
    %c0_71 = arith.constant 0 : index
    %c0_72 = arith.constant 0 : index
    %c1024 = arith.constant 1024 : index
    %177 = vector.load %arg12[%c0_71, %c0_72, %c1024] : memref<2x64x2048xbf16, #tpu.memory_space<vmem>>, vector<1x64x512xbf16>
    %178 = vector.shape_cast %177 : vector<1x64x512xbf16> to vector<64x512xbf16>
    %cst_73 = arith.constant dense<0.000000e+00> : vector<16x512xf32>
    %179 = tpu.matmul %149, %178, %cst_73 {dimension_numbers = #tpu.dot_dimension_numbers<[1], [0], [0], [1], [0, 0, 1, 1], [], []>} : vector<16x64xbf16>, vector<64x512xbf16>, vector<16x512xf32> -> vector<16x512xf32>
    %c0_74 = arith.constant 0 : index
    %c0_75 = arith.constant 0 : index
    %c1024_76 = arith.constant 1024 : index
    %180 = vector.load %arg13[%c0_74, %c0_75, %c1024_76] : memref<2x1x2048xf32, #tpu.memory_space<vmem>>, vector<1x1x512xf32>
    %181 = vector.shape_cast %180 : vector<1x1x512xf32> to vector<1x512xf32>
    %182 = vector.broadcast %181 : vector<1x512xf32> to vector<16x512xf32>
    %183 = arith.addf %179, %182 : vector<16x512xf32>
    %cst_77 = arith.constant 0.000000e+00 : f32
    %184 = vector.broadcast %cst_77 : f32 to vector<16x512xf32>
    %185 = arith.maximumf %183, %184 : vector<16x512xf32>
    %186 = arith.truncf %185 : vector<16x512xf32> to vector<16x512xbf16>
    %c0_78 = arith.constant 0 : index
    %c1024_79 = arith.constant 1024 : index
    %c0_80 = arith.constant 0 : index
    %187 = vector.load %arg14[%c0_78, %c1024_79, %c0_80] : memref<2x2048x64xbf16, #tpu.memory_space<vmem>>, vector<1x512x64xbf16>
    %188 = vector.shape_cast %187 : vector<1x512x64xbf16> to vector<512x64xbf16>
    %cst_81 = arith.constant dense<0.000000e+00> : vector<16x64xf32>
    %189 = tpu.matmul %186, %188, %cst_81 {dimension_numbers = #tpu.dot_dimension_numbers<[1], [0], [0], [1], [0, 0, 1, 1], [], []>} : vector<16x512xbf16>, vector<512x64xbf16>, vector<16x64xf32> -> vector<16x64xf32>
    %190 = arith.addf %176, %189 : vector<16x64xf32>
    %c0_82 = arith.constant 0 : index
    %c0_83 = arith.constant 0 : index
    %c1536 = arith.constant 1536 : index
    %191 = vector.load %arg12[%c0_82, %c0_83, %c1536] : memref<2x64x2048xbf16, #tpu.memory_space<vmem>>, vector<1x64x512xbf16>
    %192 = vector.shape_cast %191 : vector<1x64x512xbf16> to vector<64x512xbf16>
    %cst_84 = arith.constant dense<0.000000e+00> : vector<16x512xf32>
    %193 = tpu.matmul %149, %192, %cst_84 {dimension_numbers = #tpu.dot_dimension_numbers<[1], [0], [0], [1], [0, 0, 1, 1], [], []>} : vector<16x64xbf16>, vector<64x512xbf16>, vector<16x512xf32> -> vector<16x512xf32>
    %c0_85 = arith.constant 0 : index
    %c0_86 = arith.constant 0 : index
    %c1536_87 = arith.constant 1536 : index
    %194 = vector.load %arg13[%c0_85, %c0_86, %c1536_87] : memref<2x1x2048xf32, #tpu.memory_space<vmem>>, vector<1x1x512xf32>
    %195 = vector.shape_cast %194 : vector<1x1x512xf32> to vector<1x512xf32>
    %196 = vector.broadcast %195 : vector<1x512xf32> to vector<16x512xf32>
    %197 = arith.addf %193, %196 : vector<16x512xf32>
    %cst_88 = arith.constant 0.000000e+00 : f32
    %198 = vector.broadcast %cst_88 : f32 to vector<16x512xf32>
    %199 = arith.maximumf %197, %198 : vector<16x512xf32>
    %200 = arith.truncf %199 : vector<16x512xf32> to vector<16x512xbf16>
    %c0_89 = arith.constant 0 : index
    %c1536_90 = arith.constant 1536 : index
    %c0_91 = arith.constant 0 : index
    %201 = vector.load %arg14[%c0_89, %c1536_90, %c0_91] : memref<2x2048x64xbf16, #tpu.memory_space<vmem>>, vector<1x512x64xbf16>
    %202 = vector.shape_cast %201 : vector<1x512x64xbf16> to vector<512x64xbf16>
    %cst_92 = arith.constant dense<0.000000e+00> : vector<16x64xf32>
    %203 = tpu.matmul %200, %202, %cst_92 {dimension_numbers = #tpu.dot_dimension_numbers<[1], [0], [0], [1], [0, 0, 1, 1], [], []>} : vector<16x512xbf16>, vector<512x64xbf16>, vector<16x64xf32> -> vector<16x64xf32>
    %204 = arith.addf %190, %203 : vector<16x64xf32>
    %c0_93 = arith.constant 0 : index
    %c0_94 = arith.constant 0 : index
    %c0_95 = arith.constant 0 : index
    %205 = vector.load %arg15[%c0_93, %c0_94, %c0_95] : memref<2x1x64xf32, #tpu.memory_space<vmem>>, vector<1x1x64xf32>
    %206 = vector.shape_cast %205 : vector<1x1x64xf32> to vector<1x64xf32>
    %207 = vector.broadcast %206 : vector<1x64xf32> to vector<16x64xf32>
    %208 = arith.addf %204, %207 : vector<16x64xf32>
    %209 = arith.addf %148, %208 : vector<16x64xf32>
    %c0_96 = arith.constant 0 : index
    %c0_97 = arith.constant 0 : index
    %c0_98 = arith.constant 0 : index
    %210 = vector.load %arg18[%c0_96, %c0_97, %c0_98] : memref<2x1x64xf32, #tpu.memory_space<vmem>>, vector<1x1x64xf32>
    %211 = vector.shape_cast %210 : vector<1x1x64xf32> to vector<1x64xf32>
    %c0_99 = arith.constant 0 : index
    %c0_100 = arith.constant 0 : index
    %c0_101 = arith.constant 0 : index
    %212 = vector.load %arg19[%c0_99, %c0_100, %c0_101] : memref<2x1x64xf32, #tpu.memory_space<vmem>>, vector<1x1x64xf32>
    %213 = vector.shape_cast %212 : vector<1x1x64xf32> to vector<1x64xf32>
    %cst_102 = arith.constant dense<0.000000e+00> : vector<16xf32>
    %214 = vector.multi_reduction <add>, %209, %cst_102 [1] : vector<16x64xf32> to vector<16xf32>
    %215 = vector.shape_cast %214 : vector<16xf32> to vector<16x1xf32>
    %cst_103 = arith.constant 6.400000e+01 : f32
    %216 = vector.broadcast %cst_103 : f32 to vector<16x1xf32>
    %217 = arith.divf %215, %216 : vector<16x1xf32>
    %218 = vector.broadcast %217 : vector<16x1xf32> to vector<16x64xf32>
    %219 = arith.subf %209, %218 : vector<16x64xf32>
    %220 = arith.mulf %219, %219 : vector<16x64xf32>
    %cst_104 = arith.constant dense<0.000000e+00> : vector<16xf32>
    %221 = vector.multi_reduction <add>, %220, %cst_104 [1] : vector<16x64xf32> to vector<16xf32>
    %222 = vector.shape_cast %221 : vector<16xf32> to vector<16x1xf32>
    %cst_105 = arith.constant 6.400000e+01 : f32
    %223 = vector.broadcast %cst_105 : f32 to vector<16x1xf32>
    %224 = arith.divf %222, %223 : vector<16x1xf32>
    %cst_106 = arith.constant 9.99999974E-6 : f32
    %225 = vector.broadcast %cst_106 : f32 to vector<16x1xf32>
    %226 = arith.addf %224, %225 : vector<16x1xf32>
    %227 = math.rsqrt %226 : vector<16x1xf32>
    %228 = vector.broadcast %227 : vector<16x1xf32> to vector<16x64xf32>
    %229 = arith.mulf %219, %228 : vector<16x64xf32>
    %230 = vector.broadcast %211 : vector<1x64xf32> to vector<16x64xf32>
    %231 = arith.mulf %229, %230 : vector<16x64xf32>
    %232 = vector.broadcast %213 : vector<1x64xf32> to vector<16x64xf32>
    %233 = arith.addf %231, %232 : vector<16x64xf32>
    %234 = arith.truncf %233 : vector<16x64xf32> to vector<16x64xbf16>
    %c1 = arith.constant 1 : index
    %c0_107 = arith.constant 0 : index
    %c0_108 = arith.constant 0 : index
    %235 = vector.load %arg4[%c1, %c0_107, %c0_108] : memref<2x64x64xbf16, #tpu.memory_space<vmem>>, vector<1x64x64xbf16>
    %236 = vector.shape_cast %235 : vector<1x64x64xbf16> to vector<64x64xbf16>
    %cst_109 = arith.constant dense<0.000000e+00> : vector<16x64xf32>
    %237 = tpu.matmul %234, %236, %cst_109 {dimension_numbers = #tpu.dot_dimension_numbers<[1], [0], [0], [1], [0, 0, 1, 1], [], []>} : vector<16x64xbf16>, vector<64x64xbf16>, vector<16x64xf32> -> vector<16x64xf32>
    %c1_110 = arith.constant 1 : index
    %c0_111 = arith.constant 0 : index
    %c0_112 = arith.constant 0 : index
    %238 = vector.load %arg5[%c1_110, %c0_111, %c0_112] : memref<2x1x64xf32, #tpu.memory_space<vmem>>, vector<1x1x64xf32>
    %239 = vector.shape_cast %238 : vector<1x1x64xf32> to vector<1x64xf32>
    %240 = vector.broadcast %239 : vector<1x64xf32> to vector<16x64xf32>
    %241 = arith.addf %237, %240 : vector<16x64xf32>
    %242 = arith.truncf %241 : vector<16x64xf32> to vector<16x64xbf16>
    %c1_113 = arith.constant 1 : index
    %c0_114 = arith.constant 0 : index
    %c0_115 = arith.constant 0 : index
    %243 = vector.load %arg6[%c1_113, %c0_114, %c0_115] : memref<2x64x64xbf16, #tpu.memory_space<vmem>>, vector<1x64x64xbf16>
    %244 = vector.shape_cast %243 : vector<1x64x64xbf16> to vector<64x64xbf16>
    %cst_116 = arith.constant dense<0.000000e+00> : vector<16x64xf32>
    %245 = tpu.matmul %234, %244, %cst_116 {dimension_numbers = #tpu.dot_dimension_numbers<[1], [0], [0], [1], [0, 0, 1, 1], [], []>} : vector<16x64xbf16>, vector<64x64xbf16>, vector<16x64xf32> -> vector<16x64xf32>
    %c1_117 = arith.constant 1 : index
    %c0_118 = arith.constant 0 : index
    %c0_119 = arith.constant 0 : index
    %246 = vector.load %arg7[%c1_117, %c0_118, %c0_119] : memref<2x1x64xf32, #tpu.memory_space<vmem>>, vector<1x1x64xf32>
    %247 = vector.shape_cast %246 : vector<1x1x64xf32> to vector<1x64xf32>
    %248 = vector.broadcast %247 : vector<1x64xf32> to vector<16x64xf32>
    %249 = arith.addf %245, %248 : vector<16x64xf32>
    %250 = arith.truncf %249 : vector<16x64xf32> to vector<16x64xbf16>
    %c1_120 = arith.constant 1 : index
    %c0_121 = arith.constant 0 : index
    %c0_122 = arith.constant 0 : index
    %251 = vector.load %arg8[%c1_120, %c0_121, %c0_122] : memref<2x64x64xbf16, #tpu.memory_space<vmem>>, vector<1x64x64xbf16>
    %252 = vector.shape_cast %251 : vector<1x64x64xbf16> to vector<64x64xbf16>
    %cst_123 = arith.constant dense<0.000000e+00> : vector<16x64xf32>
    %253 = tpu.matmul %234, %252, %cst_123 {dimension_numbers = #tpu.dot_dimension_numbers<[1], [0], [0], [1], [0, 0, 1, 1], [], []>} : vector<16x64xbf16>, vector<64x64xbf16>, vector<16x64xf32> -> vector<16x64xf32>
    %c1_124 = arith.constant 1 : index
    %c0_125 = arith.constant 0 : index
    %c0_126 = arith.constant 0 : index
    %254 = vector.load %arg9[%c1_124, %c0_125, %c0_126] : memref<2x1x64xf32, #tpu.memory_space<vmem>>, vector<1x1x64xf32>
    %255 = vector.shape_cast %254 : vector<1x1x64xf32> to vector<1x64xf32>
    %256 = vector.broadcast %255 : vector<1x64xf32> to vector<16x64xf32>
    %257 = arith.addf %253, %256 : vector<16x64xf32>
    %258 = arith.truncf %257 : vector<16x64xf32> to vector<16x64xbf16>
    %259 = vector.extract_strided_slice %242 {offsets = [0, 0], sizes = [16, 8], strides = [1, 1]} : vector<16x64xbf16> to vector<16x8xbf16>
    %260 = vector.shape_cast %259 : vector<16x8xbf16> to vector<1x2x8x8xbf16>
    %261 = vector.extract_strided_slice %242 {offsets = [0, 8], sizes = [16, 8], strides = [1, 1]} : vector<16x64xbf16> to vector<16x8xbf16>
    %262 = vector.shape_cast %261 : vector<16x8xbf16> to vector<1x2x8x8xbf16>
    %263 = vector.extract_strided_slice %242 {offsets = [0, 16], sizes = [16, 8], strides = [1, 1]} : vector<16x64xbf16> to vector<16x8xbf16>
    %264 = vector.shape_cast %263 : vector<16x8xbf16> to vector<1x2x8x8xbf16>
    %265 = vector.extract_strided_slice %242 {offsets = [0, 24], sizes = [16, 8], strides = [1, 1]} : vector<16x64xbf16> to vector<16x8xbf16>
    %266 = vector.shape_cast %265 : vector<16x8xbf16> to vector<1x2x8x8xbf16>
    %267 = vector.extract_strided_slice %242 {offsets = [0, 32], sizes = [16, 8], strides = [1, 1]} : vector<16x64xbf16> to vector<16x8xbf16>
    %268 = vector.shape_cast %267 : vector<16x8xbf16> to vector<1x2x8x8xbf16>
    %269 = vector.extract_strided_slice %242 {offsets = [0, 40], sizes = [16, 8], strides = [1, 1]} : vector<16x64xbf16> to vector<16x8xbf16>
    %270 = vector.shape_cast %269 : vector<16x8xbf16> to vector<1x2x8x8xbf16>
    %271 = vector.extract_strided_slice %242 {offsets = [0, 48], sizes = [16, 8], strides = [1, 1]} : vector<16x64xbf16> to vector<16x8xbf16>
    %272 = vector.shape_cast %271 : vector<16x8xbf16> to vector<1x2x8x8xbf16>
    %273 = vector.extract_strided_slice %242 {offsets = [0, 56], sizes = [16, 8], strides = [1, 1]} : vector<16x64xbf16> to vector<16x8xbf16>
    %274 = vector.shape_cast %273 : vector<16x8xbf16> to vector<1x2x8x8xbf16>
    %275 = tpu.concatenate %260, %262, %264, %266, %268, %270, %272, %274 in 0 : vector<1x2x8x8xbf16>, vector<1x2x8x8xbf16>, vector<1x2x8x8xbf16>, vector<1x2x8x8xbf16>, vector<1x2x8x8xbf16>, vector<1x2x8x8xbf16>, vector<1x2x8x8xbf16>, vector<1x2x8x8xbf16> -> vector<8x2x8x8xbf16>
    %276 = vector.shape_cast %275 : vector<8x2x8x8xbf16> to vector<16x8x8xbf16>
    %277 = vector.extract_strided_slice %250 {offsets = [0, 0], sizes = [16, 8], strides = [1, 1]} : vector<16x64xbf16> to vector<16x8xbf16>
    %278 = vector.shape_cast %277 : vector<16x8xbf16> to vector<1x2x8x8xbf16>
    %279 = vector.extract_strided_slice %250 {offsets = [0, 8], sizes = [16, 8], strides = [1, 1]} : vector<16x64xbf16> to vector<16x8xbf16>
    %280 = vector.shape_cast %279 : vector<16x8xbf16> to vector<1x2x8x8xbf16>
    %281 = vector.extract_strided_slice %250 {offsets = [0, 16], sizes = [16, 8], strides = [1, 1]} : vector<16x64xbf16> to vector<16x8xbf16>
    %282 = vector.shape_cast %281 : vector<16x8xbf16> to vector<1x2x8x8xbf16>
    %283 = vector.extract_strided_slice %250 {offsets = [0, 24], sizes = [16, 8], strides = [1, 1]} : vector<16x64xbf16> to vector<16x8xbf16>
    %284 = vector.shape_cast %283 : vector<16x8xbf16> to vector<1x2x8x8xbf16>
    %285 = vector.extract_strided_slice %250 {offsets = [0, 32], sizes = [16, 8], strides = [1, 1]} : vector<16x64xbf16> to vector<16x8xbf16>
    %286 = vector.shape_cast %285 : vector<16x8xbf16> to vector<1x2x8x8xbf16>
    %287 = vector.extract_strided_slice %250 {offsets = [0, 40], sizes = [16, 8], strides = [1, 1]} : vector<16x64xbf16> to vector<16x8xbf16>
    %288 = vector.shape_cast %287 : vector<16x8xbf16> to vector<1x2x8x8xbf16>
    %289 = vector.extract_strided_slice %250 {offsets = [0, 48], sizes = [16, 8], strides = [1, 1]} : vector<16x64xbf16> to vector<16x8xbf16>
    %290 = vector.shape_cast %289 : vector<16x8xbf16> to vector<1x2x8x8xbf16>
    %291 = vector.extract_strided_slice %250 {offsets = [0, 56], sizes = [16, 8], strides = [1, 1]} : vector<16x64xbf16> to vector<16x8xbf16>
    %292 = vector.shape_cast %291 : vector<16x8xbf16> to vector<1x2x8x8xbf16>
    %293 = tpu.concatenate %278, %280, %282, %284, %286, %288, %290, %292 in 0 : vector<1x2x8x8xbf16>, vector<1x2x8x8xbf16>, vector<1x2x8x8xbf16>, vector<1x2x8x8xbf16>, vector<1x2x8x8xbf16>, vector<1x2x8x8xbf16>, vector<1x2x8x8xbf16>, vector<1x2x8x8xbf16> -> vector<8x2x8x8xbf16>
    %294 = vector.shape_cast %293 : vector<8x2x8x8xbf16> to vector<16x8x8xbf16>
    %295 = vector.extract_strided_slice %258 {offsets = [0, 0], sizes = [16, 8], strides = [1, 1]} : vector<16x64xbf16> to vector<16x8xbf16>
    %296 = vector.shape_cast %295 : vector<16x8xbf16> to vector<1x2x8x8xbf16>
    %297 = vector.extract_strided_slice %258 {offsets = [0, 8], sizes = [16, 8], strides = [1, 1]} : vector<16x64xbf16> to vector<16x8xbf16>
    %298 = vector.shape_cast %297 : vector<16x8xbf16> to vector<1x2x8x8xbf16>
    %299 = vector.extract_strided_slice %258 {offsets = [0, 16], sizes = [16, 8], strides = [1, 1]} : vector<16x64xbf16> to vector<16x8xbf16>
    %300 = vector.shape_cast %299 : vector<16x8xbf16> to vector<1x2x8x8xbf16>
    %301 = vector.extract_strided_slice %258 {offsets = [0, 24], sizes = [16, 8], strides = [1, 1]} : vector<16x64xbf16> to vector<16x8xbf16>
    %302 = vector.shape_cast %301 : vector<16x8xbf16> to vector<1x2x8x8xbf16>
    %303 = vector.extract_strided_slice %258 {offsets = [0, 32], sizes = [16, 8], strides = [1, 1]} : vector<16x64xbf16> to vector<16x8xbf16>
    %304 = vector.shape_cast %303 : vector<16x8xbf16> to vector<1x2x8x8xbf16>
    %305 = vector.extract_strided_slice %258 {offsets = [0, 40], sizes = [16, 8], strides = [1, 1]} : vector<16x64xbf16> to vector<16x8xbf16>
    %306 = vector.shape_cast %305 : vector<16x8xbf16> to vector<1x2x8x8xbf16>
    %307 = vector.extract_strided_slice %258 {offsets = [0, 48], sizes = [16, 8], strides = [1, 1]} : vector<16x64xbf16> to vector<16x8xbf16>
    %308 = vector.shape_cast %307 : vector<16x8xbf16> to vector<1x2x8x8xbf16>
    %309 = vector.extract_strided_slice %258 {offsets = [0, 56], sizes = [16, 8], strides = [1, 1]} : vector<16x64xbf16> to vector<16x8xbf16>
    %310 = vector.shape_cast %309 : vector<16x8xbf16> to vector<1x2x8x8xbf16>
    %311 = tpu.concatenate %296, %298, %300, %302, %304, %306, %308, %310 in 0 : vector<1x2x8x8xbf16>, vector<1x2x8x8xbf16>, vector<1x2x8x8xbf16>, vector<1x2x8x8xbf16>, vector<1x2x8x8xbf16>, vector<1x2x8x8xbf16>, vector<1x2x8x8xbf16>, vector<1x2x8x8xbf16> -> vector<8x2x8x8xbf16>
    %312 = vector.shape_cast %311 : vector<8x2x8x8xbf16> to vector<16x8x8xbf16>
    "tpu.trace_start"() <{level = 10 : i32, message = "bqd,bkd->bqk"}> : () -> ()
    %cst_127 = arith.constant dense<0.000000e+00> : vector<16x8x8xf32>
    %313 = tpu.matmul %276, %294, %cst_127 {dimension_numbers = #tpu.dot_dimension_numbers<[2], [2], [1], [1], [0, 0, 0, 1, 1, 1], [0], [0]>} : vector<16x8x8xbf16>, vector<16x8x8xbf16>, vector<16x8x8xf32> -> vector<16x8x8xf32>
    "tpu.trace_stop"() : () -> ()
    %cst_128 = arith.constant dense<0xFF800000> : vector<16x8xf32>
    %314 = vector.multi_reduction <maximumf>, %313, %cst_128 [2] : vector<16x8x8xf32> to vector<16x8xf32>
    %315 = vector.shape_cast %314 : vector<16x8xf32> to vector<16x8x1xf32>
    %316 = vector.broadcast %315 : vector<16x8x1xf32> to vector<16x8x8xf32>
    %317 = arith.subf %313, %316 : vector<16x8x8xf32>
    %318 = math.exp %317 : vector<16x8x8xf32>
    %cst_129 = arith.constant dense<0.000000e+00> : vector<16x8xf32>
    %319 = vector.multi_reduction <add>, %318, %cst_129 [2] : vector<16x8x8xf32> to vector<16x8xf32>
    %320 = vector.shape_cast %319 : vector<16x8xf32> to vector<16x8x1xf32>
    %321 = tpu.reciprocal %320 {approx = true} : vector<16x8x1xf32> -> vector<16x8x1xf32>
    %322 = vector.broadcast %321 : vector<16x8x1xf32> to vector<16x8x8xf32>
    %323 = arith.mulf %318, %322 : vector<16x8x8xf32>
    %324 = arith.truncf %323 : vector<16x8x8xf32> to vector<16x8x8xbf16>
    "tpu.trace_start"() <{level = 10 : i32, message = "bqk,bkd->bqd"}> : () -> ()
    %cst_130 = arith.constant dense<0.000000e+00> : vector<16x8x8xf32>
    %325 = tpu.matmul %324, %312, %cst_130 {dimension_numbers = #tpu.dot_dimension_numbers<[2], [1], [1], [2], [0, 0, 0, 1, 1, 2], [0], [0]>} : vector<16x8x8xbf16>, vector<16x8x8xbf16>, vector<16x8x8xf32> -> vector<16x8x8xf32>
    "tpu.trace_stop"() : () -> ()
    %326 = vector.shape_cast %325 : vector<16x8x8xf32> to vector<8x16x8xf32>
    %327 = vector.extract_strided_slice %326 {offsets = [0, 0, 0], sizes = [1, 16, 8], strides = [1, 1, 1]} : vector<8x16x8xf32> to vector<1x16x8xf32>
    %328 = vector.shape_cast %327 : vector<1x16x8xf32> to vector<16x8xf32>
    %329 = vector.extract_strided_slice %326 {offsets = [1, 0, 0], sizes = [1, 16, 8], strides = [1, 1, 1]} : vector<8x16x8xf32> to vector<1x16x8xf32>
    %330 = vector.shape_cast %329 : vector<1x16x8xf32> to vector<16x8xf32>
    %331 = vector.extract_strided_slice %326 {offsets = [2, 0, 0], sizes = [1, 16, 8], strides = [1, 1, 1]} : vector<8x16x8xf32> to vector<1x16x8xf32>
    %332 = vector.shape_cast %331 : vector<1x16x8xf32> to vector<16x8xf32>
    %333 = vector.extract_strided_slice %326 {offsets = [3, 0, 0], sizes = [1, 16, 8], strides = [1, 1, 1]} : vector<8x16x8xf32> to vector<1x16x8xf32>
    %334 = vector.shape_cast %333 : vector<1x16x8xf32> to vector<16x8xf32>
    %335 = vector.extract_strided_slice %326 {offsets = [4, 0, 0], sizes = [1, 16, 8], strides = [1, 1, 1]} : vector<8x16x8xf32> to vector<1x16x8xf32>
    %336 = vector.shape_cast %335 : vector<1x16x8xf32> to vector<16x8xf32>
    %337 = vector.extract_strided_slice %326 {offsets = [5, 0, 0], sizes = [1, 16, 8], strides = [1, 1, 1]} : vector<8x16x8xf32> to vector<1x16x8xf32>
    %338 = vector.shape_cast %337 : vector<1x16x8xf32> to vector<16x8xf32>
    %339 = vector.extract_strided_slice %326 {offsets = [6, 0, 0], sizes = [1, 16, 8], strides = [1, 1, 1]} : vector<8x16x8xf32> to vector<1x16x8xf32>
    %340 = vector.shape_cast %339 : vector<1x16x8xf32> to vector<16x8xf32>
    %341 = vector.extract_strided_slice %326 {offsets = [7, 0, 0], sizes = [1, 16, 8], strides = [1, 1, 1]} : vector<8x16x8xf32> to vector<1x16x8xf32>
    %342 = vector.shape_cast %341 : vector<1x16x8xf32> to vector<16x8xf32>
    %343 = tpu.concatenate %328, %330, %332, %334, %336, %338, %340, %342 in 1 : vector<16x8xf32>, vector<16x8xf32>, vector<16x8xf32>, vector<16x8xf32>, vector<16x8xf32>, vector<16x8xf32>, vector<16x8xf32>, vector<16x8xf32> -> vector<16x64xf32>
    %344 = arith.truncf %343 : vector<16x64xf32> to vector<16x64xbf16>
    %c1_131 = arith.constant 1 : index
    %c0_132 = arith.constant 0 : index
    %c0_133 = arith.constant 0 : index
    %345 = vector.load %arg10[%c1_131, %c0_132, %c0_133] : memref<2x64x64xbf16, #tpu.memory_space<vmem>>, vector<1x64x64xbf16>
    %346 = vector.shape_cast %345 : vector<1x64x64xbf16> to vector<64x64xbf16>
    %cst_134 = arith.constant dense<0.000000e+00> : vector<16x64xf32>
    %347 = tpu.matmul %344, %346, %cst_134 {dimension_numbers = #tpu.dot_dimension_numbers<[1], [0], [0], [1], [0, 0, 1, 1], [], []>} : vector<16x64xbf16>, vector<64x64xbf16>, vector<16x64xf32> -> vector<16x64xf32>
    %c1_135 = arith.constant 1 : index
    %c0_136 = arith.constant 0 : index
    %c0_137 = arith.constant 0 : index
    %348 = vector.load %arg11[%c1_135, %c0_136, %c0_137] : memref<2x1x64xf32, #tpu.memory_space<vmem>>, vector<1x1x64xf32>
    %349 = vector.shape_cast %348 : vector<1x1x64xf32> to vector<1x64xf32>
    %350 = vector.broadcast %349 : vector<1x64xf32> to vector<16x64xf32>
    %351 = arith.addf %347, %350 : vector<16x64xf32>
    %352 = arith.addf %233, %351 : vector<16x64xf32>
    %353 = vector.shape_cast %352 : vector<16x64xf32> to vector<2x8x64xf32>
    %354 = vector.extract_strided_slice %353 {offsets = [0, 0, 0], sizes = [2, 1, 64], strides = [1, 1, 1]} : vector<2x8x64xf32> to vector<2x1x64xf32>
    %355 = vector.shape_cast %354 : vector<2x1x64xf32> to vector<2x64xf32>
    %c1_138 = arith.constant 1 : index
    %c0_139 = arith.constant 0 : index
    %c0_140 = arith.constant 0 : index
    %356 = vector.load %arg16[%c1_138, %c0_139, %c0_140] : memref<2x1x64xf32, #tpu.memory_space<vmem>>, vector<1x1x64xf32>
    %357 = vector.shape_cast %356 : vector<1x1x64xf32> to vector<1x64xf32>
    %c1_141 = arith.constant 1 : index
    %c0_142 = arith.constant 0 : index
    %c0_143 = arith.constant 0 : index
    %358 = vector.load %arg17[%c1_141, %c0_142, %c0_143] : memref<2x1x64xf32, #tpu.memory_space<vmem>>, vector<1x1x64xf32>
    %359 = vector.shape_cast %358 : vector<1x1x64xf32> to vector<1x64xf32>
    %cst_144 = arith.constant dense<0.000000e+00> : vector<2xf32>
    %360 = vector.multi_reduction <add>, %355, %cst_144 [1] : vector<2x64xf32> to vector<2xf32>
    %361 = vector.shape_cast %360 : vector<2xf32> to vector<2x1xf32>
    %cst_145 = arith.constant 6.400000e+01 : f32
    %362 = vector.broadcast %cst_145 : f32 to vector<2x1xf32>
    %363 = arith.divf %361, %362 : vector<2x1xf32>
    %364 = vector.broadcast %363 : vector<2x1xf32> to vector<2x64xf32>
    %365 = arith.subf %355, %364 : vector<2x64xf32>
    %366 = arith.mulf %365, %365 : vector<2x64xf32>
    %cst_146 = arith.constant dense<0.000000e+00> : vector<2xf32>
    %367 = vector.multi_reduction <add>, %366, %cst_146 [1] : vector<2x64xf32> to vector<2xf32>
    %368 = vector.shape_cast %367 : vector<2xf32> to vector<2x1xf32>
    %cst_147 = arith.constant 6.400000e+01 : f32
    %369 = vector.broadcast %cst_147 : f32 to vector<2x1xf32>
    %370 = arith.divf %368, %369 : vector<2x1xf32>
    %cst_148 = arith.constant 9.99999974E-6 : f32
    %371 = vector.broadcast %cst_148 : f32 to vector<2x1xf32>
    %372 = arith.addf %370, %371 : vector<2x1xf32>
    %373 = math.rsqrt %372 : vector<2x1xf32>
    %374 = vector.broadcast %373 : vector<2x1xf32> to vector<2x64xf32>
    %375 = arith.mulf %365, %374 : vector<2x64xf32>
    %376 = vector.broadcast %357 : vector<1x64xf32> to vector<2x64xf32>
    %377 = arith.mulf %375, %376 : vector<2x64xf32>
    %378 = vector.broadcast %359 : vector<1x64xf32> to vector<2x64xf32>
    %379 = arith.addf %377, %378 : vector<2x64xf32>
    %380 = arith.truncf %379 : vector<2x64xf32> to vector<2x64xbf16>
    %c1_149 = arith.constant 1 : index
    %c0_150 = arith.constant 0 : index
    %c0_151 = arith.constant 0 : index
    %381 = vector.load %arg12[%c1_149, %c0_150, %c0_151] : memref<2x64x2048xbf16, #tpu.memory_space<vmem>>, vector<1x64x512xbf16>
    %382 = vector.shape_cast %381 : vector<1x64x512xbf16> to vector<64x512xbf16>
    %cst_152 = arith.constant dense<0.000000e+00> : vector<2x512xf32>
    %383 = tpu.matmul %380, %382, %cst_152 {dimension_numbers = #tpu.dot_dimension_numbers<[1], [0], [0], [1], [0, 0, 1, 1], [], []>} : vector<2x64xbf16>, vector<64x512xbf16>, vector<2x512xf32> -> vector<2x512xf32>
    %c1_153 = arith.constant 1 : index
    %c0_154 = arith.constant 0 : index
    %c0_155 = arith.constant 0 : index
    %384 = vector.load %arg13[%c1_153, %c0_154, %c0_155] : memref<2x1x2048xf32, #tpu.memory_space<vmem>>, vector<1x1x512xf32>
    %385 = vector.shape_cast %384 : vector<1x1x512xf32> to vector<1x512xf32>
    %386 = vector.broadcast %385 : vector<1x512xf32> to vector<2x512xf32>
    %387 = arith.addf %383, %386 : vector<2x512xf32>
    %cst_156 = arith.constant 0.000000e+00 : f32
    %388 = vector.broadcast %cst_156 : f32 to vector<2x512xf32>
    %389 = arith.maximumf %387, %388 : vector<2x512xf32>
    %390 = arith.truncf %389 : vector<2x512xf32> to vector<2x512xbf16>
    %c1_157 = arith.constant 1 : index
    %c0_158 = arith.constant 0 : index
    %c0_159 = arith.constant 0 : index
    %391 = vector.load %arg14[%c1_157, %c0_158, %c0_159] : memref<2x2048x64xbf16, #tpu.memory_space<vmem>>, vector<1x512x64xbf16>
    %392 = vector.shape_cast %391 : vector<1x512x64xbf16> to vector<512x64xbf16>
    %cst_160 = arith.constant dense<0.000000e+00> : vector<2x64xf32>
    %393 = tpu.matmul %390, %392, %cst_160 {dimension_numbers = #tpu.dot_dimension_numbers<[1], [0], [0], [1], [0, 0, 1, 1], [], []>} : vector<2x512xbf16>, vector<512x64xbf16>, vector<2x64xf32> -> vector<2x64xf32>
    %c1_161 = arith.constant 1 : index
    %c0_162 = arith.constant 0 : index
    %c512_163 = arith.constant 512 : index
    %394 = vector.load %arg12[%c1_161, %c0_162, %c512_163] : memref<2x64x2048xbf16, #tpu.memory_space<vmem>>, vector<1x64x512xbf16>
    %395 = vector.shape_cast %394 : vector<1x64x512xbf16> to vector<64x512xbf16>
    %cst_164 = arith.constant dense<0.000000e+00> : vector<2x512xf32>
    %396 = tpu.matmul %380, %395, %cst_164 {dimension_numbers = #tpu.dot_dimension_numbers<[1], [0], [0], [1], [0, 0, 1, 1], [], []>} : vector<2x64xbf16>, vector<64x512xbf16>, vector<2x512xf32> -> vector<2x512xf32>
    %c1_165 = arith.constant 1 : index
    %c0_166 = arith.constant 0 : index
    %c512_167 = arith.constant 512 : index
    %397 = vector.load %arg13[%c1_165, %c0_166, %c512_167] : memref<2x1x2048xf32, #tpu.memory_space<vmem>>, vector<1x1x512xf32>
    %398 = vector.shape_cast %397 : vector<1x1x512xf32> to vector<1x512xf32>
    %399 = vector.broadcast %398 : vector<1x512xf32> to vector<2x512xf32>
    %400 = arith.addf %396, %399 : vector<2x512xf32>
    %cst_168 = arith.constant 0.000000e+00 : f32
    %401 = vector.broadcast %cst_168 : f32 to vector<2x512xf32>
    %402 = arith.maximumf %400, %401 : vector<2x512xf32>
    %403 = arith.truncf %402 : vector<2x512xf32> to vector<2x512xbf16>
    %c1_169 = arith.constant 1 : index
    %c512_170 = arith.constant 512 : index
    %c0_171 = arith.constant 0 : index
    %404 = vector.load %arg14[%c1_169, %c512_170, %c0_171] : memref<2x2048x64xbf16, #tpu.memory_space<vmem>>, vector<1x512x64xbf16>
    %405 = vector.shape_cast %404 : vector<1x512x64xbf16> to vector<512x64xbf16>
    %cst_172 = arith.constant dense<0.000000e+00> : vector<2x64xf32>
    %406 = tpu.matmul %403, %405, %cst_172 {dimension_numbers = #tpu.dot_dimension_numbers<[1], [0], [0], [1], [0, 0, 1, 1], [], []>} : vector<2x512xbf16>, vector<512x64xbf16>, vector<2x64xf32> -> vector<2x64xf32>
    %407 = arith.addf %393, %406 : vector<2x64xf32>
    %c1_173 = arith.constant 1 : index
    %c0_174 = arith.constant 0 : index
    %c1024_175 = arith.constant 1024 : index
    %408 = vector.load %arg12[%c1_173, %c0_174, %c1024_175] : memref<2x64x2048xbf16, #tpu.memory_space<vmem>>, vector<1x64x512xbf16>
    %409 = vector.shape_cast %408 : vector<1x64x512xbf16> to vector<64x512xbf16>
    %cst_176 = arith.constant dense<0.000000e+00> : vector<2x512xf32>
    %410 = tpu.matmul %380, %409, %cst_176 {dimension_numbers = #tpu.dot_dimension_numbers<[1], [0], [0], [1], [0, 0, 1, 1], [], []>} : vector<2x64xbf16>, vector<64x512xbf16>, vector<2x512xf32> -> vector<2x512xf32>
    %c1_177 = arith.constant 1 : index
    %c0_178 = arith.constant 0 : index
    %c1024_179 = arith.constant 1024 : index
    %411 = vector.load %arg13[%c1_177, %c0_178, %c1024_179] : memref<2x1x2048xf32, #tpu.memory_space<vmem>>, vector<1x1x512xf32>
    %412 = vector.shape_cast %411 : vector<1x1x512xf32> to vector<1x512xf32>
    %413 = vector.broadcast %412 : vector<1x512xf32> to vector<2x512xf32>
    %414 = arith.addf %410, %413 : vector<2x512xf32>
    %cst_180 = arith.constant 0.000000e+00 : f32
    %415 = vector.broadcast %cst_180 : f32 to vector<2x512xf32>
    %416 = arith.maximumf %414, %415 : vector<2x512xf32>
    %417 = arith.truncf %416 : vector<2x512xf32> to vector<2x512xbf16>
    %c1_181 = arith.constant 1 : index
    %c1024_182 = arith.constant 1024 : index
    %c0_183 = arith.constant 0 : index
    %418 = vector.load %arg14[%c1_181, %c1024_182, %c0_183] : memref<2x2048x64xbf16, #tpu.memory_space<vmem>>, vector<1x512x64xbf16>
    %419 = vector.shape_cast %418 : vector<1x512x64xbf16> to vector<512x64xbf16>
    %cst_184 = arith.constant dense<0.000000e+00> : vector<2x64xf32>
    %420 = tpu.matmul %417, %419, %cst_184 {dimension_numbers = #tpu.dot_dimension_numbers<[1], [0], [0], [1], [0, 0, 1, 1], [], []>} : vector<2x512xbf16>, vector<512x64xbf16>, vector<2x64xf32> -> vector<2x64xf32>
    %421 = arith.addf %407, %420 : vector<2x64xf32>
    %c1_185 = arith.constant 1 : index
    %c0_186 = arith.constant 0 : index
    %c1536_187 = arith.constant 1536 : index
    %422 = vector.load %arg12[%c1_185, %c0_186, %c1536_187] : memref<2x64x2048xbf16, #tpu.memory_space<vmem>>, vector<1x64x512xbf16>
    %423 = vector.shape_cast %422 : vector<1x64x512xbf16> to vector<64x512xbf16>
    %cst_188 = arith.constant dense<0.000000e+00> : vector<2x512xf32>
    %424 = tpu.matmul %380, %423, %cst_188 {dimension_numbers = #tpu.dot_dimension_numbers<[1], [0], [0], [1], [0, 0, 1, 1], [], []>} : vector<2x64xbf16>, vector<64x512xbf16>, vector<2x512xf32> -> vector<2x512xf32>
    %c1_189 = arith.constant 1 : index
    %c0_190 = arith.constant 0 : index
    %c1536_191 = arith.constant 1536 : index
    %425 = vector.load %arg13[%c1_189, %c0_190, %c1536_191] : memref<2x1x2048xf32, #tpu.memory_space<vmem>>, vector<1x1x512xf32>
    %426 = vector.shape_cast %425 : vector<1x1x512xf32> to vector<1x512xf32>
    %427 = vector.broadcast %426 : vector<1x512xf32> to vector<2x512xf32>
    %428 = arith.addf %424, %427 : vector<2x512xf32>
    %cst_192 = arith.constant 0.000000e+00 : f32
    %429 = vector.broadcast %cst_192 : f32 to vector<2x512xf32>
    %430 = arith.maximumf %428, %429 : vector<2x512xf32>
    %431 = arith.truncf %430 : vector<2x512xf32> to vector<2x512xbf16>
    %c1_193 = arith.constant 1 : index
    %c1536_194 = arith.constant 1536 : index
    %c0_195 = arith.constant 0 : index
    %432 = vector.load %arg14[%c1_193, %c1536_194, %c0_195] : memref<2x2048x64xbf16, #tpu.memory_space<vmem>>, vector<1x512x64xbf16>
    %433 = vector.shape_cast %432 : vector<1x512x64xbf16> to vector<512x64xbf16>
    %cst_196 = arith.constant dense<0.000000e+00> : vector<2x64xf32>
    %434 = tpu.matmul %431, %433, %cst_196 {dimension_numbers = #tpu.dot_dimension_numbers<[1], [0], [0], [1], [0, 0, 1, 1], [], []>} : vector<2x512xbf16>, vector<512x64xbf16>, vector<2x64xf32> -> vector<2x64xf32>
    %435 = arith.addf %421, %434 : vector<2x64xf32>
    %c1_197 = arith.constant 1 : index
    %c0_198 = arith.constant 0 : index
    %c0_199 = arith.constant 0 : index
    %436 = vector.load %arg15[%c1_197, %c0_198, %c0_199] : memref<2x1x64xf32, #tpu.memory_space<vmem>>, vector<1x1x64xf32>
    %437 = vector.shape_cast %436 : vector<1x1x64xf32> to vector<1x64xf32>
    %438 = vector.broadcast %437 : vector<1x64xf32> to vector<2x64xf32>
    %439 = arith.addf %435, %438 : vector<2x64xf32>
    %440 = arith.addf %379, %439 : vector<2x64xf32>
    %c1_200 = arith.constant 1 : index
    %c0_201 = arith.constant 0 : index
    %c0_202 = arith.constant 0 : index
    %441 = vector.load %arg18[%c1_200, %c0_201, %c0_202] : memref<2x1x64xf32, #tpu.memory_space<vmem>>, vector<1x1x64xf32>
    %442 = vector.shape_cast %441 : vector<1x1x64xf32> to vector<1x64xf32>
    %c1_203 = arith.constant 1 : index
    %c0_204 = arith.constant 0 : index
    %c0_205 = arith.constant 0 : index
    %443 = vector.load %arg19[%c1_203, %c0_204, %c0_205] : memref<2x1x64xf32, #tpu.memory_space<vmem>>, vector<1x1x64xf32>
    %444 = vector.shape_cast %443 : vector<1x1x64xf32> to vector<1x64xf32>
    %cst_206 = arith.constant dense<0.000000e+00> : vector<2xf32>
    %445 = vector.multi_reduction <add>, %440, %cst_206 [1] : vector<2x64xf32> to vector<2xf32>
    %446 = vector.shape_cast %445 : vector<2xf32> to vector<2x1xf32>
    %cst_207 = arith.constant 6.400000e+01 : f32
    %447 = vector.broadcast %cst_207 : f32 to vector<2x1xf32>
    %448 = arith.divf %446, %447 : vector<2x1xf32>
    %449 = vector.broadcast %448 : vector<2x1xf32> to vector<2x64xf32>
    %450 = arith.subf %440, %449 : vector<2x64xf32>
    %451 = arith.mulf %450, %450 : vector<2x64xf32>
    %cst_208 = arith.constant dense<0.000000e+00> : vector<2xf32>
    %452 = vector.multi_reduction <add>, %451, %cst_208 [1] : vector<2x64xf32> to vector<2xf32>
    %453 = vector.shape_cast %452 : vector<2xf32> to vector<2x1xf32>
    %cst_209 = arith.constant 6.400000e+01 : f32
    %454 = vector.broadcast %cst_209 : f32 to vector<2x1xf32>
    %455 = arith.divf %453, %454 : vector<2x1xf32>
    %cst_210 = arith.constant 9.99999974E-6 : f32
    %456 = vector.broadcast %cst_210 : f32 to vector<2x1xf32>
    %457 = arith.addf %455, %456 : vector<2x1xf32>
    %458 = math.rsqrt %457 : vector<2x1xf32>
    %459 = vector.broadcast %458 : vector<2x1xf32> to vector<2x64xf32>
    %460 = arith.mulf %450, %459 : vector<2x64xf32>
    %461 = vector.broadcast %442 : vector<1x64xf32> to vector<2x64xf32>
    %462 = arith.mulf %460, %461 : vector<2x64xf32>
    %463 = vector.broadcast %444 : vector<1x64xf32> to vector<2x64xf32>
    %464 = arith.addf %462, %463 : vector<2x64xf32>
    %465 = arith.truncf %464 : vector<2x64xf32> to vector<2x64xbf16>
    %c0_211 = arith.constant 0 : index
    %c0_212 = arith.constant 0 : index
    %466 = vector.load %arg20[%c0_211, %c0_212] : memref<64x8xbf16, #tpu.memory_space<vmem>>, vector<64x8xbf16>
    %cst_213 = arith.constant dense<0.000000e+00> : vector<2x8xf32>
    %467 = tpu.matmul %465, %466, %cst_213 {dimension_numbers = #tpu.dot_dimension_numbers<[1], [0], [0], [1], [0, 0, 1, 1], [], []>} : vector<2x64xbf16>, vector<64x8xbf16>, vector<2x8xf32> -> vector<2x8xf32>
    %c0_214 = arith.constant 0 : index
    %c0_215 = arith.constant 0 : index
    %468 = vector.load %arg21[%c0_214, %c0_215] : memref<1x8xf32, #tpu.memory_space<vmem>>, vector<1x8xf32>
    %469 = vector.broadcast %468 : vector<1x8xf32> to vector<2x8xf32>
    %470 = arith.addf %467, %469 : vector<2x8xf32>
    %c0_216 = arith.constant 0 : index
    %c0_217 = arith.constant 0 : index
    %471 = vector.load %arg22[%c0_216, %c0_217] : memref<2x8xf32, #tpu.memory_space<vmem>>, vector<2x8xf32>
    tpu.vector_store %arg22[%c0_216, %c0_217], %470 {strides = array<i32>} : memref<2x8xf32, #tpu.memory_space<vmem>>, vector<2x8xf32>,
    return
  }
  func.func @transform_0(%arg0: i32) -> (i32, i32) {
    %c0_i32 = arith.constant 0 : i32
    %c0_i32_0 = arith.constant 0 : i32
    return %arg0, %c0_i32 : i32, i32
  }
  func.func @transform_1(%arg0: i32) -> (i32, i32) {
    %c0_i32 = arith.constant 0 : i32
    %c0_i32_0 = arith.constant 0 : i32
    %c0_i32_1 = arith.constant 0 : i32
    return %c0_i32, %c0_i32_0 : i32, i32
  }
  func.func @transform_2(%arg0: i32) -> (i32, i32) {
    %c0_i32 = arith.constant 0 : i32
    %c0_i32_0 = arith.constant 0 : i32
    %c0_i32_1 = arith.constant 0 : i32
    return %c0_i32, %c0_i32_0 : i32, i32
  }
  func.func @transform_3(%arg0: i32) -> (i32, i32, i32) {
    %c0_i32 = arith.constant 0 : i32
    %c0_i32_0 = arith.constant 0 : i32
    %c0_i32_1 = arith.constant 0 : i32
    %c0_i32_2 = arith.constant 0 : i32
    return %c0_i32, %c0_i32_0, %c0_i32_1 : i32, i32, i32
  }
  func.func @transform_4(%arg0: i32) -> (i32, i32, i32) {
    %c0_i32 = arith.constant 0 : i32
    %c0_i32_0 = arith.constant 0 : i32
    %c0_i32_1 = arith.constant 0 : i32
    %c0_i32_2 = arith.constant 0 : i32
    return %c0_i32, %c0_i32_0, %c0_i32_1 : i32, i32, i32
  }
  func.func @transform_5(%arg0: i32) -> (i32, i32, i32) {
    %c0_i32 = arith.constant 0 : i32
    %c0_i32_0 = arith.constant 0 : i32
    %c0_i32_1 = arith.constant 0 : i32
    %c0_i32_2 = arith.constant 0 : i32
    return %c0_i32, %c0_i32_0, %c0_i32_1 : i32, i32, i32
  }
  func.func @transform_6(%arg0: i32) -> (i32, i32, i32) {
    %c0_i32 = arith.constant 0 : i32
    %c0_i32_0 = arith.constant 0 : i32
    %c0_i32_1 = arith.constant 0 : i32
    %c0_i32_2 = arith.constant 0 : i32
    return %c0_i32, %c0_i32_0, %c0_i32_1 : i32, i32, i32
  }
  func.func @transform_7(%arg0: i32) -> (i32, i32, i32) {
    %c0_i32 = arith.constant 0 : i32
    %c0_i32_0 = arith.constant 0 : i32
    %c0_i32_1 = arith.constant 0 : i32
    %c0_i32_2 = arith.constant 0 : i32
    return %c0_i32, %c0_i32_0, %c0_i32_1 : i32, i32, i32
  }
  func.func @transform_8(%arg0: i32) -> (i32, i32, i32) {
    %c0_i32 = arith.constant 0 : i32
    %c0_i32_0 = arith.constant 0 : i32
    %c0_i32_1 = arith.constant 0 : i32
    %c0_i32_2 = arith.constant 0 : i32
    return %c0_i32, %c0_i32_0, %c0_i32_1 : i32, i32, i32
  }
  func.func @transform_9(%arg0: i32) -> (i32, i32, i32) {
    %c0_i32 = arith.constant 0 : i32
    %c0_i32_0 = arith.constant 0 : i32
    %c0_i32_1 = arith.constant 0 : i32
    %c0_i32_2 = arith.constant 0 : i32
    return %c0_i32, %c0_i32_0, %c0_i32_1 : i32, i32, i32
  }
  func.func @transform_10(%arg0: i32) -> (i32, i32, i32) {
    %c0_i32 = arith.constant 0 : i32
    %c0_i32_0 = arith.constant 0 : i32
    %c0_i32_1 = arith.constant 0 : i32
    %c0_i32_2 = arith.constant 0 : i32
    return %c0_i32, %c0_i32_0, %c0_i32_1 : i32, i32, i32
  }
  func.func @transform_11(%arg0: i32) -> (i32, i32, i32) {
    %c0_i32 = arith.constant 0 : i32
    %c0_i32_0 = arith.constant 0 : i32
    %c0_i32_1 = arith.constant 0 : i32
    %c0_i32_2 = arith.constant 0 : i32
    return %c0_i32, %c0_i32_0, %c0_i32_1 : i32, i32, i32
  }
  func.func @transform_12(%arg0: i32) -> (i32, i32, i32) {
    %c0_i32 = arith.constant 0 : i32
    %c0_i32_0 = arith.constant 0 : i32
    %c0_i32_1 = arith.constant 0 : i32
    %c0_i32_2 = arith.constant 0 : i32
    return %c0_i32, %c0_i32_0, %c0_i32_1 : i32, i32, i32
  }
  func.func @transform_13(%arg0: i32) -> (i32, i32, i32) {
    %c0_i32 = arith.constant 0 : i32
    %c0_i32_0 = arith.constant 0 : i32
    %c0_i32_1 = arith.constant 0 : i32
    %c0_i32_2 = arith.constant 0 : i32
    return %c0_i32, %c0_i32_0, %c0_i32_1 : i32, i32, i32
  }
  func.func @transform_14(%arg0: i32) -> (i32, i32, i32) {
    %c0_i32 = arith.constant 0 : i32
    %c0_i32_0 = arith.constant 0 : i32
    %c0_i32_1 = arith.constant 0 : i32
    %c0_i32_2 = arith.constant 0 : i32
    return %c0_i32, %c0_i32_0, %c0_i32_1 : i32, i32, i32
  }
  func.func @transform_15(%arg0: i32) -> (i32, i32, i32) {
    %c0_i32 = arith.constant 0 : i32
    %c0_i32_0 = arith.constant 0 : i32
    %c0_i32_1 = arith.constant 0 : i32
    %c0_i32_2 = arith.constant 0 : i32
    return %c0_i32, %c0_i32_0, %c0_i32_1 : i32, i32, i32
  }
  func.func @transform_16(%arg0: i32) -> (i32, i32, i32) {
    %c0_i32 = arith.constant 0 : i32
    %c0_i32_0 = arith.constant 0 : i32
    %c0_i32_1 = arith.constant 0 : i32
    %c0_i32_2 = arith.constant 0 : i32
    return %c0_i32, %c0_i32_0, %c0_i32_1 : i32, i32, i32
  }
  func.func @transform_17(%arg0: i32) -> (i32, i32, i32) {
    %c0_i32 = arith.constant 0 : i32
    %c0_i32_0 = arith.constant 0 : i32
    %c0_i32_1 = arith.constant 0 : i32
    %c0_i32_2 = arith.constant 0 : i32
    return %c0_i32, %c0_i32_0, %c0_i32_1 : i32, i32, i32
  }
  func.func @transform_18(%arg0: i32) -> (i32, i32, i32) {
    %c0_i32 = arith.constant 0 : i32
    %c0_i32_0 = arith.constant 0 : i32
    %c0_i32_1 = arith.constant 0 : i32
    %c0_i32_2 = arith.constant 0 : i32
    return %c0_i32, %c0_i32_0, %c0_i32_1 : i32, i32, i32
  }
  func.func @transform_19(%arg0: i32) -> (i32, i32) {
    %c0_i32 = arith.constant 0 : i32
    %c0_i32_0 = arith.constant 0 : i32
    %c0_i32_1 = arith.constant 0 : i32
    return %c0_i32, %c0_i32_0 : i32, i32
  }
  func.func @transform_20(%arg0: i32) -> (i32, i32) {
    %c0_i32 = arith.constant 0 : i32
    %c0_i32_0 = arith.constant 0 : i32
    %c0_i32_1 = arith.constant 0 : i32
    return %c0_i32, %c0_i32_0 : i32, i32
  }
  func.func @transform_21(%arg0: i32) -> (i32, i32) {
    %c0_i32 = arith.constant 0 : i32
    %c0_i32_0 = arith.constant 0 : i32
    return %arg0, %c0_i32 : i32, i32
  }
}

</mosaic_0001>

<llo_original>
// kernel: tpu_custom_call.1
$region0: #{tpu_custom_call.1}
  #allocation0 [shape = 'u32[]', space=smem, size = 0x4, offset = 0x4, fixed_abs, tag = 'smem constant byte address 0x4 - core index']
  #allocation1 [shape = 'u32[144,128]{1,0:T(1,128)}', space=vmem, size = 0x12000, scoped, tag = 'internal scratch']
  %s0 = inlined_call_operand.vmem [shape: bf16[16,16], index: 0, kind: input, shape index: {}]
  %s1 = inlined_call_operand.vmem [shape: bf16[16,64], index: 1, kind: input, shape index: {}]
  %s2 = inlined_call_operand.vmem [shape: f32[1,64], index: 2, kind: input, shape index: {}]
  %s3 = inlined_call_operand.vmem [shape: bf16[2,64,64], index: 3, kind: input, shape index: {}]
  %s4 = inlined_call_operand.vmem [shape: f32[2,1,64], index: 4, kind: input, shape index: {}]
  %s5 = inlined_call_operand.vmem [shape: bf16[2,64,64], index: 5, kind: input, shape index: {}]
  %s6 = inlined_call_operand.vmem [shape: f32[2,1,64], index: 6, kind: input, shape index: {}]
  %s7 = inlined_call_operand.vmem [shape: bf16[2,64,64], index: 7, kind: input, shape index: {}]
  %s8 = inlined_call_operand.vmem [shape: f32[2,1,64], index: 8, kind: input, shape index: {}]
  %s9 = inlined_call_operand.vmem [shape: bf16[2,64,64], index: 9, kind: input, shape index: {}]
  %s10 = inlined_call_operand.vmem [shape: f32[2,1,64], index: 10, kind: input, shape index: {}]
  %s11 = inlined_call_operand.vmem [shape: bf16[2,64,2048], index: 11, kind: input, shape index: {}]
  %s12 = inlined_call_operand.vmem [shape: f32[2,1,2048], index: 12, kind: input, shape index: {}]
  %s13 = inlined_call_operand.vmem [shape: bf16[2,2048,64], index: 13, kind: input, shape index: {}]
  %s14 = inlined_call_operand.vmem [shape: f32[2,1,64], index: 14, kind: input, shape index: {}]
  %s15 = inlined_call_operand.vmem [shape: f32[2,1,64], index: 15, kind: input, shape index: {}]
  %s16 = inlined_call_operand.vmem [shape: f32[2,1,64], index: 16, kind: input, shape index: {}]
  %s17 = inlined_call_operand.vmem [shape: f32[2,1,64], index: 17, kind: input, shape index: {}]
  %s18 = inlined_call_operand.vmem [shape: f32[2,1,64], index: 18, kind: input, shape index: {}]
  %s19 = inlined_call_operand.vmem [shape: bf16[64,8], index: 19, kind: input, shape index: {}]
  %s20 = inlined_call_operand.vmem [shape: f32[1,8], index: 20, kind: input, shape index: {}]
  %s21 = inlined_call_operand.hbm [shape: f32[2,8], index: 21, kind: output, shape index: {}]
  %s22 = sld [smem:[#allocation0]]
  $region94: #{tpu_custom_call.1} parent=0
    _
  %s24 = ssub.s32 1, %s22
  %s25 = scalar_select 0, %s24, %s22
  $region1: #{tpu_custom_call.1} parent=0
    #allocation2 [shape = 'u8[1024]{0}', space=vmem, size = 0x400, scoped, tag = 'output window, operand 0, single buffered']
    #allocation3 [shape = 's32[1]{0}', space=sflag, size = 0x4, scoped, tag = 'scoped memory for tpu_custom_call.1']
    %26 = vsyncpa [#allocation3], 0
    // Predicated region
    $region2: #{tpu_custom_call.1} parent=1 // pred_check
      _
    $region3: #{tpu_custom_call.1} parent=1 // pred_check_branch
      %28 = sbr.rel (0) target = $region5
    $region4: #{tpu_custom_call.1} parent=1 // pred_region
      _
    $region5: #{tpu_custom_call.1} parent=1 // pred_fallthru
      _
    // Predicated region
    $region6: #{tpu_custom_call.1} parent=1 // pred_check
      _
    $region7: #{tpu_custom_call.1} parent=1 // pred_check_branch
      %30 = sbr.rel (0) target = $region9
    $region8: #{tpu_custom_call.1} parent=1 // pred_region
      _
    $region9: #{tpu_custom_call.1} parent=1 // pred_fallthru
      _
    // Predicated region
    $region10: #{tpu_custom_call.1} parent=1 // pred_check
      _
    $region11: #{tpu_custom_call.1} parent=1 // pred_check_branch
      %32 = sbr.rel (0) target = $region13
    $region12: #{tpu_custom_call.1} parent=1 // pred_region
      _
    $region13: #{tpu_custom_call.1} parent=1 // pred_fallthru
      _
    // Predicated region
    $region14: #{tpu_custom_call.1} parent=1 // pred_check
      _
    $region15: #{tpu_custom_call.1} parent=1 // pred_check_branch
      %34 = sbr.rel (0) target = $region17
    $region16: #{tpu_custom_call.1} parent=1 // pred_region
      _
    $region17: #{tpu_custom_call.1} parent=1 // pred_fallthru
      _
    // Predicated region
    $region18: #{tpu_custom_call.1} parent=1 // pred_check
      _
    $region19: #{tpu_custom_call.1} parent=1 // pred_check_branch
      %36 = sbr.rel (0) target = $region21
    $region20: #{tpu_custom_call.1} parent=1 // pred_region
      _
    $region21: #{tpu_custom_call.1} parent=1 // pred_fallthru
      _
    // Predicated region
    $region22: #{tpu_custom_call.1} parent=1 // pred_check
      _
    $region23: #{tpu_custom_call.1} parent=1 // pred_check_branch
      %38 = sbr.rel (0) target = $region25
    $region24: #{tpu_custom_call.1} parent=1 // pred_region
      _
    $region25: #{tpu_custom_call.1} parent=1 // pred_fallthru
      _
    // Predicated region
    $region26: #{tpu_custom_call.1} parent=1 // pred_check
      _
    $region27: #{tpu_custom_call.1} parent=1 // pred_check_branch
      %40 = sbr.rel (0) target = $region29
    $region28: #{tpu_custom_call.1} parent=1 // pred_region
      _
    $region29: #{tpu_custom_call.1} parent=1 // pred_fallthru
      _
    // Predicated region
    $region30: #{tpu_custom_call.1} parent=1 // pred_check
      _
    $region31: #{tpu_custom_call.1} parent=1 // pred_check_branch
      %42 = sbr.rel (0) target = $region33
    $region32: #{tpu_custom_call.1} parent=1 // pred_region
      _
    $region33: #{tpu_custom_call.1} parent=1 // pred_fallthru
      _
    // Predicated region
    $region34: #{tpu_custom_call.1} parent=1 // pred_check
      _
    $region35: #{tpu_custom_call.1} parent=1 // pred_check_branch
      %44 = sbr.rel (0) target = $region37
    $region36: #{tpu_custom_call.1} parent=1 // pred_region
      _
    $region37: #{tpu_custom_call.1} parent=1 // pred_fallthru
      _
    // Predicated region
    $region38: #{tpu_custom_call.1} parent=1 // pred_check
      _
    $region39: #{tpu_custom_call.1} parent=1 // pred_check_branch
      %46 = sbr.rel (0) target = $region41
    $region40: #{tpu_custom_call.1} parent=1 // pred_region
      _
    $region41: #{tpu_custom_call.1} parent=1 // pred_fallthru
      _
    // Predicated region
    $region42: #{tpu_custom_call.1} parent=1 // pred_check
      _
    $region43: #{tpu_custom_call.1} parent=1 // pred_check_branch
      %48 = sbr.rel (0) target = $region45
    $region44: #{tpu_custom_call.1} parent=1 // pred_region
      _
    $region45: #{tpu_custom_call.1} parent=1 // pred_fallthru
      _
    // Predicated region
    $region46: #{tpu_custom_call.1} parent=1 // pred_check
      _
    $region47: #{tpu_custom_call.1} parent=1 // pred_check_branch
      %50 = sbr.rel (0) target = $region49
    $region48: #{tpu_custom_call.1} parent=1 // pred_region
      _
    $region49: #{tpu_custom_call.1} parent=1 // pred_fallthru
      _
    // Predicated region
    $region50: #{tpu_custom_call.1} parent=1 // pred_check
      _
    $region51: #{tpu_custom_call.1} parent=1 // pred_check_branch
      %52 = sbr.rel (0) target = $region53
    $region52: #{tpu_custom_call.1} parent=1 // pred_region
      _
    $region53: #{tpu_custom_call.1} parent=1 // pred_fallthru
      _
    // Predicated region
    $region54: #{tpu_custom_call.1} parent=1 // pred_check
      _
    $region55: #{tpu_custom_call.1} parent=1 // pred_check_branch
      %54 = sbr.rel (0) target = $region57
    $region56: #{tpu_custom_call.1} parent=1 // pred_region
      _
    $region57: #{tpu_custom_call.1} parent=1 // pred_fallthru
      _
    // Predicated region
    $region58: #{tpu_custom_call.1} parent=1 // pred_check
      _
    $region59: #{tpu_custom_call.1} parent=1 // pred_check_branch
      %56 = sbr.rel (0) target = $region61
    $region60: #{tpu_custom_call.1} parent=1 // pred_region
      _
    $region61: #{tpu_custom_call.1} parent=1 // pred_fallthru
      _
    // Predicated region
    $region62: #{tpu_custom_call.1} parent=1 // pred_check
      _
    $region63: #{tpu_custom_call.1} parent=1 // pred_check_branch
      %58 = sbr.rel (0) target = $region65
    $region64: #{tpu_custom_call.1} parent=1 // pred_region
      _
    $region65: #{tpu_custom_call.1} parent=1 // pred_fallthru
      _
    // Predicated region
    $region66: #{tpu_custom_call.1} parent=1 // pred_check
      _
    $region67: #{tpu_custom_call.1} parent=1 // pred_check_branch
      %60 = sbr.rel (0) target = $region69
    $region68: #{tpu_custom_call.1} parent=1 // pred_region
      _
    $region69: #{tpu_custom_call.1} parent=1 // pred_fallthru
      _
    // Predicated region
    $region70: #{tpu_custom_call.1} parent=1 // pred_check
      _
    $region71: #{tpu_custom_call.1} parent=1 // pred_check_branch
      %62 = sbr.rel (0) target = $region73
    $region72: #{tpu_custom_call.1} parent=1 // pred_region
      _
    $region73: #{tpu_custom_call.1} parent=1 // pred_fallthru
      _
    // Predicated region
    $region74: #{tpu_custom_call.1} parent=1 // pred_check
      _
    $region75: #{tpu_custom_call.1} parent=1 // pred_check_branch
      %64 = sbr.rel (0) target = $region77
    $region76: #{tpu_custom_call.1} parent=1 // pred_region
      _
    $region77: #{tpu_custom_call.1} parent=1 // pred_fallthru
      _
    // Predicated region
    $region78: #{tpu_custom_call.1} parent=1 // pred_check
      _
    $region79: #{tpu_custom_call.1} parent=1 // pred_check_branch
      %66 = sbr.rel (0) target = $region81
    $region80: #{tpu_custom_call.1} parent=1 // pred_region
      _
    $region81: #{tpu_custom_call.1} parent=1 // pred_fallthru
      _
    // Predicated region
    $region82: #{tpu_custom_call.1} parent=1 // pred_check
      _
    $region83: #{tpu_custom_call.1} parent=1 // pred_check_branch
      %68 = sbr.rel (0) target = $region85
    $region84: #{tpu_custom_call.1} parent=1 // pred_region
      _
    $region85: #{tpu_custom_call.1} parent=1 // pred_fallthru
      _
    %v70 = vld [vmem:[%s0] sm:$0xf]
    %v71 = vld [vmem:[%s0 + $0x4] sm:$0xf]
    %v72 = vld [vmem:[%s1] sm:$0xf]
    %v73 = vld [vmem:[%s1 + $0x4] sm:$0xf]
    %v74 = vld [vmem:[%s2] sm:$0x1]
    %v76 = vlaneseq
    %v77 = vshrl.u32 %v76, 7
    %v78 = vsub.s32 0, %v77
    %v79 = vrot.slane %v74, %v78
    %v83 = vunpack.c.l.b16 %v70
    %v84 = vunpack.c.l.b16 %v71
    %v85 = vpack.c.b16 %v84, %v83
    %v88 = vunpack.c.l.b16 %v72
    %v89 = vunpack.c.l.b16 %v73
    %v90 = vpack.c.b16 %v89, %v88
    %vm92 = vcmask 130048
    %v94 = vsel %vm92, %v85, 0
    %96 = vmatprep.subr.bf16.mxu0 0
    %97 = vmatpush1.bf16.msra.mxu0 0
    %98 = vmatprep.subr.bf16.mxu0 0
    %99 = vmatpush1.bf16.msra.mxu0 0
    %100 = vmatprep.subr.bf16.mxu0 0
    %101 = vmatpush1.bf16.msra.mxu0 0
    %102 = vmatprep.subr.bf16.mxu0 0
    %103 = vmatpush1.bf16.msra.mxu0 0
    %104 = vmatprep.subr.bf16.mxu0 0
    %105 = vmatpush1.bf16.msra.mxu0 0
    %106 = vmatprep.subr.bf16.mxu0 0
    %107 = vmatpush1.bf16.msra.mxu0 0
    %108 = vmatprep.subr.bf16.mxu0 0
    %109 = vmatpush1.bf16.msra.mxu0 0
    %110 = vmatprep.subr.bf16.mxu0 0
    %111 = vmatpush1.bf16.msra.mxu0 %v90
    %112 = vmatprep.subr.bf16.mxu0 0
    %113 = vmatpush2.bf16.msra.mxu0 0
    %114 = vmatprep.subr.bf16.mxu0 0
    %115 = vmatpush2.bf16.msra.mxu0 0
    %116 = vmatprep.subr.bf16.mxu0 0
    %117 = vmatpush2.bf16.msra.mxu0 0
    %118 = vmatprep.subr.bf16.mxu0 0
    %119 = vmatpush2.bf16.msra.mxu0 0
    %120 = vmatprep.subr.bf16.mxu0 0
    %121 = vmatpush2.bf16.msra.mxu0 0
    %122 = vmatprep.subr.bf16.mxu0 0
    %123 = vmatpush2.bf16.msra.mxu0 0
    %124 = vmatprep.subr.bf16.mxu0 0
    %125 = vmatpush2.bf16.msra.mxu0 0
    %126 = vmatprep.subr.bf16.mxu0 0
    %127 = vmatpush2.bf16.msra.mxu0 0
    %128 = vmatprep.mubr.bf16.mxu0 0
    %129 = vmatmul.mubr.bf16.gmra.mxu0 %v94
    %v130 = vpop.f32.mrf.mxu0
    %v131 = vadd.f32 %v79, %v130
    %v132 = vpop.f32.mrf.mxu0
    %v133 = vpop.f32.mrf.mxu0
    %v134 = vadd.f32 %v79, %v133
    %v135 = vpop.f32.mrf.mxu0
    %136 = vdwg.mxu0
    %v137 = vpack.c.bf16 %v134, %v131
    %v138 = vld [vmem:[%s3] sm:$0xf]
    %v139 = vld [vmem:[%s3 + $0x4] sm:$0xf]
    %v140 = vld [vmem:[%s3 + $0x8] sm:$0xf]
    %v141 = vld [vmem:[%s3 + $0xc] sm:$0xf]
    %v142 = vld [vmem:[%s3 + $0x10] sm:$0xf]
    %v143 = vld [vmem:[%s3 + $0x14] sm:$0xf]
    %v144 = vld [vmem:[%s3 + $0x18] sm:$0xf]
    %v145 = vld [vmem:[%s3 + $0x1c] sm:$0xf]
    %v146 = vld [vmem:[%s4] sm:$0x1]
    %v148 = vlaneseq
    %v149 = vshrl.u32 %v148, 7
    %v150 = vsub.s32 0, %v149
    %v151 = vrot.slane %v146, %v150
    %v161 = vunpack.c.l.b16 %v138
    %v162 = vunpack.c.l.b16 %v139
    %v163 = vunpack.c.l.b16 %v140
    %v164 = vunpack.c.l.b16 %v141
    %v165 = vunpack.c.l.b16 %v142
    %v166 = vunpack.c.l.b16 %v143
    %v167 = vunpack.c.l.b16 %v144
    %v168 = vunpack.c.l.b16 %v145
    %v169 = vpack.c.b16 %v162, %v161
    %v170 = vpack.c.b16 %v164, %v163
    %v171 = vpack.c.b16 %v166, %v165
    %v172 = vpack.c.b16 %v168, %v167
    %vm177 = vcmask 523264
    %v179 = vsel %vm177, %v137, 0
    %181 = vmatprep.subr.bf16.mxu0 0
    %182 = vmatpush1.bf16.msra.mxu0 0
    %183 = vmatprep.subr.bf16.mxu0 0
    %184 = vmatpush1.bf16.msra.mxu0 0
    %185 = vmatprep.subr.bf16.mxu0 0
    %186 = vmatpush1.bf16.msra.mxu0 0
    %187 = vmatprep.subr.bf16.mxu0 0
    %188 = vmatpush1.bf16.msra.mxu0 0
    %189 = vmatprep.subr.bf16.mxu0 0
    %190 = vmatpush1.bf16.msra.mxu0 %v172
    %191 = vmatprep.subr.bf16.mxu0 0
    %192 = vmatpush1.bf16.msra.mxu0 %v171
    %193 = vmatprep.subr.bf16.mxu0 0
    %194 = vmatpush1.bf16.msra.mxu0 %v170
    %195 = vmatprep.subr.bf16.mxu0 0
    %196 = vmatpush1.bf16.msra.mxu0 %v169
    %197 = vmatprep.subr.bf16.mxu0 0
    %198 = vmatpush2.bf16.msra.mxu0 0
    %199 = vmatprep.subr.bf16.mxu0 0
    %200 = vmatpush2.bf16.msra.mxu0 0
    %201 = vmatprep.subr.bf16.mxu0 0
    %202 = vmatpush2.bf16.msra.mxu0 0
    %203 = vmatprep.subr.bf16.mxu0 0
    %204 = vmatpush2.bf16.msra.mxu0 0
    %205 = vmatprep.subr.bf16.mxu0 0
    %206 = vmatpush2.bf16.msra.mxu0 0
    %207 = vmatprep.subr.bf16.mxu0 0
    %208 = vmatpush2.bf16.msra.mxu0 0
    %209 = vmatprep.subr.bf16.mxu0 0
    %210 = vmatpush2.bf16.msra.mxu0 0
    %211 = vmatprep.subr.bf16.mxu0 0
    %212 = vmatpush2.bf16.msra.mxu0 0
    %213 = vmatprep.mubr.bf16.mxu0 0
    %214 = vmatmul.mubr.bf16.gmra.mxu0 %v179
    %v215 = vpop.f32.mrf.mxu0
    %v216 = vadd.f32 %v151, %v215
    %v217 = vpop.f32.mrf.mxu0
    %v218 = vpop.f32.mrf.mxu0
    %v219 = vadd.f32 %v151, %v218
    %v220 = vpop.f32.mrf.mxu0
    %221 = vdwg.mxu0
    %v222 = vpack.c.bf16 %v219, %v216
    %v223 = vld [vmem:[%s5] sm:$0xf]
    %v224 = vld [vmem:[%s5 + $0x4] sm:$0xf]
    %v225 = vld [vmem:[%s5 + $0x8] sm:$0xf]
    %v226 = vld [vmem:[%s5 + $0xc] sm:$0xf]
    %v227 = vld [vmem:[%s5 + $0x10] sm:$0xf]
    %v228 = vld [vmem:[%s5 + $0x14] sm:$0xf]
    %v229 = vld [vmem:[%s5 + $0x18] sm:$0xf]
    %v230 = vld [vmem:[%s5 + $0x1c] sm:$0xf]
    %v231 = vld [vmem:[%s6] sm:$0x1]
    %v233 = vlaneseq
    %v234 = vshrl.u32 %v233, 7
    %v235 = vsub.s32 0, %v234
    %v236 = vrot.slane %v231, %v235
    %v246 = vunpack.c.l.b16 %v223
    %v247 = vunpack.c.l.b16 %v224
    %v248 = vunpack.c.l.b16 %v225
    %v249 = vunpack.c.l.b16 %v226
    %v250 = vunpack.c.l.b16 %v227
    %v251 = vunpack.c.l.b16 %v228
    %v252 = vunpack.c.l.b16 %v229
    %v253 = vunpack.c.l.b16 %v230
    %v254 = vpack.c.b16 %v247, %v246
    %v255 = vpack.c.b16 %v249, %v248
    %v256 = vpack.c.b16 %v251, %v250
    %v257 = vpack.c.b16 %v253, %v252
    %262 = vmatprep.subr.bf16.mxu0 0
    %263 = vmatpush1.bf16.msra.mxu0 0
    %264 = vmatprep.subr.bf16.mxu0 0
    %265 = vmatpush1.bf16.msra.mxu0 0
    %266 = vmatprep.subr.bf16.mxu0 0
    %267 = vmatpush1.bf16.msra.mxu0 0
    %268 = vmatprep.subr.bf16.mxu0 0
    %269 = vmatpush1.bf16.msra.mxu0 0
    %270 = vmatprep.subr.bf16.mxu0 0
    %271 = vmatpush1.bf16.msra.mxu0 %v257
    %272 = vmatprep.subr.bf16.mxu0 0
    %273 = vmatpush1.bf16.msra.mxu0 %v256
    %274 = vmatprep.subr.bf16.mxu0 0
    %275 = vmatpush1.bf16.msra.mxu0 %v255
    %276 = vmatprep.subr.bf16.mxu0 0
    %277 = vmatpush1.bf16.msra.mxu0 %v254
    %278 = vmatprep.subr.bf16.mxu0 0
    %279 = vmatpush2.bf16.msra.mxu0 0
    %280 = vmatprep.subr.bf16.mxu0 0
    %281 = vmatpush2.bf16.msra.mxu0 0
    %282 = vmatprep.subr.bf16.mxu0 0
    %283 = vmatpush2.bf16.msra.mxu0 0
    %284 = vmatprep.subr.bf16.mxu0 0
    %285 = vmatpush2.bf16.msra.mxu0 0
    %286 = vmatprep.subr.bf16.mxu0 0
    %287 = vmatpush2.bf16.msra.mxu0 0
    %288 = vmatprep.subr.bf16.mxu0 0
    %289 = vmatpush2.bf16.msra.mxu0 0
    %290 = vmatprep.subr.bf16.mxu0 0
    %291 = vmatpush2.bf16.msra.mxu0 0
    %292 = vmatprep.subr.bf16.mxu0 0
    %293 = vmatpush2.bf16.msra.mxu0 0
    %294 = vmatprep.mubr.bf16.mxu0 0
    %295 = vmatmul.mubr.bf16.gmra.mxu0 %v179
    %v296 = vpop.f32.mrf.mxu0
    %v297 = vadd.f32 %v236, %v296
    %v298 = vpop.f32.mrf.mxu0
    %v299 = vpop.f32.mrf.mxu0
    %v300 = vadd.f32 %v236, %v299
    %v301 = vpop.f32.mrf.mxu0
    %302 = vdwg.mxu0
    %v303 = vpack.c.bf16 %v300, %v297
    %v304 = vld [vmem:[%s7] sm:$0xf]
    %v305 = vld [vmem:[%s7 + $0x4] sm:$0xf]
    %v306 = vld [vmem:[%s7 + $0x8] sm:$0xf]
    %v307 = vld [vmem:[%s7 + $0xc] sm:$0xf]
    %v308 = vld [vmem:[%s7 + $0x10] sm:$0xf]
    %v309 = vld [vmem:[%s7 + $0x14] sm:$0xf]
    %v310 = vld [vmem:[%s7 + $0x18] sm:$0xf]
    %v311 = vld [vmem:[%s7 + $0x1c] sm:$0xf]
    %v312 = vld [vmem:[%s8] sm:$0x1]
    %v314 = vlaneseq
    %v315 = vshrl.u32 %v314, 7
    %v316 = vsub.s32 0, %v315
    %v317 = vrot.slane %v312, %v316
    %v327 = vunpack.c.l.b16 %v304
    %v328 = vunpack.c.l.b16 %v305
    %v329 = vunpack.c.l.b16 %v306
    %v330 = vunpack.c.l.b16 %v307
    %v331 = vunpack.c.l.b16 %v308
    %v332 = vunpack.c.l.b16 %v309
    %v333 = vunpack.c.l.b16 %v310
    %v334 = vunpack.c.l.b16 %v311
    %v335 = vpack.c.b16 %v328, %v327
    %v336 = vpack.c.b16 %v330, %v329
    %v337 = vpack.c.b16 %v332, %v331
    %v338 = vpack.c.b16 %v334, %v333
    %343 = vmatprep.subr.bf16.mxu0 0
    %344 = vmatpush1.bf16.msra.mxu0 0
    %345 = vmatprep.subr.bf16.mxu0 0
    %346 = vmatpush1.bf16.msra.mxu0 0
    %347 = vmatprep.subr.bf16.mxu0 0
    %348 = vmatpush1.bf16.msra.mxu0 0
    %349 = vmatprep.subr.bf16.mxu0 0
    %350 = vmatpush1.bf16.msra.mxu0 0
    %351 = vmatprep.subr.bf16.mxu0 0
    %352 = vmatpush1.bf16.msra.mxu0 %v338
    %353 = vmatprep.subr.bf16.mxu0 0
    %354 = vmatpush1.bf16.msra.mxu0 %v337
    %355 = vmatprep.subr.bf16.mxu0 0
    %356 = vmatpush1.bf16.msra.mxu0 %v336
    %357 = vmatprep.subr.bf16.mxu0 0
    %358 = vmatpush1.bf16.msra.mxu0 %v335
    %359 = vmatprep.subr.bf16.mxu0 0
    %360 = vmatpush2.bf16.msra.mxu0 0
    %361 = vmatprep.subr.bf16.mxu0 0
    %362 = vmatpush2.bf16.msra.mxu0 0
    %363 = vmatprep.subr.bf16.mxu0 0
    %364 = vmatpush2.bf16.msra.mxu0 0
    %365 = vmatprep.subr.bf16.mxu0 0
    %366 = vmatpush2.bf16.msra.mxu0 0
    %367 = vmatprep.subr.bf16.mxu0 0
    %368 = vmatpush2.bf16.msra.mxu0 0
    %369 = vmatprep.subr.bf16.mxu0 0
    %370 = vmatpush2.bf16.msra.mxu0 0
    %371 = vmatprep.subr.bf16.mxu0 0
    %372 = vmatpush2.bf16.msra.mxu0 0
    %373 = vmatprep.subr.bf16.mxu0 0
    %374 = vmatpush2.bf16.msra.mxu0 0
    %375 = vmatprep.mubr.bf16.mxu0 0
    %376 = vmatmul.mubr.bf16.gmra.mxu0 %v179
    %v377 = vpop.f32.mrf.mxu0
    %v378 = vadd.f32 %v317, %v377
    %v379 = vpop.f32.mrf.mxu0
    %v380 = vpop.f32.mrf.mxu0
    %v381 = vadd.f32 %v317, %v380
    %v382 = vpop.f32.mrf.mxu0
    %383 = vdwg.mxu0
    %v384 = vpack.c.bf16 %v381, %v378
    %v386 = vunpack.c.l.b16 %v222
    %v387 = vunpack.c.h.b16 %v222
    %v388 = vpack.c.b16 %v386, %v386
    %v389 = vpack.c.b16 %v387, %v387
    %390 = vrot.lane.b32.xlu0 %v388, 120
    %v391 = vpop.permute.xlu0 %390
    %392 = vrot.lane.b32.xlu0 %v389, 120
    %v393 = vpop.permute.xlu0 %392
    %394 = vrot.lane.b32.xlu0 %v388, 112
    %v395 = vpop.permute.xlu0 %394
    %396 = vrot.lane.b32.xlu0 %v389, 112
    %v397 = vpop.permute.xlu0 %396
    %398 = vrot.lane.b32.xlu0 %v388, 104
    %v399 = vpop.permute.xlu0 %398
    %400 = vrot.lane.b32.xlu0 %v389, 104
    %v401 = vpop.permute.xlu0 %400
    %402 = vrot.lane.b32.xlu0 %v388, 96
    %v403 = vpop.permute.xlu0 %402
    %404 = vrot.lane.b32.xlu0 %v389, 96
    %v405 = vpop.permute.xlu0 %404
    %406 = vrot.lane.b32.xlu0 %v388, 88
    %v407 = vpop.permute.xlu0 %406
    %408 = vrot.lane.b32.xlu0 %v389, 88
    %v409 = vpop.permute.xlu0 %408
    %410 = vrot.lane.b32.xlu0 %v388, 80
    %v411 = vpop.permute.xlu0 %410
    %412 = vrot.lane.b32.xlu0 %v389, 80
    %v413 = vpop.permute.xlu0 %412
    %414 = vrot.lane.b32.xlu0 %v388, 72
    %v415 = vpop.permute.xlu0 %414
    %416 = vrot.lane.b32.xlu0 %v389, 72
    %v417 = vpop.permute.xlu0 %416
    %v419 = vunpack.c.l.b16 %v303
    %v420 = vunpack.c.h.b16 %v303
    %v421 = vpack.c.b16 %v419, %v419
    %v422 = vpack.c.b16 %v420, %v420
    %423 = vrot.lane.b32.xlu0 %v421, 120
    %v424 = vpop.permute.xlu0 %423
    %425 = vrot.lane.b32.xlu0 %v422, 120
    %v426 = vpop.permute.xlu0 %425
    %427 = vrot.lane.b32.xlu0 %v421, 112
    %v428 = vpop.permute.xlu0 %427
    %429 = vrot.lane.b32.xlu0 %v422, 112
    %v430 = vpop.permute.xlu0 %429
    %431 = vrot.lane.b32.xlu0 %v421, 104
    %v432 = vpop.permute.xlu0 %431
    %433 = vrot.lane.b32.xlu0 %v422, 104
    %v434 = vpop.permute.xlu0 %433
    %435 = vrot.lane.b32.xlu0 %v421, 96
    %v436 = vpop.permute.xlu0 %435
    %437 = vrot.lane.b32.xlu0 %v422, 96
    %v438 = vpop.permute.xlu0 %437
    %439 = vrot.lane.b32.xlu0 %v421, 88
    %v440 = vpop.permute.xlu0 %439
    %441 = vrot.lane.b32.xlu0 %v422, 88
    %v442 = vpop.permute.xlu0 %441
    %443 = vrot.lane.b32.xlu0 %v421, 80
    %v444 = vpop.permute.xlu0 %443
    %445 = vrot.lane.b32.xlu0 %v422, 80
    %v446 = vpop.permute.xlu0 %445
    %447 = vrot.lane.b32.xlu0 %v421, 72
    %v448 = vpop.permute.xlu0 %447
    %449 = vrot.lane.b32.xlu0 %v422, 72
    %v450 = vpop.permute.xlu0 %449
    %v452 = vunpack.c.l.b16 %v384
    %v453 = vunpack.c.h.b16 %v384
    %v454 = vpack.c.b16 %v452, %v452
    %v455 = vpack.c.b16 %v453, %v453
    %456 = vrot.lane.b32.xlu0 %v454, 120
    %v457 = vpop.permute.xlu0 %456
    %458 = vrot.lane.b32.xlu0 %v455, 120
    %v459 = vpop.permute.xlu0 %458
    %460 = vrot.lane.b32.xlu0 %v454, 112
    %v461 = vpop.permute.xlu0 %460
    %462 = vrot.lane.b32.xlu0 %v455, 112
    %v463 = vpop.permute.xlu0 %462
    %464 = vrot.lane.b32.xlu0 %v454, 104
    %v465 = vpop.permute.xlu0 %464
    %466 = vrot.lane.b32.xlu0 %v455, 104
    %v467 = vpop.permute.xlu0 %466
    %468 = vrot.lane.b32.xlu0 %v454, 96
    %v469 = vpop.permute.xlu0 %468
    %470 = vrot.lane.b32.xlu0 %v455, 96
    %v471 = vpop.permute.xlu0 %470
    %472 = vrot.lane.b32.xlu0 %v454, 88
    %v473 = vpop.permute.xlu0 %472
    %474 = vrot.lane.b32.xlu0 %v455, 88
    %v475 = vpop.permute.xlu0 %474
    %476 = vrot.lane.b32.xlu0 %v454, 80
    %v477 = vpop.permute.xlu0 %476
    %478 = vrot.lane.b32.xlu0 %v455, 80
    %v479 = vpop.permute.xlu0 %478
    %480 = vrot.lane.b32.xlu0 %v454, 72
    %v481 = vpop.permute.xlu0 %480
    %482 = vrot.lane.b32.xlu0 %v455, 72
    %v483 = vpop.permute.xlu0 %482
    %vm484 = vcmask 64512
    %v486 = vsel %vm484, %v388, 0
    %v489 = vsel %vm484, %v421, 0
    %491 = vmatprep.subr.bf16.mxu0 0
    %492 = vmatpush1.bf16.xpose.msra.mxu0 0
    %493 = vmatprep.subr.bf16.mxu0 0
    %494 = vmatpush1.bf16.xpose.msra.mxu0 0
    %495 = vmatprep.subr.bf16.mxu0 0
    %496 = vmatpush1.bf16.xpose.msra.mxu0 0
    %497 = vmatprep.subr.bf16.mxu0 0
    %498 = vmatpush1.bf16.xpose.msra.mxu0 0
    %499 = vmatprep.subr.bf16.mxu0 0
    %500 = vmatpush1.bf16.xpose.msra.mxu0 0
    %501 = vmatprep.subr.bf16.mxu0 0
    %502 = vmatpush1.bf16.xpose.msra.mxu0 0
    %503 = vmatprep.subr.bf16.mxu0 0
    %504 = vmatpush1.bf16.xpose.msra.mxu0 0
    %505 = vmatprep.subr.bf16.mxu0 0
    %506 = vmatpush1.bf16.xpose.msra.mxu0 %v489
    %507 = vmatprep.subr.bf16.mxu0 0
    %508 = vmatpush2.bf16.xpose.msra.mxu0 0
    %509 = vmatprep.subr.bf16.mxu0 0
    %510 = vmatpush2.bf16.xpose.msra.mxu0 0
    %511 = vmatprep.subr.bf16.mxu0 0
    %512 = vmatpush2.bf16.xpose.msra.mxu0 0
    %513 = vmatprep.subr.bf16.mxu0 0
    %514 = vmatpush2.bf16.xpose.msra.mxu0 0
    %515 = vmatprep.subr.bf16.mxu0 0
    %516 = vmatpush2.bf16.xpose.msra.mxu0 0
    %517 = vmatprep.subr.bf16.mxu0 0
    %518 = vmatpush2.bf16.xpose.msra.mxu0 0
    %519 = vmatprep.subr.bf16.mxu0 0
    %520 = vmatpush2.bf16.xpose.msra.mxu0 0
    %521 = vmatprep.subr.bf16.mxu0 0
    %522 = vmatpush2.bf16.xpose.msra.mxu0 0
    %523 = vmatprep.mubr.bf16.mxu0 0
    %524 = vmatmul.mubr.bf16.gmra.mxu0 %v486
    %v525 = vpop.f32.mrf.mxu0
    %v526 = vadd.f32 0.0, %v525
    %v527 = vpop.f32.mrf.mxu0
    %v528 = vpop.f32.mrf.mxu0
    %v529 = vpop.f32.mrf.mxu0
    %530 = vdwg.mxu0
    %v532 = vsel %vm484, %v389, 0
    %v535 = vsel %vm484, %v422, 0
    %537 = vmatprep.subr.bf16.mxu0 0
    %538 = vmatpush1.bf16.xpose.msra.mxu0 0
    %539 = vmatprep.subr.bf16.mxu0 0
    %540 = vmatpush1.bf16.xpose.msra.mxu0 0
    %541 = vmatprep.subr.bf16.mxu0 0
    %542 = vmatpush1.bf16.xpose.msra.mxu0 0
    %543 = vmatprep.subr.bf16.mxu0 0
    %544 = vmatpush1.bf16.xpose.msra.mxu0 0
    %545 = vmatprep.subr.bf16.mxu0 0
    %546 = vmatpush1.bf16.xpose.msra.mxu0 0
    %547 = vmatprep.subr.bf16.mxu0 0
    %548 = vmatpush1.bf16.xpose.msra.mxu0 0
    %549 = vmatprep.subr.bf16.mxu0 0
    %550 = vmatpush1.bf16.xpose.msra.mxu0 0
    %551 = vmatprep.subr.bf16.mxu0 0
    %552 = vmatpush1.bf16.xpose.msra.mxu0 %v535
    %553 = vmatprep.subr.bf16.mxu0 0
    %554 = vmatpush2.bf16.xpose.msra.mxu0 0
    %555 = vmatprep.subr.bf16.mxu0 0
    %556 = vmatpush2.bf16.xpose.msra.mxu0 0
    %557 = vmatprep.subr.bf16.mxu0 0
    %558 = vmatpush2.bf16.xpose.msra.mxu0 0
    %559 = vmatprep.subr.bf16.mxu0 0
    %560 = vmatpush2.bf16.xpose.msra.mxu0 0
    %561 = vmatprep.subr.bf16.mxu0 0
    %562 = vmatpush2.bf16.xpose.msra.mxu0 0
    %563 = vmatprep.subr.bf16.mxu0 0
    %564 = vmatpush2.bf16.xpose.msra.mxu0 0
    %565 = vmatprep.subr.bf16.mxu0 0
    %566 = vmatpush2.bf16.xpose.msra.mxu0 0
    %567 = vmatprep.subr.bf16.mxu0 0
    %568 = vmatpush2.bf16.xpose.msra.mxu0 0
    %569 = vmatprep.mubr.bf16.mxu0 0
    %570 = vmatmul.mubr.bf16.gmra.mxu0 %v532
    %v571 = vpop.f32.mrf.mxu0
    %v572 = vadd.f32 0.0, %v571
    %v573 = vpop.f32.mrf.mxu0
    %v574 = vpop.f32.mrf.mxu0
    %v575 = vpop.f32.mrf.mxu0
    %576 = vdwg.mxu0
    %v578 = vsel %vm484, %v391, 0
    %v581 = vsel %vm484, %v424, 0
    %583 = vmatprep.subr.bf16.mxu0 0
    %584 = vmatpush1.bf16.xpose.msra.mxu0 0
    %585 = vmatprep.subr.bf16.mxu0 0
    %586 = vmatpush1.bf16.xpose.msra.mxu0 0
    %587 = vmatprep.subr.bf16.mxu0 0
    %588 = vmatpush1.bf16.xpose.msra.mxu0 0
    %589 = vmatprep.subr.bf16.mxu0 0
    %590 = vmatpush1.bf16.xpose.msra.mxu0 0
    %591 = vmatprep.subr.bf16.mxu0 0
    %592 = vmatpush1.bf16.xpose.msra.mxu0 0
    %593 = vmatprep.subr.bf16.mxu0 0
    %594 = vmatpush1.bf16.xpose.msra.mxu0 0
    %595 = vmatprep.subr.bf16.mxu0 0
    %596 = vmatpush1.bf16.xpose.msra.mxu0 0
    %597 = vmatprep.subr.bf16.mxu0 0
    %598 = vmatpush1.bf16.xpose.msra.mxu0 %v581
    %599 = vmatprep.subr.bf16.mxu0 0
    %600 = vmatpush2.bf16.xpose.msra.mxu0 0
    %601 = vmatprep.subr.bf16.mxu0 0
    %602 = vmatpush2.bf16.xpose.msra.mxu0 0
    %603 = vmatprep.subr.bf16.mxu0 0
    %604 = vmatpush2.bf16.xpose.msra.mxu0 0
    %605 = vmatprep.subr.bf16.mxu0 0
    %606 = vmatpush2.bf16.xpose.msra.mxu0 0
    %607 = vmatprep.subr.bf16.mxu0 0
    %608 = vmatpush2.bf16.xpose.msra.mxu0 0
    %609 = vmatprep.subr.bf16.mxu0 0
    %610 = vmatpush2.bf16.xpose.msra.mxu0 0
    %611 = vmatprep.subr.bf16.mxu0 0
    %612 = vmatpush2.bf16.xpose.msra.mxu0 0
    %613 = vmatprep.subr.bf16.mxu0 0
    %614 = vmatpush2.bf16.xpose.msra.mxu0 0
    %615 = vmatprep.mubr.bf16.mxu0 0
    %616 = vmatmul.mubr.bf16.gmra.mxu0 %v578
    %v617 = vpop.f32.mrf.mxu0
    %v618 = vadd.f32 0.0, %v617
    %v619 = vpop.f32.mrf.mxu0
    %v620 = vpop.f32.mrf.mxu0
    %v621 = vpop.f32.mrf.mxu0
    %622 = vdwg.mxu0
    %v624 = vsel %vm484, %v393, 0
    %v627 = vsel %vm484, %v426, 0
    %629 = vmatprep.subr.bf16.mxu0 0
    %630 = vmatpush1.bf16.xpose.msra.mxu0 0
    %631 = vmatprep.subr.bf16.mxu0 0
    %632 = vmatpush1.bf16.xpose.msra.mxu0 0
    %633 = vmatprep.subr.bf16.mxu0 0
    %634 = vmatpush1.bf16.xpose.msra.mxu0 0
    %635 = vmatprep.subr.bf16.mxu0 0
    %636 = vmatpush1.bf16.xpose.msra.mxu0 0
    %637 = vmatprep.subr.bf16.mxu0 0
    %638 = vmatpush1.bf16.xpose.msra.mxu0 0
    %639 = vmatprep.subr.bf16.mxu0 0
    %640 = vmatpush1.bf16.xpose.msra.mxu0 0
    %641 = vmatprep.subr.bf16.mxu0 0
    %642 = vmatpush1.bf16.xpose.msra.mxu0 0
    %643 = vmatprep.subr.bf16.mxu0 0
    %644 = vmatpush1.bf16.xpose.msra.mxu0 %v627
    %645 = vmatprep.subr.bf16.mxu0 0
    %646 = vmatpush2.bf16.xpose.msra.mxu0 0
    %647 = vmatprep.subr.bf16.mxu0 0
    %648 = vmatpush2.bf16.xpose.msra.mxu0 0
    %649 = vmatprep.subr.bf16.mxu0 0
    %650 = vmatpush2.bf16.xpose.msra.mxu0 0
    %651 = vmatprep.subr.bf16.mxu0 0
    %652 = vmatpush2.bf16.xpose.msra.mxu0 0
    %653 = vmatprep.subr.bf16.mxu0 0
    %654 = vmatpush2.bf16.xpose.msra.mxu0 0
    %655 = vmatprep.subr.bf16.mxu0 0
    %656 = vmatpush2.bf16.xpose.msra.mxu0 0
    %657 = vmatprep.subr.bf16.mxu0 0
    %658 = vmatpush2.bf16.xpose.msra.mxu0 0
    %659 = vmatprep.subr.bf16.mxu0 0
    %660 = vmatpush2.bf16.xpose.msra.mxu0 0
    %661 = vmatprep.mubr.bf16.mxu0 0
    %662 = vmatmul.mubr.bf16.gmra.mxu0 %v624
    %v663 = vpop.f32.mrf.mxu0
    %v664 = vadd.f32 0.0, %v663
    %v665 = vpop.f32.mrf.mxu0
    %v666 = vpop.f32.mrf.mxu0
    %v667 = vpop.f32.mrf.mxu0
    %668 = vdwg.mxu0
    %v670 = vsel %vm484, %v395, 0
    %v673 = vsel %vm484, %v428, 0
    %675 = vmatprep.subr.bf16.mxu0 0
    %676 = vmatpush1.bf16.xpose.msra.mxu0 0
    %677 = vmatprep.subr.bf16.mxu0 0
    %678 = vmatpush1.bf16.xpose.msra.mxu0 0
    %679 = vmatprep.subr.bf16.mxu0 0
    %680 = vmatpush1.bf16.xpose.msra.mxu0 0
    %681 = vmatprep.subr.bf16.mxu0 0
    %682 = vmatpush1.bf16.xpose.msra.mxu0 0
    %683 = vmatprep.subr.bf16.mxu0 0
    %684 = vmatpush1.bf16.xpose.msra.mxu0 0
    %685 = vmatprep.subr.bf16.mxu0 0
    %686 = vmatpush1.bf16.xpose.msra.mxu0 0
    %687 = vmatprep.subr.bf16.mxu0 0
    %688 = vmatpush1.bf16.xpose.msra.mxu0 0
    %689 = vmatprep.subr.bf16.mxu0 0
    %690 = vmatpush1.bf16.xpose.msra.mxu0 %v673
    %691 = vmatprep.subr.bf16.mxu0 0
    %692 = vmatpush2.bf16.xpose.msra.mxu0 0
    %693 = vmatprep.subr.bf16.mxu0 0
    %694 = vmatpush2.bf16.xpose.msra.mxu0 0
    %695 = vmatprep.subr.bf16.mxu0 0
    %696 = vmatpush2.bf16.xpose.msra.mxu0 0
    %697 = vmatprep.subr.bf16.mxu0 0
    %698 = vmatpush2.bf16.xpose.msra.mxu0 0
    %699 = vmatprep.subr.bf16.mxu0 0
    %700 = vmatpush2.bf16.xpose.msra.mxu0 0
    %701 = vmatprep.subr.bf16.mxu0 0
    %702 = vmatpush2.bf16.xpose.msra.mxu0 0
    %703 = vmatprep.subr.bf16.mxu0 0
    %704 = vmatpush2.bf16.xpose.msra.mxu0 0
    %705 = vmatprep.subr.bf16.mxu0 0
    %706 = vmatpush2.bf16.xpose.msra.mxu0 0
    %707 = vmatprep.mubr.bf16.mxu0 0
    %708 = vmatmul.mubr.bf16.gmra.mxu0 %v670
    %v709 = vpop.f32.mrf.mxu0
    %v710 = vadd.f32 0.0, %v709
    %v711 = vpop.f32.mrf.mxu0
    %v712 = vpop.f32.mrf.mxu0
    %v713 = vpop.f32.mrf.mxu0
    %714 = vdwg.mxu0
    %v716 = vsel %vm484, %v397, 0
    %v719 = vsel %vm484, %v430, 0
    %721 = vmatprep.subr.bf16.mxu0 0
    %722 = vmatpush1.bf16.xpose.msra.mxu0 0
    %723 = vmatprep.subr.bf16.mxu0 0
    %724 = vmatpush1.bf16.xpose.msra.mxu0 0
    %725 = vmatprep.subr.bf16.mxu0 0
    %726 = vmatpush1.bf16.xpose.msra.mxu0 0
    %727 = vmatprep.subr.bf16.mxu0 0
    %728 = vmatpush1.bf16.xpose.msra.mxu0 0
    %729 = vmatprep.subr.bf16.mxu0 0
    %730 = vmatpush1.bf16.xpose.msra.mxu0 0
    %731 = vmatprep.subr.bf16.mxu0 0
    %732 = vmatpush1.bf16.xpose.msra.mxu0 0
    %733 = vmatprep.subr.bf16.mxu0 0
    %734 = vmatpush1.bf16.xpose.msra.mxu0 0
    %735 = vmatprep.subr.bf16.mxu0 0
    %736 = vmatpush1.bf16.xpose.msra.mxu0 %v719
    %737 = vmatprep.subr.bf16.mxu0 0
    %738 = vmatpush2.bf16.xpose.msra.mxu0 0
    %739 = vmatprep.subr.bf16.mxu0 0
    %740 = vmatpush2.bf16.xpose.msra.mxu0 0
    %741 = vmatprep.subr.bf16.mxu0 0
    %742 = vmatpush2.bf16.xpose.msra.mxu0 0
    %743 = vmatprep.subr.bf16.mxu0 0
    %744 = vmatpush2.bf16.xpose.msra.mxu0 0
    %745 = vmatprep.subr.bf16.mxu0 0
    %746 = vmatpush2.bf16.xpose.msra.mxu0 0
    %747 = vmatprep.subr.bf16.mxu0 0
    %748 = vmatpush2.bf16.xpose.msra.mxu0 0
    %749 = vmatprep.subr.bf16.mxu0 0
    %750 = vmatpush2.bf16.xpose.msra.mxu0 0
    %751 = vmatprep.subr.bf16.mxu0 0
    %752 = vmatpush2.bf16.xpose.msra.mxu0 0
    %753 = vmatprep.mubr.bf16.mxu0 0
    %754 = vmatmul.mubr.bf16.gmra.mxu0 %v716
    %v755 = vpop.f32.mrf.mxu0
    %v756 = vadd.f32 0.0, %v755
    %v757 = vpop.f32.mrf.mxu0
    %v758 = vpop.f32.mrf.mxu0
    %v759 = vpop.f32.mrf.mxu0
    %760 = vdwg.mxu0
    %v762 = vsel %vm484, %v399, 0
    %v765 = vsel %vm484, %v432, 0
    %767 = vmatprep.subr.bf16.mxu0 0
    %768 = vmatpush1.bf16.xpose.msra.mxu0 0
    %769 = vmatprep.subr.bf16.mxu0 0
    %770 = vmatpush1.bf16.xpose.msra.mxu0 0
    %771 = vmatprep.subr.bf16.mxu0 0
    %772 = vmatpush1.bf16.xpose.msra.mxu0 0
    %773 = vmatprep.subr.bf16.mxu0 0
    %774 = vmatpush1.bf16.xpose.msra.mxu0 0
    %775 = vmatprep.subr.bf16.mxu0 0
    %776 = vmatpush1.bf16.xpose.msra.mxu0 0
    %777 = vmatprep.subr.bf16.mxu0 0
    %778 = vmatpush1.bf16.xpose.msra.mxu0 0
    %779 = vmatprep.subr.bf16.mxu0 0
    %780 = vmatpush1.bf16.xpose.msra.mxu0 0
    %781 = vmatprep.subr.bf16.mxu0 0
    %782 = vmatpush1.bf16.xpose.msra.mxu0 %v765
    %783 = vmatprep.subr.bf16.mxu0 0
    %784 = vmatpush2.bf16.xpose.msra.mxu0 0
    %785 = vmatprep.subr.bf16.mxu0 0
    %786 = vmatpush2.bf16.xpose.msra.mxu0 0
    %787 = vmatprep.subr.bf16.mxu0 0
    %788 = vmatpush2.bf16.xpose.msra.mxu0 0
    %789 = vmatprep.subr.bf16.mxu0 0
    %790 = vmatpush2.bf16.xpose.msra.mxu0 0
    %791 = vmatprep.subr.bf16.mxu0 0
    %792 = vmatpush2.bf16.xpose.msra.mxu0 0
    %793 = vmatprep.subr.bf16.mxu0 0
    %794 = vmatpush2.bf16.xpose.msra.mxu0 0
    %795 = vmatprep.subr.bf16.mxu0 0
    %796 = vmatpush2.bf16.xpose.msra.mxu0 0
    %797 = vmatprep.subr.bf16.mxu0 0
    %798 = vmatpush2.bf16.xpose.msra.mxu0 0
    %799 = vmatprep.mubr.bf16.mxu0 0
    %800 = vmatmul.mubr.bf16.gmra.mxu0 %v762
    %v801 = vpop.f32.mrf.mxu0
    %v802 = vadd.f32 0.0, %v801
    %v803 = vpop.f32.mrf.mxu0
    %v804 = vpop.f32.mrf.mxu0
    %v805 = vpop.f32.mrf.mxu0
    %806 = vdwg.mxu0
    %v808 = vsel %vm484, %v401, 0
    %v811 = vsel %vm484, %v434, 0
    %813 = vmatprep.subr.bf16.mxu0 0
    %814 = vmatpush1.bf16.xpose.msra.mxu0 0
    %815 = vmatprep.subr.bf16.mxu0 0
    %816 = vmatpush1.bf16.xpose.msra.mxu0 0
    %817 = vmatprep.subr.bf16.mxu0 0
    %818 = vmatpush1.bf16.xpose.msra.mxu0 0
    %819 = vmatprep.subr.bf16.mxu0 0
    %820 = vmatpush1.bf16.xpose.msra.mxu0 0
    %821 = vmatprep.subr.bf16.mxu0 0
    %822 = vmatpush1.bf16.xpose.msra.mxu0 0
    %823 = vmatprep.subr.bf16.mxu0 0
    %824 = vmatpush1.bf16.xpose.msra.mxu0 0
    %825 = vmatprep.subr.bf16.mxu0 0
    %826 = vmatpush1.bf16.xpose.msra.mxu0 0
    %827 = vmatprep.subr.bf16.mxu0 0
    %828 = vmatpush1.bf16.xpose.msra.mxu0 %v811
    %829 = vmatprep.subr.bf16.mxu0 0
    %830 = vmatpush2.bf16.xpose.msra.mxu0 0
    %831 = vmatprep.subr.bf16.mxu0 0
    %832 = vmatpush2.bf16.xpose.msra.mxu0 0
    %833 = vmatprep.subr.bf16.mxu0 0
    %834 = vmatpush2.bf16.xpose.msra.mxu0 0
    %835 = vmatprep.subr.bf16.mxu0 0
    %836 = vmatpush2.bf16.xpose.msra.mxu0 0
    %837 = vmatprep.subr.bf16.mxu0 0
    %838 = vmatpush2.bf16.xpose.msra.mxu0 0
    %839 = vmatprep.subr.bf16.mxu0 0
    %840 = vmatpush2.bf16.xpose.msra.mxu0 0
    %841 = vmatprep.subr.bf16.mxu0 0
    %842 = vmatpush2.bf16.xpose.msra.mxu0 0
    %843 = vmatprep.subr.bf16.mxu0 0
    %844 = vmatpush2.bf16.xpose.msra.mxu0 0
    %845 = vmatprep.mubr.bf16.mxu0 0
    %846 = vmatmul.mubr.bf16.gmra.mxu0 %v808
    %v847 = vpop.f32.mrf.mxu0
    %v848 = vadd.f32 0.0, %v847
    %v849 = vpop.f32.mrf.mxu0
    %v850 = vpop.f32.mrf.mxu0
    %v851 = vpop.f32.mrf.mxu0
    %852 = vdwg.mxu0
    %v854 = vsel %vm484, %v403, 0
    %v857 = vsel %vm484, %v436, 0
    %859 = vmatprep.subr.bf16.mxu0 0
    %860 = vmatpush1.bf16.xpose.msra.mxu0 0
    %861 = vmatprep.subr.bf16.mxu0 0
    %862 = vmatpush1.bf16.xpose.msra.mxu0 0
    %863 = vmatprep.subr.bf16.mxu0 0
    %864 = vmatpush1.bf16.xpose.msra.mxu0 0
    %865 = vmatprep.subr.bf16.mxu0 0
    %866 = vmatpush1.bf16.xpose.msra.mxu0 0
    %867 = vmatprep.subr.bf16.mxu0 0
    %868 = vmatpush1.bf16.xpose.msra.mxu0 0
    %869 = vmatprep.subr.bf16.mxu0 0
    %870 = vmatpush1.bf16.xpose.msra.mxu0 0
    %871 = vmatprep.subr.bf16.mxu0 0
    %872 = vmatpush1.bf16.xpose.msra.mxu0 0
    %873 = vmatprep.subr.bf16.mxu0 0
    %874 = vmatpush1.bf16.xpose.msra.mxu0 %v857
    %875 = vmatprep.subr.bf16.mxu0 0
    %876 = vmatpush2.bf16.xpose.msra.mxu0 0
    %877 = vmatprep.subr.bf16.mxu0 0
    %878 = vmatpush2.bf16.xpose.msra.mxu0 0
    %879 = vmatprep.subr.bf16.mxu0 0
    %880 = vmatpush2.bf16.xpose.msra.mxu0 0
    %881 = vmatprep.subr.bf16.mxu0 0
    %882 = vmatpush2.bf16.xpose.msra.mxu0 0
    %883 = vmatprep.subr.bf16.mxu0 0
    %884 = vmatpush2.bf16.xpose.msra.mxu0 0
    %885 = vmatprep.subr.bf16.mxu0 0
    %886 = vmatpush2.bf16.xpose.msra.mxu0 0
    %887 = vmatprep.subr.bf16.mxu0 0
    %888 = vmatpush2.bf16.xpose.msra.mxu0 0
    %889 = vmatprep.subr.bf16.mxu0 0
    %890 = vmatpush2.bf16.xpose.msra.mxu0 0
    %891 = vmatprep.mubr.bf16.mxu0 0
    %892 = vmatmul.mubr.bf16.gmra.mxu0 %v854
    %v893 = vpop.f32.mrf.mxu0
    %v894 = vadd.f32 0.0, %v893
    %v895 = vpop.f32.mrf.mxu0
    %v896 = vpop.f32.mrf.mxu0
    %v897 = vpop.f32.mrf.mxu0
    %898 = vdwg.mxu0
    %v900 = vsel %vm484, %v405, 0
    %v903 = vsel %vm484, %v438, 0
    %905 = vmatprep.subr.bf16.mxu0 0
    %906 = vmatpush1.bf16.xpose.msra.mxu0 0
    %907 = vmatprep.subr.bf16.mxu0 0
    %908 = vmatpush1.bf16.xpose.msra.mxu0 0
    %909 = vmatprep.subr.bf16.mxu0 0
    %910 = vmatpush1.bf16.xpose.msra.mxu0 0
    %911 = vmatprep.subr.bf16.mxu0 0
    %912 = vmatpush1.bf16.xpose.msra.mxu0 0
    %913 = vmatprep.subr.bf16.mxu0 0
    %914 = vmatpush1.bf16.xpose.msra.mxu0 0
    %915 = vmatprep.subr.bf16.mxu0 0
    %916 = vmatpush1.bf16.xpose.msra.mxu0 0
    %917 = vmatprep.subr.bf16.mxu0 0
    %918 = vmatpush1.bf16.xpose.msra.mxu0 0
    %919 = vmatprep.subr.bf16.mxu0 0
    %920 = vmatpush1.bf16.xpose.msra.mxu0 %v903
    %921 = vmatprep.subr.bf16.mxu0 0
    %922 = vmatpush2.bf16.xpose.msra.mxu0 0
    %923 = vmatprep.subr.bf16.mxu0 0
    %924 = vmatpush2.bf16.xpose.msra.mxu0 0
    %925 = vmatprep.subr.bf16.mxu0 0
    %926 = vmatpush2.bf16.xpose.msra.mxu0 0
    %927 = vmatprep.subr.bf16.mxu0 0
    %928 = vmatpush2.bf16.xpose.msra.mxu0 0
    %929 = vmatprep.subr.bf16.mxu0 0
    %930 = vmatpush2.bf16.xpose.msra.mxu0 0
    %931 = vmatprep.subr.bf16.mxu0 0
    %932 = vmatpush2.bf16.xpose.msra.mxu0 0
    %933 = vmatprep.subr.bf16.mxu0 0
    %934 = vmatpush2.bf16.xpose.msra.mxu0 0
    %935 = vmatprep.subr.bf16.mxu0 0
    %936 = vmatpush2.bf16.xpose.msra.mxu0 0
    %937 = vmatprep.mubr.bf16.mxu0 0
    %938 = vmatmul.mubr.bf16.gmra.mxu0 %v900
    %v939 = vpop.f32.mrf.mxu0
    %v940 = vadd.f32 0.0, %v939
    %v941 = vpop.f32.mrf.mxu0
    %v942 = vpop.f32.mrf.mxu0
    %v943 = vpop.f32.mrf.mxu0
    %944 = vdwg.mxu0
    %v946 = vsel %vm484, %v407, 0
    %v949 = vsel %vm484, %v440, 0
    %951 = vmatprep.subr.bf16.mxu0 0
    %952 = vmatpush1.bf16.xpose.msra.mxu0 0
    %953 = vmatprep.subr.bf16.mxu0 0
    %954 = vmatpush1.bf16.xpose.msra.mxu0 0
    %955 = vmatprep.subr.bf16.mxu0 0
    %956 = vmatpush1.bf16.xpose.msra.mxu0 0
    %957 = vmatprep.subr.bf16.mxu0 0
    %958 = vmatpush1.bf16.xpose.msra.mxu0 0
    %959 = vmatprep.subr.bf16.mxu0 0
    %960 = vmatpush1.bf16.xpose.msra.mxu0 0
    %961 = vmatprep.subr.bf16.mxu0 0
    %962 = vmatpush1.bf16.xpose.msra.mxu0 0
    %963 = vmatprep.subr.bf16.mxu0 0
    %964 = vmatpush1.bf16.xpose.msra.mxu0 0
    %965 = vmatprep.subr.bf16.mxu0 0
    %966 = vmatpush1.bf16.xpose.msra.mxu0 %v949
    %967 = vmatprep.subr.bf16.mxu0 0
    %968 = vmatpush2.bf16.xpose.msra.mxu0 0
    %969 = vmatprep.subr.bf16.mxu0 0
    %970 = vmatpush2.bf16.xpose.msra.mxu0 0
    %971 = vmatprep.subr.bf16.mxu0 0
    %972 = vmatpush2.bf16.xpose.msra.mxu0 0
    %973 = vmatprep.subr.bf16.mxu0 0
    %974 = vmatpush2.bf16.xpose.msra.mxu0 0
    %975 = vmatprep.subr.bf16.mxu0 0
    %976 = vmatpush2.bf16.xpose.msra.mxu0 0
    %977 = vmatprep.subr.bf16.mxu0 0
    %978 = vmatpush2.bf16.xpose.msra.mxu0 0
    %979 = vmatprep.subr.bf16.mxu0 0
    %980 = vmatpush2.bf16.xpose.msra.mxu0 0
    %981 = vmatprep.subr.bf16.mxu0 0
    %982 = vmatpush2.bf16.xpose.msra.mxu0 0
    %983 = vmatprep.mubr.bf16.mxu0 0
    %984 = vmatmul.mubr.bf16.gmra.mxu0 %v946
    %v985 = vpop.f32.mrf.mxu0
    %v986 = vadd.f32 0.0, %v985
    %v987 = vpop.f32.mrf.mxu0
    %v988 = vpop.f32.mrf.mxu0
    %v989 = vpop.f32.mrf.mxu0
    %990 = vdwg.mxu0
    %v992 = vsel %vm484, %v409, 0
    %v995 = vsel %vm484, %v442, 0
    %997 = vmatprep.subr.bf16.mxu0 0
    %998 = vmatpush1.bf16.xpose.msra.mxu0 0
    %999 = vmatprep.subr.bf16.mxu0 0
    %1000 = vmatpush1.bf16.xpose.msra.mxu0 0
    %1001 = vmatprep.subr.bf16.mxu0 0
    %1002 = vmatpush1.bf16.xpose.msra.mxu0 0
    %1003 = vmatprep.subr.bf16.mxu0 0
    %1004 = vmatpush1.bf16.xpose.msra.mxu0 0
    %1005 = vmatprep.subr.bf16.mxu0 0
    %1006 = vmatpush1.bf16.xpose.msra.mxu0 0
    %1007 = vmatprep.subr.bf16.mxu0 0
    %1008 = vmatpush1.bf16.xpose.msra.mxu0 0
    %1009 = vmatprep.subr.bf16.mxu0 0
    %1010 = vmatpush1.bf16.xpose.msra.mxu0 0
    %1011 = vmatprep.subr.bf16.mxu0 0
    %1012 = vmatpush1.bf16.xpose.msra.mxu0 %v995
    %1013 = vmatprep.subr.bf16.mxu0 0
    %1014 = vmatpush2.bf16.xpose.msra.mxu0 0
    %1015 = vmatprep.subr.bf16.mxu0 0
    %1016 = vmatpush2.bf16.xpose.msra.mxu0 0
    %1017 = vmatprep.subr.bf16.mxu0 0
    %1018 = vmatpush2.bf16.xpose.msra.mxu0 0
    %1019 = vmatprep.subr.bf16.mxu0 0
    %1020 = vmatpush2.bf16.xpose.msra.mxu0 0
    %1021 = vmatprep.subr.bf16.mxu0 0
    %1022 = vmatpush2.bf16.xpose.msra.mxu0 0
    %1023 = vmatprep.subr.bf16.mxu0 0
    %1024 = vmatpush2.bf16.xpose.msra.mxu0 0
    %1025 = vmatprep.subr.bf16.mxu0 0
    %1026 = vmatpush2.bf16.xpose.msra.mxu0 0
    %1027 = vmatprep.subr.bf16.mxu0 0
    %1028 = vmatpush2.bf16.xpose.msra.mxu0 0
    %1029 = vmatprep.mubr.bf16.mxu0 0
    %1030 = vmatmul.mubr.bf16.gmra.mxu0 %v992
    %v1031 = vpop.f32.mrf.mxu0
    %v1032 = vadd.f32 0.0, %v1031
    %v1033 = vpop.f32.mrf.mxu0
    %v1034 = vpop.f32.mrf.mxu0
    %v1035 = vpop.f32.mrf.mxu0
    %1036 = vdwg.mxu0
    %v1038 = vsel %vm484, %v411, 0
    %v1041 = vsel %vm484, %v444, 0
    %1043 = vmatprep.subr.bf16.mxu0 0
    %1044 = vmatpush1.bf16.xpose.msra.mxu0 0
    %1045 = vmatprep.subr.bf16.mxu0 0
    %1046 = vmatpush1.bf16.xpose.msra.mxu0 0
    %1047 = vmatprep.subr.bf16.mxu0 0
    %1048 = vmatpush1.bf16.xpose.msra.mxu0 0
    %1049 = vmatprep.subr.bf16.mxu0 0
    %1050 = vmatpush1.bf16.xpose.msra.mxu0 0
    %1051 = vmatprep.subr.bf16.mxu0 0
    %1052 = vmatpush1.bf16.xpose.msra.mxu0 0
    %1053 = vmatprep.subr.bf16.mxu0 0
    %1054 = vmatpush1.bf16.xpose.msra.mxu0 0
    %1055 = vmatprep.subr.bf16.mxu0 0
    %1056 = vmatpush1.bf16.xpose.msra.mxu0 0
    %1057 = vmatprep.subr.bf16.mxu0 0
    %1058 = vmatpush1.bf16.xpose.msra.mxu0 %v1041
    %1059 = vmatprep.subr.bf16.mxu0 0
    %1060 = vmatpush2.bf16.xpose.msra.mxu0 0
    %1061 = vmatprep.subr.bf16.mxu0 0
    %1062 = vmatpush2.bf16.xpose.msra.mxu0 0
    %1063 = vmatprep.subr.bf16.mxu0 0
    %1064 = vmatpush2.bf16.xpose.msra.mxu0 0
    %1065 = vmatprep.subr.bf16.mxu0 0
    %1066 = vmatpush2.bf16.xpose.msra.mxu0 0
    %1067 = vmatprep.subr.bf16.mxu0 0
    %1068 = vmatpush2.bf16.xpose.msra.mxu0 0
    %1069 = vmatprep.subr.bf16.mxu0 0
    %1070 = vmatpush2.bf16.xpose.msra.mxu0 0
    %1071 = vmatprep.subr.bf16.mxu0 0
    %1072 = vmatpush2.bf16.xpose.msra.mxu0 0
    %1073 = vmatprep.subr.bf16.mxu0 0
    %1074 = vmatpush2.bf16.xpose.msra.mxu0 0
    %1075 = vmatprep.mubr.bf16.mxu0 0
    %1076 = vmatmul.mubr.bf16.gmra.mxu0 %v1038
    %v1077 = vpop.f32.mrf.mxu0
    %v1078 = vadd.f32 0.0, %v1077
    %v1079 = vpop.f32.mrf.mxu0
    %v1080 = vpop.f32.mrf.mxu0
    %v1081 = vpop.f32.mrf.mxu0
    %1082 = vdwg.mxu0
    %v1084 = vsel %vm484, %v413, 0
    %v1087 = vsel %vm484, %v446, 0
    %1089 = vmatprep.subr.bf16.mxu0 0
    %1090 = vmatpush1.bf16.xpose.msra.mxu0 0
    %1091 = vmatprep.subr.bf16.mxu0 0
    %1092 = vmatpush1.bf16.xpose.msra.mxu0 0
    %1093 = vmatprep.subr.bf16.mxu0 0
    %1094 = vmatpush1.bf16.xpose.msra.mxu0 0
    %1095 = vmatprep.subr.bf16.mxu0 0
    %1096 = vmatpush1.bf16.xpose.msra.mxu0 0
    %1097 = vmatprep.subr.bf16.mxu0 0
    %1098 = vmatpush1.bf16.xpose.msra.mxu0 0
    %1099 = vmatprep.subr.bf16.mxu0 0
    %1100 = vmatpush1.bf16.xpose.msra.mxu0 0
    %1101 = vmatprep.subr.bf16.mxu0 0
    %1102 = vmatpush1.bf16.xpose.msra.mxu0 0
    %1103 = vmatprep.subr.bf16.mxu0 0
    %1104 = vmatpush1.bf16.xpose.msra.mxu0 %v1087
    %1105 = vmatprep.subr.bf16.mxu0 0
    %1106 = vmatpush2.bf16.xpose.msra.mxu0 0
    %1107 = vmatprep.subr.bf16.mxu0 0
    %1108 = vmatpush2.bf16.xpose.msra.mxu0 0
    %1109 = vmatprep.subr.bf16.mxu0 0
    %1110 = vmatpush2.bf16.xpose.msra.mxu0 0
    %1111 = vmatprep.subr.bf16.mxu0 0
    %1112 = vmatpush2.bf16.xpose.msra.mxu0 0
    %1113 = vmatprep.subr.bf16.mxu0 0
    %1114 = vmatpush2.bf16.xpose.msra.mxu0 0
    %1115 = vmatprep.subr.bf16.mxu0 0
    %1116 = vmatpush2.bf16.xpose.msra.mxu0 0
    %1117 = vmatprep.subr.bf16.mxu0 0
    %1118 = vmatpush2.bf16.xpose.msra.mxu0 0
    %1119 = vmatprep.subr.bf16.mxu0 0
    %1120 = vmatpush2.bf16.xpose.msra.mxu0 0
    %1121 = vmatprep.mubr.bf16.mxu0 0
    %1122 = vmatmul.mubr.bf16.gmra.mxu0 %v1084
    %v1123 = vpop.f32.mrf.mxu0
    %v1124 = vadd.f32 0.0, %v1123
    %v1125 = vpop.f32.mrf.mxu0
    %v1126 = vpop.f32.mrf.mxu0
    %v1127 = vpop.f32.mrf.mxu0
    %1128 = vdwg.mxu0
    %v1130 = vsel %vm484, %v415, 0
    %v1133 = vsel %vm484, %v448, 0
    %1135 = vmatprep.subr.bf16.mxu0 0
    %1136 = vmatpush1.bf16.xpose.msra.mxu0 0
    %1137 = vmatprep.subr.bf16.mxu0 0
    %1138 = vmatpush1.bf16.xpose.msra.mxu0 0
    %1139 = vmatprep.subr.bf16.mxu0 0
    %1140 = vmatpush1.bf16.xpose.msra.mxu0 0
    %1141 = vmatprep.subr.bf16.mxu0 0
    %1142 = vmatpush1.bf16.xpose.msra.mxu0 0
    %1143 = vmatprep.subr.bf16.mxu0 0
    %1144 = vmatpush1.bf16.xpose.msra.mxu0 0
    %1145 = vmatprep.subr.bf16.mxu0 0
    %1146 = vmatpush1.bf16.xpose.msra.mxu0 0
    %1147 = vmatprep.subr.bf16.mxu0 0
    %1148 = vmatpush1.bf16.xpose.msra.mxu0 0
    %1149 = vmatprep.subr.bf16.mxu0 0
    %1150 = vmatpush1.bf16.xpose.msra.mxu0 %v1133
    %1151 = vmatprep.subr.bf16.mxu0 0
    %1152 = vmatpush2.bf16.xpose.msra.mxu0 0
    %1153 = vmatprep.subr.bf16.mxu0 0
    %1154 = vmatpush2.bf16.xpose.msra.mxu0 0
    %1155 = vmatprep.subr.bf16.mxu0 0
    %1156 = vmatpush2.bf16.xpose.msra.mxu0 0
    %1157 = vmatprep.subr.bf16.mxu0 0
    %1158 = vmatpush2.bf16.xpose.msra.mxu0 0
    %1159 = vmatprep.subr.bf16.mxu0 0
    %1160 = vmatpush2.bf16.xpose.msra.mxu0 0
    %1161 = vmatprep.subr.bf16.mxu0 0
    %1162 = vmatpush2.bf16.xpose.msra.mxu0 0
    %1163 = vmatprep.subr.bf16.mxu0 0
    %1164 = vmatpush2.bf16.xpose.msra.mxu0 0
    %1165 = vmatprep.subr.bf16.mxu0 0
    %1166 = vmatpush2.bf16.xpose.msra.mxu0 0
    %1167 = vmatprep.mubr.bf16.mxu0 0
    %1168 = vmatmul.mubr.bf16.gmra.mxu0 %v1130
    %v1169 = vpop.f32.mrf.mxu0
    %v1170 = vadd.f32 0.0, %v1169
    %v1171 = vpop.f32.mrf.mxu0
    %v1172 = vpop.f32.mrf.mxu0
    %v1173 = vpop.f32.mrf.mxu0
    %1174 = vdwg.mxu0
    %v1176 = vsel %vm484, %v417, 0
    %v1179 = vsel %vm484, %v450, 0
    %1181 = vmatprep.subr.bf16.mxu0 0
    %1182 = vmatpush1.bf16.xpose.msra.mxu0 0
    %1183 = vmatprep.subr.bf16.mxu0 0
    %1184 = vmatpush1.bf16.xpose.msra.mxu0 0
    %1185 = vmatprep.subr.bf16.mxu0 0
    %1186 = vmatpush1.bf16.xpose.msra.mxu0 0
    %1187 = vmatprep.subr.bf16.mxu0 0
    %1188 = vmatpush1.bf16.xpose.msra.mxu0 0
    %1189 = vmatprep.subr.bf16.mxu0 0
    %1190 = vmatpush1.bf16.xpose.msra.mxu0 0
    %1191 = vmatprep.subr.bf16.mxu0 0
    %1192 = vmatpush1.bf16.xpose.msra.mxu0 0
    %1193 = vmatprep.subr.bf16.mxu0 0
    %1194 = vmatpush1.bf16.xpose.msra.mxu0 0
    %1195 = vmatprep.subr.bf16.mxu0 0
    %1196 = vmatpush1.bf16.xpose.msra.mxu0 %v1179
    %1197 = vmatprep.subr.bf16.mxu0 0
    %1198 = vmatpush2.bf16.xpose.msra.mxu0 0
    %1199 = vmatprep.subr.bf16.mxu0 0
    %1200 = vmatpush2.bf16.xpose.msra.mxu0 0
    %1201 = vmatprep.subr.bf16.mxu0 0
    %1202 = vmatpush2.bf16.xpose.msra.mxu0 0
    %1203 = vmatprep.subr.bf16.mxu0 0
    %1204 = vmatpush2.bf16.xpose.msra.mxu0 0
    %1205 = vmatprep.subr.bf16.mxu0 0
    %1206 = vmatpush2.bf16.xpose.msra.mxu0 0
    %1207 = vmatprep.subr.bf16.mxu0 0
    %1208 = vmatpush2.bf16.xpose.msra.mxu0 0
    %1209 = vmatprep.subr.bf16.mxu0 0
    %1210 = vmatpush2.bf16.xpose.msra.mxu0 0
    %1211 = vmatprep.subr.bf16.mxu0 0
    %1212 = vmatpush2.bf16.xpose.msra.mxu0 0
    %1213 = vmatprep.mubr.bf16.mxu0 0
    %1214 = vmatmul.mubr.bf16.gmra.mxu0 %v1176
    %v1215 = vpop.f32.mrf.mxu0
    %v1216 = vadd.f32 0.0, %v1215
    %v1217 = vpop.f32.mrf.mxu0
    %v1218 = vpop.f32.mrf.mxu0
    %v1219 = vpop.f32.mrf.mxu0
    %1220 = vdwg.mxu0
    %v1221 = vsel %vm484, %v526, -inf
    %1222 = vmax.xlane.f32.xlu0 %v1221
    %v1223 = vpop.xlane.xlu0 %1222
    %v1224 = vsel %vm484, %v572, -inf
    %1225 = vmax.xlane.f32.xlu0 %v1224
    %v1226 = vpop.xlane.xlu0 %1225
    %v1227 = vsel %vm484, %v618, -inf
    %1228 = vmax.xlane.f32.xlu0 %v1227
    %v1229 = vpop.xlane.xlu0 %1228
    %v1230 = vsel %vm484, %v664, -inf
    %1231 = vmax.xlane.f32.xlu0 %v1230
    %v1232 = vpop.xlane.xlu0 %1231
    %v1233 = vsel %vm484, %v710, -inf
    %1234 = vmax.xlane.f32.xlu0 %v1233
    %v1235 = vpop.xlane.xlu0 %1234
    %v1236 = vsel %vm484, %v756, -inf
    %1237 = vmax.xlane.f32.xlu0 %v1236
    %v1238 = vpop.xlane.xlu0 %1237
    %v1239 = vsel %vm484, %v802, -inf
    %1240 = vmax.xlane.f32.xlu0 %v1239
    %v1241 = vpop.xlane.xlu0 %1240
    %v1242 = vsel %vm484, %v848, -inf
    %1243 = vmax.xlane.f32.xlu0 %v1242
    %v1244 = vpop.xlane.xlu0 %1243
    %v1245 = vsel %vm484, %v894, -inf
    %1246 = vmax.xlane.f32.xlu0 %v1245
    %v1247 = vpop.xlane.xlu0 %1246
    %v1248 = vsel %vm484, %v940, -inf
    %1249 = vmax.xlane.f32.xlu0 %v1248
    %v1250 = vpop.xlane.xlu0 %1249
    %v1251 = vsel %vm484, %v986, -inf
    %1252 = vmax.xlane.f32.xlu0 %v1251
    %v1253 = vpop.xlane.xlu0 %1252
    %v1254 = vsel %vm484, %v1032, -inf
    %1255 = vmax.xlane.f32.xlu0 %v1254
    %v1256 = vpop.xlane.xlu0 %1255
    %v1257 = vsel %vm484, %v1078, -inf
    %1258 = vmax.xlane.f32.xlu0 %v1257
    %v1259 = vpop.xlane.xlu0 %1258
    %v1260 = vsel %vm484, %v1124, -inf
    %1261 = vmax.xlane.f32.xlu0 %v1260
    %v1262 = vpop.xlane.xlu0 %1261
    %v1263 = vsel %vm484, %v1170, -inf
    %1264 = vmax.xlane.f32.xlu0 %v1263
    %v1265 = vpop.xlane.xlu0 %1264
    %v1266 = vsel %vm484, %v1216, -inf
    %1267 = vmax.xlane.f32.xlu0 %v1266
    %v1268 = vpop.xlane.xlu0 %1267
    %v1269 = vsub.f32 %v526, %v1223
    %v1270 = vsub.f32 %v572, %v1226
    %v1271 = vsub.f32 %v618, %v1229
    %v1272 = vsub.f32 %v664, %v1232
    %v1273 = vsub.f32 %v710, %v1235
    %v1274 = vsub.f32 %v756, %v1238
    %v1275 = vsub.f32 %v802, %v1241
    %v1276 = vsub.f32 %v848, %v1244
    %v1277 = vsub.f32 %v894, %v1247
    %v1278 = vsub.f32 %v940, %v1250
    %v1279 = vsub.f32 %v986, %v1253
    %v1280 = vsub.f32 %v1032, %v1256
    %v1281 = vsub.f32 %v1078, %v1259
    %v1282 = vsub.f32 %v1124, %v1262
    %v1283 = vsub.f32 %v1170, %v1265
    %v1284 = vsub.f32 %v1216, %v1268
    %v1285 = vmul.f32 %v1269, 1.442695
    %v1286 = vpow.pop %v1285
    %v1287 = vmul.f32 %v1270, 1.442695
    %v1288 = vpow.pop %v1287
    %v1289 = vmul.f32 %v1271, 1.442695
    %v1290 = vpow.pop %v1289
    %v1291 = vmul.f32 %v1272, 1.442695
    %v1292 = vpow.pop %v1291
    %v1293 = vmul.f32 %v1273, 1.442695
    %v1294 = vpow.pop %v1293
    %v1295 = vmul.f32 %v1274, 1.442695
    %v1296 = vpow.pop %v1295
    %v1297 = vmul.f32 %v1275, 1.442695
    %v1298 = vpow.pop %v1297
    %v1299 = vmul.f32 %v1276, 1.442695
    %v1300 = vpow.pop %v1299
    %v1301 = vmul.f32 %v1277, 1.442695
    %v1302 = vpow.pop %v1301
    %v1303 = vmul.f32 %v1278, 1.442695
    %v1304 = vpow.pop %v1303
    %v1305 = vmul.f32 %v1279, 1.442695
    %v1306 = vpow.pop %v1305
    %v1307 = vmul.f32 %v1280, 1.442695
    %v1308 = vpow.pop %v1307
    %v1309 = vmul.f32 %v1281, 1.442695
    %v1310 = vpow.pop %v1309
    %v1311 = vmul.f32 %v1282, 1.442695
    %v1312 = vpow.pop %v1311
    %v1313 = vmul.f32 %v1283, 1.442695
    %v1314 = vpow.pop %v1313
    %v1315 = vmul.f32 %v1284, 1.442695
    %v1316 = vpow.pop %v1315
    %v1317 = vsel %vm484, %v1286, 0.0
    %1318 = vadd.xlane.f32.xlu0 %v1317
    %v1319 = vpop.xlane.xlu0 %1318
    %v1320 = vsel %vm484, %v1288, 0.0
    %1321 = vadd.xlane.f32.xlu0 %v1320
    %v1322 = vpop.xlane.xlu0 %1321
    %v1323 = vsel %vm484, %v1290, 0.0
    %1324 = vadd.xlane.f32.xlu0 %v1323
    %v1325 = vpop.xlane.xlu0 %1324
    %v1326 = vsel %vm484, %v1292, 0.0
    %1327 = vadd.xlane.f32.xlu0 %v1326
    %v1328 = vpop.xlane.xlu0 %1327
    %v1329 = vsel %vm484, %v1294, 0.0
    %1330 = vadd.xlane.f32.xlu0 %v1329
    %v1331 = vpop.xlane.xlu0 %1330
    %v1332 = vsel %vm484, %v1296, 0.0
    %1333 = vadd.xlane.f32.xlu0 %v1332
    %v1334 = vpop.xlane.xlu0 %1333
    %v1335 = vsel %vm484, %v1298, 0.0
    %1336 = vadd.xlane.f32.xlu0 %v1335
    %v1337 = vpop.xlane.xlu0 %1336
    %v1338 = vsel %vm484, %v1300, 0.0
    %1339 = vadd.xlane.f32.xlu0 %v1338
    %v1340 = vpop.xlane.xlu0 %1339
    %v1341 = vsel %vm484, %v1302, 0.0
    %1342 = vadd.xlane.f32.xlu0 %v1341
    %v1343 = vpop.xlane.xlu0 %1342
    %v1344 = vsel %vm484, %v1304, 0.0
    %1345 = vadd.xlane.f32.xlu0 %v1344
    %v1346 = vpop.xlane.xlu0 %1345
    %v1347 = vsel %vm484, %v1306, 0.0
    %1348 = vadd.xlane.f32.xlu0 %v1347
    %v1349 = vpop.xlane.xlu0 %1348
    %v1350 = vsel %vm484, %v1308, 0.0
    %1351 = vadd.xlane.f32.xlu0 %v1350
    %v1352 = vpop.xlane.xlu0 %1351
    %v1353 = vsel %vm484, %v1310, 0.0
    %1354 = vadd.xlane.f32.xlu0 %v1353
    %v1355 = vpop.xlane.xlu0 %1354
    %v1356 = vsel %vm484, %v1312, 0.0
    %1357 = vadd.xlane.f32.xlu0 %v1356
    %v1358 = vpop.xlane.xlu0 %1357
    %v1359 = vsel %vm484, %v1314, 0.0
    %1360 = vadd.xlane.f32.xlu0 %v1359
    %v1361 = vpop.xlane.xlu0 %1360
    %v1362 = vsel %vm484, %v1316, 0.0
    %1363 = vadd.xlane.f32.xlu0 %v1362
    %v1364 = vpop.xlane.xlu0 %1363
    %v1365 = vrcp.pop %v1319
    %v1366 = vrcp.pop %v1322
    %v1367 = vrcp.pop %v1325
    %v1368 = vrcp.pop %v1328
    %v1369 = vrcp.pop %v1331
    %v1370 = vrcp.pop %v1334
    %v1371 = vrcp.pop %v1337
    %v1372 = vrcp.pop %v1340
    %v1373 = vrcp.pop %v1343
    %v1374 = vrcp.pop %v1346
    %v1375 = vrcp.pop %v1349
    %v1376 = vrcp.pop %v1352
    %v1377 = vrcp.pop %v1355
    %v1378 = vrcp.pop %v1358
    %v1379 = vrcp.pop %v1361
    %v1380 = vrcp.pop %v1364
    %v1381 = vmul.f32 %v1286, %v1365
    %v1382 = vmul.f32 %v1288, %v1366
    %v1383 = vmul.f32 %v1290, %v1367
    %v1384 = vmul.f32 %v1292, %v1368
    %v1385 = vmul.f32 %v1294, %v1369
    %v1386 = vmul.f32 %v1296, %v1370
    %v1387 = vmul.f32 %v1298, %v1371
    %v1388 = vmul.f32 %v1300, %v1372
    %v1389 = vmul.f32 %v1302, %v1373
    %v1390 = vmul.f32 %v1304, %v1374
    %v1391 = vmul.f32 %v1306, %v1375
    %v1392 = vmul.f32 %v1308, %v1376
    %v1393 = vmul.f32 %v1310, %v1377
    %v1394 = vmul.f32 %v1312, %v1378
    %v1395 = vmul.f32 %v1314, %v1379
    %v1396 = vmul.f32 %v1316, %v1380
    %v1397 = vpack.c.bf16 %v1381, %v1381
    %v1398 = vpack.c.bf16 %v1382, %v1382
    %v1399 = vpack.c.bf16 %v1383, %v1383
    %v1400 = vpack.c.bf16 %v1384, %v1384
    %v1401 = vpack.c.bf16 %v1385, %v1385
    %v1402 = vpack.c.bf16 %v1386, %v1386
    %v1403 = vpack.c.bf16 %v1387, %v1387
    %v1404 = vpack.c.bf16 %v1388, %v1388
    %v1405 = vpack.c.bf16 %v1389, %v1389
    %v1406 = vpack.c.bf16 %v1390, %v1390
    %v1407 = vpack.c.bf16 %v1391, %v1391
    %v1408 = vpack.c.bf16 %v1392, %v1392
    %v1409 = vpack.c.bf16 %v1393, %v1393
    %v1410 = vpack.c.bf16 %v1394, %v1394
    %v1411 = vpack.c.bf16 %v1395, %v1395
    %v1412 = vpack.c.bf16 %v1396, %v1396
    %v1414 = vsel %vm484, %v1397, 0
    %vm1416 = vcmask 1043456
    %v1418 = vsel %vm1416, %v454, 0
    %1420 = vmatprep.subr.bf16.mxu0 0
    %1421 = vmatpush1.bf16.msra.mxu0 0
    %1422 = vmatprep.subr.bf16.mxu0 0
    %1423 = vmatpush1.bf16.msra.mxu0 0
    %1424 = vmatprep.subr.bf16.mxu0 0
    %1425 = vmatpush1.bf16.msra.mxu0 0
    %1426 = vmatprep.subr.bf16.mxu0 0
    %1427 = vmatpush1.bf16.msra.mxu0 0
    %1428 = vmatprep.subr.bf16.mxu0 0
    %1429 = vmatpush1.bf16.msra.mxu0 0
    %1430 = vmatprep.subr.bf16.mxu0 0
    %1431 = vmatpush1.bf16.msra.mxu0 0
    %1432 = vmatprep.subr.bf16.mxu0 0
    %1433 = vmatpush1.bf16.msra.mxu0 0
    %1434 = vmatprep.subr.bf16.mxu0 0
    %1435 = vmatpush1.bf16.msra.mxu0 %v1418
    %1436 = vmatprep.subr.bf16.mxu0 0
    %1437 = vmatpush2.bf16.msra.mxu0 0
    %1438 = vmatprep.subr.bf16.mxu0 0
    %1439 = vmatpush2.bf16.msra.mxu0 0
    %1440 = vmatprep.subr.bf16.mxu0 0
    %1441 = vmatpush2.bf16.msra.mxu0 0
    %1442 = vmatprep.subr.bf16.mxu0 0
    %1443 = vmatpush2.bf16.msra.mxu0 0
    %1444 = vmatprep.subr.bf16.mxu0 0
    %1445 = vmatpush2.bf16.msra.mxu0 0
    %1446 = vmatprep.subr.bf16.mxu0 0
    %1447 = vmatpush2.bf16.msra.mxu0 0
    %1448 = vmatprep.subr.bf16.mxu0 0
    %1449 = vmatpush2.bf16.msra.mxu0 0
    %1450 = vmatprep.subr.bf16.mxu0 0
    %1451 = vmatpush2.bf16.msra.mxu0 0
    %1452 = vmatprep.mubr.bf16.mxu0 0
    %1453 = vmatmul.mubr.bf16.gmra.mxu0 %v1414
    %v1454 = vpop.f32.mrf.mxu0
    %v1455 = vadd.f32 0.0, %v1454
    %v1456 = vpop.f32.mrf.mxu0
    %v1457 = vpop.f32.mrf.mxu0
    %v1458 = vpop.f32.mrf.mxu0
    %1459 = vdwg.mxu0
    %v1461 = vsel %vm484, %v1398, 0
    %v1464 = vsel %vm1416, %v455, 0
    %1466 = vmatprep.subr.bf16.mxu0 0
    %1467 = vmatpush1.bf16.msra.mxu0 0
    %1468 = vmatprep.subr.bf16.mxu0 0
    %1469 = vmatpush1.bf16.msra.mxu0 0
    %1470 = vmatprep.subr.bf16.mxu0 0
    %1471 = vmatpush1.bf16.msra.mxu0 0
    %1472 = vmatprep.subr.bf16.mxu0 0
    %1473 = vmatpush1.bf16.msra.mxu0 0
    %1474 = vmatprep.subr.bf16.mxu0 0
    %1475 = vmatpush1.bf16.msra.mxu0 0
    %1476 = vmatprep.subr.bf16.mxu0 0
    %1477 = vmatpush1.bf16.msra.mxu0 0
    %1478 = vmatprep.subr.bf16.mxu0 0
    %1479 = vmatpush1.bf16.msra.mxu0 0
    %1480 = vmatprep.subr.bf16.mxu0 0
    %1481 = vmatpush1.bf16.msra.mxu0 %v1464
    %1482 = vmatprep.subr.bf16.mxu0 0
    %1483 = vmatpush2.bf16.msra.mxu0 0
    %1484 = vmatprep.subr.bf16.mxu0 0
    %1485 = vmatpush2.bf16.msra.mxu0 0
    %1486 = vmatprep.subr.bf16.mxu0 0
    %1487 = vmatpush2.bf16.msra.mxu0 0
    %1488 = vmatprep.subr.bf16.mxu0 0
    %1489 = vmatpush2.bf16.msra.mxu0 0
    %1490 = vmatprep.subr.bf16.mxu0 0
    %1491 = vmatpush2.bf16.msra.mxu0 0
    %1492 = vmatprep.subr.bf16.mxu0 0
    %1493 = vmatpush2.bf16.msra.mxu0 0
    %1494 = vmatprep.subr.bf16.mxu0 0
    %1495 = vmatpush2.bf16.msra.mxu0 0
    %1496 = vmatprep.subr.bf16.mxu0 0
    %1497 = vmatpush2.bf16.msra.mxu0 0
    %1498 = vmatprep.mubr.bf16.mxu0 0
    %1499 = vmatmul.mubr.bf16.gmra.mxu0 %v1461
    %v1500 = vpop.f32.mrf.mxu0
    %v1501 = vadd.f32 0.0, %v1500
    %v1502 = vpop.f32.mrf.mxu0
    %v1503 = vpop.f32.mrf.mxu0
    %v1504 = vpop.f32.mrf.mxu0
    %1505 = vdwg.mxu0
    %v1507 = vsel %vm484, %v1399, 0
    %v1510 = vsel %vm1416, %v457, 0
    %1512 = vmatprep.subr.bf16.mxu0 0
    %1513 = vmatpush1.bf16.msra.mxu0 0
    %1514 = vmatprep.subr.bf16.mxu0 0
    %1515 = vmatpush1.bf16.msra.mxu0 0
    %1516 = vmatprep.subr.bf16.mxu0 0
    %1517 = vmatpush1.bf16.msra.mxu0 0
    %1518 = vmatprep.subr.bf16.mxu0 0
    %1519 = vmatpush1.bf16.msra.mxu0 0
    %1520 = vmatprep.subr.bf16.mxu0 0
    %1521 = vmatpush1.bf16.msra.mxu0 0
    %1522 = vmatprep.subr.bf16.mxu0 0
    %1523 = vmatpush1.bf16.msra.mxu0 0
    %1524 = vmatprep.subr.bf16.mxu0 0
    %1525 = vmatpush1.bf16.msra.mxu0 0
    %1526 = vmatprep.subr.bf16.mxu0 0
    %1527 = vmatpush1.bf16.msra.mxu0 %v1510
    %1528 = vmatprep.subr.bf16.mxu0 0
    %1529 = vmatpush2.bf16.msra.mxu0 0
    %1530 = vmatprep.subr.bf16.mxu0 0
    %1531 = vmatpush2.bf16.msra.mxu0 0
    %1532 = vmatprep.subr.bf16.mxu0 0
    %1533 = vmatpush2.bf16.msra.mxu0 0
    %1534 = vmatprep.subr.bf16.mxu0 0
    %1535 = vmatpush2.bf16.msra.mxu0 0
    %1536 = vmatprep.subr.bf16.mxu0 0
    %1537 = vmatpush2.bf16.msra.mxu0 0
    %1538 = vmatprep.subr.bf16.mxu0 0
    %1539 = vmatpush2.bf16.msra.mxu0 0
    %1540 = vmatprep.subr.bf16.mxu0 0
    %1541 = vmatpush2.bf16.msra.mxu0 0
    %1542 = vmatprep.subr.bf16.mxu0 0
    %1543 = vmatpush2.bf16.msra.mxu0 0
    %1544 = vmatprep.mubr.bf16.mxu0 0
    %1545 = vmatmul.mubr.bf16.gmra.mxu0 %v1507
    %v1546 = vpop.f32.mrf.mxu0
    %v1547 = vadd.f32 0.0, %v1546
    %v1548 = vpop.f32.mrf.mxu0
    %v1549 = vpop.f32.mrf.mxu0
    %v1550 = vpop.f32.mrf.mxu0
    %1551 = vdwg.mxu0
    %v1553 = vsel %vm484, %v1400, 0
    %v1556 = vsel %vm1416, %v459, 0
    %1558 = vmatprep.subr.bf16.mxu0 0
    %1559 = vmatpush1.bf16.msra.mxu0 0
    %1560 = vmatprep.subr.bf16.mxu0 0
    %1561 = vmatpush1.bf16.msra.mxu0 0
    %1562 = vmatprep.subr.bf16.mxu0 0
    %1563 = vmatpush1.bf16.msra.mxu0 0
    %1564 = vmatprep.subr.bf16.mxu0 0
    %1565 = vmatpush1.bf16.msra.mxu0 0
    %1566 = vmatprep.subr.bf16.mxu0 0
    %1567 = vmatpush1.bf16.msra.mxu0 0
    %1568 = vmatprep.subr.bf16.mxu0 0
    %1569 = vmatpush1.bf16.msra.mxu0 0
    %1570 = vmatprep.subr.bf16.mxu0 0
    %1571 = vmatpush1.bf16.msra.mxu0 0
    %1572 = vmatprep.subr.bf16.mxu0 0
    %1573 = vmatpush1.bf16.msra.mxu0 %v1556
    %1574 = vmatprep.subr.bf16.mxu0 0
    %1575 = vmatpush2.bf16.msra.mxu0 0
    %1576 = vmatprep.subr.bf16.mxu0 0
    %1577 = vmatpush2.bf16.msra.mxu0 0
    %1578 = vmatprep.subr.bf16.mxu0 0
    %1579 = vmatpush2.bf16.msra.mxu0 0
    %1580 = vmatprep.subr.bf16.mxu0 0
    %1581 = vmatpush2.bf16.msra.mxu0 0
    %1582 = vmatprep.subr.bf16.mxu0 0
    %1583 = vmatpush2.bf16.msra.mxu0 0
    %1584 = vmatprep.subr.bf16.mxu0 0
    %1585 = vmatpush2.bf16.msra.mxu0 0
    %1586 = vmatprep.subr.bf16.mxu0 0
    %1587 = vmatpush2.bf16.msra.mxu0 0
    %1588 = vmatprep.subr.bf16.mxu0 0
    %1589 = vmatpush2.bf16.msra.mxu0 0
    %1590 = vmatprep.mubr.bf16.mxu0 0
    %1591 = vmatmul.mubr.bf16.gmra.mxu0 %v1553
    %v1592 = vpop.f32.mrf.mxu0
    %v1593 = vadd.f32 0.0, %v1592
    %v1594 = vpop.f32.mrf.mxu0
    %v1595 = vpop.f32.mrf.mxu0
    %v1596 = vpop.f32.mrf.mxu0
    %1597 = vdwg.mxu0
    %v1599 = vsel %vm484, %v1401, 0
    %v1602 = vsel %vm1416, %v461, 0
    %1604 = vmatprep.subr.bf16.mxu0 0
    %1605 = vmatpush1.bf16.msra.mxu0 0
    %1606 = vmatprep.subr.bf16.mxu0 0
    %1607 = vmatpush1.bf16.msra.mxu0 0
    %1608 = vmatprep.subr.bf16.mxu0 0
    %1609 = vmatpush1.bf16.msra.mxu0 0
    %1610 = vmatprep.subr.bf16.mxu0 0
    %1611 = vmatpush1.bf16.msra.mxu0 0
    %1612 = vmatprep.subr.bf16.mxu0 0
    %1613 = vmatpush1.bf16.msra.mxu0 0
    %1614 = vmatprep.subr.bf16.mxu0 0
    %1615 = vmatpush1.bf16.msra.mxu0 0
    %1616 = vmatprep.subr.bf16.mxu0 0
    %1617 = vmatpush1.bf16.msra.mxu0 0
    %1618 = vmatprep.subr.bf16.mxu0 0
    %1619 = vmatpush1.bf16.msra.mxu0 %v1602
    %1620 = vmatprep.subr.bf16.mxu0 0
    %1621 = vmatpush2.bf16.msra.mxu0 0
    %1622 = vmatprep.subr.bf16.mxu0 0
    %1623 = vmatpush2.bf16.msra.mxu0 0
    %1624 = vmatprep.subr.bf16.mxu0 0
    %1625 = vmatpush2.bf16.msra.mxu0 0
    %1626 = vmatprep.subr.bf16.mxu0 0
    %1627 = vmatpush2.bf16.msra.mxu0 0
    %1628 = vmatprep.subr.bf16.mxu0 0
    %1629 = vmatpush2.bf16.msra.mxu0 0
    %1630 = vmatprep.subr.bf16.mxu0 0
    %1631 = vmatpush2.bf16.msra.mxu0 0
    %1632 = vmatprep.subr.bf16.mxu0 0
    %1633 = vmatpush2.bf16.msra.mxu0 0
    %1634 = vmatprep.subr.bf16.mxu0 0
    %1635 = vmatpush2.bf16.msra.mxu0 0
    %1636 = vmatprep.mubr.bf16.mxu0 0
    %1637 = vmatmul.mubr.bf16.gmra.mxu0 %v1599
    %v1638 = vpop.f32.mrf.mxu0
    %v1639 = vadd.f32 0.0, %v1638
    %v1640 = vpop.f32.mrf.mxu0
    %v1641 = vpop.f32.mrf.mxu0
    %v1642 = vpop.f32.mrf.mxu0
    %1643 = vdwg.mxu0
    %v1645 = vsel %vm484, %v1402, 0
    %v1648 = vsel %vm1416, %v463, 0
    %1650 = vmatprep.subr.bf16.mxu0 0
    %1651 = vmatpush1.bf16.msra.mxu0 0
    %1652 = vmatprep.subr.bf16.mxu0 0
    %1653 = vmatpush1.bf16.msra.mxu0 0
    %1654 = vmatprep.subr.bf16.mxu0 0
    %1655 = vmatpush1.bf16.msra.mxu0 0
    %1656 = vmatprep.subr.bf16.mxu0 0
    %1657 = vmatpush1.bf16.msra.mxu0 0
    %1658 = vmatprep.subr.bf16.mxu0 0
    %1659 = vmatpush1.bf16.msra.mxu0 0
    %1660 = vmatprep.subr.bf16.mxu0 0
    %1661 = vmatpush1.bf16.msra.mxu0 0
    %1662 = vmatprep.subr.bf16.mxu0 0
    %1663 = vmatpush1.bf16.msra.mxu0 0
    %1664 = vmatprep.subr.bf16.mxu0 0
    %1665 = vmatpush1.bf16.msra.mxu0 %v1648
    %1666 = vmatprep.subr.bf16.mxu0 0
    %1667 = vmatpush2.bf16.msra.mxu0 0
    %1668 = vmatprep.subr.bf16.mxu0 0
    %1669 = vmatpush2.bf16.msra.mxu0 0
    %1670 = vmatprep.subr.bf16.mxu0 0
    %1671 = vmatpush2.bf16.msra.mxu0 0
    %1672 = vmatprep.subr.bf16.mxu0 0
    %1673 = vmatpush2.bf16.msra.mxu0 0
    %1674 = vmatprep.subr.bf16.mxu0 0
    %1675 = vmatpush2.bf16.msra.mxu0 0
    %1676 = vmatprep.subr.bf16.mxu0 0
    %1677 = vmatpush2.bf16.msra.mxu0 0
    %1678 = vmatprep.subr.bf16.mxu0 0
    %1679 = vmatpush2.bf16.msra.mxu0 0
    %1680 = vmatprep.subr.bf16.mxu0 0
    %1681 = vmatpush2.bf16.msra.mxu0 0
    %1682 = vmatprep.mubr.bf16.mxu0 0
    %1683 = vmatmul.mubr.bf16.gmra.mxu0 %v1645
    %v1684 = vpop.f32.mrf.mxu0
    %v1685 = vadd.f32 0.0, %v1684
    %v1686 = vpop.f32.mrf.mxu0
    %v1687 = vpop.f32.mrf.mxu0
    %v1688 = vpop.f32.mrf.mxu0
    %1689 = vdwg.mxu0
    %v1691 = vsel %vm484, %v1403, 0
    %v1694 = vsel %vm1416, %v465, 0
    %1696 = vmatprep.subr.bf16.mxu0 0
    %1697 = vmatpush1.bf16.msra.mxu0 0
    %1698 = vmatprep.subr.bf16.mxu0 0
    %1699 = vmatpush1.bf16.msra.mxu0 0
    %1700 = vmatprep.subr.bf16.mxu0 0
    %1701 = vmatpush1.bf16.msra.mxu0 0
    %1702 = vmatprep.subr.bf16.mxu0 0
    %1703 = vmatpush1.bf16.msra.mxu0 0
    %1704 = vmatprep.subr.bf16.mxu0 0
    %1705 = vmatpush1.bf16.msra.mxu0 0
    %1706 = vmatprep.subr.bf16.mxu0 0
    %1707 = vmatpush1.bf16.msra.mxu0 0
    %1708 = vmatprep.subr.bf16.mxu0 0
    %1709 = vmatpush1.bf16.msra.mxu0 0
    %1710 = vmatprep.subr.bf16.mxu0 0
    %1711 = vmatpush1.bf16.msra.mxu0 %v1694
    %1712 = vmatprep.subr.bf16.mxu0 0
    %1713 = vmatpush2.bf16.msra.mxu0 0
    %1714 = vmatprep.subr.bf16.mxu0 0
    %1715 = vmatpush2.bf16.msra.mxu0 0
    %1716 = vmatprep.subr.bf16.mxu0 0
    %1717 = vmatpush2.bf16.msra.mxu0 0
    %1718 = vmatprep.subr.bf16.mxu0 0
    %1719 = vmatpush2.bf16.msra.mxu0 0
    %1720 = vmatprep.subr.bf16.mxu0 0
    %1721 = vmatpush2.bf16.msra.mxu0 0
    %1722 = vmatprep.subr.bf16.mxu0 0
    %1723 = vmatpush2.bf16.msra.mxu0 0
    %1724 = vmatprep.subr.bf16.mxu0 0
    %1725 = vmatpush2.bf16.msra.mxu0 0
    %1726 = vmatprep.subr.bf16.mxu0 0
    %1727 = vmatpush2.bf16.msra.mxu0 0
    %1728 = vmatprep.mubr.bf16.mxu0 0
    %1729 = vmatmul.mubr.bf16.gmra.mxu0 %v1691
    %v1730 = vpop.f32.mrf.mxu0
    %v1731 = vadd.f32 0.0, %v1730
    %v1732 = vpop.f32.mrf.mxu0
    %v1733 = vpop.f32.mrf.mxu0
    %v1734 = vpop.f32.mrf.mxu0
    %1735 = vdwg.mxu0
    %v1737 = vsel %vm484, %v1404, 0
    %v1740 = vsel %vm1416, %v467, 0
    %1742 = vmatprep.subr.bf16.mxu0 0
    %1743 = vmatpush1.bf16.msra.mxu0 0
    %1744 = vmatprep.subr.bf16.mxu0 0
    %1745 = vmatpush1.bf16.msra.mxu0 0
    %1746 = vmatprep.subr.bf16.mxu0 0
    %1747 = vmatpush1.bf16.msra.mxu0 0
    %1748 = vmatprep.subr.bf16.mxu0 0
    %1749 = vmatpush1.bf16.msra.mxu0 0
    %1750 = vmatprep.subr.bf16.mxu0 0
    %1751 = vmatpush1.bf16.msra.mxu0 0
    %1752 = vmatprep.subr.bf16.mxu0 0
    %1753 = vmatpush1.bf16.msra.mxu0 0
    %1754 = vmatprep.subr.bf16.mxu0 0
    %1755 = vmatpush1.bf16.msra.mxu0 0
    %1756 = vmatprep.subr.bf16.mxu0 0
    %1757 = vmatpush1.bf16.msra.mxu0 %v1740
    %1758 = vmatprep.subr.bf16.mxu0 0
    %1759 = vmatpush2.bf16.msra.mxu0 0
    %1760 = vmatprep.subr.bf16.mxu0 0
    %1761 = vmatpush2.bf16.msra.mxu0 0
    %1762 = vmatprep.subr.bf16.mxu0 0
    %1763 = vmatpush2.bf16.msra.mxu0 0
    %1764 = vmatprep.subr.bf16.mxu0 0
    %1765 = vmatpush2.bf16.msra.mxu0 0
    %1766 = vmatprep.subr.bf16.mxu0 0
    %1767 = vmatpush2.bf16.msra.mxu0 0
    %1768 = vmatprep.subr.bf16.mxu0 0
    %1769 = vmatpush2.bf16.msra.mxu0 0
    %1770 = vmatprep.subr.bf16.mxu0 0
    %1771 = vmatpush2.bf16.msra.mxu0 0
    %1772 = vmatprep.subr.bf16.mxu0 0
    %1773 = vmatpush2.bf16.msra.mxu0 0
    %1774 = vmatprep.mubr.bf16.mxu0 0
    %1775 = vmatmul.mubr.bf16.gmra.mxu0 %v1737
    %v1776 = vpop.f32.mrf.mxu0
    %v1777 = vadd.f32 0.0, %v1776
    %v1778 = vpop.f32.mrf.mxu0
    %v1779 = vpop.f32.mrf.mxu0
    %v1780 = vpop.f32.mrf.mxu0
    %1781 = vdwg.mxu0
    %v1783 = vsel %vm484, %v1405, 0
    %v1786 = vsel %vm1416, %v469, 0
    %1788 = vmatprep.subr.bf16.mxu0 0
    %1789 = vmatpush1.bf16.msra.mxu0 0
    %1790 = vmatprep.subr.bf16.mxu0 0
    %1791 = vmatpush1.bf16.msra.mxu0 0
    %1792 = vmatprep.subr.bf16.mxu0 0
    %1793 = vmatpush1.bf16.msra.mxu0 0
    %1794 = vmatprep.subr.bf16.mxu0 0
    %1795 = vmatpush1.bf16.msra.mxu0 0
    %1796 = vmatprep.subr.bf16.mxu0 0
    %1797 = vmatpush1.bf16.msra.mxu0 0
    %1798 = vmatprep.subr.bf16.mxu0 0
    %1799 = vmatpush1.bf16.msra.mxu0 0
    %1800 = vmatprep.subr.bf16.mxu0 0
    %1801 = vmatpush1.bf16.msra.mxu0 0
    %1802 = vmatprep.subr.bf16.mxu0 0
    %1803 = vmatpush1.bf16.msra.mxu0 %v1786
    %1804 = vmatprep.subr.bf16.mxu0 0
    %1805 = vmatpush2.bf16.msra.mxu0 0
    %1806 = vmatprep.subr.bf16.mxu0 0
    %1807 = vmatpush2.bf16.msra.mxu0 0
    %1808 = vmatprep.subr.bf16.mxu0 0
    %1809 = vmatpush2.bf16.msra.mxu0 0
    %1810 = vmatprep.subr.bf16.mxu0 0
    %1811 = vmatpush2.bf16.msra.mxu0 0
    %1812 = vmatprep.subr.bf16.mxu0 0
    %1813 = vmatpush2.bf16.msra.mxu0 0
    %1814 = vmatprep.subr.bf16.mxu0 0
    %1815 = vmatpush2.bf16.msra.mxu0 0
    %1816 = vmatprep.subr.bf16.mxu0 0
    %1817 = vmatpush2.bf16.msra.mxu0 0
    %1818 = vmatprep.subr.bf16.mxu0 0
    %1819 = vmatpush2.bf16.msra.mxu0 0
    %1820 = vmatprep.mubr.bf16.mxu0 0
    %1821 = vmatmul.mubr.bf16.gmra.mxu0 %v1783
    %v1822 = vpop.f32.mrf.mxu0
    %v1823 = vadd.f32 0.0, %v1822
    %v1824 = vpop.f32.mrf.mxu0
    %v1825 = vpop.f32.mrf.mxu0
    %v1826 = vpop.f32.mrf.mxu0
    %1827 = vdwg.mxu0
    %v1829 = vsel %vm484, %v1406, 0
    %v1832 = vsel %vm1416, %v471, 0
    %1834 = vmatprep.subr.bf16.mxu0 0
    %1835 = vmatpush1.bf16.msra.mxu0 0
    %1836 = vmatprep.subr.bf16.mxu0 0
    %1837 = vmatpush1.bf16.msra.mxu0 0
    %1838 = vmatprep.subr.bf16.mxu0 0
    %1839 = vmatpush1.bf16.msra.mxu0 0
    %1840 = vmatprep.subr.bf16.mxu0 0
    %1841 = vmatpush1.bf16.msra.mxu0 0
    %1842 = vmatprep.subr.bf16.mxu0 0
    %1843 = vmatpush1.bf16.msra.mxu0 0
    %1844 = vmatprep.subr.bf16.mxu0 0
    %1845 = vmatpush1.bf16.msra.mxu0 0
    %1846 = vmatprep.subr.bf16.mxu0 0
    %1847 = vmatpush1.bf16.msra.mxu0 0
    %1848 = vmatprep.subr.bf16.mxu0 0
    %1849 = vmatpush1.bf16.msra.mxu0 %v1832
    %1850 = vmatprep.subr.bf16.mxu0 0
    %1851 = vmatpush2.bf16.msra.mxu0 0
    %1852 = vmatprep.subr.bf16.mxu0 0
    %1853 = vmatpush2.bf16.msra.mxu0 0
    %1854 = vmatprep.subr.bf16.mxu0 0
    %1855 = vmatpush2.bf16.msra.mxu0 0
    %1856 = vmatprep.subr.bf16.mxu0 0
    %1857 = vmatpush2.bf16.msra.mxu0 0
    %1858 = vmatprep.subr.bf16.mxu0 0
    %1859 = vmatpush2.bf16.msra.mxu0 0
    %1860 = vmatprep.subr.bf16.mxu0 0
    %1861 = vmatpush2.bf16.msra.mxu0 0
    %1862 = vmatprep.subr.bf16.mxu0 0
    %1863 = vmatpush2.bf16.msra.mxu0 0
    %1864 = vmatprep.subr.bf16.mxu0 0
    %1865 = vmatpush2.bf16.msra.mxu0 0
    %1866 = vmatprep.mubr.bf16.mxu0 0
    %1867 = vmatmul.mubr.bf16.gmra.mxu0 %v1829
    %v1868 = vpop.f32.mrf.mxu0
    %v1869 = vadd.f32 0.0, %v1868
    %v1870 = vpop.f32.mrf.mxu0
    %v1871 = vpop.f32.mrf.mxu0
    %v1872 = vpop.f32.mrf.mxu0
    %1873 = vdwg.mxu0
    %v1875 = vsel %vm484, %v1407, 0
    %v1878 = vsel %vm1416, %v473, 0
    %1880 = vmatprep.subr.bf16.mxu0 0
    %1881 = vmatpush1.bf16.msra.mxu0 0
    %1882 = vmatprep.subr.bf16.mxu0 0
    %1883 = vmatpush1.bf16.msra.mxu0 0
    %1884 = vmatprep.subr.bf16.mxu0 0
    %1885 = vmatpush1.bf16.msra.mxu0 0
    %1886 = vmatprep.subr.bf16.mxu0 0
    %1887 = vmatpush1.bf16.msra.mxu0 0
    %1888 = vmatprep.subr.bf16.mxu0 0
    %1889 = vmatpush1.bf16.msra.mxu0 0
    %1890 = vmatprep.subr.bf16.mxu0 0
    %1891 = vmatpush1.bf16.msra.mxu0 0
    %1892 = vmatprep.subr.bf16.mxu0 0
    %1893 = vmatpush1.bf16.msra.mxu0 0
    %1894 = vmatprep.subr.bf16.mxu0 0
    %1895 = vmatpush1.bf16.msra.mxu0 %v1878
    %1896 = vmatprep.subr.bf16.mxu0 0
    %1897 = vmatpush2.bf16.msra.mxu0 0
    %1898 = vmatprep.subr.bf16.mxu0 0
    %1899 = vmatpush2.bf16.msra.mxu0 0
    %1900 = vmatprep.subr.bf16.mxu0 0
    %1901 = vmatpush2.bf16.msra.mxu0 0
    %1902 = vmatprep.subr.bf16.mxu0 0
    %1903 = vmatpush2.bf16.msra.mxu0 0
    %1904 = vmatprep.subr.bf16.mxu0 0
    %1905 = vmatpush2.bf16.msra.mxu0 0
    %1906 = vmatprep.subr.bf16.mxu0 0
    %1907 = vmatpush2.bf16.msra.mxu0 0
    %1908 = vmatprep.subr.bf16.mxu0 0
    %1909 = vmatpush2.bf16.msra.mxu0 0
    %1910 = vmatprep.subr.bf16.mxu0 0
    %1911 = vmatpush2.bf16.msra.mxu0 0
    %1912 = vmatprep.mubr.bf16.mxu0 0
    %1913 = vmatmul.mubr.bf16.gmra.mxu0 %v1875
    %v1914 = vpop.f32.mrf.mxu0
    %v1915 = vadd.f32 0.0, %v1914
    %v1916 = vpop.f32.mrf.mxu0
    %v1917 = vpop.f32.mrf.mxu0
    %v1918 = vpop.f32.mrf.mxu0
    %1919 = vdwg.mxu0
    %v1921 = vsel %vm484, %v1408, 0
    %v1924 = vsel %vm1416, %v475, 0
    %1926 = vmatprep.subr.bf16.mxu0 0
    %1927 = vmatpush1.bf16.msra.mxu0 0
    %1928 = vmatprep.subr.bf16.mxu0 0
    %1929 = vmatpush1.bf16.msra.mxu0 0
    %1930 = vmatprep.subr.bf16.mxu0 0
    %1931 = vmatpush1.bf16.msra.mxu0 0
    %1932 = vmatprep.subr.bf16.mxu0 0
    %1933 = vmatpush1.bf16.msra.mxu0 0
    %1934 = vmatprep.subr.bf16.mxu0 0
    %1935 = vmatpush1.bf16.msra.mxu0 0
    %1936 = vmatprep.subr.bf16.mxu0 0
    %1937 = vmatpush1.bf16.msra.mxu0 0
    %1938 = vmatprep.subr.bf16.mxu0 0
    %1939 = vmatpush1.bf16.msra.mxu0 0
    %1940 = vmatprep.subr.bf16.mxu0 0
    %1941 = vmatpush1.bf16.msra.mxu0 %v1924
    %1942 = vmatprep.subr.bf16.mxu0 0
    %1943 = vmatpush2.bf16.msra.mxu0 0
    %1944 = vmatprep.subr.bf16.mxu0 0
    %1945 = vmatpush2.bf16.msra.mxu0 0
    %1946 = vmatprep.subr.bf16.mxu0 0
    %1947 = vmatpush2.bf16.msra.mxu0 0
    %1948 = vmatprep.subr.bf16.mxu0 0
    %1949 = vmatpush2.bf16.msra.mxu0 0
    %1950 = vmatprep.subr.bf16.mxu0 0
    %1951 = vmatpush2.bf16.msra.mxu0 0
    %1952 = vmatprep.subr.bf16.mxu0 0
    %1953 = vmatpush2.bf16.msra.mxu0 0
    %1954 = vmatprep.subr.bf16.mxu0 0
    %1955 = vmatpush2.bf16.msra.mxu0 0
    %1956 = vmatprep.subr.bf16.mxu0 0
    %1957 = vmatpush2.bf16.msra.mxu0 0
    %1958 = vmatprep.mubr.bf16.mxu0 0
    %1959 = vmatmul.mubr.bf16.gmra.mxu0 %v1921
    %v1960 = vpop.f32.mrf.mxu0
    %v1961 = vadd.f32 0.0, %v1960
    %v1962 = vpop.f32.mrf.mxu0
    %v1963 = vpop.f32.mrf.mxu0
    %v1964 = vpop.f32.mrf.mxu0
    %1965 = vdwg.mxu0
    %v1967 = vsel %vm484, %v1409, 0
    %v1970 = vsel %vm1416, %v477, 0
    %1972 = vmatprep.subr.bf16.mxu0 0
    %1973 = vmatpush1.bf16.msra.mxu0 0
    %1974 = vmatprep.subr.bf16.mxu0 0
    %1975 = vmatpush1.bf16.msra.mxu0 0
    %1976 = vmatprep.subr.bf16.mxu0 0
    %1977 = vmatpush1.bf16.msra.mxu0 0
    %1978 = vmatprep.subr.bf16.mxu0 0
    %1979 = vmatpush1.bf16.msra.mxu0 0
    %1980 = vmatprep.subr.bf16.mxu0 0
    %1981 = vmatpush1.bf16.msra.mxu0 0
    %1982 = vmatprep.subr.bf16.mxu0 0
    %1983 = vmatpush1.bf16.msra.mxu0 0
    %1984 = vmatprep.subr.bf16.mxu0 0
    %1985 = vmatpush1.bf16.msra.mxu0 0
    %1986 = vmatprep.subr.bf16.mxu0 0
    %1987 = vmatpush1.bf16.msra.mxu0 %v1970
    %1988 = vmatprep.subr.bf16.mxu0 0
    %1989 = vmatpush2.bf16.msra.mxu0 0
    %1990 = vmatprep.subr.bf16.mxu0 0
    %1991 = vmatpush2.bf16.msra.mxu0 0
    %1992 = vmatprep.subr.bf16.mxu0 0
    %1993 = vmatpush2.bf16.msra.mxu0 0
    %1994 = vmatprep.subr.bf16.mxu0 0
    %1995 = vmatpush2.bf16.msra.mxu0 0
    %1996 = vmatprep.subr.bf16.mxu0 0
    %1997 = vmatpush2.bf16.msra.mxu0 0
    %1998 = vmatprep.subr.bf16.mxu0 0
    %1999 = vmatpush2.bf16.msra.mxu0 0
    %2000 = vmatprep.subr.bf16.mxu0 0
    %2001 = vmatpush2.bf16.msra.mxu0 0
    %2002 = vmatprep.subr.bf16.mxu0 0
    %2003 = vmatpush2.bf16.msra.mxu0 0
    %2004 = vmatprep.mubr.bf16.mxu0 0
    %2005 = vmatmul.mubr.bf16.gmra.mxu0 %v1967
    %v2006 = vpop.f32.mrf.mxu0
    %v2007 = vadd.f32 0.0, %v2006
    %v2008 = vpop.f32.mrf.mxu0
    %v2009 = vpop.f32.mrf.mxu0
    %v2010 = vpop.f32.mrf.mxu0
    %2011 = vdwg.mxu0
    %v2013 = vsel %vm484, %v1410, 0
    %v2016 = vsel %vm1416, %v479, 0
    %2018 = vmatprep.subr.bf16.mxu0 0
    %2019 = vmatpush1.bf16.msra.mxu0 0
    %2020 = vmatprep.subr.bf16.mxu0 0
    %2021 = vmatpush1.bf16.msra.mxu0 0
    %2022 = vmatprep.subr.bf16.mxu0 0
    %2023 = vmatpush1.bf16.msra.mxu0 0
    %2024 = vmatprep.subr.bf16.mxu0 0
    %2025 = vmatpush1.bf16.msra.mxu0 0
    %2026 = vmatprep.subr.bf16.mxu0 0
    %2027 = vmatpush1.bf16.msra.mxu0 0
    %2028 = vmatprep.subr.bf16.mxu0 0
    %2029 = vmatpush1.bf16.msra.mxu0 0
    %2030 = vmatprep.subr.bf16.mxu0 0
    %2031 = vmatpush1.bf16.msra.mxu0 0
    %2032 = vmatprep.subr.bf16.mxu0 0
    %2033 = vmatpush1.bf16.msra.mxu0 %v2016
    %2034 = vmatprep.subr.bf16.mxu0 0
    %2035 = vmatpush2.bf16.msra.mxu0 0
    %2036 = vmatprep.subr.bf16.mxu0 0
    %2037 = vmatpush2.bf16.msra.mxu0 0
    %2038 = vmatprep.subr.bf16.mxu0 0
    %2039 = vmatpush2.bf16.msra.mxu0 0
    %2040 = vmatprep.subr.bf16.mxu0 0
    %2041 = vmatpush2.bf16.msra.mxu0 0
    %2042 = vmatprep.subr.bf16.mxu0 0
    %2043 = vmatpush2.bf16.msra.mxu0 0
    %2044 = vmatprep.subr.bf16.mxu0 0
    %2045 = vmatpush2.bf16.msra.mxu0 0
    %2046 = vmatprep.subr.bf16.mxu0 0
    %2047 = vmatpush2.bf16.msra.mxu0 0
    %2048 = vmatprep.subr.bf16.mxu0 0
    %2049 = vmatpush2.bf16.msra.mxu0 0
    %2050 = vmatprep.mubr.bf16.mxu0 0
    %2051 = vmatmul.mubr.bf16.gmra.mxu0 %v2013
    %v2052 = vpop.f32.mrf.mxu0
    %v2053 = vadd.f32 0.0, %v2052
    %v2054 = vpop.f32.mrf.mxu0
    %v2055 = vpop.f32.mrf.mxu0
    %v2056 = vpop.f32.mrf.mxu0
    %2057 = vdwg.mxu0
    %v2059 = vsel %vm484, %v1411, 0
    %v2062 = vsel %vm1416, %v481, 0
    %2064 = vmatprep.subr.bf16.mxu0 0
    %2065 = vmatpush1.bf16.msra.mxu0 0
    %2066 = vmatprep.subr.bf16.mxu0 0
    %2067 = vmatpush1.bf16.msra.mxu0 0
    %2068 = vmatprep.subr.bf16.mxu0 0
    %2069 = vmatpush1.bf16.msra.mxu0 0
    %2070 = vmatprep.subr.bf16.mxu0 0
    %2071 = vmatpush1.bf16.msra.mxu0 0
    %2072 = vmatprep.subr.bf16.mxu0 0
    %2073 = vmatpush1.bf16.msra.mxu0 0
    %2074 = vmatprep.subr.bf16.mxu0 0
    %2075 = vmatpush1.bf16.msra.mxu0 0
    %2076 = vmatprep.subr.bf16.mxu0 0
    %2077 = vmatpush1.bf16.msra.mxu0 0
    %2078 = vmatprep.subr.bf16.mxu0 0
    %2079 = vmatpush1.bf16.msra.mxu0 %v2062
    %2080 = vmatprep.subr.bf16.mxu0 0
    %2081 = vmatpush2.bf16.msra.mxu0 0
    %2082 = vmatprep.subr.bf16.mxu0 0
    %2083 = vmatpush2.bf16.msra.mxu0 0
    %2084 = vmatprep.subr.bf16.mxu0 0
    %2085 = vmatpush2.bf16.msra.mxu0 0
    %2086 = vmatprep.subr.bf16.mxu0 0
    %2087 = vmatpush2.bf16.msra.mxu0 0
    %2088 = vmatprep.subr.bf16.mxu0 0
    %2089 = vmatpush2.bf16.msra.mxu0 0
    %2090 = vmatprep.subr.bf16.mxu0 0
    %2091 = vmatpush2.bf16.msra.mxu0 0
    %2092 = vmatprep.subr.bf16.mxu0 0
    %2093 = vmatpush2.bf16.msra.mxu0 0
    %2094 = vmatprep.subr.bf16.mxu0 0
    %2095 = vmatpush2.bf16.msra.mxu0 0
    %2096 = vmatprep.mubr.bf16.mxu0 0
    %2097 = vmatmul.mubr.bf16.gmra.mxu0 %v2059
    %v2098 = vpop.f32.mrf.mxu0
    %v2099 = vadd.f32 0.0, %v2098
    %v2100 = vpop.f32.mrf.mxu0
    %v2101 = vpop.f32.mrf.mxu0
    %v2102 = vpop.f32.mrf.mxu0
    %2103 = vdwg.mxu0
    %v2105 = vsel %vm484, %v1412, 0
    %v2108 = vsel %vm1416, %v483, 0
    %2110 = vmatprep.subr.bf16.mxu0 0
    %2111 = vmatpush1.bf16.msra.mxu0 0
    %2112 = vmatprep.subr.bf16.mxu0 0
    %2113 = vmatpush1.bf16.msra.mxu0 0
    %2114 = vmatprep.subr.bf16.mxu0 0
    %2115 = vmatpush1.bf16.msra.mxu0 0
    %2116 = vmatprep.subr.bf16.mxu0 0
    %2117 = vmatpush1.bf16.msra.mxu0 0
    %2118 = vmatprep.subr.bf16.mxu0 0
    %2119 = vmatpush1.bf16.msra.mxu0 0
    %2120 = vmatprep.subr.bf16.mxu0 0
    %2121 = vmatpush1.bf16.msra.mxu0 0
    %2122 = vmatprep.subr.bf16.mxu0 0
    %2123 = vmatpush1.bf16.msra.mxu0 0
    %2124 = vmatprep.subr.bf16.mxu0 0
    %2125 = vmatpush1.bf16.msra.mxu0 %v2108
    %2126 = vmatprep.subr.bf16.mxu0 0
    %2127 = vmatpush2.bf16.msra.mxu0 0
    %2128 = vmatprep.subr.bf16.mxu0 0
    %2129 = vmatpush2.bf16.msra.mxu0 0
    %2130 = vmatprep.subr.bf16.mxu0 0
    %2131 = vmatpush2.bf16.msra.mxu0 0
    %2132 = vmatprep.subr.bf16.mxu0 0
    %2133 = vmatpush2.bf16.msra.mxu0 0
    %2134 = vmatprep.subr.bf16.mxu0 0
    %2135 = vmatpush2.bf16.msra.mxu0 0
    %2136 = vmatprep.subr.bf16.mxu0 0
    %2137 = vmatpush2.bf16.msra.mxu0 0
    %2138 = vmatprep.subr.bf16.mxu0 0
    %2139 = vmatpush2.bf16.msra.mxu0 0
    %2140 = vmatprep.subr.bf16.mxu0 0
    %2141 = vmatpush2.bf16.msra.mxu0 0
    %2142 = vmatprep.mubr.bf16.mxu0 0
    %2143 = vmatmul.mubr.bf16.gmra.mxu0 %v2105
    %v2144 = vpop.f32.mrf.mxu0
    %v2145 = vadd.f32 0.0, %v2144
    %v2146 = vpop.f32.mrf.mxu0
    %v2147 = vpop.f32.mrf.mxu0
    %v2148 = vpop.f32.mrf.mxu0
    %2149 = vdwg.mxu0
    %2152 = vrot.lane.b32.xlu0 %v1547, 8
    %v2153 = vpop.permute.xlu0 %2152
    %2154 = vrot.lane.b32.xlu0 %v1593, 8
    %v2155 = vpop.permute.xlu0 %2154
    %2160 = vrot.lane.b32.xlu0 %v1639, 16
    %v2161 = vpop.permute.xlu0 %2160
    %2162 = vrot.lane.b32.xlu0 %v1685, 16
    %v2163 = vpop.permute.xlu0 %2162
    %2168 = vrot.lane.b32.xlu0 %v1731, 24
    %v2169 = vpop.permute.xlu0 %2168
    %2170 = vrot.lane.b32.xlu0 %v1777, 24
    %v2171 = vpop.permute.xlu0 %2170
    %2176 = vrot.lane.b32.xlu0 %v1823, 32
    %v2177 = vpop.permute.xlu0 %2176
    %2178 = vrot.lane.b32.xlu0 %v1869, 32
    %v2179 = vpop.permute.xlu0 %2178
    %2184 = vrot.lane.b32.xlu0 %v1915, 40
    %v2185 = vpop.permute.xlu0 %2184
    %2186 = vrot.lane.b32.xlu0 %v1961, 40
    %v2187 = vpop.permute.xlu0 %2186
    %2192 = vrot.lane.b32.xlu0 %v2007, 48
    %v2193 = vpop.permute.xlu0 %2192
    %2194 = vrot.lane.b32.xlu0 %v2053, 48
    %v2195 = vpop.permute.xlu0 %2194
    %2200 = vrot.lane.b32.xlu0 %v2099, 56
    %v2201 = vpop.permute.xlu0 %2200
    %2202 = vrot.lane.b32.xlu0 %v2145, 56
    %v2203 = vpop.permute.xlu0 %2202
    %v2206 = vsel %vm484, %v1455, %v2153
    %v2207 = vsel %vm484, %v1501, %v2155
    %v2208 = vsel %vm92, %v2206, %v2161
    %v2209 = vsel %vm92, %v2207, %v2163
    %vm2210 = vcmask 195584
    %v2211 = vsel %vm2210, %v2208, %v2169
    %v2212 = vsel %vm2210, %v2209, %v2171
    %vm2213 = vcmask 261120
    %v2214 = vsel %vm2213, %v2211, %v2177
    %v2215 = vsel %vm2213, %v2212, %v2179
    %vm2216 = vcmask 326656
    %v2217 = vsel %vm2216, %v2214, %v2185
    %v2218 = vsel %vm2216, %v2215, %v2187
    %vm2219 = vcmask 392192
    %v2220 = vsel %vm2219, %v2217, %v2193
    %v2221 = vsel %vm2219, %v2218, %v2195
    %vm2222 = vcmask 457728
    %v2223 = vsel %vm2222, %v2220, %v2201
    %v2224 = vsel %vm2222, %v2221, %v2203
    %v2225 = vpack.c.bf16 %v2224, %v2223
    %v2226 = vld [vmem:[%s9] sm:$0xf]
    %v2227 = vld [vmem:[%s9 + $0x4] sm:$0xf]
    %v2228 = vld [vmem:[%s9 + $0x8] sm:$0xf]
    %v2229 = vld [vmem:[%s9 + $0xc] sm:$0xf]
    %v2230 = vld [vmem:[%s9 + $0x10] sm:$0xf]
    %v2231 = vld [vmem:[%s9 + $0x14] sm:$0xf]
    %v2232 = vld [vmem:[%s9 + $0x18] sm:$0xf]
    %v2233 = vld [vmem:[%s9 + $0x1c] sm:$0xf]
    %v2234 = vld [vmem:[%s10] sm:$0x1]
    %v2236 = vlaneseq
    %v2237 = vshrl.u32 %v2236, 7
    %v2238 = vsub.s32 0, %v2237
    %v2239 = vrot.slane %v2234, %v2238
    %v2249 = vunpack.c.l.b16 %v2226
    %v2250 = vunpack.c.l.b16 %v2227
    %v2251 = vunpack.c.l.b16 %v2228
    %v2252 = vunpack.c.l.b16 %v2229
    %v2253 = vunpack.c.l.b16 %v2230
    %v2254 = vunpack.c.l.b16 %v2231
    %v2255 = vunpack.c.l.b16 %v2232
    %v2256 = vunpack.c.l.b16 %v2233
    %v2257 = vpack.c.b16 %v2250, %v2249
    %v2258 = vpack.c.b16 %v2252, %v2251
    %v2259 = vpack.c.b16 %v2254, %v2253
    %v2260 = vpack.c.b16 %v2256, %v2255
    %v2266 = vsel %vm177, %v2225, 0
    %2268 = vmatprep.subr.bf16.mxu0 0
    %2269 = vmatpush1.bf16.msra.mxu0 0
    %2270 = vmatprep.subr.bf16.mxu0 0
    %2271 = vmatpush1.bf16.msra.mxu0 0
    %2272 = vmatprep.subr.bf16.mxu0 0
    %2273 = vmatpush1.bf16.msra.mxu0 0
    %2274 = vmatprep.subr.bf16.mxu0 0
    %2275 = vmatpush1.bf16.msra.mxu0 0
    %2276 = vmatprep.subr.bf16.mxu0 0
    %2277 = vmatpush1.bf16.msra.mxu0 %v2260
    %2278 = vmatprep.subr.bf16.mxu0 0
    %2279 = vmatpush1.bf16.msra.mxu0 %v2259
    %2280 = vmatprep.subr.bf16.mxu0 0
    %2281 = vmatpush1.bf16.msra.mxu0 %v2258
    %2282 = vmatprep.subr.bf16.mxu0 0
    %2283 = vmatpush1.bf16.msra.mxu0 %v2257
    %2284 = vmatprep.subr.bf16.mxu0 0
    %2285 = vmatpush2.bf16.msra.mxu0 0
    %2286 = vmatprep.subr.bf16.mxu0 0
    %2287 = vmatpush2.bf16.msra.mxu0 0
    %2288 = vmatprep.subr.bf16.mxu0 0
    %2289 = vmatpush2.bf16.msra.mxu0 0
    %2290 = vmatprep.subr.bf16.mxu0 0
    %2291 = vmatpush2.bf16.msra.mxu0 0
    %2292 = vmatprep.subr.bf16.mxu0 0
    %2293 = vmatpush2.bf16.msra.mxu0 0
    %2294 = vmatprep.subr.bf16.mxu0 0
    %2295 = vmatpush2.bf16.msra.mxu0 0
    %2296 = vmatprep.subr.bf16.mxu0 0
    %2297 = vmatpush2.bf16.msra.mxu0 0
    %2298 = vmatprep.subr.bf16.mxu0 0
    %2299 = vmatpush2.bf16.msra.mxu0 0
    %2300 = vmatprep.mubr.bf16.mxu0 0
    %2301 = vmatmul.mubr.bf16.gmra.mxu0 %v2266
    %v2302 = vpop.f32.mrf.mxu0
    %v2303 = vadd.f32 %v2239, %v2302
    %v2304 = vpop.f32.mrf.mxu0
    %v2305 = vpop.f32.mrf.mxu0
    %v2306 = vadd.f32 %v2239, %v2305
    %v2307 = vpop.f32.mrf.mxu0
    %2308 = vdwg.mxu0
    %v2309 = vadd.f32 %v131, %v2303
    %v2310 = vadd.f32 %v134, %v2306
    %v2311 = vld [vmem:[%s15] sm:$0x1]
    %v2312 = vld [vmem:[%s16] sm:$0x1]
    %v2313 = vsel %vm177, %v2309, 0.0
    %2314 = vadd.xlane.f32.xlu0 %v2313
    %v2315 = vpop.xlane.xlu0 %2314
    %v2316 = vsel %vm177, %v2310, 0.0
    %2317 = vadd.xlane.f32.xlu0 %v2316
    %v2318 = vpop.xlane.xlu0 %2317
    %v2319 = vrcp.pop 64.0
    %v2320 = vmul.f32 %v2315, %v2319
    %v2321 = vmul.f32 %v2318, %v2319
    %v2322 = vsub.f32 %v2309, %v2320
    %v2323 = vsub.f32 %v2310, %v2321
    %v2324 = vmul.f32 %v2322, %v2322
    %v2325 = vmul.f32 %v2323, %v2323
    %v2326 = vsel %vm177, %v2324, 0.0
    %2327 = vadd.xlane.f32.xlu0 %v2326
    %v2328 = vpop.xlane.xlu0 %2327
    %v2329 = vsel %vm177, %v2325, 0.0
    %2330 = vadd.xlane.f32.xlu0 %v2329
    %v2331 = vpop.xlane.xlu0 %2330
    %v2332 = vmul.f32 %v2328, %v2319
    %v2333 = vmul.f32 %v2331, %v2319
    %v2334 = vadd.f32 %v2332, 1e-05
    %v2335 = vadd.f32 %v2333, 1e-05
    %v2336 = vrsqrt.pop %v2334
    %v2337 = vrsqrt.pop %v2335
    %v2338 = vmul.f32 %v2322, %v2336
    %v2339 = vmul.f32 %v2323, %v2337
    %v2341 = vlaneseq
    %v2342 = vshrl.u32 %v2341, 7
    %v2343 = vsub.s32 0, %v2342
    %v2344 = vrot.slane %v2311, %v2343
    %v2346 = vmul.f32 %v2338, %v2344
    %v2347 = vmul.f32 %v2339, %v2344
    %v2349 = vlaneseq
    %v2350 = vshrl.u32 %v2349, 7
    %v2351 = vsub.s32 0, %v2350
    %v2352 = vrot.slane %v2312, %v2351
    %v2354 = vadd.f32 %v2346, %v2352
    %v2355 = vadd.f32 %v2347, %v2352
    %v2356 = vpack.c.bf16 %v2355, %v2354
    %v2357 = vld [vmem:[%s11] sm:$0xff]
    %v2358 = vld [vmem:[%s11 + $0x8] sm:$0xff]
    %v2359 = vld [vmem:[%s11 + $0x40] sm:$0xff]
    %v2360 = vld [vmem:[%s11 + $0x48] sm:$0xff]
    %v2361 = vld [vmem:[%s11 + $0x80] sm:$0xff]
    %v2362 = vld [vmem:[%s11 + $0x88] sm:$0xff]
    %v2363 = vld [vmem:[%s11 + $0xc0] sm:$0xff]
    %v2364 = vld [vmem:[%s11 + $0xc8] sm:$0xff]
    %v2365 = vld [vmem:[%s11 + $0x100] sm:$0xff]
    %v2366 = vld [vmem:[%s11 + $0x108] sm:$0xff]
    %v2367 = vld [vmem:[%s11 + $0x140] sm:$0xff]
    %v2368 = vld [vmem:[%s11 + $0x148] sm:$0xff]
    %v2369 = vld [vmem:[%s11 + $0x180] sm:$0xff]
    %v2370 = vld [vmem:[%s11 + $0x188] sm:$0xff]
    %v2371 = vld [vmem:[%s11 + $0x1c0] sm:$0xff]
    %v2372 = vld [vmem:[%s11 + $0x1c8] sm:$0xff]
    %v2373 = vld [vmem:[%s12] sm:$0xf]
    %v2375 = vlaneseq
    %v2376 = vshrl.u32 %v2375, 7
    %v2377 = vsub.s32 0, %v2376
    %v2378 = vrot.slane %v2373, %v2377
    %v2379 = vlaneseq
    %v2380 = vshrl.u32 %v2379, 7
    %v2381 = vsub.s32 1, %v2380
    %v2382 = vrot.slane %v2373, %v2381
    %v2383 = vlaneseq
    %v2384 = vshrl.u32 %v2383, 7
    %v2385 = vsub.s32 2, %v2384
    %v2386 = vrot.slane %v2373, %v2385
    %v2387 = vlaneseq
    %v2388 = vshrl.u32 %v2387, 7
    %v2389 = vsub.s32 3, %v2388
    %v2390 = vrot.slane %v2373, %v2389
    %v2411 = vunpack.c.l.b16 %v2357
    %v2412 = vunpack.c.h.b16 %v2357
    %v2413 = vunpack.c.l.b16 %v2358
    %v2414 = vunpack.c.h.b16 %v2358
    %v2415 = vunpack.c.l.b16 %v2359
    %v2416 = vunpack.c.h.b16 %v2359
    %v2417 = vunpack.c.l.b16 %v2360
    %v2418 = vunpack.c.h.b16 %v2360
    %v2419 = vunpack.c.l.b16 %v2361
    %v2420 = vunpack.c.h.b16 %v2361
    %v2421 = vunpack.c.l.b16 %v2362
    %v2422 = vunpack.c.h.b16 %v2362
    %v2423 = vunpack.c.l.b16 %v2363
    %v2424 = vunpack.c.h.b16 %v2363
    %v2425 = vunpack.c.l.b16 %v2364
    %v2426 = vunpack.c.h.b16 %v2364
    %v2427 = vunpack.c.l.b16 %v2365
    %v2428 = vunpack.c.h.b16 %v2365
    %v2429 = vunpack.c.l.b16 %v2366
    %v2430 = vunpack.c.h.b16 %v2366
    %v2431 = vunpack.c.l.b16 %v2367
    %v2432 = vunpack.c.h.b16 %v2367
    %v2433 = vunpack.c.l.b16 %v2368
    %v2434 = vunpack.c.h.b16 %v2368
    %v2435 = vunpack.c.l.b16 %v2369
    %v2436 = vunpack.c.h.b16 %v2369
    %v2437 = vunpack.c.l.b16 %v2370
    %v2438 = vunpack.c.h.b16 %v2370
    %v2439 = vunpack.c.l.b16 %v2371
    %v2440 = vunpack.c.h.b16 %v2371
    %v2441 = vunpack.c.l.b16 %v2372
    %v2442 = vunpack.c.h.b16 %v2372
    %v2443 = vpack.c.b16 %v2415, %v2411
    %v2444 = vpack.c.b16 %v2416, %v2412
    %v2445 = vpack.c.b16 %v2417, %v2413
    %v2446 = vpack.c.b16 %v2418, %v2414
    %v2447 = vpack.c.b16 %v2423, %v2419
    %v2448 = vpack.c.b16 %v2424, %v2420
    %v2449 = vpack.c.b16 %v2425, %v2421
    %v2450 = vpack.c.b16 %v2426, %v2422
    %v2451 = vpack.c.b16 %v2431, %v2427
    %v2452 = vpack.c.b16 %v2432, %v2428
    %v2453 = vpack.c.b16 %v2433, %v2429
    %v2454 = vpack.c.b16 %v2434, %v2430
    %v2455 = vpack.c.b16 %v2439, %v2435
    %v2456 = vpack.c.b16 %v2440, %v2436
    %v2457 = vpack.c.b16 %v2441, %v2437
    %v2458 = vpack.c.b16 %v2442, %v2438
    %v2476 = vsel %vm177, %v2356, 0
    %2478 = vmatprep.subr.bf16.mxu0 0
    %2479 = vmatpush1.bf16.msra.mxu0 0
    %2480 = vmatprep.subr.bf16.mxu0 0
    %2481 = vmatpush1.bf16.msra.mxu0 0
    %2482 = vmatprep.subr.bf16.mxu0 0
    %2483 = vmatpush1.bf16.msra.mxu0 0
    %2484 = vmatprep.subr.bf16.mxu0 0
    %2485 = vmatpush1.bf16.msra.mxu0 0
    %2486 = vmatprep.subr.bf16.mxu0 %v2456
    %2487 = vmatpush1.bf16.msra.mxu0 %v2455
    %2488 = vmatprep.subr.bf16.mxu0 %v2452
    %2489 = vmatpush1.bf16.msra.mxu0 %v2451
    %2490 = vmatprep.subr.bf16.mxu0 %v2448
    %2491 = vmatpush1.bf16.msra.mxu0 %v2447
    %2492 = vmatprep.subr.bf16.mxu0 %v2444
    %2493 = vmatpush1.bf16.msra.mxu0 %v2443
    %2494 = vmatprep.subr.bf16.mxu0 0
    %2495 = vmatpush2.bf16.msra.mxu0 0
    %2496 = vmatprep.subr.bf16.mxu0 0
    %2497 = vmatpush2.bf16.msra.mxu0 0
    %2498 = vmatprep.subr.bf16.mxu0 0
    %2499 = vmatpush2.bf16.msra.mxu0 0
    %2500 = vmatprep.subr.bf16.mxu0 0
    %2501 = vmatpush2.bf16.msra.mxu0 0
    %2502 = vmatprep.subr.bf16.mxu0 0
    %2503 = vmatpush2.bf16.msra.mxu0 0
    %2504 = vmatprep.subr.bf16.mxu0 0
    %2505 = vmatpush2.bf16.msra.mxu0 0
    %2506 = vmatprep.subr.bf16.mxu0 0
    %2507 = vmatpush2.bf16.msra.mxu0 0
    %2508 = vmatprep.subr.bf16.mxu0 0
    %2509 = vmatpush2.bf16.msra.mxu0 0
    %2510 = vmatprep.mubr.bf16.mxu0 0
    %2511 = vmatmul.mubr.bf16.gmra.mxu0 %v2476
    %v2512 = vpop.f32.mrf.mxu0
    %v2513 = vadd.f32 %v2378, %v2512
    %v2514 = vpop.f32.mrf.mxu0
    %v2515 = vadd.f32 %v2382, %v2514
    %v2516 = vpop.f32.mrf.mxu0
    %v2517 = vadd.f32 %v2378, %v2516
    %v2518 = vpop.f32.mrf.mxu0
    %v2519 = vadd.f32 %v2382, %v2518
    %2520 = vdwg.mxu0
    %2521 = vmatprep.subr.bf16.mxu0 0
    %2522 = vmatpush1.bf16.msra.mxu0 0
    %2523 = vmatprep.subr.bf16.mxu0 0
    %2524 = vmatpush1.bf16.msra.mxu0 0
    %2525 = vmatprep.subr.bf16.mxu0 0
    %2526 = vmatpush1.bf16.msra.mxu0 0
    %2527 = vmatprep.subr.bf16.mxu0 0
    %2528 = vmatpush1.bf16.msra.mxu0 0
    %2529 = vmatprep.subr.bf16.mxu0 %v2458
    %2530 = vmatpush1.bf16.msra.mxu0 %v2457
    %2531 = vmatprep.subr.bf16.mxu0 %v2454
    %2532 = vmatpush1.bf16.msra.mxu0 %v2453
    %2533 = vmatprep.subr.bf16.mxu0 %v2450
    %2534 = vmatpush1.bf16.msra.mxu0 %v2449
    %2535 = vmatprep.subr.bf16.mxu0 %v2446
    %2536 = vmatpush1.bf16.msra.mxu0 %v2445
    %2537 = vmatprep.subr.bf16.mxu0 0
    %2538 = vmatpush2.bf16.msra.mxu0 0
    %2539 = vmatprep.subr.bf16.mxu0 0
    %2540 = vmatpush2.bf16.msra.mxu0 0
    %2541 = vmatprep.subr.bf16.mxu0 0
    %2542 = vmatpush2.bf16.msra.mxu0 0
    %2543 = vmatprep.subr.bf16.mxu0 0
    %2544 = vmatpush2.bf16.msra.mxu0 0
    %2545 = vmatprep.subr.bf16.mxu0 0
    %2546 = vmatpush2.bf16.msra.mxu0 0
    %2547 = vmatprep.subr.bf16.mxu0 0
    %2548 = vmatpush2.bf16.msra.mxu0 0
    %2549 = vmatprep.subr.bf16.mxu0 0
    %2550 = vmatpush2.bf16.msra.mxu0 0
    %2551 = vmatprep.subr.bf16.mxu0 0
    %2552 = vmatpush2.bf16.msra.mxu0 0
    %2553 = vmatprep.mubr.bf16.mxu0 0
    %2554 = vmatmul.mubr.bf16.gmra.mxu0 %v2476
    %v2555 = vpop.f32.mrf.mxu0
    %v2556 = vadd.f32 %v2386, %v2555
    %v2557 = vpop.f32.mrf.mxu0
    %v2558 = vadd.f32 %v2390, %v2557
    %v2559 = vpop.f32.mrf.mxu0
    %v2560 = vadd.f32 %v2386, %v2559
    %v2561 = vpop.f32.mrf.mxu0
    %v2562 = vadd.f32 %v2390, %v2561
    %2563 = vdwg.mxu0
    %v2564 = vmax.f32 %v2513, 0.0
    %v2565 = vmax.f32 %v2515, 0.0
    %v2566 = vmax.f32 %v2556, 0.0
    %v2567 = vmax.f32 %v2558, 0.0
    %v2568 = vmax.f32 %v2517, 0.0
    %v2569 = vmax.f32 %v2519, 0.0
    %v2570 = vmax.f32 %v2560, 0.0
    %v2571 = vmax.f32 %v2562, 0.0
    %v2572 = vpack.c.bf16 %v2568, %v2564
    %v2573 = vpack.c.bf16 %v2569, %v2565
    %v2574 = vpack.c.bf16 %v2570, %v2566
    %v2575 = vpack.c.bf16 %v2571, %v2567
    %v2576 = vld [vmem:[%s13] sm:$0xf]
    %v2577 = vld [vmem:[%s13 + $0x4] sm:$0xf]
    %v2578 = vld [vmem:[%s13 + $0x8] sm:$0xf]
    %v2579 = vld [vmem:[%s13 + $0xc] sm:$0xf]
    %v2580 = vld [vmem:[%s13 + $0x10] sm:$0xf]
    %v2581 = vld [vmem:[%s13 + $0x14] sm:$0xf]
    %v2582 = vld [vmem:[%s13 + $0x18] sm:$0xf]
    %v2583 = vld [vmem:[%s13 + $0x1c] sm:$0xf]
    %v2584 = vld [vmem:[%s13 + $0x20] sm:$0xf]
    %v2585 = vld [vmem:[%s13 + $0x24] sm:$0xf]
    %v2586 = vld [vmem:[%s13 + $0x28] sm:$0xf]
    %v2587 = vld [vmem:[%s13 + $0x2c] sm:$0xf]
    %v2588 = vld [vmem:[%s13 + $0x30] sm:$0xf]
    %v2589 = vld [vmem:[%s13 + $0x34] sm:$0xf]
    %v2590 = vld [vmem:[%s13 + $0x38] sm:$0xf]
    %v2591 = vld [vmem:[%s13 + $0x3c] sm:$0xf]
    %v2592 = vld [vmem:[%s13 + $0x40] sm:$0xf]
    %v2593 = vld [vmem:[%s13 + $0x44] sm:$0xf]
    %v2594 = vld [vmem:[%s13 + $0x48] sm:$0xf]
    %v2595 = vld [vmem:[%s13 + $0x4c] sm:$0xf]
    %v2596 = vld [vmem:[%s13 + $0x50] sm:$0xf]
    %v2597 = vld [vmem:[%s13 + $0x54] sm:$0xf]
    %v2598 = vld [vmem:[%s13 + $0x58] sm:$0xf]
    %v2599 = vld [vmem:[%s13 + $0x5c] sm:$0xf]
    %v2600 = vld [vmem:[%s13 + $0x60] sm:$0xf]
    %v2601 = vld [vmem:[%s13 + $0x64] sm:$0xf]
    %v2602 = vld [vmem:[%s13 + $0x68] sm:$0xf]
    %v2603 = vld [vmem:[%s13 + $0x6c] sm:$0xf]
    %v2604 = vld [vmem:[%s13 + $0x70] sm:$0xf]
    %v2605 = vld [vmem:[%s13 + $0x74] sm:$0xf]
    %v2606 = vld [vmem:[%s13 + $0x78] sm:$0xf]
    %v2607 = vld [vmem:[%s13 + $0x7c] sm:$0xf]
    %v2608 = vld [vmem:[%s13 + $0x80] sm:$0xf]
    %v2609 = vld [vmem:[%s13 + $0x84] sm:$0xf]
    %v2610 = vld [vmem:[%s13 + $0x88] sm:$0xf]
    %v2611 = vld [vmem:[%s13 + $0x8c] sm:$0xf]
    %v2612 = vld [vmem:[%s13 + $0x90] sm:$0xf]
    %v2613 = vld [vmem:[%s13 + $0x94] sm:$0xf]
    %v2614 = vld [vmem:[%s13 + $0x98] sm:$0xf]
    %v2615 = vld [vmem:[%s13 + $0x9c] sm:$0xf]
    %v2616 = vld [vmem:[%s13 + $0xa0] sm:$0xf]
    %v2617 = vld [vmem:[%s13 + $0xa4] sm:$0xf]
    %v2618 = vld [vmem:[%s13 + $0xa8] sm:$0xf]
    %v2619 = vld [vmem:[%s13 + $0xac] sm:$0xf]
    %v2620 = vld [vmem:[%s13 + $0xb0] sm:$0xf]
    %v2621 = vld [vmem:[%s13 + $0xb4] sm:$0xf]
    %v2622 = vld [vmem:[%s13 + $0xb8] sm:$0xf]
    %v2623 = vld [vmem:[%s13 + $0xbc] sm:$0xf]
    %v2624 = vld [vmem:[%s13 + $0xc0] sm:$0xf]
    %v2625 = vld [vmem:[%s13 + $0xc4] sm:$0xf]
    %v2626 = vld [vmem:[%s13 + $0xc8] sm:$0xf]
    %v2627 = vld [vmem:[%s13 + $0xcc] sm:$0xf]
    %v2628 = vld [vmem:[%s13 + $0xd0] sm:$0xf]
    %v2629 = vld [vmem:[%s13 + $0xd4] sm:$0xf]
    %v2630 = vld [vmem:[%s13 + $0xd8] sm:$0xf]
    %v2631 = vld [vmem:[%s13 + $0xdc] sm:$0xf]
    %v2632 = vld [vmem:[%s13 + $0xe0] sm:$0xf]
    %v2633 = vld [vmem:[%s13 + $0xe4] sm:$0xf]
    %v2634 = vld [vmem:[%s13 + $0xe8] sm:$0xf]
    %v2635 = vld [vmem:[%s13 + $0xec] sm:$0xf]
    %v2636 = vld [vmem:[%s13 + $0xf0] sm:$0xf]
    %v2637 = vld [vmem:[%s13 + $0xf4] sm:$0xf]
    %v2638 = vld [vmem:[%s13 + $0xf8] sm:$0xf]
    %v2639 = vld [vmem:[%s13 + $0xfc] sm:$0xf]
    %v2640 = vld [vmem:[%s11 + $0x10] sm:$0xff]
    %v2641 = vld [vmem:[%s11 + $0x18] sm:$0xff]
    %v2642 = vld [vmem:[%s11 + $0x50] sm:$0xff]
    %v2643 = vld [vmem:[%s11 + $0x58] sm:$0xff]
    %v2644 = vld [vmem:[%s11 + $0x90] sm:$0xff]
    %v2645 = vld [vmem:[%s11 + $0x98] sm:$0xff]
    %v2646 = vld [vmem:[%s11 + $0xd0] sm:$0xff]
    %v2647 = vld [vmem:[%s11 + $0xd8] sm:$0xff]
    %v2648 = vld [vmem:[%s11 + $0x110] sm:$0xff]
    %v2649 = vld [vmem:[%s11 + $0x118] sm:$0xff]
    %v2650 = vld [vmem:[%s11 + $0x150] sm:$0xff]
    %v2651 = vld [vmem:[%s11 + $0x158] sm:$0xff]
    %v2652 = vld [vmem:[%s11 + $0x190] sm:$0xff]
    %v2653 = vld [vmem:[%s11 + $0x198] sm:$0xff]
    %v2654 = vld [vmem:[%s11 + $0x1d0] sm:$0xff]
    %v2655 = vld [vmem:[%s11 + $0x1d8] sm:$0xff]
    %v2656 = vld [vmem:[%s12 + $0x4] sm:$0xf]
    %v2658 = vlaneseq
    %v2659 = vshrl.u32 %v2658, 7
    %v2660 = vsub.s32 0, %v2659
    %v2661 = vrot.slane %v2656, %v2660
    %v2662 = vlaneseq
    %v2663 = vshrl.u32 %v2662, 7
    %v2664 = vsub.s32 1, %v2663
    %v2665 = vrot.slane %v2656, %v2664
    %v2666 = vlaneseq
    %v2667 = vshrl.u32 %v2666, 7
    %v2668 = vsub.s32 2, %v2667
    %v2669 = vrot.slane %v2656, %v2668
    %v2670 = vlaneseq
    %v2671 = vshrl.u32 %v2670, 7
    %v2672 = vsub.s32 3, %v2671
    %v2673 = vrot.slane %v2656, %v2672
    %v2694 = vunpack.c.l.b16 %v2640
    %v2695 = vunpack.c.h.b16 %v2640
    %v2696 = vunpack.c.l.b16 %v2641
    %v2697 = vunpack.c.h.b16 %v2641
    %v2698 = vunpack.c.l.b16 %v2642
    %v2699 = vunpack.c.h.b16 %v2642
    %v2700 = vunpack.c.l.b16 %v2643
    %v2701 = vunpack.c.h.b16 %v2643
    %v2702 = vunpack.c.l.b16 %v2644
    %v2703 = vunpack.c.h.b16 %v2644
    %v2704 = vunpack.c.l.b16 %v2645
    %v2705 = vunpack.c.h.b16 %v2645
    %v2706 = vunpack.c.l.b16 %v2646
    %v2707 = vunpack.c.h.b16 %v2646
    %v2708 = vunpack.c.l.b16 %v2647
    %v2709 = vunpack.c.h.b16 %v2647
    %v2710 = vunpack.c.l.b16 %v2648
    %v2711 = vunpack.c.h.b16 %v2648
    %v2712 = vunpack.c.l.b16 %v2649
    %v2713 = vunpack.c.h.b16 %v2649
    %v2714 = vunpack.c.l.b16 %v2650
    %v2715 = vunpack.c.h.b16 %v2650
    %v2716 = vunpack.c.l.b16 %v2651
    %v2717 = vunpack.c.h.b16 %v2651
    %v2718 = vunpack.c.l.b16 %v2652
    %v2719 = vunpack.c.h.b16 %v2652
    %v2720 = vunpack.c.l.b16 %v2653
    %v2721 = vunpack.c.h.b16 %v2653
    %v2722 = vunpack.c.l.b16 %v2654
    %v2723 = vunpack.c.h.b16 %v2654
    %v2724 = vunpack.c.l.b16 %v2655
    %v2725 = vunpack.c.h.b16 %v2655
    %v2726 = vpack.c.b16 %v2698, %v2694
    %v2727 = vpack.c.b16 %v2699, %v2695
    %v2728 = vpack.c.b16 %v2700, %v2696
    %v2729 = vpack.c.b16 %v2701, %v2697
    %v2730 = vpack.c.b16 %v2706, %v2702
    %v2731 = vpack.c.b16 %v2707, %v2703
    %v2732 = vpack.c.b16 %v2708, %v2704
    %v2733 = vpack.c.b16 %v2709, %v2705
    %v2734 = vpack.c.b16 %v2714, %v2710
    %v2735 = vpack.c.b16 %v2715, %v2711
    %v2736 = vpack.c.b16 %v2716, %v2712
    %v2737 = vpack.c.b16 %v2717, %v2713
    %v2738 = vpack.c.b16 %v2722, %v2718
    %v2739 = vpack.c.b16 %v2723, %v2719
    %v2740 = vpack.c.b16 %v2724, %v2720
    %v2741 = vpack.c.b16 %v2725, %v2721
    %2758 = vmatprep.subr.bf16.mxu0 0
    %2759 = vmatpush1.bf16.msra.mxu0 0
    %2760 = vmatprep.subr.bf16.mxu0 0
    %2761 = vmatpush1.bf16.msra.mxu0 0
    %2762 = vmatprep.subr.bf16.mxu0 0
    %2763 = vmatpush1.bf16.msra.mxu0 0
    %2764 = vmatprep.subr.bf16.mxu0 0
    %2765 = vmatpush1.bf16.msra.mxu0 0
    %2766 = vmatprep.subr.bf16.mxu0 %v2739
    %2767 = vmatpush1.bf16.msra.mxu0 %v2738
    %2768 = vmatprep.subr.bf16.mxu0 %v2735
    %2769 = vmatpush1.bf16.msra.mxu0 %v2734
    %2770 = vmatprep.subr.bf16.mxu0 %v2731
    %2771 = vmatpush1.bf16.msra.mxu0 %v2730
    %2772 = vmatprep.subr.bf16.mxu0 %v2727
    %2773 = vmatpush1.bf16.msra.mxu0 %v2726
    %2774 = vmatprep.subr.bf16.mxu0 0
    %2775 = vmatpush2.bf16.msra.mxu0 0
    %2776 = vmatprep.subr.bf16.mxu0 0
    %2777 = vmatpush2.bf16.msra.mxu0 0
    %2778 = vmatprep.subr.bf16.mxu0 0
    %2779 = vmatpush2.bf16.msra.mxu0 0
    %2780 = vmatprep.subr.bf16.mxu0 0
    %2781 = vmatpush2.bf16.msra.mxu0 0
    %2782 = vmatprep.subr.bf16.mxu0 0
    %2783 = vmatpush2.bf16.msra.mxu0 0
    %2784 = vmatprep.subr.bf16.mxu0 0
    %2785 = vmatpush2.bf16.msra.mxu0 0
    %2786 = vmatprep.subr.bf16.mxu0 0
    %2787 = vmatpush2.bf16.msra.mxu0 0
    %2788 = vmatprep.subr.bf16.mxu0 0
    %2789 = vmatpush2.bf16.msra.mxu0 0
    %2790 = vmatprep.mubr.bf16.mxu0 0
    %2791 = vmatmul.mubr.bf16.gmra.mxu0 %v2476
    %v2792 = vpop.f32.mrf.mxu0
    %v2793 = vadd.f32 %v2661, %v2792
    %v2794 = vpop.f32.mrf.mxu0
    %v2795 = vadd.f32 %v2665, %v2794
    %v2796 = vpop.f32.mrf.mxu0
    %v2797 = vadd.f32 %v2661, %v2796
    %v2798 = vpop.f32.mrf.mxu0
    %v2799 = vadd.f32 %v2665, %v2798
    %2800 = vdwg.mxu0
    %2801 = vmatprep.subr.bf16.mxu0 0
    %2802 = vmatpush1.bf16.msra.mxu0 0
    %2803 = vmatprep.subr.bf16.mxu0 0
    %2804 = vmatpush1.bf16.msra.mxu0 0
    %2805 = vmatprep.subr.bf16.mxu0 0
    %2806 = vmatpush1.bf16.msra.mxu0 0
    %2807 = vmatprep.subr.bf16.mxu0 0
    %2808 = vmatpush1.bf16.msra.mxu0 0
    %2809 = vmatprep.subr.bf16.mxu0 %v2741
    %2810 = vmatpush1.bf16.msra.mxu0 %v2740
    %2811 = vmatprep.subr.bf16.mxu0 %v2737
    %2812 = vmatpush1.bf16.msra.mxu0 %v2736
    %2813 = vmatprep.subr.bf16.mxu0 %v2733
    %2814 = vmatpush1.bf16.msra.mxu0 %v2732
    %2815 = vmatprep.subr.bf16.mxu0 %v2729
    %2816 = vmatpush1.bf16.msra.mxu0 %v2728
    %2817 = vmatprep.subr.bf16.mxu0 0
    %2818 = vmatpush2.bf16.msra.mxu0 0
    %2819 = vmatprep.subr.bf16.mxu0 0
    %2820 = vmatpush2.bf16.msra.mxu0 0
    %2821 = vmatprep.subr.bf16.mxu0 0
    %2822 = vmatpush2.bf16.msra.mxu0 0
    %2823 = vmatprep.subr.bf16.mxu0 0
    %2824 = vmatpush2.bf16.msra.mxu0 0
    %2825 = vmatprep.subr.bf16.mxu0 0
    %2826 = vmatpush2.bf16.msra.mxu0 0
    %2827 = vmatprep.subr.bf16.mxu0 0
    %2828 = vmatpush2.bf16.msra.mxu0 0
    %2829 = vmatprep.subr.bf16.mxu0 0
    %2830 = vmatpush2.bf16.msra.mxu0 0
    %2831 = vmatprep.subr.bf16.mxu0 0
    %2832 = vmatpush2.bf16.msra.mxu0 0
    %2833 = vmatprep.mubr.bf16.mxu0 0
    %2834 = vmatmul.mubr.bf16.gmra.mxu0 %v2476
    %v2835 = vpop.f32.mrf.mxu0
    %v2836 = vadd.f32 %v2669, %v2835
    %v2837 = vpop.f32.mrf.mxu0
    %v2838 = vadd.f32 %v2673, %v2837
    %v2839 = vpop.f32.mrf.mxu0
    %v2840 = vadd.f32 %v2669, %v2839
    %v2841 = vpop.f32.mrf.mxu0
    %v2842 = vadd.f32 %v2673, %v2841
    %2843 = vdwg.mxu0
    %v2844 = vmax.f32 %v2793, 0.0
    %v2845 = vmax.f32 %v2795, 0.0
    %v2846 = vmax.f32 %v2836, 0.0
    %v2847 = vmax.f32 %v2838, 0.0
    %v2848 = vmax.f32 %v2797, 0.0
    %v2849 = vmax.f32 %v2799, 0.0
    %v2850 = vmax.f32 %v2840, 0.0
    %v2851 = vmax.f32 %v2842, 0.0
    %v2852 = vpack.c.bf16 %v2848, %v2844
    %v2853 = vpack.c.bf16 %v2849, %v2845
    %v2854 = vpack.c.bf16 %v2850, %v2846
    %v2855 = vpack.c.bf16 %v2851, %v2847
    %v2856 = vld [vmem:[%s13 + $0x100] sm:$0xf]
    %v2857 = vld [vmem:[%s13 + $0x104] sm:$0xf]
    %v2858 = vld [vmem:[%s13 + $0x108] sm:$0xf]
    %v2859 = vld [vmem:[%s13 + $0x10c] sm:$0xf]
    %v2860 = vld [vmem:[%s13 + $0x110] sm:$0xf]
    %v2861 = vld [vmem:[%s13 + $0x114] sm:$0xf]
    %v2862 = vld [vmem:[%s13 + $0x118] sm:$0xf]
    %v2863 = vld [vmem:[%s13 + $0x11c] sm:$0xf]
    %v2864 = vld [vmem:[%s13 + $0x120] sm:$0xf]
    %v2865 = vld [vmem:[%s13 + $0x124] sm:$0xf]
    %v2866 = vld [vmem:[%s13 + $0x128] sm:$0xf]
    %v2867 = vld [vmem:[%s13 + $0x12c] sm:$0xf]
    %v2868 = vld [vmem:[%s13 + $0x130] sm:$0xf]
    %v2869 = vld [vmem:[%s13 + $0x134] sm:$0xf]
    %v2870 = vld [vmem:[%s13 + $0x138] sm:$0xf]
    %v2871 = vld [vmem:[%s13 + $0x13c] sm:$0xf]
    %v2872 = vld [vmem:[%s13 + $0x140] sm:$0xf]
    %v2873 = vld [vmem:[%s13 + $0x144] sm:$0xf]
    %v2874 = vld [vmem:[%s13 + $0x148] sm:$0xf]
    %v2875 = vld [vmem:[%s13 + $0x14c] sm:$0xf]
    %v2876 = vld [vmem:[%s13 + $0x150] sm:$0xf]
    %v2877 = vld [vmem:[%s13 + $0x154] sm:$0xf]
    %v2878 = vld [vmem:[%s13 + $0x158] sm:$0xf]
    %v2879 = vld [vmem:[%s13 + $0x15c] sm:$0xf]
    %v2880 = vld [vmem:[%s13 + $0x160] sm:$0xf]
    %v2881 = vld [vmem:[%s13 + $0x164] sm:$0xf]
    %v2882 = vld [vmem:[%s13 + $0x168] sm:$0xf]
    %v2883 = vld [vmem:[%s13 + $0x16c] sm:$0xf]
    %v2884 = vld [vmem:[%s13 + $0x170] sm:$0xf]
    %v2885 = vld [vmem:[%s13 + $0x174] sm:$0xf]
    %v2886 = vld [vmem:[%s13 + $0x178] sm:$0xf]
    %v2887 = vld [vmem:[%s13 + $0x17c] sm:$0xf]
    %v2888 = vld [vmem:[%s13 + $0x180] sm:$0xf]
    %v2889 = vld [vmem:[%s13 + $0x184] sm:$0xf]
    %v2890 = vld [vmem:[%s13 + $0x188] sm:$0xf]
    %v2891 = vld [vmem:[%s13 + $0x18c] sm:$0xf]
    %v2892 = vld [vmem:[%s13 + $0x190] sm:$0xf]
    %v2893 = vld [vmem:[%s13 + $0x194] sm:$0xf]
    %v2894 = vld [vmem:[%s13 + $0x198] sm:$0xf]
    %v2895 = vld [vmem:[%s13 + $0x19c] sm:$0xf]
    %v2896 = vld [vmem:[%s13 + $0x1a0] sm:$0xf]
    %v2897 = vld [vmem:[%s13 + $0x1a4] sm:$0xf]
    %v2898 = vld [vmem:[%s13 + $0x1a8] sm:$0xf]
    %v2899 = vld [vmem:[%s13 + $0x1ac] sm:$0xf]
    %v2900 = vld [vmem:[%s13 + $0x1b0] sm:$0xf]
    %v2901 = vld [vmem:[%s13 + $0x1b4] sm:$0xf]
    %v2902 = vld [vmem:[%s13 + $0x1b8] sm:$0xf]
    %v2903 = vld [vmem:[%s13 + $0x1bc] sm:$0xf]
    %v2904 = vld [vmem:[%s13 + $0x1c0] sm:$0xf]
    %v2905 = vld [vmem:[%s13 + $0x1c4] sm:$0xf]
    %v2906 = vld [vmem:[%s13 + $0x1c8] sm:$0xf]
    %v2907 = vld [vmem:[%s13 + $0x1cc] sm:$0xf]
    %v2908 = vld [vmem:[%s13 + $0x1d0] sm:$0xf]
    %v2909 = vld [vmem:[%s13 + $0x1d4] sm:$0xf]
    %v2910 = vld [vmem:[%s13 + $0x1d8] sm:$0xf]
    %v2911 = vld [vmem:[%s13 + $0x1dc] sm:$0xf]
    %v2912 = vld [vmem:[%s13 + $0x1e0] sm:$0xf]
    %v2913 = vld [vmem:[%s13 + $0x1e4] sm:$0xf]
    %v2914 = vld [vmem:[%s13 + $0x1e8] sm:$0xf]
    %v2915 = vld [vmem:[%s13 + $0x1ec] sm:$0xf]
    %v2916 = vld [vmem:[%s13 + $0x1f0] sm:$0xf]
    %v2917 = vld [vmem:[%s13 + $0x1f4] sm:$0xf]
    %v2918 = vld [vmem:[%s13 + $0x1f8] sm:$0xf]
    %v2919 = vld [vmem:[%s13 + $0x1fc] sm:$0xf]
    %v2984 = vunpack.c.l.b16 %v2856
    %v2985 = vunpack.c.l.b16 %v2857
    %v2986 = vunpack.c.l.b16 %v2858
    %v2987 = vunpack.c.l.b16 %v2859
    %v2988 = vunpack.c.l.b16 %v2860
    %v2989 = vunpack.c.l.b16 %v2861
    %v2990 = vunpack.c.l.b16 %v2862
    %v2991 = vunpack.c.l.b16 %v2863
    %v2992 = vunpack.c.l.b16 %v2864
    %v2993 = vunpack.c.l.b16 %v2865
    %v2994 = vunpack.c.l.b16 %v2866
    %v2995 = vunpack.c.l.b16 %v2867
    %v2996 = vunpack.c.l.b16 %v2868
    %v2997 = vunpack.c.l.b16 %v2869
    %v2998 = vunpack.c.l.b16 %v2870
    %v2999 = vunpack.c.l.b16 %v2871
    %v3000 = vunpack.c.l.b16 %v2872
    %v3001 = vunpack.c.l.b16 %v2873
    %v3002 = vunpack.c.l.b16 %v2874
    %v3003 = vunpack.c.l.b16 %v2875
    %v3004 = vunpack.c.l.b16 %v2876
    %v3005 = vunpack.c.l.b16 %v2877
    %v3006 = vunpack.c.l.b16 %v2878
    %v3007 = vunpack.c.l.b16 %v2879
    %v3008 = vunpack.c.l.b16 %v2880
    %v3009 = vunpack.c.l.b16 %v2881
    %v3010 = vunpack.c.l.b16 %v2882
    %v3011 = vunpack.c.l.b16 %v2883
    %v3012 = vunpack.c.l.b16 %v2884
    %v3013 = vunpack.c.l.b16 %v2885
    %v3014 = vunpack.c.l.b16 %v2886
    %v3015 = vunpack.c.l.b16 %v2887
    %v3016 = vunpack.c.l.b16 %v2888
    %v3017 = vunpack.c.l.b16 %v2889
    %v3018 = vunpack.c.l.b16 %v2890
    %v3019 = vunpack.c.l.b16 %v2891
    %v3020 = vunpack.c.l.b16 %v2892
    %v3021 = vunpack.c.l.b16 %v2893
    %v3022 = vunpack.c.l.b16 %v2894
    %v3023 = vunpack.c.l.b16 %v2895
    %v3024 = vunpack.c.l.b16 %v2896
    %v3025 = vunpack.c.l.b16 %v2897
    %v3026 = vunpack.c.l.b16 %v2898
    %v3027 = vunpack.c.l.b16 %v2899
    %v3028 = vunpack.c.l.b16 %v2900
    %v3029 = vunpack.c.l.b16 %v2901
    %v3030 = vunpack.c.l.b16 %v2902
    %v3031 = vunpack.c.l.b16 %v2903
    %v3032 = vunpack.c.l.b16 %v2904
    %v3033 = vunpack.c.l.b16 %v2905
    %v3034 = vunpack.c.l.b16 %v2906
    %v3035 = vunpack.c.l.b16 %v2907
    %v3036 = vunpack.c.l.b16 %v2908
    %v3037 = vunpack.c.l.b16 %v2909
    %v3038 = vunpack.c.l.b16 %v2910
    %v3039 = vunpack.c.l.b16 %v2911
    %v3040 = vunpack.c.l.b16 %v2912
    %v3041 = vunpack.c.l.b16 %v2913
    %v3042 = vunpack.c.l.b16 %v2914
    %v3043 = vunpack.c.l.b16 %v2915
    %v3044 = vunpack.c.l.b16 %v2916
    %v3045 = vunpack.c.l.b16 %v2917
    %v3046 = vunpack.c.l.b16 %v2918
    %v3047 = vunpack.c.l.b16 %v2919
    %v3048 = vpack.c.b16 %v2985, %v2984
    %v3049 = vpack.c.b16 %v2987, %v2986
    %v3050 = vpack.c.b16 %v2989, %v2988
    %v3051 = vpack.c.b16 %v2991, %v2990
    %v3052 = vpack.c.b16 %v2993, %v2992
    %v3053 = vpack.c.b16 %v2995, %v2994
    %v3054 = vpack.c.b16 %v2997, %v2996
    %v3055 = vpack.c.b16 %v2999, %v2998
    %v3056 = vpack.c.b16 %v3001, %v3000
    %v3057 = vpack.c.b16 %v3003, %v3002
    %v3058 = vpack.c.b16 %v3005, %v3004
    %v3059 = vpack.c.b16 %v3007, %v3006
    %v3060 = vpack.c.b16 %v3009, %v3008
    %v3061 = vpack.c.b16 %v3011, %v3010
    %v3062 = vpack.c.b16 %v3013, %v3012
    %v3063 = vpack.c.b16 %v3015, %v3014
    %v3064 = vpack.c.b16 %v3017, %v3016
    %v3065 = vpack.c.b16 %v3019, %v3018
    %v3066 = vpack.c.b16 %v3021, %v3020
    %v3067 = vpack.c.b16 %v3023, %v3022
    %v3068 = vpack.c.b16 %v3025, %v3024
    %v3069 = vpack.c.b16 %v3027, %v3026
    %v3070 = vpack.c.b16 %v3029, %v3028
    %v3071 = vpack.c.b16 %v3031, %v3030
    %v3072 = vpack.c.b16 %v3033, %v3032
    %v3073 = vpack.c.b16 %v3035, %v3034
    %v3074 = vpack.c.b16 %v3037, %v3036
    %v3075 = vpack.c.b16 %v3039, %v3038
    %v3076 = vpack.c.b16 %v3041, %v3040
    %v3077 = vpack.c.b16 %v3043, %v3042
    %v3078 = vpack.c.b16 %v3045, %v3044
    %v3079 = vpack.c.b16 %v3047, %v3046
    %3112 = vmatprep.subr.bf16.mxu0 0
    %3113 = vmatpush1.bf16.msra.mxu0 %v3055
    %3114 = vmatprep.subr.bf16.mxu0 0
    %3115 = vmatpush1.bf16.msra.mxu0 %v3054
    %3116 = vmatprep.subr.bf16.mxu0 0
    %3117 = vmatpush1.bf16.msra.mxu0 %v3053
    %3118 = vmatprep.subr.bf16.mxu0 0
    %3119 = vmatpush1.bf16.msra.mxu0 %v3052
    %3120 = vmatprep.subr.bf16.mxu0 0
    %3121 = vmatpush1.bf16.msra.mxu0 %v3051
    %3122 = vmatprep.subr.bf16.mxu0 0
    %3123 = vmatpush1.bf16.msra.mxu0 %v3050
    %3124 = vmatprep.subr.bf16.mxu0 0
    %3125 = vmatpush1.bf16.msra.mxu0 %v3049
    %3126 = vmatprep.subr.bf16.mxu0 0
    %3127 = vmatpush1.bf16.msra.mxu0 %v3048
    %3128 = vmatprep.subr.bf16.mxu0 0
    %3129 = vmatpush2.bf16.msra.mxu0 %v3063
    %3130 = vmatprep.subr.bf16.mxu0 0
    %3131 = vmatpush2.bf16.msra.mxu0 %v3062
    %3132 = vmatprep.subr.bf16.mxu0 0
    %3133 = vmatpush2.bf16.msra.mxu0 %v3061
    %3134 = vmatprep.subr.bf16.mxu0 0
    %3135 = vmatpush2.bf16.msra.mxu0 %v3060
    %3136 = vmatprep.subr.bf16.mxu0 0
    %3137 = vmatpush2.bf16.msra.mxu0 %v3059
    %3138 = vmatprep.subr.bf16.mxu0 0
    %3139 = vmatpush2.bf16.msra.mxu0 %v3058
    %3140 = vmatprep.subr.bf16.mxu0 0
    %3141 = vmatpush2.bf16.msra.mxu0 %v3057
    %3142 = vmatprep.subr.bf16.mxu0 0
    %3143 = vmatpush2.bf16.msra.mxu0 %v3056
    %3144 = vmatprep.mubr.bf16.mxu0 %v2853
    %3145 = vmatmul.mubr.bf16.gmra.mxu0 %v2852
    %v3146 = vpop.f32.mrf.mxu0
    %v3147 = vadd.f32 0.0, %v3146
    %v3148 = vpop.f32.mrf.mxu0
    %v3149 = vpop.f32.mrf.mxu0
    %v3150 = vadd.f32 0.0, %v3149
    %v3151 = vpop.f32.mrf.mxu0
    %3152 = vdwg.mxu0
    %3153 = vmatprep.subr.bf16.mxu0 0
    %3154 = vmatpush1.bf16.msra.mxu0 %v3071
    %3155 = vmatprep.subr.bf16.mxu0 0
    %3156 = vmatpush1.bf16.msra.mxu0 %v3070
    %3157 = vmatprep.subr.bf16.mxu0 0
    %3158 = vmatpush1.bf16.msra.mxu0 %v3069
    %3159 = vmatprep.subr.bf16.mxu0 0
    %3160 = vmatpush1.bf16.msra.mxu0 %v3068
    %3161 = vmatprep.subr.bf16.mxu0 0
    %3162 = vmatpush1.bf16.msra.mxu0 %v3067
    %3163 = vmatprep.subr.bf16.mxu0 0
    %3164 = vmatpush1.bf16.msra.mxu0 %v3066
    %3165 = vmatprep.subr.bf16.mxu0 0
    %3166 = vmatpush1.bf16.msra.mxu0 %v3065
    %3167 = vmatprep.subr.bf16.mxu0 0
    %3168 = vmatpush1.bf16.msra.mxu0 %v3064
    %3169 = vmatprep.subr.bf16.mxu0 0
    %3170 = vmatpush2.bf16.msra.mxu0 %v3079
    %3171 = vmatprep.subr.bf16.mxu0 0
    %3172 = vmatpush2.bf16.msra.mxu0 %v3078
    %3173 = vmatprep.subr.bf16.mxu0 0
    %3174 = vmatpush2.bf16.msra.mxu0 %v3077
    %3175 = vmatprep.subr.bf16.mxu0 0
    %3176 = vmatpush2.bf16.msra.mxu0 %v3076
    %3177 = vmatprep.subr.bf16.mxu0 0
    %3178 = vmatpush2.bf16.msra.mxu0 %v3075
    %3179 = vmatprep.subr.bf16.mxu0 0
    %3180 = vmatpush2.bf16.msra.mxu0 %v3074
    %3181 = vmatprep.subr.bf16.mxu0 0
    %3182 = vmatpush2.bf16.msra.mxu0 %v3073
    %3183 = vmatprep.subr.bf16.mxu0 0
    %3184 = vmatpush2.bf16.msra.mxu0 %v3072
    %3185 = vmatprep.mubr.bf16.mxu0 %v2855
    %3186 = vmatmul.mubr.bf16.gmra.mxu0 %v2854
    %v3187 = vpop.f32.mrf.mxu0
    %v3188 = vadd.f32 %v3147, %v3187
    %v3189 = vpop.f32.mrf.mxu0
    %v3190 = vpop.f32.mrf.mxu0
    %v3191 = vadd.f32 %v3150, %v3190
    %v3192 = vpop.f32.mrf.mxu0
    %3193 = vdwg.mxu0
    %v3258 = vunpack.c.l.b16 %v2576
    %v3259 = vunpack.c.l.b16 %v2577
    %v3260 = vunpack.c.l.b16 %v2578
    %v3261 = vunpack.c.l.b16 %v2579
    %v3262 = vunpack.c.l.b16 %v2580
    %v3263 = vunpack.c.l.b16 %v2581
    %v3264 = vunpack.c.l.b16 %v2582
    %v3265 = vunpack.c.l.b16 %v2583
    %v3266 = vunpack.c.l.b16 %v2584
    %v3267 = vunpack.c.l.b16 %v2585
    %v3268 = vunpack.c.l.b16 %v2586
    %v3269 = vunpack.c.l.b16 %v2587
    %v3270 = vunpack.c.l.b16 %v2588
    %v3271 = vunpack.c.l.b16 %v2589
    %v3272 = vunpack.c.l.b16 %v2590
    %v3273 = vunpack.c.l.b16 %v2591
    %v3274 = vunpack.c.l.b16 %v2592
    %v3275 = vunpack.c.l.b16 %v2593
    %v3276 = vunpack.c.l.b16 %v2594
    %v3277 = vunpack.c.l.b16 %v2595
    %v3278 = vunpack.c.l.b16 %v2596
    %v3279 = vunpack.c.l.b16 %v2597
    %v3280 = vunpack.c.l.b16 %v2598
    %v3281 = vunpack.c.l.b16 %v2599
    %v3282 = vunpack.c.l.b16 %v2600
    %v3283 = vunpack.c.l.b16 %v2601
    %v3284 = vunpack.c.l.b16 %v2602
    %v3285 = vunpack.c.l.b16 %v2603
    %v3286 = vunpack.c.l.b16 %v2604
    %v3287 = vunpack.c.l.b16 %v2605
    %v3288 = vunpack.c.l.b16 %v2606
    %v3289 = vunpack.c.l.b16 %v2607
    %v3290 = vunpack.c.l.b16 %v2608
    %v3291 = vunpack.c.l.b16 %v2609
    %v3292 = vunpack.c.l.b16 %v2610
    %v3293 = vunpack.c.l.b16 %v2611
    %v3294 = vunpack.c.l.b16 %v2612
    %v3295 = vunpack.c.l.b16 %v2613
    %v3296 = vunpack.c.l.b16 %v2614
    %v3297 = vunpack.c.l.b16 %v2615
    %v3298 = vunpack.c.l.b16 %v2616
    %v3299 = vunpack.c.l.b16 %v2617
    %v3300 = vunpack.c.l.b16 %v2618
    %v3301 = vunpack.c.l.b16 %v2619
    %v3302 = vunpack.c.l.b16 %v2620
    %v3303 = vunpack.c.l.b16 %v2621
    %v3304 = vunpack.c.l.b16 %v2622
    %v3305 = vunpack.c.l.b16 %v2623
    %v3306 = vunpack.c.l.b16 %v2624
    %v3307 = vunpack.c.l.b16 %v2625
    %v3308 = vunpack.c.l.b16 %v2626
    %v3309 = vunpack.c.l.b16 %v2627
    %v3310 = vunpack.c.l.b16 %v2628
    %v3311 = vunpack.c.l.b16 %v2629
    %v3312 = vunpack.c.l.b16 %v2630
    %v3313 = vunpack.c.l.b16 %v2631
    %v3314 = vunpack.c.l.b16 %v2632
    %v3315 = vunpack.c.l.b16 %v2633
    %v3316 = vunpack.c.l.b16 %v2634
    %v3317 = vunpack.c.l.b16 %v2635
    %v3318 = vunpack.c.l.b16 %v2636
    %v3319 = vunpack.c.l.b16 %v2637
    %v3320 = vunpack.c.l.b16 %v2638
    %v3321 = vunpack.c.l.b16 %v2639
    %v3322 = vpack.c.b16 %v3259, %v3258
    %v3323 = vpack.c.b16 %v3261, %v3260
    %v3324 = vpack.c.b16 %v3263, %v3262
    %v3325 = vpack.c.b16 %v3265, %v3264
    %v3326 = vpack.c.b16 %v3267, %v3266
    %v3327 = vpack.c.b16 %v3269, %v3268
    %v3328 = vpack.c.b16 %v3271, %v3270
    %v3329 = vpack.c.b16 %v3273, %v3272
    %v3330 = vpack.c.b16 %v3275, %v3274
    %v3331 = vpack.c.b16 %v3277, %v3276
    %v3332 = vpack.c.b16 %v3279, %v3278
    %v3333 = vpack.c.b16 %v3281, %v3280
    %v3334 = vpack.c.b16 %v3283, %v3282
    %v3335 = vpack.c.b16 %v3285, %v3284
    %v3336 = vpack.c.b16 %v3287, %v3286
    %v3337 = vpack.c.b16 %v3289, %v3288
    %v3338 = vpack.c.b16 %v3291, %v3290
    %v3339 = vpack.c.b16 %v3293, %v3292
    %v3340 = vpack.c.b16 %v3295, %v3294
    %v3341 = vpack.c.b16 %v3297, %v3296
    %v3342 = vpack.c.b16 %v3299, %v3298
    %v3343 = vpack.c.b16 %v3301, %v3300
    %v3344 = vpack.c.b16 %v3303, %v3302
    %v3345 = vpack.c.b16 %v3305, %v3304
    %v3346 = vpack.c.b16 %v3307, %v3306
    %v3347 = vpack.c.b16 %v3309, %v3308
    %v3348 = vpack.c.b16 %v3311, %v3310
    %v3349 = vpack.c.b16 %v3313, %v3312
    %v3350 = vpack.c.b16 %v3315, %v3314
    %v3351 = vpack.c.b16 %v3317, %v3316
    %v3352 = vpack.c.b16 %v3319, %v3318
    %v3353 = vpack.c.b16 %v3321, %v3320
    %3386 = vmatprep.subr.bf16.mxu0 0
    %3387 = vmatpush1.bf16.msra.mxu0 %v3329
    %3388 = vmatprep.subr.bf16.mxu0 0
    %3389 = vmatpush1.bf16.msra.mxu0 %v3328
    %3390 = vmatprep.subr.bf16.mxu0 0
    %3391 = vmatpush1.bf16.msra.mxu0 %v3327
    %3392 = vmatprep.subr.bf16.mxu0 0
    %3393 = vmatpush1.bf16.msra.mxu0 %v3326
    %3394 = vmatprep.subr.bf16.mxu0 0
    %3395 = vmatpush1.bf16.msra.mxu0 %v3325
    %3396 = vmatprep.subr.bf16.mxu0 0
    %3397 = vmatpush1.bf16.msra.mxu0 %v3324
    %3398 = vmatprep.subr.bf16.mxu0 0
    %3399 = vmatpush1.bf16.msra.mxu0 %v3323
    %3400 = vmatprep.subr.bf16.mxu0 0
    %3401 = vmatpush1.bf16.msra.mxu0 %v3322
    %3402 = vmatprep.subr.bf16.mxu0 0
    %3403 = vmatpush2.bf16.msra.mxu0 %v3337
    %3404 = vmatprep.subr.bf16.mxu0 0
    %3405 = vmatpush2.bf16.msra.mxu0 %v3336
    %3406 = vmatprep.subr.bf16.mxu0 0
    %3407 = vmatpush2.bf16.msra.mxu0 %v3335
    %3408 = vmatprep.subr.bf16.mxu0 0
    %3409 = vmatpush2.bf16.msra.mxu0 %v3334
    %3410 = vmatprep.subr.bf16.mxu0 0
    %3411 = vmatpush2.bf16.msra.mxu0 %v3333
    %3412 = vmatprep.subr.bf16.mxu0 0
    %3413 = vmatpush2.bf16.msra.mxu0 %v3332
    %3414 = vmatprep.subr.bf16.mxu0 0
    %3415 = vmatpush2.bf16.msra.mxu0 %v3331
    %3416 = vmatprep.subr.bf16.mxu0 0
    %3417 = vmatpush2.bf16.msra.mxu0 %v3330
    %3418 = vmatprep.mubr.bf16.mxu0 %v2573
    %3419 = vmatmul.mubr.bf16.gmra.mxu0 %v2572
    %v3420 = vpop.f32.mrf.mxu0
    %v3421 = vadd.f32 %v3188, %v3420
    %v3422 = vpop.f32.mrf.mxu0
    %v3423 = vpop.f32.mrf.mxu0
    %v3424 = vadd.f32 %v3191, %v3423
    %v3425 = vpop.f32.mrf.mxu0
    %3426 = vdwg.mxu0
    %3427 = vmatprep.subr.bf16.mxu0 0
    %3428 = vmatpush1.bf16.msra.mxu0 %v3345
    %3429 = vmatprep.subr.bf16.mxu0 0
    %3430 = vmatpush1.bf16.msra.mxu0 %v3344
    %3431 = vmatprep.subr.bf16.mxu0 0
    %3432 = vmatpush1.bf16.msra.mxu0 %v3343
    %3433 = vmatprep.subr.bf16.mxu0 0
    %3434 = vmatpush1.bf16.msra.mxu0 %v3342
    %3435 = vmatprep.subr.bf16.mxu0 0
    %3436 = vmatpush1.bf16.msra.mxu0 %v3341
    %3437 = vmatprep.subr.bf16.mxu0 0
    %3438 = vmatpush1.bf16.msra.mxu0 %v3340
    %3439 = vmatprep.subr.bf16.mxu0 0
    %3440 = vmatpush1.bf16.msra.mxu0 %v3339
    %3441 = vmatprep.subr.bf16.mxu0 0
    %3442 = vmatpush1.bf16.msra.mxu0 %v3338
    %3443 = vmatprep.subr.bf16.mxu0 0
    %3444 = vmatpush2.bf16.msra.mxu0 %v3353
    %3445 = vmatprep.subr.bf16.mxu0 0
    %3446 = vmatpush2.bf16.msra.mxu0 %v3352
    %3447 = vmatprep.subr.bf16.mxu0 0
    %3448 = vmatpush2.bf16.msra.mxu0 %v3351
    %3449 = vmatprep.subr.bf16.mxu0 0
    %3450 = vmatpush2.bf16.msra.mxu0 %v3350
    %3451 = vmatprep.subr.bf16.mxu0 0
    %3452 = vmatpush2.bf16.msra.mxu0 %v3349
    %3453 = vmatprep.subr.bf16.mxu0 0
    %3454 = vmatpush2.bf16.msra.mxu0 %v3348
    %3455 = vmatprep.subr.bf16.mxu0 0
    %3456 = vmatpush2.bf16.msra.mxu0 %v3347
    %3457 = vmatprep.subr.bf16.mxu0 0
    %3458 = vmatpush2.bf16.msra.mxu0 %v3346
    %3459 = vmatprep.mubr.bf16.mxu0 %v2575
    %3460 = vmatmul.mubr.bf16.gmra.mxu0 %v2574
    %v3461 = vpop.f32.mrf.mxu0
    %v3462 = vadd.f32 %v3421, %v3461
    %v3463 = vpop.f32.mrf.mxu0
    %v3464 = vpop.f32.mrf.mxu0
    %v3465 = vadd.f32 %v3424, %v3464
    %v3466 = vpop.f32.mrf.mxu0
    %3467 = vdwg.mxu0
    %v3468 = vld [vmem:[%s11 + $0x20] sm:$0xff]
    %v3469 = vld [vmem:[%s11 + $0x28] sm:$0xff]
    %v3470 = vld [vmem:[%s11 + $0x60] sm:$0xff]
    %v3471 = vld [vmem:[%s11 + $0x68] sm:$0xff]
    %v3472 = vld [vmem:[%s11 + $0xa0] sm:$0xff]
    %v3473 = vld [vmem:[%s11 + $0xa8] sm:$0xff]
    %v3474 = vld [vmem:[%s11 + $0xe0] sm:$0xff]
    %v3475 = vld [vmem:[%s11 + $0xe8] sm:$0xff]
    %v3476 = vld [vmem:[%s11 + $0x120] sm:$0xff]
    %v3477 = vld [vmem:[%s11 + $0x128] sm:$0xff]
    %v3478 = vld [vmem:[%s11 + $0x160] sm:$0xff]
    %v3479 = vld [vmem:[%s11 + $0x168] sm:$0xff]
    %v3480 = vld [vmem:[%s11 + $0x1a0] sm:$0xff]
    %v3481 = vld [vmem:[%s11 + $0x1a8] sm:$0xff]
    %v3482 = vld [vmem:[%s11 + $0x1e0] sm:$0xff]
    %v3483 = vld [vmem:[%s11 + $0x1e8] sm:$0xff]
    %v3484 = vld [vmem:[%s12 + $0x8] sm:$0xf]
    %v3486 = vlaneseq
    %v3487 = vshrl.u32 %v3486, 7
    %v3488 = vsub.s32 0, %v3487
    %v3489 = vrot.slane %v3484, %v3488
    %v3490 = vlaneseq
    %v3491 = vshrl.u32 %v3490, 7
    %v3492 = vsub.s32 1, %v3491
    %v3493 = vrot.slane %v3484, %v3492
    %v3494 = vlaneseq
    %v3495 = vshrl.u32 %v3494, 7
    %v3496 = vsub.s32 2, %v3495
    %v3497 = vrot.slane %v3484, %v3496
    %v3498 = vlaneseq
    %v3499 = vshrl.u32 %v3498, 7
    %v3500 = vsub.s32 3, %v3499
    %v3501 = vrot.slane %v3484, %v3500
    %v3522 = vunpack.c.l.b16 %v3468
    %v3523 = vunpack.c.h.b16 %v3468
    %v3524 = vunpack.c.l.b16 %v3469
    %v3525 = vunpack.c.h.b16 %v3469
    %v3526 = vunpack.c.l.b16 %v3470
    %v3527 = vunpack.c.h.b16 %v3470
    %v3528 = vunpack.c.l.b16 %v3471
    %v3529 = vunpack.c.h.b16 %v3471
    %v3530 = vunpack.c.l.b16 %v3472
    %v3531 = vunpack.c.h.b16 %v3472
    %v3532 = vunpack.c.l.b16 %v3473
    %v3533 = vunpack.c.h.b16 %v3473
    %v3534 = vunpack.c.l.b16 %v3474
    %v3535 = vunpack.c.h.b16 %v3474
    %v3536 = vunpack.c.l.b16 %v3475
    %v3537 = vunpack.c.h.b16 %v3475
    %v3538 = vunpack.c.l.b16 %v3476
    %v3539 = vunpack.c.h.b16 %v3476
    %v3540 = vunpack.c.l.b16 %v3477
    %v3541 = vunpack.c.h.b16 %v3477
    %v3542 = vunpack.c.l.b16 %v3478
    %v3543 = vunpack.c.h.b16 %v3478
    %v3544 = vunpack.c.l.b16 %v3479
    %v3545 = vunpack.c.h.b16 %v3479
    %v3546 = vunpack.c.l.b16 %v3480
    %v3547 = vunpack.c.h.b16 %v3480
    %v3548 = vunpack.c.l.b16 %v3481
    %v3549 = vunpack.c.h.b16 %v3481
    %v3550 = vunpack.c.l.b16 %v3482
    %v3551 = vunpack.c.h.b16 %v3482
    %v3552 = vunpack.c.l.b16 %v3483
    %v3553 = vunpack.c.h.b16 %v3483
    %v3554 = vpack.c.b16 %v3526, %v3522
    %v3555 = vpack.c.b16 %v3527, %v3523
    %v3556 = vpack.c.b16 %v3528, %v3524
    %v3557 = vpack.c.b16 %v3529, %v3525
    %v3558 = vpack.c.b16 %v3534, %v3530
    %v3559 = vpack.c.b16 %v3535, %v3531
    %v3560 = vpack.c.b16 %v3536, %v3532
    %v3561 = vpack.c.b16 %v3537, %v3533
    %v3562 = vpack.c.b16 %v3542, %v3538
    %v3563 = vpack.c.b16 %v3543, %v3539
    %v3564 = vpack.c.b16 %v3544, %v3540
    %v3565 = vpack.c.b16 %v3545, %v3541
    %v3566 = vpack.c.b16 %v3550, %v3546
    %v3567 = vpack.c.b16 %v3551, %v3547
    %v3568 = vpack.c.b16 %v3552, %v3548
    %v3569 = vpack.c.b16 %v3553, %v3549
    %3586 = vmatprep.subr.bf16.mxu0 0
    %3587 = vmatpush1.bf16.msra.mxu0 0
    %3588 = vmatprep.subr.bf16.mxu0 0
    %3589 = vmatpush1.bf16.msra.mxu0 0
    %3590 = vmatprep.subr.bf16.mxu0 0
    %3591 = vmatpush1.bf16.msra.mxu0 0
    %3592 = vmatprep.subr.bf16.mxu0 0
    %3593 = vmatpush1.bf16.msra.mxu0 0
    %3594 = vmatprep.subr.bf16.mxu0 %v3567
    %3595 = vmatpush1.bf16.msra.mxu0 %v3566
    %3596 = vmatprep.subr.bf16.mxu0 %v3563
    %3597 = vmatpush1.bf16.msra.mxu0 %v3562
    %3598 = vmatprep.subr.bf16.mxu0 %v3559
    %3599 = vmatpush1.bf16.msra.mxu0 %v3558
    %3600 = vmatprep.subr.bf16.mxu0 %v3555
    %3601 = vmatpush1.bf16.msra.mxu0 %v3554
    %3602 = vmatprep.subr.bf16.mxu0 0
    %3603 = vmatpush2.bf16.msra.mxu0 0
    %3604 = vmatprep.subr.bf16.mxu0 0
    %3605 = vmatpush2.bf16.msra.mxu0 0
    %3606 = vmatprep.subr.bf16.mxu0 0
    %3607 = vmatpush2.bf16.msra.mxu0 0
    %3608 = vmatprep.subr.bf16.mxu0 0
    %3609 = vmatpush2.bf16.msra.mxu0 0
    %3610 = vmatprep.subr.bf16.mxu0 0
    %3611 = vmatpush2.bf16.msra.mxu0 0
    %3612 = vmatprep.subr.bf16.mxu0 0
    %3613 = vmatpush2.bf16.msra.mxu0 0
    %3614 = vmatprep.subr.bf16.mxu0 0
    %3615 = vmatpush2.bf16.msra.mxu0 0
    %3616 = vmatprep.subr.bf16.mxu0 0
    %3617 = vmatpush2.bf16.msra.mxu0 0
    %3618 = vmatprep.mubr.bf16.mxu0 0
    %3619 = vmatmul.mubr.bf16.gmra.mxu0 %v2476
    %v3620 = vpop.f32.mrf.mxu0
    %v3621 = vadd.f32 %v3489, %v3620
    %v3622 = vpop.f32.mrf.mxu0
    %v3623 = vadd.f32 %v3493, %v3622
    %v3624 = vpop.f32.mrf.mxu0
    %v3625 = vadd.f32 %v3489, %v3624
    %v3626 = vpop.f32.mrf.mxu0
    %v3627 = vadd.f32 %v3493, %v3626
    %3628 = vdwg.mxu0
    %3629 = vmatprep.subr.bf16.mxu0 0
    %3630 = vmatpush1.bf16.msra.mxu0 0
    %3631 = vmatprep.subr.bf16.mxu0 0
    %3632 = vmatpush1.bf16.msra.mxu0 0
    %3633 = vmatprep.subr.bf16.mxu0 0
    %3634 = vmatpush1.bf16.msra.mxu0 0
    %3635 = vmatprep.subr.bf16.mxu0 0
    %3636 = vmatpush1.bf16.msra.mxu0 0
    %3637 = vmatprep.subr.bf16.mxu0 %v3569
    %3638 = vmatpush1.bf16.msra.mxu0 %v3568
    %3639 = vmatprep.subr.bf16.mxu0 %v3565
    %3640 = vmatpush1.bf16.msra.mxu0 %v3564
    %3641 = vmatprep.subr.bf16.mxu0 %v3561
    %3642 = vmatpush1.bf16.msra.mxu0 %v3560
    %3643 = vmatprep.subr.bf16.mxu0 %v3557
    %3644 = vmatpush1.bf16.msra.mxu0 %v3556
    %3645 = vmatprep.subr.bf16.mxu0 0
    %3646 = vmatpush2.bf16.msra.mxu0 0
    %3647 = vmatprep.subr.bf16.mxu0 0
    %3648 = vmatpush2.bf16.msra.mxu0 0
    %3649 = vmatprep.subr.bf16.mxu0 0
    %3650 = vmatpush2.bf16.msra.mxu0 0
    %3651 = vmatprep.subr.bf16.mxu0 0
    %3652 = vmatpush2.bf16.msra.mxu0 0
    %3653 = vmatprep.subr.bf16.mxu0 0
    %3654 = vmatpush2.bf16.msra.mxu0 0
    %3655 = vmatprep.subr.bf16.mxu0 0
    %3656 = vmatpush2.bf16.msra.mxu0 0
    %3657 = vmatprep.subr.bf16.mxu0 0
    %3658 = vmatpush2.bf16.msra.mxu0 0
    %3659 = vmatprep.subr.bf16.mxu0 0
    %3660 = vmatpush2.bf16.msra.mxu0 0
    %3661 = vmatprep.mubr.bf16.mxu0 0
    %3662 = vmatmul.mubr.bf16.gmra.mxu0 %v2476
    %v3663 = vpop.f32.mrf.mxu0
    %v3664 = vadd.f32 %v3497, %v3663
    %v3665 = vpop.f32.mrf.mxu0
    %v3666 = vadd.f32 %v3501, %v3665
    %v3667 = vpop.f32.mrf.mxu0
    %v3668 = vadd.f32 %v3497, %v3667
    %v3669 = vpop.f32.mrf.mxu0
    %v3670 = vadd.f32 %v3501, %v3669
    %3671 = vdwg.mxu0
    %v3672 = vmax.f32 %v3621, 0.0
    %v3673 = vmax.f32 %v3623, 0.0
    %v3674 = vmax.f32 %v3664, 0.0
    %v3675 = vmax.f32 %v3666, 0.0
    %v3676 = vmax.f32 %v3625, 0.0
    %v3677 = vmax.f32 %v3627, 0.0
    %v3678 = vmax.f32 %v3668, 0.0
    %v3679 = vmax.f32 %v3670, 0.0
    %v3680 = vpack.c.bf16 %v3676, %v3672
    %v3681 = vpack.c.bf16 %v3677, %v3673
    %v3682 = vpack.c.bf16 %v3678, %v3674
    %v3683 = vpack.c.bf16 %v3679, %v3675
    %v3684 = vld [vmem:[%s13 + $0x200] sm:$0xf]
    %v3685 = vld [vmem:[%s13 + $0x204] sm:$0xf]
    %v3686 = vld [vmem:[%s13 + $0x208] sm:$0xf]
    %v3687 = vld [vmem:[%s13 + $0x20c] sm:$0xf]
    %v3688 = vld [vmem:[%s13 + $0x210] sm:$0xf]
    %v3689 = vld [vmem:[%s13 + $0x214] sm:$0xf]
    %v3690 = vld [vmem:[%s13 + $0x218] sm:$0xf]
    %v3691 = vld [vmem:[%s13 + $0x21c] sm:$0xf]
    %v3692 = vld [vmem:[%s13 + $0x220] sm:$0xf]
    %v3693 = vld [vmem:[%s13 + $0x224] sm:$0xf]
    %v3694 = vld [vmem:[%s13 + $0x228] sm:$0xf]
    %v3695 = vld [vmem:[%s13 + $0x22c] sm:$0xf]
    %v3696 = vld [vmem:[%s13 + $0x230] sm:$0xf]
    %v3697 = vld [vmem:[%s13 + $0x234] sm:$0xf]
    %v3698 = vld [vmem:[%s13 + $0x238] sm:$0xf]
    %v3699 = vld [vmem:[%s13 + $0x23c] sm:$0xf]
    %v3700 = vld [vmem:[%s13 + $0x240] sm:$0xf]
    %v3701 = vld [vmem:[%s13 + $0x244] sm:$0xf]
    %v3702 = vld [vmem:[%s13 + $0x248] sm:$0xf]
    %v3703 = vld [vmem:[%s13 + $0x24c] sm:$0xf]
    %v3704 = vld [vmem:[%s13 + $0x250] sm:$0xf]
    %v3705 = vld [vmem:[%s13 + $0x254] sm:$0xf]
    %v3706 = vld [vmem:[%s13 + $0x258] sm:$0xf]
    %v3707 = vld [vmem:[%s13 + $0x25c] sm:$0xf]
    %v3708 = vld [vmem:[%s13 + $0x260] sm:$0xf]
    %v3709 = vld [vmem:[%s13 + $0x264] sm:$0xf]
    %v3710 = vld [vmem:[%s13 + $0x268] sm:$0xf]
    %v3711 = vld [vmem:[%s13 + $0x26c] sm:$0xf]
    %v3712 = vld [vmem:[%s13 + $0x270] sm:$0xf]
    %v3713 = vld [vmem:[%s13 + $0x274] sm:$0xf]
    %v3714 = vld [vmem:[%s13 + $0x278] sm:$0xf]
    %v3715 = vld [vmem:[%s13 + $0x27c] sm:$0xf]
    %v3716 = vld [vmem:[%s13 + $0x280] sm:$0xf]
    %v3717 = vld [vmem:[%s13 + $0x284] sm:$0xf]
    %v3718 = vld [vmem:[%s13 + $0x288] sm:$0xf]
    %v3719 = vld [vmem:[%s13 + $0x28c] sm:$0xf]
    %v3720 = vld [vmem:[%s13 + $0x290] sm:$0xf]
    %v3721 = vld [vmem:[%s13 + $0x294] sm:$0xf]
    %v3722 = vld [vmem:[%s13 + $0x298] sm:$0xf]
    %v3723 = vld [vmem:[%s13 + $0x29c] sm:$0xf]
    %v3724 = vld [vmem:[%s13 + $0x2a0] sm:$0xf]
    %v3725 = vld [vmem:[%s13 + $0x2a4] sm:$0xf]
    %v3726 = vld [vmem:[%s13 + $0x2a8] sm:$0xf]
    %v3727 = vld [vmem:[%s13 + $0x2ac] sm:$0xf]
    %v3728 = vld [vmem:[%s13 + $0x2b0] sm:$0xf]
    %v3729 = vld [vmem:[%s13 + $0x2b4] sm:$0xf]
    %v3730 = vld [vmem:[%s13 + $0x2b8] sm:$0xf]
    %v3731 = vld [vmem:[%s13 + $0x2bc] sm:$0xf]
    %v3732 = vld [vmem:[%s13 + $0x2c0] sm:$0xf]
    %v3733 = vld [vmem:[%s13 + $0x2c4] sm:$0xf]
    %v3734 = vld [vmem:[%s13 + $0x2c8] sm:$0xf]
    %v3735 = vld [vmem:[%s13 + $0x2cc] sm:$0xf]
    %v3736 = vld [vmem:[%s13 + $0x2d0] sm:$0xf]
    %v3737 = vld [vmem:[%s13 + $0x2d4] sm:$0xf]
    %v3738 = vld [vmem:[%s13 + $0x2d8] sm:$0xf]
    %v3739 = vld [vmem:[%s13 + $0x2dc] sm:$0xf]
    %v3740 = vld [vmem:[%s13 + $0x2e0] sm:$0xf]
    %v3741 = vld [vmem:[%s13 + $0x2e4] sm:$0xf]
    %v3742 = vld [vmem:[%s13 + $0x2e8] sm:$0xf]
    %v3743 = vld [vmem:[%s13 + $0x2ec] sm:$0xf]
    %v3744 = vld [vmem:[%s13 + $0x2f0] sm:$0xf]
    %v3745 = vld [vmem:[%s13 + $0x2f4] sm:$0xf]
    %v3746 = vld [vmem:[%s13 + $0x2f8] sm:$0xf]
    %v3747 = vld [vmem:[%s13 + $0x2fc] sm:$0xf]
    %v3812 = vunpack.c.l.b16 %v3684
    %v3813 = vunpack.c.l.b16 %v3685
    %v3814 = vunpack.c.l.b16 %v3686
    %v3815 = vunpack.c.l.b16 %v3687
    %v3816 = vunpack.c.l.b16 %v3688
    %v3817 = vunpack.c.l.b16 %v3689
    %v3818 = vunpack.c.l.b16 %v3690
    %v3819 = vunpack.c.l.b16 %v3691
    %v3820 = vunpack.c.l.b16 %v3692
    %v3821 = vunpack.c.l.b16 %v3693
    %v3822 = vunpack.c.l.b16 %v3694
    %v3823 = vunpack.c.l.b16 %v3695
    %v3824 = vunpack.c.l.b16 %v3696
    %v3825 = vunpack.c.l.b16 %v3697
    %v3826 = vunpack.c.l.b16 %v3698
    %v3827 = vunpack.c.l.b16 %v3699
    %v3828 = vunpack.c.l.b16 %v3700
    %v3829 = vunpack.c.l.b16 %v3701
    %v3830 = vunpack.c.l.b16 %v3702
    %v3831 = vunpack.c.l.b16 %v3703
    %v3832 = vunpack.c.l.b16 %v3704
    %v3833 = vunpack.c.l.b16 %v3705
    %v3834 = vunpack.c.l.b16 %v3706
    %v3835 = vunpack.c.l.b16 %v3707
    %v3836 = vunpack.c.l.b16 %v3708
    %v3837 = vunpack.c.l.b16 %v3709
    %v3838 = vunpack.c.l.b16 %v3710
    %v3839 = vunpack.c.l.b16 %v3711
    %v3840 = vunpack.c.l.b16 %v3712
    %v3841 = vunpack.c.l.b16 %v3713
    %v3842 = vunpack.c.l.b16 %v3714
    %v3843 = vunpack.c.l.b16 %v3715
    %v3844 = vunpack.c.l.b16 %v3716
    %v3845 = vunpack.c.l.b16 %v3717
    %v3846 = vunpack.c.l.b16 %v3718
    %v3847 = vunpack.c.l.b16 %v3719
    %v3848 = vunpack.c.l.b16 %v3720
    %v3849 = vunpack.c.l.b16 %v3721
    %v3850 = vunpack.c.l.b16 %v3722
    %v3851 = vunpack.c.l.b16 %v3723
    %v3852 = vunpack.c.l.b16 %v3724
    %v3853 = vunpack.c.l.b16 %v3725
    %v3854 = vunpack.c.l.b16 %v3726
    %v3855 = vunpack.c.l.b16 %v3727
    %v3856 = vunpack.c.l.b16 %v3728
    %v3857 = vunpack.c.l.b16 %v3729
    %v3858 = vunpack.c.l.b16 %v3730
    %v3859 = vunpack.c.l.b16 %v3731
    %v3860 = vunpack.c.l.b16 %v3732
    %v3861 = vunpack.c.l.b16 %v3733
    %v3862 = vunpack.c.l.b16 %v3734
    %v3863 = vunpack.c.l.b16 %v3735
    %v3864 = vunpack.c.l.b16 %v3736
    %v3865 = vunpack.c.l.b16 %v3737
    %v3866 = vunpack.c.l.b16 %v3738
    %v3867 = vunpack.c.l.b16 %v3739
    %v3868 = vunpack.c.l.b16 %v3740
    %v3869 = vunpack.c.l.b16 %v3741
    %v3870 = vunpack.c.l.b16 %v3742
    %v3871 = vunpack.c.l.b16 %v3743
    %v3872 = vunpack.c.l.b16 %v3744
    %v3873 = vunpack.c.l.b16 %v3745
    %v3874 = vunpack.c.l.b16 %v3746
    %v3875 = vunpack.c.l.b16 %v3747
    %v3876 = vpack.c.b16 %v3813, %v3812
    %v3877 = vpack.c.b16 %v3815, %v3814
    %v3878 = vpack.c.b16 %v3817, %v3816
    %v3879 = vpack.c.b16 %v3819, %v3818
    %v3880 = vpack.c.b16 %v3821, %v3820
    %v3881 = vpack.c.b16 %v3823, %v3822
    %v3882 = vpack.c.b16 %v3825, %v3824
    %v3883 = vpack.c.b16 %v3827, %v3826
    %v3884 = vpack.c.b16 %v3829, %v3828
    %v3885 = vpack.c.b16 %v3831, %v3830
    %v3886 = vpack.c.b16 %v3833, %v3832
    %v3887 = vpack.c.b16 %v3835, %v3834
    %v3888 = vpack.c.b16 %v3837, %v3836
    %v3889 = vpack.c.b16 %v3839, %v3838
    %v3890 = vpack.c.b16 %v3841, %v3840
    %v3891 = vpack.c.b16 %v3843, %v3842
    %v3892 = vpack.c.b16 %v3845, %v3844
    %v3893 = vpack.c.b16 %v3847, %v3846
    %v3894 = vpack.c.b16 %v3849, %v3848
    %v3895 = vpack.c.b16 %v3851, %v3850
    %v3896 = vpack.c.b16 %v3853, %v3852
    %v3897 = vpack.c.b16 %v3855, %v3854
    %v3898 = vpack.c.b16 %v3857, %v3856
    %v3899 = vpack.c.b16 %v3859, %v3858
    %v3900 = vpack.c.b16 %v3861, %v3860
    %v3901 = vpack.c.b16 %v3863, %v3862
    %v3902 = vpack.c.b16 %v3865, %v3864
    %v3903 = vpack.c.b16 %v3867, %v3866
    %v3904 = vpack.c.b16 %v3869, %v3868
    %v3905 = vpack.c.b16 %v3871, %v3870
    %v3906 = vpack.c.b16 %v3873, %v3872
    %v3907 = vpack.c.b16 %v3875, %v3874
    %3940 = vmatprep.subr.bf16.mxu0 0
    %3941 = vmatpush1.bf16.msra.mxu0 %v3883
    %3942 = vmatprep.subr.bf16.mxu0 0
    %3943 = vmatpush1.bf16.msra.mxu0 %v3882
    %3944 = vmatprep.subr.bf16.mxu0 0
    %3945 = vmatpush1.bf16.msra.mxu0 %v3881
    %3946 = vmatprep.subr.bf16.mxu0 0
    %3947 = vmatpush1.bf16.msra.mxu0 %v3880
    %3948 = vmatprep.subr.bf16.mxu0 0
    %3949 = vmatpush1.bf16.msra.mxu0 %v3879
    %3950 = vmatprep.subr.bf16.mxu0 0
    %3951 = vmatpush1.bf16.msra.mxu0 %v3878
    %3952 = vmatprep.subr.bf16.mxu0 0
    %3953 = vmatpush1.bf16.msra.mxu0 %v3877
    %3954 = vmatprep.subr.bf16.mxu0 0
    %3955 = vmatpush1.bf16.msra.mxu0 %v3876
    %3956 = vmatprep.subr.bf16.mxu0 0
    %3957 = vmatpush2.bf16.msra.mxu0 %v3891
    %3958 = vmatprep.subr.bf16.mxu0 0
    %3959 = vmatpush2.bf16.msra.mxu0 %v3890
    %3960 = vmatprep.subr.bf16.mxu0 0
    %3961 = vmatpush2.bf16.msra.mxu0 %v3889
    %3962 = vmatprep.subr.bf16.mxu0 0
    %3963 = vmatpush2.bf16.msra.mxu0 %v3888
    %3964 = vmatprep.subr.bf16.mxu0 0
    %3965 = vmatpush2.bf16.msra.mxu0 %v3887
    %3966 = vmatprep.subr.bf16.mxu0 0
    %3967 = vmatpush2.bf16.msra.mxu0 %v3886
    %3968 = vmatprep.subr.bf16.mxu0 0
    %3969 = vmatpush2.bf16.msra.mxu0 %v3885
    %3970 = vmatprep.subr.bf16.mxu0 0
    %3971 = vmatpush2.bf16.msra.mxu0 %v3884
    %3972 = vmatprep.mubr.bf16.mxu0 %v3681
    %3973 = vmatmul.mubr.bf16.gmra.mxu0 %v3680
    %v3974 = vpop.f32.mrf.mxu0
    %v3975 = vadd.f32 0.0, %v3974
    %v3976 = vpop.f32.mrf.mxu0
    %v3977 = vpop.f32.mrf.mxu0
    %v3978 = vadd.f32 0.0, %v3977
    %v3979 = vpop.f32.mrf.mxu0
    %3980 = vdwg.mxu0
    %3981 = vmatprep.subr.bf16.mxu0 0
    %3982 = vmatpush1.bf16.msra.mxu0 %v3899
    %3983 = vmatprep.subr.bf16.mxu0 0
    %3984 = vmatpush1.bf16.msra.mxu0 %v3898
    %3985 = vmatprep.subr.bf16.mxu0 0
    %3986 = vmatpush1.bf16.msra.mxu0 %v3897
    %3987 = vmatprep.subr.bf16.mxu0 0
    %3988 = vmatpush1.bf16.msra.mxu0 %v3896
    %3989 = vmatprep.subr.bf16.mxu0 0
    %3990 = vmatpush1.bf16.msra.mxu0 %v3895
    %3991 = vmatprep.subr.bf16.mxu0 0
    %3992 = vmatpush1.bf16.msra.mxu0 %v3894
    %3993 = vmatprep.subr.bf16.mxu0 0
    %3994 = vmatpush1.bf16.msra.mxu0 %v3893
    %3995 = vmatprep.subr.bf16.mxu0 0
    %3996 = vmatpush1.bf16.msra.mxu0 %v3892
    %3997 = vmatprep.subr.bf16.mxu0 0
    %3998 = vmatpush2.bf16.msra.mxu0 %v3907
    %3999 = vmatprep.subr.bf16.mxu0 0
    %4000 = vmatpush2.bf16.msra.mxu0 %v3906
    %4001 = vmatprep.subr.bf16.mxu0 0
    %4002 = vmatpush2.bf16.msra.mxu0 %v3905
    %4003 = vmatprep.subr.bf16.mxu0 0
    %4004 = vmatpush2.bf16.msra.mxu0 %v3904
    %4005 = vmatprep.subr.bf16.mxu0 0
    %4006 = vmatpush2.bf16.msra.mxu0 %v3903
    %4007 = vmatprep.subr.bf16.mxu0 0
    %4008 = vmatpush2.bf16.msra.mxu0 %v3902
    %4009 = vmatprep.subr.bf16.mxu0 0
    %4010 = vmatpush2.bf16.msra.mxu0 %v3901
    %4011 = vmatprep.subr.bf16.mxu0 0
    %4012 = vmatpush2.bf16.msra.mxu0 %v3900
    %4013 = vmatprep.mubr.bf16.mxu0 %v3683
    %4014 = vmatmul.mubr.bf16.gmra.mxu0 %v3682
    %v4015 = vpop.f32.mrf.mxu0
    %v4016 = vadd.f32 %v3975, %v4015
    %v4017 = vpop.f32.mrf.mxu0
    %v4018 = vpop.f32.mrf.mxu0
    %v4019 = vadd.f32 %v3978, %v4018
    %v4020 = vpop.f32.mrf.mxu0
    %4021 = vdwg.mxu0
    %v4022 = vadd.f32 %v3462, %v4016
    %v4023 = vadd.f32 %v3465, %v4019
    %v4024 = vld [vmem:[%s11 + $0x30] sm:$0xff]
    %v4025 = vld [vmem:[%s11 + $0x38] sm:$0xff]
    %v4026 = vld [vmem:[%s11 + $0x70] sm:$0xff]
    %v4027 = vld [vmem:[%s11 + $0x78] sm:$0xff]
    %v4028 = vld [vmem:[%s11 + $0xb0] sm:$0xff]
    %v4029 = vld [vmem:[%s11 + $0xb8] sm:$0xff]
    %v4030 = vld [vmem:[%s11 + $0xf0] sm:$0xff]
    %v4031 = vld [vmem:[%s11 + $0xf8] sm:$0xff]
    %v4032 = vld [vmem:[%s11 + $0x130] sm:$0xff]
    %v4033 = vld [vmem:[%s11 + $0x138] sm:$0xff]
    %v4034 = vld [vmem:[%s11 + $0x170] sm:$0xff]
    %v4035 = vld [vmem:[%s11 + $0x178] sm:$0xff]
    %v4036 = vld [vmem:[%s11 + $0x1b0] sm:$0xff]
    %v4037 = vld [vmem:[%s11 + $0x1b8] sm:$0xff]
    %v4038 = vld [vmem:[%s11 + $0x1f0] sm:$0xff]
    %v4039 = vld [vmem:[%s11 + $0x1f8] sm:$0xff]
    %v4040 = vld [vmem:[%s12 + $0xc] sm:$0xf]
    %v4042 = vlaneseq
    %v4043 = vshrl.u32 %v4042, 7
    %v4044 = vsub.s32 0, %v4043
    %v4045 = vrot.slane %v4040, %v4044
    %v4046 = vlaneseq
    %v4047 = vshrl.u32 %v4046, 7
    %v4048 = vsub.s32 1, %v4047
    %v4049 = vrot.slane %v4040, %v4048
    %v4050 = vlaneseq
    %v4051 = vshrl.u32 %v4050, 7
    %v4052 = vsub.s32 2, %v4051
    %v4053 = vrot.slane %v4040, %v4052
    %v4054 = vlaneseq
    %v4055 = vshrl.u32 %v4054, 7
    %v4056 = vsub.s32 3, %v4055
    %v4057 = vrot.slane %v4040, %v4056
    %v4078 = vunpack.c.l.b16 %v4024
    %v4079 = vunpack.c.h.b16 %v4024
    %v4080 = vunpack.c.l.b16 %v4025
    %v4081 = vunpack.c.h.b16 %v4025
    %v4082 = vunpack.c.l.b16 %v4026
    %v4083 = vunpack.c.h.b16 %v4026
    %v4084 = vunpack.c.l.b16 %v4027
    %v4085 = vunpack.c.h.b16 %v4027
    %v4086 = vunpack.c.l.b16 %v4028
    %v4087 = vunpack.c.h.b16 %v4028
    %v4088 = vunpack.c.l.b16 %v4029
    %v4089 = vunpack.c.h.b16 %v4029
    %v4090 = vunpack.c.l.b16 %v4030
    %v4091 = vunpack.c.h.b16 %v4030
    %v4092 = vunpack.c.l.b16 %v4031
    %v4093 = vunpack.c.h.b16 %v4031
    %v4094 = vunpack.c.l.b16 %v4032
    %v4095 = vunpack.c.h.b16 %v4032
    %v4096 = vunpack.c.l.b16 %v4033
    %v4097 = vunpack.c.h.b16 %v4033
    %v4098 = vunpack.c.l.b16 %v4034
    %v4099 = vunpack.c.h.b16 %v4034
    %v4100 = vunpack.c.l.b16 %v4035
    %v4101 = vunpack.c.h.b16 %v4035
    %v4102 = vunpack.c.l.b16 %v4036
    %v4103 = vunpack.c.h.b16 %v4036
    %v4104 = vunpack.c.l.b16 %v4037
    %v4105 = vunpack.c.h.b16 %v4037
    %v4106 = vunpack.c.l.b16 %v4038
    %v4107 = vunpack.c.h.b16 %v4038
    %v4108 = vunpack.c.l.b16 %v4039
    %v4109 = vunpack.c.h.b16 %v4039
    %v4110 = vpack.c.b16 %v4082, %v4078
    %v4111 = vpack.c.b16 %v4083, %v4079
    %v4112 = vpack.c.b16 %v4084, %v4080
    %v4113 = vpack.c.b16 %v4085, %v4081
    %v4114 = vpack.c.b16 %v4090, %v4086
    %v4115 = vpack.c.b16 %v4091, %v4087
    %v4116 = vpack.c.b16 %v4092, %v4088
    %v4117 = vpack.c.b16 %v4093, %v4089
    %v4118 = vpack.c.b16 %v4098, %v4094
    %v4119 = vpack.c.b16 %v4099, %v4095
    %v4120 = vpack.c.b16 %v4100, %v4096
    %v4121 = vpack.c.b16 %v4101, %v4097
    %v4122 = vpack.c.b16 %v4106, %v4102
    %v4123 = vpack.c.b16 %v4107, %v4103
    %v4124 = vpack.c.b16 %v4108, %v4104
    %v4125 = vpack.c.b16 %v4109, %v4105
    %4142 = vmatprep.subr.bf16.mxu0 0
    %4143 = vmatpush1.bf16.msra.mxu0 0
    %4144 = vmatprep.subr.bf16.mxu0 0
    %4145 = vmatpush1.bf16.msra.mxu0 0
    %4146 = vmatprep.subr.bf16.mxu0 0
    %4147 = vmatpush1.bf16.msra.mxu0 0
    %4148 = vmatprep.subr.bf16.mxu0 0
    %4149 = vmatpush1.bf16.msra.mxu0 0
    %4150 = vmatprep.subr.bf16.mxu0 %v4123
    %4151 = vmatpush1.bf16.msra.mxu0 %v4122
    %4152 = vmatprep.subr.bf16.mxu0 %v4119
    %4153 = vmatpush1.bf16.msra.mxu0 %v4118
    %4154 = vmatprep.subr.bf16.mxu0 %v4115
    %4155 = vmatpush1.bf16.msra.mxu0 %v4114
    %4156 = vmatprep.subr.bf16.mxu0 %v4111
    %4157 = vmatpush1.bf16.msra.mxu0 %v4110
    %4158 = vmatprep.subr.bf16.mxu0 0
    %4159 = vmatpush2.bf16.msra.mxu0 0
    %4160 = vmatprep.subr.bf16.mxu0 0
    %4161 = vmatpush2.bf16.msra.mxu0 0
    %4162 = vmatprep.subr.bf16.mxu0 0
    %4163 = vmatpush2.bf16.msra.mxu0 0
    %4164 = vmatprep.subr.bf16.mxu0 0
    %4165 = vmatpush2.bf16.msra.mxu0 0
    %4166 = vmatprep.subr.bf16.mxu0 0
    %4167 = vmatpush2.bf16.msra.mxu0 0
    %4168 = vmatprep.subr.bf16.mxu0 0
    %4169 = vmatpush2.bf16.msra.mxu0 0
    %4170 = vmatprep.subr.bf16.mxu0 0
    %4171 = vmatpush2.bf16.msra.mxu0 0
    %4172 = vmatprep.subr.bf16.mxu0 0
    %4173 = vmatpush2.bf16.msra.mxu0 0
    %4174 = vmatprep.mubr.bf16.mxu0 0
    %4175 = vmatmul.mubr.bf16.gmra.mxu0 %v2476
    %v4176 = vpop.f32.mrf.mxu0
    %v4177 = vadd.f32 %v4045, %v4176
    %v4178 = vpop.f32.mrf.mxu0
    %v4179 = vadd.f32 %v4049, %v4178
    %v4180 = vpop.f32.mrf.mxu0
    %v4181 = vadd.f32 %v4045, %v4180
    %v4182 = vpop.f32.mrf.mxu0
    %v4183 = vadd.f32 %v4049, %v4182
    %4184 = vdwg.mxu0
    %4185 = vmatprep.subr.bf16.mxu0 0
    %4186 = vmatpush1.bf16.msra.mxu0 0
    %4187 = vmatprep.subr.bf16.mxu0 0
    %4188 = vmatpush1.bf16.msra.mxu0 0
    %4189 = vmatprep.subr.bf16.mxu0 0
    %4190 = vmatpush1.bf16.msra.mxu0 0
    %4191 = vmatprep.subr.bf16.mxu0 0
    %4192 = vmatpush1.bf16.msra.mxu0 0
    %4193 = vmatprep.subr.bf16.mxu0 %v4125
    %4194 = vmatpush1.bf16.msra.mxu0 %v4124
    %4195 = vmatprep.subr.bf16.mxu0 %v4121
    %4196 = vmatpush1.bf16.msra.mxu0 %v4120
    %4197 = vmatprep.subr.bf16.mxu0 %v4117
    %4198 = vmatpush1.bf16.msra.mxu0 %v4116
    %4199 = vmatprep.subr.bf16.mxu0 %v4113
    %4200 = vmatpush1.bf16.msra.mxu0 %v4112
    %4201 = vmatprep.subr.bf16.mxu0 0
    %4202 = vmatpush2.bf16.msra.mxu0 0
    %4203 = vmatprep.subr.bf16.mxu0 0
    %4204 = vmatpush2.bf16.msra.mxu0 0
    %4205 = vmatprep.subr.bf16.mxu0 0
    %4206 = vmatpush2.bf16.msra.mxu0 0
    %4207 = vmatprep.subr.bf16.mxu0 0
    %4208 = vmatpush2.bf16.msra.mxu0 0
    %4209 = vmatprep.subr.bf16.mxu0 0
    %4210 = vmatpush2.bf16.msra.mxu0 0
    %4211 = vmatprep.subr.bf16.mxu0 0
    %4212 = vmatpush2.bf16.msra.mxu0 0
    %4213 = vmatprep.subr.bf16.mxu0 0
    %4214 = vmatpush2.bf16.msra.mxu0 0
    %4215 = vmatprep.subr.bf16.mxu0 0
    %4216 = vmatpush2.bf16.msra.mxu0 0
    %4217 = vmatprep.mubr.bf16.mxu0 0
    %4218 = vmatmul.mubr.bf16.gmra.mxu0 %v2476
    %v4219 = vpop.f32.mrf.mxu0
    %v4220 = vadd.f32 %v4053, %v4219
    %v4221 = vpop.f32.mrf.mxu0
    %v4222 = vadd.f32 %v4057, %v4221
    %v4223 = vpop.f32.mrf.mxu0
    %v4224 = vadd.f32 %v4053, %v4223
    %v4225 = vpop.f32.mrf.mxu0
    %v4226 = vadd.f32 %v4057, %v4225
    %4227 = vdwg.mxu0
    %v4228 = vmax.f32 %v4177, 0.0
    %v4229 = vmax.f32 %v4179, 0.0
    %v4230 = vmax.f32 %v4220, 0.0
    %v4231 = vmax.f32 %v4222, 0.0
    %v4232 = vmax.f32 %v4181, 0.0
    %v4233 = vmax.f32 %v4183, 0.0
    %v4234 = vmax.f32 %v4224, 0.0
    %v4235 = vmax.f32 %v4226, 0.0
    %v4236 = vpack.c.bf16 %v4232, %v4228
    %v4237 = vpack.c.bf16 %v4233, %v4229
    %v4238 = vpack.c.bf16 %v4234, %v4230
    %v4239 = vpack.c.bf16 %v4235, %v4231
    %v4240 = vld [vmem:[%s13 + $0x300] sm:$0xf]
    %v4241 = vld [vmem:[%s13 + $0x304] sm:$0xf]
    %v4242 = vld [vmem:[%s13 + $0x308] sm:$0xf]
    %v4243 = vld [vmem:[%s13 + $0x30c] sm:$0xf]
    %v4244 = vld [vmem:[%s13 + $0x310] sm:$0xf]
    %v4245 = vld [vmem:[%s13 + $0x314] sm:$0xf]
    %v4246 = vld [vmem:[%s13 + $0x318] sm:$0xf]
    %v4247 = vld [vmem:[%s13 + $0x31c] sm:$0xf]
    %v4248 = vld [vmem:[%s13 + $0x320] sm:$0xf]
    %v4249 = vld [vmem:[%s13 + $0x324] sm:$0xf]
    %v4250 = vld [vmem:[%s13 + $0x328] sm:$0xf]
    %v4251 = vld [vmem:[%s13 + $0x32c] sm:$0xf]
    %v4252 = vld [vmem:[%s13 + $0x330] sm:$0xf]
    %v4253 = vld [vmem:[%s13 + $0x334] sm:$0xf]
    %v4254 = vld [vmem:[%s13 + $0x338] sm:$0xf]
    %v4255 = vld [vmem:[%s13 + $0x33c] sm:$0xf]
    %v4256 = vld [vmem:[%s13 + $0x340] sm:$0xf]
    %v4257 = vld [vmem:[%s13 + $0x344] sm:$0xf]
    %v4258 = vld [vmem:[%s13 + $0x348] sm:$0xf]
    %v4259 = vld [vmem:[%s13 + $0x34c] sm:$0xf]
    %v4260 = vld [vmem:[%s13 + $0x350] sm:$0xf]
    %v4261 = vld [vmem:[%s13 + $0x354] sm:$0xf]
    %v4262 = vld [vmem:[%s13 + $0x358] sm:$0xf]
    %v4263 = vld [vmem:[%s13 + $0x35c] sm:$0xf]
    %v4264 = vld [vmem:[%s13 + $0x360] sm:$0xf]
    %v4265 = vld [vmem:[%s13 + $0x364] sm:$0xf]
    %v4266 = vld [vmem:[%s13 + $0x368] sm:$0xf]
    %v4267 = vld [vmem:[%s13 + $0x36c] sm:$0xf]
    %v4268 = vld [vmem:[%s13 + $0x370] sm:$0xf]
    %v4269 = vld [vmem:[%s13 + $0x374] sm:$0xf]
    %v4270 = vld [vmem:[%s13 + $0x378] sm:$0xf]
    %v4271 = vld [vmem:[%s13 + $0x37c] sm:$0xf]
    %v4272 = vld [vmem:[%s13 + $0x380] sm:$0xf]
    %v4273 = vld [vmem:[%s13 + $0x384] sm:$0xf]
    %v4274 = vld [vmem:[%s13 + $0x388] sm:$0xf]
    %v4275 = vld [vmem:[%s13 + $0x38c] sm:$0xf]
    %v4276 = vld [vmem:[%s13 + $0x390] sm:$0xf]
    %v4277 = vld [vmem:[%s13 + $0x394] sm:$0xf]
    %v4278 = vld [vmem:[%s13 + $0x398] sm:$0xf]
    %v4279 = vld [vmem:[%s13 + $0x39c] sm:$0xf]
    %v4280 = vld [vmem:[%s13 + $0x3a0] sm:$0xf]
    %v4281 = vld [vmem:[%s13 + $0x3a4] sm:$0xf]
    %v4282 = vld [vmem:[%s13 + $0x3a8] sm:$0xf]
    %v4283 = vld [vmem:[%s13 + $0x3ac] sm:$0xf]
    %v4284 = vld [vmem:[%s13 + $0x3b0] sm:$0xf]
    %v4285 = vld [vmem:[%s13 + $0x3b4] sm:$0xf]
    %v4286 = vld [vmem:[%s13 + $0x3b8] sm:$0xf]
    %v4287 = vld [vmem:[%s13 + $0x3bc] sm:$0xf]
    %v4288 = vld [vmem:[%s13 + $0x3c0] sm:$0xf]
    %v4289 = vld [vmem:[%s13 + $0x3c4] sm:$0xf]
    %v4290 = vld [vmem:[%s13 + $0x3c8] sm:$0xf]
    %v4291 = vld [vmem:[%s13 + $0x3cc] sm:$0xf]
    %v4292 = vld [vmem:[%s13 + $0x3d0] sm:$0xf]
    %v4293 = vld [vmem:[%s13 + $0x3d4] sm:$0xf]
    %v4294 = vld [vmem:[%s13 + $0x3d8] sm:$0xf]
    %v4295 = vld [vmem:[%s13 + $0x3dc] sm:$0xf]
    %v4296 = vld [vmem:[%s13 + $0x3e0] sm:$0xf]
    %v4297 = vld [vmem:[%s13 + $0x3e4] sm:$0xf]
    %v4298 = vld [vmem:[%s13 + $0x3e8] sm:$0xf]
    %v4299 = vld [vmem:[%s13 + $0x3ec] sm:$0xf]
    %v4300 = vld [vmem:[%s13 + $0x3f0] sm:$0xf]
    %v4301 = vld [vmem:[%s13 + $0x3f4] sm:$0xf]
    %v4302 = vld [vmem:[%s13 + $0x3f8] sm:$0xf]
    %v4303 = vld [vmem:[%s13 + $0x3fc] sm:$0xf]
    %v4368 = vunpack.c.l.b16 %v4240
    %v4369 = vunpack.c.l.b16 %v4241
    %v4370 = vunpack.c.l.b16 %v4242
    %v4371 = vunpack.c.l.b16 %v4243
    %v4372 = vunpack.c.l.b16 %v4244
    %v4373 = vunpack.c.l.b16 %v4245
    %v4374 = vunpack.c.l.b16 %v4246
    %v4375 = vunpack.c.l.b16 %v4247
    %v4376 = vunpack.c.l.b16 %v4248
    %v4377 = vunpack.c.l.b16 %v4249
    %v4378 = vunpack.c.l.b16 %v4250
    %v4379 = vunpack.c.l.b16 %v4251
    %v4380 = vunpack.c.l.b16 %v4252
    %v4381 = vunpack.c.l.b16 %v4253
    %v4382 = vunpack.c.l.b16 %v4254
    %v4383 = vunpack.c.l.b16 %v4255
    %v4384 = vunpack.c.l.b16 %v4256
    %v4385 = vunpack.c.l.b16 %v4257
    %v4386 = vunpack.c.l.b16 %v4258
    %v4387 = vunpack.c.l.b16 %v4259
    %v4388 = vunpack.c.l.b16 %v4260
    %v4389 = vunpack.c.l.b16 %v4261
    %v4390 = vunpack.c.l.b16 %v4262
    %v4391 = vunpack.c.l.b16 %v4263
    %v4392 = vunpack.c.l.b16 %v4264
    %v4393 = vunpack.c.l.b16 %v4265
    %v4394 = vunpack.c.l.b16 %v4266
    %v4395 = vunpack.c.l.b16 %v4267
    %v4396 = vunpack.c.l.b16 %v4268
    %v4397 = vunpack.c.l.b16 %v4269
    %v4398 = vunpack.c.l.b16 %v4270
    %v4399 = vunpack.c.l.b16 %v4271
    %v4400 = vunpack.c.l.b16 %v4272
    %v4401 = vunpack.c.l.b16 %v4273
    %v4402 = vunpack.c.l.b16 %v4274
    %v4403 = vunpack.c.l.b16 %v4275
    %v4404 = vunpack.c.l.b16 %v4276
    %v4405 = vunpack.c.l.b16 %v4277
    %v4406 = vunpack.c.l.b16 %v4278
    %v4407 = vunpack.c.l.b16 %v4279
    %v4408 = vunpack.c.l.b16 %v4280
    %v4409 = vunpack.c.l.b16 %v4281
    %v4410 = vunpack.c.l.b16 %v4282
    %v4411 = vunpack.c.l.b16 %v4283
    %v4412 = vunpack.c.l.b16 %v4284
    %v4413 = vunpack.c.l.b16 %v4285
    %v4414 = vunpack.c.l.b16 %v4286
    %v4415 = vunpack.c.l.b16 %v4287
    %v4416 = vunpack.c.l.b16 %v4288
    %v4417 = vunpack.c.l.b16 %v4289
    %v4418 = vunpack.c.l.b16 %v4290
    %v4419 = vunpack.c.l.b16 %v4291
    %v4420 = vunpack.c.l.b16 %v4292
    %v4421 = vunpack.c.l.b16 %v4293
    %v4422 = vunpack.c.l.b16 %v4294
    %v4423 = vunpack.c.l.b16 %v4295
    %v4424 = vunpack.c.l.b16 %v4296
    %v4425 = vunpack.c.l.b16 %v4297
    %v4426 = vunpack.c.l.b16 %v4298
    %v4427 = vunpack.c.l.b16 %v4299
    %v4428 = vunpack.c.l.b16 %v4300
    %v4429 = vunpack.c.l.b16 %v4301
    %v4430 = vunpack.c.l.b16 %v4302
    %v4431 = vunpack.c.l.b16 %v4303
    %v4432 = vpack.c.b16 %v4369, %v4368
    %v4433 = vpack.c.b16 %v4371, %v4370
    %v4434 = vpack.c.b16 %v4373, %v4372
    %v4435 = vpack.c.b16 %v4375, %v4374
    %v4436 = vpack.c.b16 %v4377, %v4376
    %v4437 = vpack.c.b16 %v4379, %v4378
    %v4438 = vpack.c.b16 %v4381, %v4380
    %v4439 = vpack.c.b16 %v4383, %v4382
    %v4440 = vpack.c.b16 %v4385, %v4384
    %v4441 = vpack.c.b16 %v4387, %v4386
    %v4442 = vpack.c.b16 %v4389, %v4388
    %v4443 = vpack.c.b16 %v4391, %v4390
    %v4444 = vpack.c.b16 %v4393, %v4392
    %v4445 = vpack.c.b16 %v4395, %v4394
    %v4446 = vpack.c.b16 %v4397, %v4396
    %v4447 = vpack.c.b16 %v4399, %v4398
    %v4448 = vpack.c.b16 %v4401, %v4400
    %v4449 = vpack.c.b16 %v4403, %v4402
    %v4450 = vpack.c.b16 %v4405, %v4404
    %v4451 = vpack.c.b16 %v4407, %v4406
    %v4452 = vpack.c.b16 %v4409, %v4408
    %v4453 = vpack.c.b16 %v4411, %v4410
    %v4454 = vpack.c.b16 %v4413, %v4412
    %v4455 = vpack.c.b16 %v4415, %v4414
    %v4456 = vpack.c.b16 %v4417, %v4416
    %v4457 = vpack.c.b16 %v4419, %v4418
    %v4458 = vpack.c.b16 %v4421, %v4420
    %v4459 = vpack.c.b16 %v4423, %v4422
    %v4460 = vpack.c.b16 %v4425, %v4424
    %v4461 = vpack.c.b16 %v4427, %v4426
    %v4462 = vpack.c.b16 %v4429, %v4428
    %v4463 = vpack.c.b16 %v4431, %v4430
    %4496 = vmatprep.subr.bf16.mxu0 0
    %4497 = vmatpush1.bf16.msra.mxu0 %v4439
    %4498 = vmatprep.subr.bf16.mxu0 0
    %4499 = vmatpush1.bf16.msra.mxu0 %v4438
    %4500 = vmatprep.subr.bf16.mxu0 0
    %4501 = vmatpush1.bf16.msra.mxu0 %v4437
    %4502 = vmatprep.subr.bf16.mxu0 0
    %4503 = vmatpush1.bf16.msra.mxu0 %v4436
    %4504 = vmatprep.subr.bf16.mxu0 0
    %4505 = vmatpush1.bf16.msra.mxu0 %v4435
    %4506 = vmatprep.subr.bf16.mxu0 0
    %4507 = vmatpush1.bf16.msra.mxu0 %v4434
    %4508 = vmatprep.subr.bf16.mxu0 0
    %4509 = vmatpush1.bf16.msra.mxu0 %v4433
    %4510 = vmatprep.subr.bf16.mxu0 0
    %4511 = vmatpush1.bf16.msra.mxu0 %v4432
    %4512 = vmatprep.subr.bf16.mxu0 0
    %4513 = vmatpush2.bf16.msra.mxu0 %v4447
    %4514 = vmatprep.subr.bf16.mxu0 0
    %4515 = vmatpush2.bf16.msra.mxu0 %v4446
    %4516 = vmatprep.subr.bf16.mxu0 0
    %4517 = vmatpush2.bf16.msra.mxu0 %v4445
    %4518 = vmatprep.subr.bf16.mxu0 0
    %4519 = vmatpush2.bf16.msra.mxu0 %v4444
    %4520 = vmatprep.subr.bf16.mxu0 0
    %4521 = vmatpush2.bf16.msra.mxu0 %v4443
    %4522 = vmatprep.subr.bf16.mxu0 0
    %4523 = vmatpush2.bf16.msra.mxu0 %v4442
    %4524 = vmatprep.subr.bf16.mxu0 0
    %4525 = vmatpush2.bf16.msra.mxu0 %v4441
    %4526 = vmatprep.subr.bf16.mxu0 0
    %4527 = vmatpush2.bf16.msra.mxu0 %v4440
    %4528 = vmatprep.mubr.bf16.mxu0 %v4237
    %4529 = vmatmul.mubr.bf16.gmra.mxu0 %v4236
    %v4530 = vpop.f32.mrf.mxu0
    %v4531 = vadd.f32 0.0, %v4530
    %v4532 = vpop.f32.mrf.mxu0
    %v4533 = vpop.f32.mrf.mxu0
    %v4534 = vadd.f32 0.0, %v4533
    %v4535 = vpop.f32.mrf.mxu0
    %4536 = vdwg.mxu0
    %4537 = vmatprep.subr.bf16.mxu0 0
    %4538 = vmatpush1.bf16.msra.mxu0 %v4455
    %4539 = vmatprep.subr.bf16.mxu0 0
    %4540 = vmatpush1.bf16.msra.mxu0 %v4454
    %4541 = vmatprep.subr.bf16.mxu0 0
    %4542 = vmatpush1.bf16.msra.mxu0 %v4453
    %4543 = vmatprep.subr.bf16.mxu0 0
    %4544 = vmatpush1.bf16.msra.mxu0 %v4452
    %4545 = vmatprep.subr.bf16.mxu0 0
    %4546 = vmatpush1.bf16.msra.mxu0 %v4451
    %4547 = vmatprep.subr.bf16.mxu0 0
    %4548 = vmatpush1.bf16.msra.mxu0 %v4450
    %4549 = vmatprep.subr.bf16.mxu0 0
    %4550 = vmatpush1.bf16.msra.mxu0 %v4449
    %4551 = vmatprep.subr.bf16.mxu0 0
    %4552 = vmatpush1.bf16.msra.mxu0 %v4448
    %4553 = vmatprep.subr.bf16.mxu0 0
    %4554 = vmatpush2.bf16.msra.mxu0 %v4463
    %4555 = vmatprep.subr.bf16.mxu0 0
    %4556 = vmatpush2.bf16.msra.mxu0 %v4462
    %4557 = vmatprep.subr.bf16.mxu0 0
    %4558 = vmatpush2.bf16.msra.mxu0 %v4461
    %4559 = vmatprep.subr.bf16.mxu0 0
    %4560 = vmatpush2.bf16.msra.mxu0 %v4460
    %4561 = vmatprep.subr.bf16.mxu0 0
    %4562 = vmatpush2.bf16.msra.mxu0 %v4459
    %4563 = vmatprep.subr.bf16.mxu0 0
    %4564 = vmatpush2.bf16.msra.mxu0 %v4458
    %4565 = vmatprep.subr.bf16.mxu0 0
    %4566 = vmatpush2.bf16.msra.mxu0 %v4457
    %4567 = vmatprep.subr.bf16.mxu0 0
    %4568 = vmatpush2.bf16.msra.mxu0 %v4456
    %4569 = vmatprep.mubr.bf16.mxu0 %v4239
    %4570 = vmatmul.mubr.bf16.gmra.mxu0 %v4238
    %v4571 = vpop.f32.mrf.mxu0
    %v4572 = vadd.f32 %v4531, %v4571
    %v4573 = vpop.f32.mrf.mxu0
    %v4574 = vpop.f32.mrf.mxu0
    %v4575 = vadd.f32 %v4534, %v4574
    %v4576 = vpop.f32.mrf.mxu0
    %4577 = vdwg.mxu0
    %v4578 = vadd.f32 %v4022, %v4572
    %v4579 = vadd.f32 %v4023, %v4575
    %v4580 = vld [vmem:[%s14] sm:$0x1]
    %v4582 = vlaneseq
    %v4583 = vshrl.u32 %v4582, 7
    %v4584 = vsub.s32 0, %v4583
    %v4585 = vrot.slane %v4580, %v4584
    %v4587 = vadd.f32 %v4578, %v4585
    %v4588 = vadd.f32 %v4579, %v4585
    %v4589 = vadd.f32 %v2354, %v4587
    %v4590 = vadd.f32 %v2355, %v4588
    %v4591 = vld [vmem:[%s17] sm:$0x1]
    %v4592 = vld [vmem:[%s18] sm:$0x1]
    %v4593 = vsel %vm177, %v4589, 0.0
    %4594 = vadd.xlane.f32.xlu0 %v4593
    %v4595 = vpop.xlane.xlu0 %4594
    %v4596 = vsel %vm177, %v4590, 0.0
    %4597 = vadd.xlane.f32.xlu0 %v4596
    %v4598 = vpop.xlane.xlu0 %4597
    %v4599 = vmul.f32 %v4595, %v2319
    %v4600 = vmul.f32 %v4598, %v2319
    %v4601 = vsub.f32 %v4589, %v4599
    %v4602 = vsub.f32 %v4590, %v4600
    %v4603 = vmul.f32 %v4601, %v4601
    %v4604 = vmul.f32 %v4602, %v4602
    %v4605 = vsel %vm177, %v4603, 0.0
    %4606 = vadd.xlane.f32.xlu0 %v4605
    %v4607 = vpop.xlane.xlu0 %4606
    %v4608 = vsel %vm177, %v4604, 0.0
    %4609 = vadd.xlane.f32.xlu0 %v4608
    %v4610 = vpop.xlane.xlu0 %4609
    %v4611 = vmul.f32 %v4607, %v2319
    %v4612 = vmul.f32 %v4610, %v2319
    %v4613 = vadd.f32 %v4611, 1e-05
    %v4614 = vadd.f32 %v4612, 1e-05
    %v4615 = vrsqrt.pop %v4613
    %v4616 = vrsqrt.pop %v4614
    %v4617 = vmul.f32 %v4601, %v4615
    %v4618 = vmul.f32 %v4602, %v4616
    %v4620 = vlaneseq
    %v4621 = vshrl.u32 %v4620, 7
    %v4622 = vsub.s32 0, %v4621
    %v4623 = vrot.slane %v4591, %v4622
    %v4625 = vmul.f32 %v4617, %v4623
    %v4626 = vmul.f32 %v4618, %v4623
    %v4628 = vlaneseq
    %v4629 = vshrl.u32 %v4628, 7
    %v4630 = vsub.s32 0, %v4629
    %v4631 = vrot.slane %v4592, %v4630
    %v4633 = vadd.f32 %v4625, %v4631
    %v4634 = vadd.f32 %v4626, %v4631
    %v4635 = vpack.c.bf16 %v4634, %v4633
    %s4636 = scalar_lea.vmem %s3, 32
    %v4637 = vld [vmem:[%s4636] sm:$0xf]
    %v4638 = vld [vmem:[%s4636 + $0x4] sm:$0xf]
    %v4639 = vld [vmem:[%s4636 + $0x8] sm:$0xf]
    %v4640 = vld [vmem:[%s4636 + $0xc] sm:$0xf]
    %v4641 = vld [vmem:[%s4636 + $0x10] sm:$0xf]
    %v4642 = vld [vmem:[%s4636 + $0x14] sm:$0xf]
    %v4643 = vld [vmem:[%s4636 + $0x18] sm:$0xf]
    %v4644 = vld [vmem:[%s4636 + $0x1c] sm:$0xf]
    %s4645 = scalar_lea.vmem %s4, 1
    %v4646 = vld [vmem:[%s4645] sm:$0x1]
    %v4648 = vlaneseq
    %v4649 = vshrl.u32 %v4648, 7
    %v4650 = vsub.s32 0, %v4649
    %v4651 = vrot.slane %v4646, %v4650
    %v4661 = vunpack.c.l.b16 %v4637
    %v4662 = vunpack.c.l.b16 %v4638
    %v4663 = vunpack.c.l.b16 %v4639
    %v4664 = vunpack.c.l.b16 %v4640
    %v4665 = vunpack.c.l.b16 %v4641
    %v4666 = vunpack.c.l.b16 %v4642
    %v4667 = vunpack.c.l.b16 %v4643
    %v4668 = vunpack.c.l.b16 %v4644
    %v4669 = vpack.c.b16 %v4662, %v4661
    %v4670 = vpack.c.b16 %v4664, %v4663
    %v4671 = vpack.c.b16 %v4666, %v4665
    %v4672 = vpack.c.b16 %v4668, %v4667
    %v4678 = vsel %vm177, %v4635, 0
    %4680 = vmatprep.subr.bf16.mxu0 0
    %4681 = vmatpush1.bf16.msra.mxu0 0
    %4682 = vmatprep.subr.bf16.mxu0 0
    %4683 = vmatpush1.bf16.msra.mxu0 0
    %4684 = vmatprep.subr.bf16.mxu0 0
    %4685 = vmatpush1.bf16.msra.mxu0 0
    %4686 = vmatprep.subr.bf16.mxu0 0
    %4687 = vmatpush1.bf16.msra.mxu0 0
    %4688 = vmatprep.subr.bf16.mxu0 0
    %4689 = vmatpush1.bf16.msra.mxu0 %v4672
    %4690 = vmatprep.subr.bf16.mxu0 0
    %4691 = vmatpush1.bf16.msra.mxu0 %v4671
    %4692 = vmatprep.subr.bf16.mxu0 0
    %4693 = vmatpush1.bf16.msra.mxu0 %v4670
    %4694 = vmatprep.subr.bf16.mxu0 0
    %4695 = vmatpush1.bf16.msra.mxu0 %v4669
    %4696 = vmatprep.subr.bf16.mxu0 0
    %4697 = vmatpush2.bf16.msra.mxu0 0
    %4698 = vmatprep.subr.bf16.mxu0 0
    %4699 = vmatpush2.bf16.msra.mxu0 0
    %4700 = vmatprep.subr.bf16.mxu0 0
    %4701 = vmatpush2.bf16.msra.mxu0 0
    %4702 = vmatprep.subr.bf16.mxu0 0
    %4703 = vmatpush2.bf16.msra.mxu0 0
    %4704 = vmatprep.subr.bf16.mxu0 0
    %4705 = vmatpush2.bf16.msra.mxu0 0
    %4706 = vmatprep.subr.bf16.mxu0 0
    %4707 = vmatpush2.bf16.msra.mxu0 0
    %4708 = vmatprep.subr.bf16.mxu0 0
    %4709 = vmatpush2.bf16.msra.mxu0 0
    %4710 = vmatprep.subr.bf16.mxu0 0
    %4711 = vmatpush2.bf16.msra.mxu0 0
    %4712 = vmatprep.mubr.bf16.mxu0 0
    %4713 = vmatmul.mubr.bf16.gmra.mxu0 %v4678
    %v4714 = vpop.f32.mrf.mxu0
    %v4715 = vadd.f32 %v4651, %v4714
    %v4716 = vpop.f32.mrf.mxu0
    %v4717 = vpop.f32.mrf.mxu0
    %v4718 = vadd.f32 %v4651, %v4717
    %v4719 = vpop.f32.mrf.mxu0
    %4720 = vdwg.mxu0
    %v4721 = vpack.c.bf16 %v4718, %v4715
    %s4722 = scalar_lea.vmem %s5, 32
    %v4723 = vld [vmem:[%s4722] sm:$0xf]
    %v4724 = vld [vmem:[%s4722 + $0x4] sm:$0xf]
    %v4725 = vld [vmem:[%s4722 + $0x8] sm:$0xf]
    %v4726 = vld [vmem:[%s4722 + $0xc] sm:$0xf]
    %v4727 = vld [vmem:[%s4722 + $0x10] sm:$0xf]
    %v4728 = vld [vmem:[%s4722 + $0x14] sm:$0xf]
    %v4729 = vld [vmem:[%s4722 + $0x18] sm:$0xf]
    %v4730 = vld [vmem:[%s4722 + $0x1c] sm:$0xf]
    %s4731 = scalar_lea.vmem %s6, 1
    %v4732 = vld [vmem:[%s4731] sm:$0x1]
    %v4734 = vlaneseq
    %v4735 = vshrl.u32 %v4734, 7
    %v4736 = vsub.s32 0, %v4735
    %v4737 = vrot.slane %v4732, %v4736
    %v4747 = vunpack.c.l.b16 %v4723
    %v4748 = vunpack.c.l.b16 %v4724
    %v4749 = vunpack.c.l.b16 %v4725
    %v4750 = vunpack.c.l.b16 %v4726
    %v4751 = vunpack.c.l.b16 %v4727
    %v4752 = vunpack.c.l.b16 %v4728
    %v4753 = vunpack.c.l.b16 %v4729
    %v4754 = vunpack.c.l.b16 %v4730
    %v4755 = vpack.c.b16 %v4748, %v4747
    %v4756 = vpack.c.b16 %v4750, %v4749
    %v4757 = vpack.c.b16 %v4752, %v4751
    %v4758 = vpack.c.b16 %v4754, %v4753
    %4763 = vmatprep.subr.bf16.mxu0 0
    %4764 = vmatpush1.bf16.msra.mxu0 0
    %4765 = vmatprep.subr.bf16.mxu0 0
    %4766 = vmatpush1.bf16.msra.mxu0 0
    %4767 = vmatprep.subr.bf16.mxu0 0
    %4768 = vmatpush1.bf16.msra.mxu0 0
    %4769 = vmatprep.subr.bf16.mxu0 0
    %4770 = vmatpush1.bf16.msra.mxu0 0
    %4771 = vmatprep.subr.bf16.mxu0 0
    %4772 = vmatpush1.bf16.msra.mxu0 %v4758
    %4773 = vmatprep.subr.bf16.mxu0 0
    %4774 = vmatpush1.bf16.msra.mxu0 %v4757
    %4775 = vmatprep.subr.bf16.mxu0 0
    %4776 = vmatpush1.bf16.msra.mxu0 %v4756
    %4777 = vmatprep.subr.bf16.mxu0 0
    %4778 = vmatpush1.bf16.msra.mxu0 %v4755
    %4779 = vmatprep.subr.bf16.mxu0 0
    %4780 = vmatpush2.bf16.msra.mxu0 0
    %4781 = vmatprep.subr.bf16.mxu0 0
    %4782 = vmatpush2.bf16.msra.mxu0 0
    %4783 = vmatprep.subr.bf16.mxu0 0
    %4784 = vmatpush2.bf16.msra.mxu0 0
    %4785 = vmatprep.subr.bf16.mxu0 0
    %4786 = vmatpush2.bf16.msra.mxu0 0
    %4787 = vmatprep.subr.bf16.mxu0 0
    %4788 = vmatpush2.bf16.msra.mxu0 0
    %4789 = vmatprep.subr.bf16.mxu0 0
    %4790 = vmatpush2.bf16.msra.mxu0 0
    %4791 = vmatprep.subr.bf16.mxu0 0
    %4792 = vmatpush2.bf16.msra.mxu0 0
    %4793 = vmatprep.subr.bf16.mxu0 0
    %4794 = vmatpush2.bf16.msra.mxu0 0
    %4795 = vmatprep.mubr.bf16.mxu0 0
    %4796 = vmatmul.mubr.bf16.gmra.mxu0 %v4678
    %v4797 = vpop.f32.mrf.mxu0
    %v4798 = vadd.f32 %v4737, %v4797
    %v4799 = vpop.f32.mrf.mxu0
    %v4800 = vpop.f32.mrf.mxu0
    %v4801 = vadd.f32 %v4737, %v4800
    %v4802 = vpop.f32.mrf.mxu0
    %4803 = vdwg.mxu0
    %v4804 = vpack.c.bf16 %v4801, %v4798
    %s4805 = scalar_lea.vmem %s7, 32
    %v4806 = vld [vmem:[%s4805] sm:$0xf]
    %v4807 = vld [vmem:[%s4805 + $0x4] sm:$0xf]
    %v4808 = vld [vmem:[%s4805 + $0x8] sm:$0xf]
    %v4809 = vld [vmem:[%s4805 + $0xc] sm:$0xf]
    %v4810 = vld [vmem:[%s4805 + $0x10] sm:$0xf]
    %v4811 = vld [vmem:[%s4805 + $0x14] sm:$0xf]
    %v4812 = vld [vmem:[%s4805 + $0x18] sm:$0xf]
    %v4813 = vld [vmem:[%s4805 + $0x1c] sm:$0xf]
    %s4814 = scalar_lea.vmem %s8, 1
    %v4815 = vld [vmem:[%s4814] sm:$0x1]
    %v4817 = vlaneseq
    %v4818 = vshrl.u32 %v4817, 7
    %v4819 = vsub.s32 0, %v4818
    %v4820 = vrot.slane %v4815, %v4819
    %v4830 = vunpack.c.l.b16 %v4806
    %v4831 = vunpack.c.l.b16 %v4807
    %v4832 = vunpack.c.l.b16 %v4808
    %v4833 = vunpack.c.l.b16 %v4809
    %v4834 = vunpack.c.l.b16 %v4810
    %v4835 = vunpack.c.l.b16 %v4811
    %v4836 = vunpack.c.l.b16 %v4812
    %v4837 = vunpack.c.l.b16 %v4813
    %v4838 = vpack.c.b16 %v4831, %v4830
    %v4839 = vpack.c.b16 %v4833, %v4832
    %v4840 = vpack.c.b16 %v4835, %v4834
    %v4841 = vpack.c.b16 %v4837, %v4836
    %4846 = vmatprep.subr.bf16.mxu0 0
    %4847 = vmatpush1.bf16.msra.mxu0 0
    %4848 = vmatprep.subr.bf16.mxu0 0
    %4849 = vmatpush1.bf16.msra.mxu0 0
    %4850 = vmatprep.subr.bf16.mxu0 0
    %4851 = vmatpush1.bf16.msra.mxu0 0
    %4852 = vmatprep.subr.bf16.mxu0 0
    %4853 = vmatpush1.bf16.msra.mxu0 0
    %4854 = vmatprep.subr.bf16.mxu0 0
    %4855 = vmatpush1.bf16.msra.mxu0 %v4841
    %4856 = vmatprep.subr.bf16.mxu0 0
    %4857 = vmatpush1.bf16.msra.mxu0 %v4840
    %4858 = vmatprep.subr.bf16.mxu0 0
    %4859 = vmatpush1.bf16.msra.mxu0 %v4839
    %4860 = vmatprep.subr.bf16.mxu0 0
    %4861 = vmatpush1.bf16.msra.mxu0 %v4838
    %4862 = vmatprep.subr.bf16.mxu0 0
    %4863 = vmatpush2.bf16.msra.mxu0 0
    %4864 = vmatprep.subr.bf16.mxu0 0
    %4865 = vmatpush2.bf16.msra.mxu0 0
    %4866 = vmatprep.subr.bf16.mxu0 0
    %4867 = vmatpush2.bf16.msra.mxu0 0
    %4868 = vmatprep.subr.bf16.mxu0 0
    %4869 = vmatpush2.bf16.msra.mxu0 0
    %4870 = vmatprep.subr.bf16.mxu0 0
    %4871 = vmatpush2.bf16.msra.mxu0 0
    %4872 = vmatprep.subr.bf16.mxu0 0
    %4873 = vmatpush2.bf16.msra.mxu0 0
    %4874 = vmatprep.subr.bf16.mxu0 0
    %4875 = vmatpush2.bf16.msra.mxu0 0
    %4876 = vmatprep.subr.bf16.mxu0 0
    %4877 = vmatpush2.bf16.msra.mxu0 0
    %4878 = vmatprep.mubr.bf16.mxu0 0
    %4879 = vmatmul.mubr.bf16.gmra.mxu0 %v4678
    %v4880 = vpop.f32.mrf.mxu0
    %v4881 = vadd.f32 %v4820, %v4880
    %v4882 = vpop.f32.mrf.mxu0
    %v4883 = vpop.f32.mrf.mxu0
    %v4884 = vadd.f32 %v4820, %v4883
    %v4885 = vpop.f32.mrf.mxu0
    %4886 = vdwg.mxu0
    %v4887 = vpack.c.bf16 %v4884, %v4881
    %v4889 = vunpack.c.l.b16 %v4721
    %v4890 = vunpack.c.h.b16 %v4721
    %v4891 = vpack.c.b16 %v4889, %v4889
    %v4892 = vpack.c.b16 %v4890, %v4890
    %4893 = vrot.lane.b32.xlu0 %v4891, 120
    %v4894 = vpop.permute.xlu0 %4893
    %4895 = vrot.lane.b32.xlu0 %v4892, 120
    %v4896 = vpop.permute.xlu0 %4895
    %4897 = vrot.lane.b32.xlu0 %v4891, 112
    %v4898 = vpop.permute.xlu0 %4897
    %4899 = vrot.lane.b32.xlu0 %v4892, 112
    %v4900 = vpop.permute.xlu0 %4899
    %4901 = vrot.lane.b32.xlu0 %v4891, 104
    %v4902 = vpop.permute.xlu0 %4901
    %4903 = vrot.lane.b32.xlu0 %v4892, 104
    %v4904 = vpop.permute.xlu0 %4903
    %4905 = vrot.lane.b32.xlu0 %v4891, 96
    %v4906 = vpop.permute.xlu0 %4905
    %4907 = vrot.lane.b32.xlu0 %v4892, 96
    %v4908 = vpop.permute.xlu0 %4907
    %4909 = vrot.lane.b32.xlu0 %v4891, 88
    %v4910 = vpop.permute.xlu0 %4909
    %4911 = vrot.lane.b32.xlu0 %v4892, 88
    %v4912 = vpop.permute.xlu0 %4911
    %4913 = vrot.lane.b32.xlu0 %v4891, 80
    %v4914 = vpop.permute.xlu0 %4913
    %4915 = vrot.lane.b32.xlu0 %v4892, 80
    %v4916 = vpop.permute.xlu0 %4915
    %4917 = vrot.lane.b32.xlu0 %v4891, 72
    %v4918 = vpop.permute.xlu0 %4917
    %4919 = vrot.lane.b32.xlu0 %v4892, 72
    %v4920 = vpop.permute.xlu0 %4919
    %v4922 = vunpack.c.l.b16 %v4804
    %v4923 = vunpack.c.h.b16 %v4804
    %v4924 = vpack.c.b16 %v4922, %v4922
    %v4925 = vpack.c.b16 %v4923, %v4923
    %4926 = vrot.lane.b32.xlu0 %v4924, 120
    %v4927 = vpop.permute.xlu0 %4926
    %4928 = vrot.lane.b32.xlu0 %v4925, 120
    %v4929 = vpop.permute.xlu0 %4928
    %4930 = vrot.lane.b32.xlu0 %v4924, 112
    %v4931 = vpop.permute.xlu0 %4930
    %4932 = vrot.lane.b32.xlu0 %v4925, 112
    %v4933 = vpop.permute.xlu0 %4932
    %4934 = vrot.lane.b32.xlu0 %v4924, 104
    %v4935 = vpop.permute.xlu0 %4934
    %4936 = vrot.lane.b32.xlu0 %v4925, 104
    %v4937 = vpop.permute.xlu0 %4936
    %4938 = vrot.lane.b32.xlu0 %v4924, 96
    %v4939 = vpop.permute.xlu0 %4938
    %4940 = vrot.lane.b32.xlu0 %v4925, 96
    %v4941 = vpop.permute.xlu0 %4940
    %4942 = vrot.lane.b32.xlu0 %v4924, 88
    %v4943 = vpop.permute.xlu0 %4942
    %4944 = vrot.lane.b32.xlu0 %v4925, 88
    %v4945 = vpop.permute.xlu0 %4944
    %4946 = vrot.lane.b32.xlu0 %v4924, 80
    %v4947 = vpop.permute.xlu0 %4946
    %4948 = vrot.lane.b32.xlu0 %v4925, 80
    %v4949 = vpop.permute.xlu0 %4948
    %4950 = vrot.lane.b32.xlu0 %v4924, 72
    %v4951 = vpop.permute.xlu0 %4950
    %4952 = vrot.lane.b32.xlu0 %v4925, 72
    %v4953 = vpop.permute.xlu0 %4952
    %v4955 = vunpack.c.l.b16 %v4887
    %v4956 = vunpack.c.h.b16 %v4887
    %v4957 = vpack.c.b16 %v4955, %v4955
    %v4958 = vpack.c.b16 %v4956, %v4956
    %4959 = vrot.lane.b32.xlu0 %v4957, 120
    %v4960 = vpop.permute.xlu0 %4959
    %4961 = vrot.lane.b32.xlu0 %v4958, 120
    %v4962 = vpop.permute.xlu0 %4961
    %4963 = vrot.lane.b32.xlu0 %v4957, 112
    %v4964 = vpop.permute.xlu0 %4963
    %4965 = vrot.lane.b32.xlu0 %v4958, 112
    %v4966 = vpop.permute.xlu0 %4965
    %4967 = vrot.lane.b32.xlu0 %v4957, 104
    %v4968 = vpop.permute.xlu0 %4967
    %4969 = vrot.lane.b32.xlu0 %v4958, 104
    %v4970 = vpop.permute.xlu0 %4969
    %4971 = vrot.lane.b32.xlu0 %v4957, 96
    %v4972 = vpop.permute.xlu0 %4971
    %4973 = vrot.lane.b32.xlu0 %v4958, 96
    %v4974 = vpop.permute.xlu0 %4973
    %4975 = vrot.lane.b32.xlu0 %v4957, 88
    %v4976 = vpop.permute.xlu0 %4975
    %4977 = vrot.lane.b32.xlu0 %v4958, 88
    %v4978 = vpop.permute.xlu0 %4977
    %4979 = vrot.lane.b32.xlu0 %v4957, 80
    %v4980 = vpop.permute.xlu0 %4979
    %4981 = vrot.lane.b32.xlu0 %v4958, 80
    %v4982 = vpop.permute.xlu0 %4981
    %4983 = vrot.lane.b32.xlu0 %v4957, 72
    %v4984 = vpop.permute.xlu0 %4983
    %4985 = vrot.lane.b32.xlu0 %v4958, 72
    %v4986 = vpop.permute.xlu0 %4985
    %v4988 = vsel %vm484, %v4891, 0
    %v4991 = vsel %vm484, %v4924, 0
    %4993 = vmatprep.subr.bf16.mxu0 0
    %4994 = vmatpush1.bf16.xpose.msra.mxu0 0
    %4995 = vmatprep.subr.bf16.mxu0 0
    %4996 = vmatpush1.bf16.xpose.msra.mxu0 0
    %4997 = vmatprep.subr.bf16.mxu0 0
    %4998 = vmatpush1.bf16.xpose.msra.mxu0 0
    %4999 = vmatprep.subr.bf16.mxu0 0
    %5000 = vmatpush1.bf16.xpose.msra.mxu0 0
    %5001 = vmatprep.subr.bf16.mxu0 0
    %5002 = vmatpush1.bf16.xpose.msra.mxu0 0
    %5003 = vmatprep.subr.bf16.mxu0 0
    %5004 = vmatpush1.bf16.xpose.msra.mxu0 0
    %5005 = vmatprep.subr.bf16.mxu0 0
    %5006 = vmatpush1.bf16.xpose.msra.mxu0 0
    %5007 = vmatprep.subr.bf16.mxu0 0
    %5008 = vmatpush1.bf16.xpose.msra.mxu0 %v4991
    %5009 = vmatprep.subr.bf16.mxu0 0
    %5010 = vmatpush2.bf16.xpose.msra.mxu0 0
    %5011 = vmatprep.subr.bf16.mxu0 0
    %5012 = vmatpush2.bf16.xpose.msra.mxu0 0
    %5013 = vmatprep.subr.bf16.mxu0 0
    %5014 = vmatpush2.bf16.xpose.msra.mxu0 0
    %5015 = vmatprep.subr.bf16.mxu0 0
    %5016 = vmatpush2.bf16.xpose.msra.mxu0 0
    %5017 = vmatprep.subr.bf16.mxu0 0
    %5018 = vmatpush2.bf16.xpose.msra.mxu0 0
    %5019 = vmatprep.subr.bf16.mxu0 0
    %5020 = vmatpush2.bf16.xpose.msra.mxu0 0
    %5021 = vmatprep.subr.bf16.mxu0 0
    %5022 = vmatpush2.bf16.xpose.msra.mxu0 0
    %5023 = vmatprep.subr.bf16.mxu0 0
    %5024 = vmatpush2.bf16.xpose.msra.mxu0 0
    %5025 = vmatprep.mubr.bf16.mxu0 0
    %5026 = vmatmul.mubr.bf16.gmra.mxu0 %v4988
    %v5027 = vpop.f32.mrf.mxu0
    %v5028 = vadd.f32 0.0, %v5027
    %v5029 = vpop.f32.mrf.mxu0
    %v5030 = vpop.f32.mrf.mxu0
    %v5031 = vpop.f32.mrf.mxu0
    %5032 = vdwg.mxu0
    %v5034 = vsel %vm484, %v4892, 0
    %v5037 = vsel %vm484, %v4925, 0
    %5039 = vmatprep.subr.bf16.mxu0 0
    %5040 = vmatpush1.bf16.xpose.msra.mxu0 0
    %5041 = vmatprep.subr.bf16.mxu0 0
    %5042 = vmatpush1.bf16.xpose.msra.mxu0 0
    %5043 = vmatprep.subr.bf16.mxu0 0
    %5044 = vmatpush1.bf16.xpose.msra.mxu0 0
    %5045 = vmatprep.subr.bf16.mxu0 0
    %5046 = vmatpush1.bf16.xpose.msra.mxu0 0
    %5047 = vmatprep.subr.bf16.mxu0 0
    %5048 = vmatpush1.bf16.xpose.msra.mxu0 0
    %5049 = vmatprep.subr.bf16.mxu0 0
    %5050 = vmatpush1.bf16.xpose.msra.mxu0 0
    %5051 = vmatprep.subr.bf16.mxu0 0
    %5052 = vmatpush1.bf16.xpose.msra.mxu0 0
    %5053 = vmatprep.subr.bf16.mxu0 0
    %5054 = vmatpush1.bf16.xpose.msra.mxu0 %v5037
    %5055 = vmatprep.subr.bf16.mxu0 0
    %5056 = vmatpush2.bf16.xpose.msra.mxu0 0
    %5057 = vmatprep.subr.bf16.mxu0 0
    %5058 = vmatpush2.bf16.xpose.msra.mxu0 0
    %5059 = vmatprep.subr.bf16.mxu0 0
    %5060 = vmatpush2.bf16.xpose.msra.mxu0 0
    %5061 = vmatprep.subr.bf16.mxu0 0
    %5062 = vmatpush2.bf16.xpose.msra.mxu0 0
    %5063 = vmatprep.subr.bf16.mxu0 0
    %5064 = vmatpush2.bf16.xpose.msra.mxu0 0
    %5065 = vmatprep.subr.bf16.mxu0 0
    %5066 = vmatpush2.bf16.xpose.msra.mxu0 0
    %5067 = vmatprep.subr.bf16.mxu0 0
    %5068 = vmatpush2.bf16.xpose.msra.mxu0 0
    %5069 = vmatprep.subr.bf16.mxu0 0
    %5070 = vmatpush2.bf16.xpose.msra.mxu0 0
    %5071 = vmatprep.mubr.bf16.mxu0 0
    %5072 = vmatmul.mubr.bf16.gmra.mxu0 %v5034
    %v5073 = vpop.f32.mrf.mxu0
    %v5074 = vadd.f32 0.0, %v5073
    %v5075 = vpop.f32.mrf.mxu0
    %v5076 = vpop.f32.mrf.mxu0
    %v5077 = vpop.f32.mrf.mxu0
    %5078 = vdwg.mxu0
    %v5080 = vsel %vm484, %v4894, 0
    %v5083 = vsel %vm484, %v4927, 0
    %5085 = vmatprep.subr.bf16.mxu0 0
    %5086 = vmatpush1.bf16.xpose.msra.mxu0 0
    %5087 = vmatprep.subr.bf16.mxu0 0
    %5088 = vmatpush1.bf16.xpose.msra.mxu0 0
    %5089 = vmatprep.subr.bf16.mxu0 0
    %5090 = vmatpush1.bf16.xpose.msra.mxu0 0
    %5091 = vmatprep.subr.bf16.mxu0 0
    %5092 = vmatpush1.bf16.xpose.msra.mxu0 0
    %5093 = vmatprep.subr.bf16.mxu0 0
    %5094 = vmatpush1.bf16.xpose.msra.mxu0 0
    %5095 = vmatprep.subr.bf16.mxu0 0
    %5096 = vmatpush1.bf16.xpose.msra.mxu0 0
    %5097 = vmatprep.subr.bf16.mxu0 0
    %5098 = vmatpush1.bf16.xpose.msra.mxu0 0
    %5099 = vmatprep.subr.bf16.mxu0 0
    %5100 = vmatpush1.bf16.xpose.msra.mxu0 %v5083
    %5101 = vmatprep.subr.bf16.mxu0 0
    %5102 = vmatpush2.bf16.xpose.msra.mxu0 0
    %5103 = vmatprep.subr.bf16.mxu0 0
    %5104 = vmatpush2.bf16.xpose.msra.mxu0 0
    %5105 = vmatprep.subr.bf16.mxu0 0
    %5106 = vmatpush2.bf16.xpose.msra.mxu0 0
    %5107 = vmatprep.subr.bf16.mxu0 0
    %5108 = vmatpush2.bf16.xpose.msra.mxu0 0
    %5109 = vmatprep.subr.bf16.mxu0 0
    %5110 = vmatpush2.bf16.xpose.msra.mxu0 0
    %5111 = vmatprep.subr.bf16.mxu0 0
    %5112 = vmatpush2.bf16.xpose.msra.mxu0 0
    %5113 = vmatprep.subr.bf16.mxu0 0
    %5114 = vmatpush2.bf16.xpose.msra.mxu0 0
    %5115 = vmatprep.subr.bf16.mxu0 0
    %5116 = vmatpush2.bf16.xpose.msra.mxu0 0
    %5117 = vmatprep.mubr.bf16.mxu0 0
    %5118 = vmatmul.mubr.bf16.gmra.mxu0 %v5080
    %v5119 = vpop.f32.mrf.mxu0
    %v5120 = vadd.f32 0.0, %v5119
    %v5121 = vpop.f32.mrf.mxu0
    %v5122 = vpop.f32.mrf.mxu0
    %v5123 = vpop.f32.mrf.mxu0
    %5124 = vdwg.mxu0
    %v5126 = vsel %vm484, %v4896, 0
    %v5129 = vsel %vm484, %v4929, 0
    %5131 = vmatprep.subr.bf16.mxu0 0
    %5132 = vmatpush1.bf16.xpose.msra.mxu0 0
    %5133 = vmatprep.subr.bf16.mxu0 0
    %5134 = vmatpush1.bf16.xpose.msra.mxu0 0
    %5135 = vmatprep.subr.bf16.mxu0 0
    %5136 = vmatpush1.bf16.xpose.msra.mxu0 0
    %5137 = vmatprep.subr.bf16.mxu0 0
    %5138 = vmatpush1.bf16.xpose.msra.mxu0 0
    %5139 = vmatprep.subr.bf16.mxu0 0
    %5140 = vmatpush1.bf16.xpose.msra.mxu0 0
    %5141 = vmatprep.subr.bf16.mxu0 0
    %5142 = vmatpush1.bf16.xpose.msra.mxu0 0
    %5143 = vmatprep.subr.bf16.mxu0 0
    %5144 = vmatpush1.bf16.xpose.msra.mxu0 0
    %5145 = vmatprep.subr.bf16.mxu0 0
    %5146 = vmatpush1.bf16.xpose.msra.mxu0 %v5129
    %5147 = vmatprep.subr.bf16.mxu0 0
    %5148 = vmatpush2.bf16.xpose.msra.mxu0 0
    %5149 = vmatprep.subr.bf16.mxu0 0
    %5150 = vmatpush2.bf16.xpose.msra.mxu0 0
    %5151 = vmatprep.subr.bf16.mxu0 0
    %5152 = vmatpush2.bf16.xpose.msra.mxu0 0
    %5153 = vmatprep.subr.bf16.mxu0 0
    %5154 = vmatpush2.bf16.xpose.msra.mxu0 0
    %5155 = vmatprep.subr.bf16.mxu0 0
    %5156 = vmatpush2.bf16.xpose.msra.mxu0 0
    %5157 = vmatprep.subr.bf16.mxu0 0
    %5158 = vmatpush2.bf16.xpose.msra.mxu0 0
    %5159 = vmatprep.subr.bf16.mxu0 0
    %5160 = vmatpush2.bf16.xpose.msra.mxu0 0
    %5161 = vmatprep.subr.bf16.mxu0 0
    %5162 = vmatpush2.bf16.xpose.msra.mxu0 0
    %5163 = vmatprep.mubr.bf16.mxu0 0
    %5164 = vmatmul.mubr.bf16.gmra.mxu0 %v5126
    %v5165 = vpop.f32.mrf.mxu0
    %v5166 = vadd.f32 0.0, %v5165
    %v5167 = vpop.f32.mrf.mxu0
    %v5168 = vpop.f32.mrf.mxu0
    %v5169 = vpop.f32.mrf.mxu0
    %5170 = vdwg.mxu0
    %v5172 = vsel %vm484, %v4898, 0
    %v5175 = vsel %vm484, %v4931, 0
    %5177 = vmatprep.subr.bf16.mxu0 0
    %5178 = vmatpush1.bf16.xpose.msra.mxu0 0
    %5179 = vmatprep.subr.bf16.mxu0 0
    %5180 = vmatpush1.bf16.xpose.msra.mxu0 0
    %5181 = vmatprep.subr.bf16.mxu0 0
    %5182 = vmatpush1.bf16.xpose.msra.mxu0 0
    %5183 = vmatprep.subr.bf16.mxu0 0
    %5184 = vmatpush1.bf16.xpose.msra.mxu0 0
    %5185 = vmatprep.subr.bf16.mxu0 0
    %5186 = vmatpush1.bf16.xpose.msra.mxu0 0
    %5187 = vmatprep.subr.bf16.mxu0 0
    %5188 = vmatpush1.bf16.xpose.msra.mxu0 0
    %5189 = vmatprep.subr.bf16.mxu0 0
    %5190 = vmatpush1.bf16.xpose.msra.mxu0 0
    %5191 = vmatprep.subr.bf16.mxu0 0
    %5192 = vmatpush1.bf16.xpose.msra.mxu0 %v5175
    %5193 = vmatprep.subr.bf16.mxu0 0
    %5194 = vmatpush2.bf16.xpose.msra.mxu0 0
    %5195 = vmatprep.subr.bf16.mxu0 0
    %5196 = vmatpush2.bf16.xpose.msra.mxu0 0
    %5197 = vmatprep.subr.bf16.mxu0 0
    %5198 = vmatpush2.bf16.xpose.msra.mxu0 0
    %5199 = vmatprep.subr.bf16.mxu0 0
    %5200 = vmatpush2.bf16.xpose.msra.mxu0 0
    %5201 = vmatprep.subr.bf16.mxu0 0
    %5202 = vmatpush2.bf16.xpose.msra.mxu0 0
    %5203 = vmatprep.subr.bf16.mxu0 0
    %5204 = vmatpush2.bf16.xpose.msra.mxu0 0
    %5205 = vmatprep.subr.bf16.mxu0 0
    %5206 = vmatpush2.bf16.xpose.msra.mxu0 0
    %5207 = vmatprep.subr.bf16.mxu0 0
    %5208 = vmatpush2.bf16.xpose.msra.mxu0 0
    %5209 = vmatprep.mubr.bf16.mxu0 0
    %5210 = vmatmul.mubr.bf16.gmra.mxu0 %v5172
    %v5211 = vpop.f32.mrf.mxu0
    %v5212 = vadd.f32 0.0, %v5211
    %v5213 = vpop.f32.mrf.mxu0
    %v5214 = vpop.f32.mrf.mxu0
    %v5215 = vpop.f32.mrf.mxu0
    %5216 = vdwg.mxu0
    %v5218 = vsel %vm484, %v4900, 0
    %v5221 = vsel %vm484, %v4933, 0
    %5223 = vmatprep.subr.bf16.mxu0 0
    %5224 = vmatpush1.bf16.xpose.msra.mxu0 0
    %5225 = vmatprep.subr.bf16.mxu0 0
    %5226 = vmatpush1.bf16.xpose.msra.mxu0 0
    %5227 = vmatprep.subr.bf16.mxu0 0
    %5228 = vmatpush1.bf16.xpose.msra.mxu0 0
    %5229 = vmatprep.subr.bf16.mxu0 0
    %5230 = vmatpush1.bf16.xpose.msra.mxu0 0
    %5231 = vmatprep.subr.bf16.mxu0 0
    %5232 = vmatpush1.bf16.xpose.msra.mxu0 0
    %5233 = vmatprep.subr.bf16.mxu0 0
    %5234 = vmatpush1.bf16.xpose.msra.mxu0 0
    %5235 = vmatprep.subr.bf16.mxu0 0
    %5236 = vmatpush1.bf16.xpose.msra.mxu0 0
    %5237 = vmatprep.subr.bf16.mxu0 0
    %5238 = vmatpush1.bf16.xpose.msra.mxu0 %v5221
    %5239 = vmatprep.subr.bf16.mxu0 0
    %5240 = vmatpush2.bf16.xpose.msra.mxu0 0
    %5241 = vmatprep.subr.bf16.mxu0 0
    %5242 = vmatpush2.bf16.xpose.msra.mxu0 0
    %5243 = vmatprep.subr.bf16.mxu0 0
    %5244 = vmatpush2.bf16.xpose.msra.mxu0 0
    %5245 = vmatprep.subr.bf16.mxu0 0
    %5246 = vmatpush2.bf16.xpose.msra.mxu0 0
    %5247 = vmatprep.subr.bf16.mxu0 0
    %5248 = vmatpush2.bf16.xpose.msra.mxu0 0
    %5249 = vmatprep.subr.bf16.mxu0 0
    %5250 = vmatpush2.bf16.xpose.msra.mxu0 0
    %5251 = vmatprep.subr.bf16.mxu0 0
    %5252 = vmatpush2.bf16.xpose.msra.mxu0 0
    %5253 = vmatprep.subr.bf16.mxu0 0
    %5254 = vmatpush2.bf16.xpose.msra.mxu0 0
    %5255 = vmatprep.mubr.bf16.mxu0 0
    %5256 = vmatmul.mubr.bf16.gmra.mxu0 %v5218
    %v5257 = vpop.f32.mrf.mxu0
    %v5258 = vadd.f32 0.0, %v5257
    %v5259 = vpop.f32.mrf.mxu0
    %v5260 = vpop.f32.mrf.mxu0
    %v5261 = vpop.f32.mrf.mxu0
    %5262 = vdwg.mxu0
    %v5264 = vsel %vm484, %v4902, 0
    %v5267 = vsel %vm484, %v4935, 0
    %5269 = vmatprep.subr.bf16.mxu0 0
    %5270 = vmatpush1.bf16.xpose.msra.mxu0 0
    %5271 = vmatprep.subr.bf16.mxu0 0
    %5272 = vmatpush1.bf16.xpose.msra.mxu0 0
    %5273 = vmatprep.subr.bf16.mxu0 0
    %5274 = vmatpush1.bf16.xpose.msra.mxu0 0
    %5275 = vmatprep.subr.bf16.mxu0 0
    %5276 = vmatpush1.bf16.xpose.msra.mxu0 0
    %5277 = vmatprep.subr.bf16.mxu0 0
    %5278 = vmatpush1.bf16.xpose.msra.mxu0 0
    %5279 = vmatprep.subr.bf16.mxu0 0
    %5280 = vmatpush1.bf16.xpose.msra.mxu0 0
    %5281 = vmatprep.subr.bf16.mxu0 0
    %5282 = vmatpush1.bf16.xpose.msra.mxu0 0
    %5283 = vmatprep.subr.bf16.mxu0 0
    %5284 = vmatpush1.bf16.xpose.msra.mxu0 %v5267
    %5285 = vmatprep.subr.bf16.mxu0 0
    %5286 = vmatpush2.bf16.xpose.msra.mxu0 0
    %5287 = vmatprep.subr.bf16.mxu0 0
    %5288 = vmatpush2.bf16.xpose.msra.mxu0 0
    %5289 = vmatprep.subr.bf16.mxu0 0
    %5290 = vmatpush2.bf16.xpose.msra.mxu0 0
    %5291 = vmatprep.subr.bf16.mxu0 0
    %5292 = vmatpush2.bf16.xpose.msra.mxu0 0
    %5293 = vmatprep.subr.bf16.mxu0 0
    %5294 = vmatpush2.bf16.xpose.msra.mxu0 0
    %5295 = vmatprep.subr.bf16.mxu0 0
    %5296 = vmatpush2.bf16.xpose.msra.mxu0 0
    %5297 = vmatprep.subr.bf16.mxu0 0
    %5298 = vmatpush2.bf16.xpose.msra.mxu0 0
    %5299 = vmatprep.subr.bf16.mxu0 0
    %5300 = vmatpush2.bf16.xpose.msra.mxu0 0
    %5301 = vmatprep.mubr.bf16.mxu0 0
    %5302 = vmatmul.mubr.bf16.gmra.mxu0 %v5264
    %v5303 = vpop.f32.mrf.mxu0
    %v5304 = vadd.f32 0.0, %v5303
    %v5305 = vpop.f32.mrf.mxu0
    %v5306 = vpop.f32.mrf.mxu0
    %v5307 = vpop.f32.mrf.mxu0
    %5308 = vdwg.mxu0
    %v5310 = vsel %vm484, %v4904, 0
    %v5313 = vsel %vm484, %v4937, 0
    %5315 = vmatprep.subr.bf16.mxu0 0
    %5316 = vmatpush1.bf16.xpose.msra.mxu0 0
    %5317 = vmatprep.subr.bf16.mxu0 0
    %5318 = vmatpush1.bf16.xpose.msra.mxu0 0
    %5319 = vmatprep.subr.bf16.mxu0 0
    %5320 = vmatpush1.bf16.xpose.msra.mxu0 0
    %5321 = vmatprep.subr.bf16.mxu0 0
    %5322 = vmatpush1.bf16.xpose.msra.mxu0 0
    %5323 = vmatprep.subr.bf16.mxu0 0
    %5324 = vmatpush1.bf16.xpose.msra.mxu0 0
    %5325 = vmatprep.subr.bf16.mxu0 0
    %5326 = vmatpush1.bf16.xpose.msra.mxu0 0
    %5327 = vmatprep.subr.bf16.mxu0 0
    %5328 = vmatpush1.bf16.xpose.msra.mxu0 0
    %5329 = vmatprep.subr.bf16.mxu0 0
    %5330 = vmatpush1.bf16.xpose.msra.mxu0 %v5313
    %5331 = vmatprep.subr.bf16.mxu0 0
    %5332 = vmatpush2.bf16.xpose.msra.mxu0 0
    %5333 = vmatprep.subr.bf16.mxu0 0
    %5334 = vmatpush2.bf16.xpose.msra.mxu0 0
    %5335 = vmatprep.subr.bf16.mxu0 0
    %5336 = vmatpush2.bf16.xpose.msra.mxu0 0
    %5337 = vmatprep.subr.bf16.mxu0 0
    %5338 = vmatpush2.bf16.xpose.msra.mxu0 0
    %5339 = vmatprep.subr.bf16.mxu0 0
    %5340 = vmatpush2.bf16.xpose.msra.mxu0 0
    %5341 = vmatprep.subr.bf16.mxu0 0
    %5342 = vmatpush2.bf16.xpose.msra.mxu0 0
    %5343 = vmatprep.subr.bf16.mxu0 0
    %5344 = vmatpush2.bf16.xpose.msra.mxu0 0
    %5345 = vmatprep.subr.bf16.mxu0 0
    %5346 = vmatpush2.bf16.xpose.msra.mxu0 0
    %5347 = vmatprep.mubr.bf16.mxu0 0
    %5348 = vmatmul.mubr.bf16.gmra.mxu0 %v5310
    %v5349 = vpop.f32.mrf.mxu0
    %v5350 = vadd.f32 0.0, %v5349
    %v5351 = vpop.f32.mrf.mxu0
    %v5352 = vpop.f32.mrf.mxu0
    %v5353 = vpop.f32.mrf.mxu0
    %5354 = vdwg.mxu0
    %v5356 = vsel %vm484, %v4906, 0
    %v5359 = vsel %vm484, %v4939, 0
    %5361 = vmatprep.subr.bf16.mxu0 0
    %5362 = vmatpush1.bf16.xpose.msra.mxu0 0
    %5363 = vmatprep.subr.bf16.mxu0 0
    %5364 = vmatpush1.bf16.xpose.msra.mxu0 0
    %5365 = vmatprep.subr.bf16.mxu0 0
    %5366 = vmatpush1.bf16.xpose.msra.mxu0 0
    %5367 = vmatprep.subr.bf16.mxu0 0
    %5368 = vmatpush1.bf16.xpose.msra.mxu0 0
    %5369 = vmatprep.subr.bf16.mxu0 0
    %5370 = vmatpush1.bf16.xpose.msra.mxu0 0
    %5371 = vmatprep.subr.bf16.mxu0 0
    %5372 = vmatpush1.bf16.xpose.msra.mxu0 0
    %5373 = vmatprep.subr.bf16.mxu0 0
    %5374 = vmatpush1.bf16.xpose.msra.mxu0 0
    %5375 = vmatprep.subr.bf16.mxu0 0
    %5376 = vmatpush1.bf16.xpose.msra.mxu0 %v5359
    %5377 = vmatprep.subr.bf16.mxu0 0
    %5378 = vmatpush2.bf16.xpose.msra.mxu0 0
    %5379 = vmatprep.subr.bf16.mxu0 0
    %5380 = vmatpush2.bf16.xpose.msra.mxu0 0
    %5381 = vmatprep.subr.bf16.mxu0 0
    %5382 = vmatpush2.bf16.xpose.msra.mxu0 0
    %5383 = vmatprep.subr.bf16.mxu0 0
    %5384 = vmatpush2.bf16.xpose.msra.mxu0 0
    %5385 = vmatprep.subr.bf16.mxu0 0
    %5386 = vmatpush2.bf16.xpose.msra.mxu0 0
    %5387 = vmatprep.subr.bf16.mxu0 0
    %5388 = vmatpush2.bf16.xpose.msra.mxu0 0
    %5389 = vmatprep.subr.bf16.mxu0 0
    %5390 = vmatpush2.bf16.xpose.msra.mxu0 0
    %5391 = vmatprep.subr.bf16.mxu0 0
    %5392 = vmatpush2.bf16.xpose.msra.mxu0 0
    %5393 = vmatprep.mubr.bf16.mxu0 0
    %5394 = vmatmul.mubr.bf16.gmra.mxu0 %v5356
    %v5395 = vpop.f32.mrf.mxu0
    %v5396 = vadd.f32 0.0, %v5395
    %v5397 = vpop.f32.mrf.mxu0
    %v5398 = vpop.f32.mrf.mxu0
    %v5399 = vpop.f32.mrf.mxu0
    %5400 = vdwg.mxu0
    %v5402 = vsel %vm484, %v4908, 0
    %v5405 = vsel %vm484, %v4941, 0
    %5407 = vmatprep.subr.bf16.mxu0 0
    %5408 = vmatpush1.bf16.xpose.msra.mxu0 0
    %5409 = vmatprep.subr.bf16.mxu0 0
    %5410 = vmatpush1.bf16.xpose.msra.mxu0 0
    %5411 = vmatprep.subr.bf16.mxu0 0
    %5412 = vmatpush1.bf16.xpose.msra.mxu0 0
    %5413 = vmatprep.subr.bf16.mxu0 0
    %5414 = vmatpush1.bf16.xpose.msra.mxu0 0
    %5415 = vmatprep.subr.bf16.mxu0 0
    %5416 = vmatpush1.bf16.xpose.msra.mxu0 0
    %5417 = vmatprep.subr.bf16.mxu0 0
    %5418 = vmatpush1.bf16.xpose.msra.mxu0 0
    %5419 = vmatprep.subr.bf16.mxu0 0
    %5420 = vmatpush1.bf16.xpose.msra.mxu0 0
    %5421 = vmatprep.subr.bf16.mxu0 0
    %5422 = vmatpush1.bf16.xpose.msra.mxu0 %v5405
    %5423 = vmatprep.subr.bf16.mxu0 0
    %5424 = vmatpush2.bf16.xpose.msra.mxu0 0
    %5425 = vmatprep.subr.bf16.mxu0 0
    %5426 = vmatpush2.bf16.xpose.msra.mxu0 0
    %5427 = vmatprep.subr.bf16.mxu0 0
    %5428 = vmatpush2.bf16.xpose.msra.mxu0 0
    %5429 = vmatprep.subr.bf16.mxu0 0
    %5430 = vmatpush2.bf16.xpose.msra.mxu0 0
    %5431 = vmatprep.subr.bf16.mxu0 0
    %5432 = vmatpush2.bf16.xpose.msra.mxu0 0
    %5433 = vmatprep.subr.bf16.mxu0 0
    %5434 = vmatpush2.bf16.xpose.msra.mxu0 0
    %5435 = vmatprep.subr.bf16.mxu0 0
    %5436 = vmatpush2.bf16.xpose.msra.mxu0 0
    %5437 = vmatprep.subr.bf16.mxu0 0
    %5438 = vmatpush2.bf16.xpose.msra.mxu0 0
    %5439 = vmatprep.mubr.bf16.mxu0 0
    %5440 = vmatmul.mubr.bf16.gmra.mxu0 %v5402
    %v5441 = vpop.f32.mrf.mxu0
    %v5442 = vadd.f32 0.0, %v5441
    %v5443 = vpop.f32.mrf.mxu0
    %v5444 = vpop.f32.mrf.mxu0
    %v5445 = vpop.f32.mrf.mxu0
    %5446 = vdwg.mxu0
    %v5448 = vsel %vm484, %v4910, 0
    %v5451 = vsel %vm484, %v4943, 0
    %5453 = vmatprep.subr.bf16.mxu0 0
    %5454 = vmatpush1.bf16.xpose.msra.mxu0 0
    %5455 = vmatprep.subr.bf16.mxu0 0
    %5456 = vmatpush1.bf16.xpose.msra.mxu0 0
    %5457 = vmatprep.subr.bf16.mxu0 0
    %5458 = vmatpush1.bf16.xpose.msra.mxu0 0
    %5459 = vmatprep.subr.bf16.mxu0 0
    %5460 = vmatpush1.bf16.xpose.msra.mxu0 0
    %5461 = vmatprep.subr.bf16.mxu0 0
    %5462 = vmatpush1.bf16.xpose.msra.mxu0 0
    %5463 = vmatprep.subr.bf16.mxu0 0
    %5464 = vmatpush1.bf16.xpose.msra.mxu0 0
    %5465 = vmatprep.subr.bf16.mxu0 0
    %5466 = vmatpush1.bf16.xpose.msra.mxu0 0
    %5467 = vmatprep.subr.bf16.mxu0 0
    %5468 = vmatpush1.bf16.xpose.msra.mxu0 %v5451
    %5469 = vmatprep.subr.bf16.mxu0 0
    %5470 = vmatpush2.bf16.xpose.msra.mxu0 0
    %5471 = vmatprep.subr.bf16.mxu0 0
    %5472 = vmatpush2.bf16.xpose.msra.mxu0 0
    %5473 = vmatprep.subr.bf16.mxu0 0
    %5474 = vmatpush2.bf16.xpose.msra.mxu0 0
    %5475 = vmatprep.subr.bf16.mxu0 0
    %5476 = vmatpush2.bf16.xpose.msra.mxu0 0
    %5477 = vmatprep.subr.bf16.mxu0 0
    %5478 = vmatpush2.bf16.xpose.msra.mxu0 0
    %5479 = vmatprep.subr.bf16.mxu0 0
    %5480 = vmatpush2.bf16.xpose.msra.mxu0 0
    %5481 = vmatprep.subr.bf16.mxu0 0
    %5482 = vmatpush2.bf16.xpose.msra.mxu0 0
    %5483 = vmatprep.subr.bf16.mxu0 0
    %5484 = vmatpush2.bf16.xpose.msra.mxu0 0
    %5485 = vmatprep.mubr.bf16.mxu0 0
    %5486 = vmatmul.mubr.bf16.gmra.mxu0 %v5448
    %v5487 = vpop.f32.mrf.mxu0
    %v5488 = vadd.f32 0.0, %v5487
    %v5489 = vpop.f32.mrf.mxu0
    %v5490 = vpop.f32.mrf.mxu0
    %v5491 = vpop.f32.mrf.mxu0
    %5492 = vdwg.mxu0
    %v5494 = vsel %vm484, %v4912, 0
    %v5497 = vsel %vm484, %v4945, 0
    %5499 = vmatprep.subr.bf16.mxu0 0
    %5500 = vmatpush1.bf16.xpose.msra.mxu0 0
    %5501 = vmatprep.subr.bf16.mxu0 0
    %5502 = vmatpush1.bf16.xpose.msra.mxu0 0
    %5503 = vmatprep.subr.bf16.mxu0 0
    %5504 = vmatpush1.bf16.xpose.msra.mxu0 0
    %5505 = vmatprep.subr.bf16.mxu0 0
    %5506 = vmatpush1.bf16.xpose.msra.mxu0 0
    %5507 = vmatprep.subr.bf16.mxu0 0
    %5508 = vmatpush1.bf16.xpose.msra.mxu0 0
    %5509 = vmatprep.subr.bf16.mxu0 0
    %5510 = vmatpush1.bf16.xpose.msra.mxu0 0
    %5511 = vmatprep.subr.bf16.mxu0 0
    %5512 = vmatpush1.bf16.xpose.msra.mxu0 0
    %5513 = vmatprep.subr.bf16.mxu0 0
    %5514 = vmatpush1.bf16.xpose.msra.mxu0 %v5497
    %5515 = vmatprep.subr.bf16.mxu0 0
    %5516 = vmatpush2.bf16.xpose.msra.mxu0 0
    %5517 = vmatprep.subr.bf16.mxu0 0
    %5518 = vmatpush2.bf16.xpose.msra.mxu0 0
    %5519 = vmatprep.subr.bf16.mxu0 0
    %5520 = vmatpush2.bf16.xpose.msra.mxu0 0
    %5521 = vmatprep.subr.bf16.mxu0 0
    %5522 = vmatpush2.bf16.xpose.msra.mxu0 0
    %5523 = vmatprep.subr.bf16.mxu0 0
    %5524 = vmatpush2.bf16.xpose.msra.mxu0 0
    %5525 = vmatprep.subr.bf16.mxu0 0
    %5526 = vmatpush2.bf16.xpose.msra.mxu0 0
    %5527 = vmatprep.subr.bf16.mxu0 0
    %5528 = vmatpush2.bf16.xpose.msra.mxu0 0
    %5529 = vmatprep.subr.bf16.mxu0 0
    %5530 = vmatpush2.bf16.xpose.msra.mxu0 0
    %5531 = vmatprep.mubr.bf16.mxu0 0
    %5532 = vmatmul.mubr.bf16.gmra.mxu0 %v5494
    %v5533 = vpop.f32.mrf.mxu0
    %v5534 = vadd.f32 0.0, %v5533
    %v5535 = vpop.f32.mrf.mxu0
    %v5536 = vpop.f32.mrf.mxu0
    %v5537 = vpop.f32.mrf.mxu0
    %5538 = vdwg.mxu0
    %v5540 = vsel %vm484, %v4914, 0
    %v5543 = vsel %vm484, %v4947, 0
    %5545 = vmatprep.subr.bf16.mxu0 0
    %5546 = vmatpush1.bf16.xpose.msra.mxu0 0
    %5547 = vmatprep.subr.bf16.mxu0 0
    %5548 = vmatpush1.bf16.xpose.msra.mxu0 0
    %5549 = vmatprep.subr.bf16.mxu0 0
    %5550 = vmatpush1.bf16.xpose.msra.mxu0 0
    %5551 = vmatprep.subr.bf16.mxu0 0
    %5552 = vmatpush1.bf16.xpose.msra.mxu0 0
    %5553 = vmatprep.subr.bf16.mxu0 0
    %5554 = vmatpush1.bf16.xpose.msra.mxu0 0
    %5555 = vmatprep.subr.bf16.mxu0 0
    %5556 = vmatpush1.bf16.xpose.msra.mxu0 0
    %5557 = vmatprep.subr.bf16.mxu0 0
    %5558 = vmatpush1.bf16.xpose.msra.mxu0 0
    %5559 = vmatprep.subr.bf16.mxu0 0
    %5560 = vmatpush1.bf16.xpose.msra.mxu0 %v5543
    %5561 = vmatprep.subr.bf16.mxu0 0
    %5562 = vmatpush2.bf16.xpose.msra.mxu0 0
    %5563 = vmatprep.subr.bf16.mxu0 0
    %5564 = vmatpush2.bf16.xpose.msra.mxu0 0
    %5565 = vmatprep.subr.bf16.mxu0 0
    %5566 = vmatpush2.bf16.xpose.msra.mxu0 0
    %5567 = vmatprep.subr.bf16.mxu0 0
    %5568 = vmatpush2.bf16.xpose.msra.mxu0 0
    %5569 = vmatprep.subr.bf16.mxu0 0
    %5570 = vmatpush2.bf16.xpose.msra.mxu0 0
    %5571 = vmatprep.subr.bf16.mxu0 0
    %5572 = vmatpush2.bf16.xpose.msra.mxu0 0
    %5573 = vmatprep.subr.bf16.mxu0 0
    %5574 = vmatpush2.bf16.xpose.msra.mxu0 0
    %5575 = vmatprep.subr.bf16.mxu0 0
    %5576 = vmatpush2.bf16.xpose.msra.mxu0 0
    %5577 = vmatprep.mubr.bf16.mxu0 0
    %5578 = vmatmul.mubr.bf16.gmra.mxu0 %v5540
    %v5579 = vpop.f32.mrf.mxu0
    %v5580 = vadd.f32 0.0, %v5579
    %v5581 = vpop.f32.mrf.mxu0
    %v5582 = vpop.f32.mrf.mxu0
    %v5583 = vpop.f32.mrf.mxu0
    %5584 = vdwg.mxu0
    %v5586 = vsel %vm484, %v4916, 0
    %v5589 = vsel %vm484, %v4949, 0
    %5591 = vmatprep.subr.bf16.mxu0 0
    %5592 = vmatpush1.bf16.xpose.msra.mxu0 0
    %5593 = vmatprep.subr.bf16.mxu0 0
    %5594 = vmatpush1.bf16.xpose.msra.mxu0 0
    %5595 = vmatprep.subr.bf16.mxu0 0
    %5596 = vmatpush1.bf16.xpose.msra.mxu0 0
    %5597 = vmatprep.subr.bf16.mxu0 0
    %5598 = vmatpush1.bf16.xpose.msra.mxu0 0
    %5599 = vmatprep.subr.bf16.mxu0 0
    %5600 = vmatpush1.bf16.xpose.msra.mxu0 0
    %5601 = vmatprep.subr.bf16.mxu0 0
    %5602 = vmatpush1.bf16.xpose.msra.mxu0 0
    %5603 = vmatprep.subr.bf16.mxu0 0
    %5604 = vmatpush1.bf16.xpose.msra.mxu0 0
    %5605 = vmatprep.subr.bf16.mxu0 0
    %5606 = vmatpush1.bf16.xpose.msra.mxu0 %v5589
    %5607 = vmatprep.subr.bf16.mxu0 0
    %5608 = vmatpush2.bf16.xpose.msra.mxu0 0
    %5609 = vmatprep.subr.bf16.mxu0 0
    %5610 = vmatpush2.bf16.xpose.msra.mxu0 0
    %5611 = vmatprep.subr.bf16.mxu0 0
    %5612 = vmatpush2.bf16.xpose.msra.mxu0 0
    %5613 = vmatprep.subr.bf16.mxu0 0
    %5614 = vmatpush2.bf16.xpose.msra.mxu0 0
    %5615 = vmatprep.subr.bf16.mxu0 0
    %5616 = vmatpush2.bf16.xpose.msra.mxu0 0
    %5617 = vmatprep.subr.bf16.mxu0 0
    %5618 = vmatpush2.bf16.xpose.msra.mxu0 0
    %5619 = vmatprep.subr.bf16.mxu0 0
    %5620 = vmatpush2.bf16.xpose.msra.mxu0 0
    %5621 = vmatprep.subr.bf16.mxu0 0
    %5622 = vmatpush2.bf16.xpose.msra.mxu0 0
    %5623 = vmatprep.mubr.bf16.mxu0 0
    %5624 = vmatmul.mubr.bf16.gmra.mxu0 %v5586
    %v5625 = vpop.f32.mrf.mxu0
    %v5626 = vadd.f32 0.0, %v5625
    %v5627 = vpop.f32.mrf.mxu0
    %v5628 = vpop.f32.mrf.mxu0
    %v5629 = vpop.f32.mrf.mxu0
    %5630 = vdwg.mxu0
    %v5632 = vsel %vm484, %v4918, 0
    %v5635 = vsel %vm484, %v4951, 0
    %5637 = vmatprep.subr.bf16.mxu0 0
    %5638 = vmatpush1.bf16.xpose.msra.mxu0 0
    %5639 = vmatprep.subr.bf16.mxu0 0
    %5640 = vmatpush1.bf16.xpose.msra.mxu0 0
    %5641 = vmatprep.subr.bf16.mxu0 0
    %5642 = vmatpush1.bf16.xpose.msra.mxu0 0
    %5643 = vmatprep.subr.bf16.mxu0 0
    %5644 = vmatpush1.bf16.xpose.msra.mxu0 0
    %5645 = vmatprep.subr.bf16.mxu0 0
    %5646 = vmatpush1.bf16.xpose.msra.mxu0 0
    %5647 = vmatprep.subr.bf16.mxu0 0
    %5648 = vmatpush1.bf16.xpose.msra.mxu0 0
    %5649 = vmatprep.subr.bf16.mxu0 0
    %5650 = vmatpush1.bf16.xpose.msra.mxu0 0
    %5651 = vmatprep.subr.bf16.mxu0 0
    %5652 = vmatpush1.bf16.xpose.msra.mxu0 %v5635
    %5653 = vmatprep.subr.bf16.mxu0 0
    %5654 = vmatpush2.bf16.xpose.msra.mxu0 0
    %5655 = vmatprep.subr.bf16.mxu0 0
    %5656 = vmatpush2.bf16.xpose.msra.mxu0 0
    %5657 = vmatprep.subr.bf16.mxu0 0
    %5658 = vmatpush2.bf16.xpose.msra.mxu0 0
    %5659 = vmatprep.subr.bf16.mxu0 0
    %5660 = vmatpush2.bf16.xpose.msra.mxu0 0
    %5661 = vmatprep.subr.bf16.mxu0 0
    %5662 = vmatpush2.bf16.xpose.msra.mxu0 0
    %5663 = vmatprep.subr.bf16.mxu0 0
    %5664 = vmatpush2.bf16.xpose.msra.mxu0 0
    %5665 = vmatprep.subr.bf16.mxu0 0
    %5666 = vmatpush2.bf16.xpose.msra.mxu0 0
    %5667 = vmatprep.subr.bf16.mxu0 0
    %5668 = vmatpush2.bf16.xpose.msra.mxu0 0
    %5669 = vmatprep.mubr.bf16.mxu0 0
    %5670 = vmatmul.mubr.bf16.gmra.mxu0 %v5632
    %v5671 = vpop.f32.mrf.mxu0
    %v5672 = vadd.f32 0.0, %v5671
    %v5673 = vpop.f32.mrf.mxu0
    %v5674 = vpop.f32.mrf.mxu0
    %v5675 = vpop.f32.mrf.mxu0
    %5676 = vdwg.mxu0
    %v5678 = vsel %vm484, %v4920, 0
    %v5681 = vsel %vm484, %v4953, 0
    %5683 = vmatprep.subr.bf16.mxu0 0
    %5684 = vmatpush1.bf16.xpose.msra.mxu0 0
    %5685 = vmatprep.subr.bf16.mxu0 0
    %5686 = vmatpush1.bf16.xpose.msra.mxu0 0
    %5687 = vmatprep.subr.bf16.mxu0 0
    %5688 = vmatpush1.bf16.xpose.msra.mxu0 0
    %5689 = vmatprep.subr.bf16.mxu0 0
    %5690 = vmatpush1.bf16.xpose.msra.mxu0 0
    %5691 = vmatprep.subr.bf16.mxu0 0
    %5692 = vmatpush1.bf16.xpose.msra.mxu0 0
    %5693 = vmatprep.subr.bf16.mxu0 0
    %5694 = vmatpush1.bf16.xpose.msra.mxu0 0
    %5695 = vmatprep.subr.bf16.mxu0 0
    %5696 = vmatpush1.bf16.xpose.msra.mxu0 0
    %5697 = vmatprep.subr.bf16.mxu0 0
    %5698 = vmatpush1.bf16.xpose.msra.mxu0 %v5681
    %5699 = vmatprep.subr.bf16.mxu0 0
    %5700 = vmatpush2.bf16.xpose.msra.mxu0 0
    %5701 = vmatprep.subr.bf16.mxu0 0
    %5702 = vmatpush2.bf16.xpose.msra.mxu0 0
    %5703 = vmatprep.subr.bf16.mxu0 0
    %5704 = vmatpush2.bf16.xpose.msra.mxu0 0
    %5705 = vmatprep.subr.bf16.mxu0 0
    %5706 = vmatpush2.bf16.xpose.msra.mxu0 0
    %5707 = vmatprep.subr.bf16.mxu0 0
    %5708 = vmatpush2.bf16.xpose.msra.mxu0 0
    %5709 = vmatprep.subr.bf16.mxu0 0
    %5710 = vmatpush2.bf16.xpose.msra.mxu0 0
    %5711 = vmatprep.subr.bf16.mxu0 0
    %5712 = vmatpush2.bf16.xpose.msra.mxu0 0
    %5713 = vmatprep.subr.bf16.mxu0 0
    %5714 = vmatpush2.bf16.xpose.msra.mxu0 0
    %5715 = vmatprep.mubr.bf16.mxu0 0
    %5716 = vmatmul.mubr.bf16.gmra.mxu0 %v5678
    %v5717 = vpop.f32.mrf.mxu0
    %v5718 = vadd.f32 0.0, %v5717
    %v5719 = vpop.f32.mrf.mxu0
    %v5720 = vpop.f32.mrf.mxu0
    %v5721 = vpop.f32.mrf.mxu0
    %5722 = vdwg.mxu0
    %v5723 = vsel %vm484, %v5028, -inf
    %5724 = vmax.xlane.f32.xlu0 %v5723
    %v5725 = vpop.xlane.xlu0 %5724
    %v5726 = vsel %vm484, %v5074, -inf
    %5727 = vmax.xlane.f32.xlu0 %v5726
    %v5728 = vpop.xlane.xlu0 %5727
    %v5729 = vsel %vm484, %v5120, -inf
    %5730 = vmax.xlane.f32.xlu0 %v5729
    %v5731 = vpop.xlane.xlu0 %5730
    %v5732 = vsel %vm484, %v5166, -inf
    %5733 = vmax.xlane.f32.xlu0 %v5732
    %v5734 = vpop.xlane.xlu0 %5733
    %v5735 = vsel %vm484, %v5212, -inf
    %5736 = vmax.xlane.f32.xlu0 %v5735
    %v5737 = vpop.xlane.xlu0 %5736
    %v5738 = vsel %vm484, %v5258, -inf
    %5739 = vmax.xlane.f32.xlu0 %v5738
    %v5740 = vpop.xlane.xlu0 %5739
    %v5741 = vsel %vm484, %v5304, -inf
    %5742 = vmax.xlane.f32.xlu0 %v5741
    %v5743 = vpop.xlane.xlu0 %5742
    %v5744 = vsel %vm484, %v5350, -inf
    %5745 = vmax.xlane.f32.xlu0 %v5744
    %v5746 = vpop.xlane.xlu0 %5745
    %v5747 = vsel %vm484, %v5396, -inf
    %5748 = vmax.xlane.f32.xlu0 %v5747
    %v5749 = vpop.xlane.xlu0 %5748
    %v5750 = vsel %vm484, %v5442, -inf
    %5751 = vmax.xlane.f32.xlu0 %v5750
    %v5752 = vpop.xlane.xlu0 %5751
    %v5753 = vsel %vm484, %v5488, -inf
    %5754 = vmax.xlane.f32.xlu0 %v5753
    %v5755 = vpop.xlane.xlu0 %5754
    %v5756 = vsel %vm484, %v5534, -inf
    %5757 = vmax.xlane.f32.xlu0 %v5756
    %v5758 = vpop.xlane.xlu0 %5757
    %v5759 = vsel %vm484, %v5580, -inf
    %5760 = vmax.xlane.f32.xlu0 %v5759
    %v5761 = vpop.xlane.xlu0 %5760
    %v5762 = vsel %vm484, %v5626, -inf
    %5763 = vmax.xlane.f32.xlu0 %v5762
    %v5764 = vpop.xlane.xlu0 %5763
    %v5765 = vsel %vm484, %v5672, -inf
    %5766 = vmax.xlane.f32.xlu0 %v5765
    %v5767 = vpop.xlane.xlu0 %5766
    %v5768 = vsel %vm484, %v5718, -inf
    %5769 = vmax.xlane.f32.xlu0 %v5768
    %v5770 = vpop.xlane.xlu0 %5769
    %v5771 = vsub.f32 %v5028, %v5725
    %v5772 = vsub.f32 %v5074, %v5728
    %v5773 = vsub.f32 %v5120, %v5731
    %v5774 = vsub.f32 %v5166, %v5734
    %v5775 = vsub.f32 %v5212, %v5737
    %v5776 = vsub.f32 %v5258, %v5740
    %v5777 = vsub.f32 %v5304, %v5743
    %v5778 = vsub.f32 %v5350, %v5746
    %v5779 = vsub.f32 %v5396, %v5749
    %v5780 = vsub.f32 %v5442, %v5752
    %v5781 = vsub.f32 %v5488, %v5755
    %v5782 = vsub.f32 %v5534, %v5758
    %v5783 = vsub.f32 %v5580, %v5761
    %v5784 = vsub.f32 %v5626, %v5764
    %v5785 = vsub.f32 %v5672, %v5767
    %v5786 = vsub.f32 %v5718, %v5770
    %v5787 = vmul.f32 %v5771, 1.442695
    %v5788 = vpow.pop %v5787
    %v5789 = vmul.f32 %v5772, 1.442695
    %v5790 = vpow.pop %v5789
    %v5791 = vmul.f32 %v5773, 1.442695
    %v5792 = vpow.pop %v5791
    %v5793 = vmul.f32 %v5774, 1.442695
    %v5794 = vpow.pop %v5793
    %v5795 = vmul.f32 %v5775, 1.442695
    %v5796 = vpow.pop %v5795
    %v5797 = vmul.f32 %v5776, 1.442695
    %v5798 = vpow.pop %v5797
    %v5799 = vmul.f32 %v5777, 1.442695
    %v5800 = vpow.pop %v5799
    %v5801 = vmul.f32 %v5778, 1.442695
    %v5802 = vpow.pop %v5801
    %v5803 = vmul.f32 %v5779, 1.442695
    %v5804 = vpow.pop %v5803
    %v5805 = vmul.f32 %v5780, 1.442695
    %v5806 = vpow.pop %v5805
    %v5807 = vmul.f32 %v5781, 1.442695
    %v5808 = vpow.pop %v5807
    %v5809 = vmul.f32 %v5782, 1.442695
    %v5810 = vpow.pop %v5809
    %v5811 = vmul.f32 %v5783, 1.442695
    %v5812 = vpow.pop %v5811
    %v5813 = vmul.f32 %v5784, 1.442695
    %v5814 = vpow.pop %v5813
    %v5815 = vmul.f32 %v5785, 1.442695
    %v5816 = vpow.pop %v5815
    %v5817 = vmul.f32 %v5786, 1.442695
    %v5818 = vpow.pop %v5817
    %v5819 = vsel %vm484, %v5788, 0.0
    %5820 = vadd.xlane.f32.xlu0 %v5819
    %v5821 = vpop.xlane.xlu0 %5820
    %v5822 = vsel %vm484, %v5790, 0.0
    %5823 = vadd.xlane.f32.xlu0 %v5822
    %v5824 = vpop.xlane.xlu0 %5823
    %v5825 = vsel %vm484, %v5792, 0.0
    %5826 = vadd.xlane.f32.xlu0 %v5825
    %v5827 = vpop.xlane.xlu0 %5826
    %v5828 = vsel %vm484, %v5794, 0.0
    %5829 = vadd.xlane.f32.xlu0 %v5828
    %v5830 = vpop.xlane.xlu0 %5829
    %v5831 = vsel %vm484, %v5796, 0.0
    %5832 = vadd.xlane.f32.xlu0 %v5831
    %v5833 = vpop.xlane.xlu0 %5832
    %v5834 = vsel %vm484, %v5798, 0.0
    %5835 = vadd.xlane.f32.xlu0 %v5834
    %v5836 = vpop.xlane.xlu0 %5835
    %v5837 = vsel %vm484, %v5800, 0.0
    %5838 = vadd.xlane.f32.xlu0 %v5837
    %v5839 = vpop.xlane.xlu0 %5838
    %v5840 = vsel %vm484, %v5802, 0.0
    %5841 = vadd.xlane.f32.xlu0 %v5840
    %v5842 = vpop.xlane.xlu0 %5841
    %v5843 = vsel %vm484, %v5804, 0.0
    %5844 = vadd.xlane.f32.xlu0 %v5843
    %v5845 = vpop.xlane.xlu0 %5844
    %v5846 = vsel %vm484, %v5806, 0.0
    %5847 = vadd.xlane.f32.xlu0 %v5846
    %v5848 = vpop.xlane.xlu0 %5847
    %v5849 = vsel %vm484, %v5808, 0.0
    %5850 = vadd.xlane.f32.xlu0 %v5849
    %v5851 = vpop.xlane.xlu0 %5850
    %v5852 = vsel %vm484, %v5810, 0.0
    %5853 = vadd.xlane.f32.xlu0 %v5852
    %v5854 = vpop.xlane.xlu0 %5853
    %v5855 = vsel %vm484, %v5812, 0.0
    %5856 = vadd.xlane.f32.xlu0 %v5855
    %v5857 = vpop.xlane.xlu0 %5856
    %v5858 = vsel %vm484, %v5814, 0.0
    %5859 = vadd.xlane.f32.xlu0 %v5858
    %v5860 = vpop.xlane.xlu0 %5859
    %v5861 = vsel %vm484, %v5816, 0.0
    %5862 = vadd.xlane.f32.xlu0 %v5861
    %v5863 = vpop.xlane.xlu0 %5862
    %v5864 = vsel %vm484, %v5818, 0.0
    %5865 = vadd.xlane.f32.xlu0 %v5864
    %v5866 = vpop.xlane.xlu0 %5865
    %v5867 = vrcp.pop %v5821
    %v5868 = vrcp.pop %v5824
    %v5869 = vrcp.pop %v5827
    %v5870 = vrcp.pop %v5830
    %v5871 = vrcp.pop %v5833
    %v5872 = vrcp.pop %v5836
    %v5873 = vrcp.pop %v5839
    %v5874 = vrcp.pop %v5842
    %v5875 = vrcp.pop %v5845
    %v5876 = vrcp.pop %v5848
    %v5877 = vrcp.pop %v5851
    %v5878 = vrcp.pop %v5854
    %v5879 = vrcp.pop %v5857
    %v5880 = vrcp.pop %v5860
    %v5881 = vrcp.pop %v5863
    %v5882 = vrcp.pop %v5866
    %v5883 = vmul.f32 %v5788, %v5867
    %v5884 = vmul.f32 %v5790, %v5868
    %v5885 = vmul.f32 %v5792, %v5869
    %v5886 = vmul.f32 %v5794, %v5870
    %v5887 = vmul.f32 %v5796, %v5871
    %v5888 = vmul.f32 %v5798, %v5872
    %v5889 = vmul.f32 %v5800, %v5873
    %v5890 = vmul.f32 %v5802, %v5874
    %v5891 = vmul.f32 %v5804, %v5875
    %v5892 = vmul.f32 %v5806, %v5876
    %v5893 = vmul.f32 %v5808, %v5877
    %v5894 = vmul.f32 %v5810, %v5878
    %v5895 = vmul.f32 %v5812, %v5879
    %v5896 = vmul.f32 %v5814, %v5880
    %v5897 = vmul.f32 %v5816, %v5881
    %v5898 = vmul.f32 %v5818, %v5882
    %v5899 = vpack.c.bf16 %v5883, %v5883
    %v5900 = vpack.c.bf16 %v5884, %v5884
    %v5901 = vpack.c.bf16 %v5885, %v5885
    %v5902 = vpack.c.bf16 %v5886, %v5886
    %v5903 = vpack.c.bf16 %v5887, %v5887
    %v5904 = vpack.c.bf16 %v5888, %v5888
    %v5905 = vpack.c.bf16 %v5889, %v5889
    %v5906 = vpack.c.bf16 %v5890, %v5890
    %v5907 = vpack.c.bf16 %v5891, %v5891
    %v5908 = vpack.c.bf16 %v5892, %v5892
    %v5909 = vpack.c.bf16 %v5893, %v5893
    %v5910 = vpack.c.bf16 %v5894, %v5894
    %v5911 = vpack.c.bf16 %v5895, %v5895
    %v5912 = vpack.c.bf16 %v5896, %v5896
    %v5913 = vpack.c.bf16 %v5897, %v5897
    %v5914 = vpack.c.bf16 %v5898, %v5898
    %v5916 = vsel %vm484, %v5899, 0
    %v5919 = vsel %vm1416, %v4957, 0
    %5921 = vmatprep.subr.bf16.mxu0 0
    %5922 = vmatpush1.bf16.msra.mxu0 0
    %5923 = vmatprep.subr.bf16.mxu0 0
    %5924 = vmatpush1.bf16.msra.mxu0 0
    %5925 = vmatprep.subr.bf16.mxu0 0
    %5926 = vmatpush1.bf16.msra.mxu0 0
    %5927 = vmatprep.subr.bf16.mxu0 0
    %5928 = vmatpush1.bf16.msra.mxu0 0
    %5929 = vmatprep.subr.bf16.mxu0 0
    %5930 = vmatpush1.bf16.msra.mxu0 0
    %5931 = vmatprep.subr.bf16.mxu0 0
    %5932 = vmatpush1.bf16.msra.mxu0 0
    %5933 = vmatprep.subr.bf16.mxu0 0
    %5934 = vmatpush1.bf16.msra.mxu0 0
    %5935 = vmatprep.subr.bf16.mxu0 0
    %5936 = vmatpush1.bf16.msra.mxu0 %v5919
    %5937 = vmatprep.subr.bf16.mxu0 0
    %5938 = vmatpush2.bf16.msra.mxu0 0
    %5939 = vmatprep.subr.bf16.mxu0 0
    %5940 = vmatpush2.bf16.msra.mxu0 0
    %5941 = vmatprep.subr.bf16.mxu0 0
    %5942 = vmatpush2.bf16.msra.mxu0 0
    %5943 = vmatprep.subr.bf16.mxu0 0
    %5944 = vmatpush2.bf16.msra.mxu0 0
    %5945 = vmatprep.subr.bf16.mxu0 0
    %5946 = vmatpush2.bf16.msra.mxu0 0
    %5947 = vmatprep.subr.bf16.mxu0 0
    %5948 = vmatpush2.bf16.msra.mxu0 0
    %5949 = vmatprep.subr.bf16.mxu0 0
    %5950 = vmatpush2.bf16.msra.mxu0 0
    %5951 = vmatprep.subr.bf16.mxu0 0
    %5952 = vmatpush2.bf16.msra.mxu0 0
    %5953 = vmatprep.mubr.bf16.mxu0 0
    %5954 = vmatmul.mubr.bf16.gmra.mxu0 %v5916
    %v5955 = vpop.f32.mrf.mxu0
    %v5956 = vadd.f32 0.0, %v5955
    %v5957 = vpop.f32.mrf.mxu0
    %v5958 = vpop.f32.mrf.mxu0
    %v5959 = vpop.f32.mrf.mxu0
    %5960 = vdwg.mxu0
    %v5962 = vsel %vm484, %v5900, 0
    %v5965 = vsel %vm1416, %v4958, 0
    %5967 = vmatprep.subr.bf16.mxu0 0
    %5968 = vmatpush1.bf16.msra.mxu0 0
    %5969 = vmatprep.subr.bf16.mxu0 0
    %5970 = vmatpush1.bf16.msra.mxu0 0
    %5971 = vmatprep.subr.bf16.mxu0 0
    %5972 = vmatpush1.bf16.msra.mxu0 0
    %5973 = vmatprep.subr.bf16.mxu0 0
    %5974 = vmatpush1.bf16.msra.mxu0 0
    %5975 = vmatprep.subr.bf16.mxu0 0
    %5976 = vmatpush1.bf16.msra.mxu0 0
    %5977 = vmatprep.subr.bf16.mxu0 0
    %5978 = vmatpush1.bf16.msra.mxu0 0
    %5979 = vmatprep.subr.bf16.mxu0 0
    %5980 = vmatpush1.bf16.msra.mxu0 0
    %5981 = vmatprep.subr.bf16.mxu0 0
    %5982 = vmatpush1.bf16.msra.mxu0 %v5965
    %5983 = vmatprep.subr.bf16.mxu0 0
    %5984 = vmatpush2.bf16.msra.mxu0 0
    %5985 = vmatprep.subr.bf16.mxu0 0
    %5986 = vmatpush2.bf16.msra.mxu0 0
    %5987 = vmatprep.subr.bf16.mxu0 0
    %5988 = vmatpush2.bf16.msra.mxu0 0
    %5989 = vmatprep.subr.bf16.mxu0 0
    %5990 = vmatpush2.bf16.msra.mxu0 0
    %5991 = vmatprep.subr.bf16.mxu0 0
    %5992 = vmatpush2.bf16.msra.mxu0 0
    %5993 = vmatprep.subr.bf16.mxu0 0
    %5994 = vmatpush2.bf16.msra.mxu0 0
    %5995 = vmatprep.subr.bf16.mxu0 0
    %5996 = vmatpush2.bf16.msra.mxu0 0
    %5997 = vmatprep.subr.bf16.mxu0 0
    %5998 = vmatpush2.bf16.msra.mxu0 0
    %5999 = vmatprep.mubr.bf16.mxu0 0
    %6000 = vmatmul.mubr.bf16.gmra.mxu0 %v5962
    %v6001 = vpop.f32.mrf.mxu0
    %v6002 = vadd.f32 0.0, %v6001
    %v6003 = vpop.f32.mrf.mxu0
    %v6004 = vpop.f32.mrf.mxu0
    %v6005 = vpop.f32.mrf.mxu0
    %6006 = vdwg.mxu0
    %v6008 = vsel %vm484, %v5901, 0
    %v6011 = vsel %vm1416, %v4960, 0
    %6013 = vmatprep.subr.bf16.mxu0 0
    %6014 = vmatpush1.bf16.msra.mxu0 0
    %6015 = vmatprep.subr.bf16.mxu0 0
    %6016 = vmatpush1.bf16.msra.mxu0 0
    %6017 = vmatprep.subr.bf16.mxu0 0
    %6018 = vmatpush1.bf16.msra.mxu0 0
    %6019 = vmatprep.subr.bf16.mxu0 0
    %6020 = vmatpush1.bf16.msra.mxu0 0
    %6021 = vmatprep.subr.bf16.mxu0 0
    %6022 = vmatpush1.bf16.msra.mxu0 0
    %6023 = vmatprep.subr.bf16.mxu0 0
    %6024 = vmatpush1.bf16.msra.mxu0 0
    %6025 = vmatprep.subr.bf16.mxu0 0
    %6026 = vmatpush1.bf16.msra.mxu0 0
    %6027 = vmatprep.subr.bf16.mxu0 0
    %6028 = vmatpush1.bf16.msra.mxu0 %v6011
    %6029 = vmatprep.subr.bf16.mxu0 0
    %6030 = vmatpush2.bf16.msra.mxu0 0
    %6031 = vmatprep.subr.bf16.mxu0 0
    %6032 = vmatpush2.bf16.msra.mxu0 0
    %6033 = vmatprep.subr.bf16.mxu0 0
    %6034 = vmatpush2.bf16.msra.mxu0 0
    %6035 = vmatprep.subr.bf16.mxu0 0
    %6036 = vmatpush2.bf16.msra.mxu0 0
    %6037 = vmatprep.subr.bf16.mxu0 0
    %6038 = vmatpush2.bf16.msra.mxu0 0
    %6039 = vmatprep.subr.bf16.mxu0 0
    %6040 = vmatpush2.bf16.msra.mxu0 0
    %6041 = vmatprep.subr.bf16.mxu0 0
    %6042 = vmatpush2.bf16.msra.mxu0 0
    %6043 = vmatprep.subr.bf16.mxu0 0
    %6044 = vmatpush2.bf16.msra.mxu0 0
    %6045 = vmatprep.mubr.bf16.mxu0 0
    %6046 = vmatmul.mubr.bf16.gmra.mxu0 %v6008
    %v6047 = vpop.f32.mrf.mxu0
    %v6048 = vadd.f32 0.0, %v6047
    %v6049 = vpop.f32.mrf.mxu0
    %v6050 = vpop.f32.mrf.mxu0
    %v6051 = vpop.f32.mrf.mxu0
    %6052 = vdwg.mxu0
    %v6054 = vsel %vm484, %v5902, 0
    %v6057 = vsel %vm1416, %v4962, 0
    %6059 = vmatprep.subr.bf16.mxu0 0
    %6060 = vmatpush1.bf16.msra.mxu0 0
    %6061 = vmatprep.subr.bf16.mxu0 0
    %6062 = vmatpush1.bf16.msra.mxu0 0
    %6063 = vmatprep.subr.bf16.mxu0 0
    %6064 = vmatpush1.bf16.msra.mxu0 0
    %6065 = vmatprep.subr.bf16.mxu0 0
    %6066 = vmatpush1.bf16.msra.mxu0 0
    %6067 = vmatprep.subr.bf16.mxu0 0
    %6068 = vmatpush1.bf16.msra.mxu0 0
    %6069 = vmatprep.subr.bf16.mxu0 0
    %6070 = vmatpush1.bf16.msra.mxu0 0
    %6071 = vmatprep.subr.bf16.mxu0 0
    %6072 = vmatpush1.bf16.msra.mxu0 0
    %6073 = vmatprep.subr.bf16.mxu0 0
    %6074 = vmatpush1.bf16.msra.mxu0 %v6057
    %6075 = vmatprep.subr.bf16.mxu0 0
    %6076 = vmatpush2.bf16.msra.mxu0 0
    %6077 = vmatprep.subr.bf16.mxu0 0
    %6078 = vmatpush2.bf16.msra.mxu0 0
    %6079 = vmatprep.subr.bf16.mxu0 0
    %6080 = vmatpush2.bf16.msra.mxu0 0
    %6081 = vmatprep.subr.bf16.mxu0 0
    %6082 = vmatpush2.bf16.msra.mxu0 0
    %6083 = vmatprep.subr.bf16.mxu0 0
    %6084 = vmatpush2.bf16.msra.mxu0 0
    %6085 = vmatprep.subr.bf16.mxu0 0
    %6086 = vmatpush2.bf16.msra.mxu0 0
    %6087 = vmatprep.subr.bf16.mxu0 0
    %6088 = vmatpush2.bf16.msra.mxu0 0
    %6089 = vmatprep.subr.bf16.mxu0 0
    %6090 = vmatpush2.bf16.msra.mxu0 0
    %6091 = vmatprep.mubr.bf16.mxu0 0
    %6092 = vmatmul.mubr.bf16.gmra.mxu0 %v6054
    %v6093 = vpop.f32.mrf.mxu0
    %v6094 = vadd.f32 0.0, %v6093
    %v6095 = vpop.f32.mrf.mxu0
    %v6096 = vpop.f32.mrf.mxu0
    %v6097 = vpop.f32.mrf.mxu0
    %6098 = vdwg.mxu0
    %v6100 = vsel %vm484, %v5903, 0
    %v6103 = vsel %vm1416, %v4964, 0
    %6105 = vmatprep.subr.bf16.mxu0 0
    %6106 = vmatpush1.bf16.msra.mxu0 0
    %6107 = vmatprep.subr.bf16.mxu0 0
    %6108 = vmatpush1.bf16.msra.mxu0 0
    %6109 = vmatprep.subr.bf16.mxu0 0
    %6110 = vmatpush1.bf16.msra.mxu0 0
    %6111 = vmatprep.subr.bf16.mxu0 0
    %6112 = vmatpush1.bf16.msra.mxu0 0
    %6113 = vmatprep.subr.bf16.mxu0 0
    %6114 = vmatpush1.bf16.msra.mxu0 0
    %6115 = vmatprep.subr.bf16.mxu0 0
    %6116 = vmatpush1.bf16.msra.mxu0 0
    %6117 = vmatprep.subr.bf16.mxu0 0
    %6118 = vmatpush1.bf16.msra.mxu0 0
    %6119 = vmatprep.subr.bf16.mxu0 0
    %6120 = vmatpush1.bf16.msra.mxu0 %v6103
    %6121 = vmatprep.subr.bf16.mxu0 0
    %6122 = vmatpush2.bf16.msra.mxu0 0
    %6123 = vmatprep.subr.bf16.mxu0 0
    %6124 = vmatpush2.bf16.msra.mxu0 0
    %6125 = vmatprep.subr.bf16.mxu0 0
    %6126 = vmatpush2.bf16.msra.mxu0 0
    %6127 = vmatprep.subr.bf16.mxu0 0
    %6128 = vmatpush2.bf16.msra.mxu0 0
    %6129 = vmatprep.subr.bf16.mxu0 0
    %6130 = vmatpush2.bf16.msra.mxu0 0
    %6131 = vmatprep.subr.bf16.mxu0 0
    %6132 = vmatpush2.bf16.msra.mxu0 0
    %6133 = vmatprep.subr.bf16.mxu0 0
    %6134 = vmatpush2.bf16.msra.mxu0 0
    %6135 = vmatprep.subr.bf16.mxu0 0
    %6136 = vmatpush2.bf16.msra.mxu0 0
    %6137 = vmatprep.mubr.bf16.mxu0 0
    %6138 = vmatmul.mubr.bf16.gmra.mxu0 %v6100
    %v6139 = vpop.f32.mrf.mxu0
    %v6140 = vadd.f32 0.0, %v6139
    %v6141 = vpop.f32.mrf.mxu0
    %v6142 = vpop.f32.mrf.mxu0
    %v6143 = vpop.f32.mrf.mxu0
    %6144 = vdwg.mxu0
    %v6146 = vsel %vm484, %v5904, 0
    %v6149 = vsel %vm1416, %v4966, 0
    %6151 = vmatprep.subr.bf16.mxu0 0
    %6152 = vmatpush1.bf16.msra.mxu0 0
    %6153 = vmatprep.subr.bf16.mxu0 0
    %6154 = vmatpush1.bf16.msra.mxu0 0
    %6155 = vmatprep.subr.bf16.mxu0 0
    %6156 = vmatpush1.bf16.msra.mxu0 0
    %6157 = vmatprep.subr.bf16.mxu0 0
    %6158 = vmatpush1.bf16.msra.mxu0 0
    %6159 = vmatprep.subr.bf16.mxu0 0
    %6160 = vmatpush1.bf16.msra.mxu0 0
    %6161 = vmatprep.subr.bf16.mxu0 0
    %6162 = vmatpush1.bf16.msra.mxu0 0
    %6163 = vmatprep.subr.bf16.mxu0 0
    %6164 = vmatpush1.bf16.msra.mxu0 0
    %6165 = vmatprep.subr.bf16.mxu0 0
    %6166 = vmatpush1.bf16.msra.mxu0 %v6149
    %6167 = vmatprep.subr.bf16.mxu0 0
    %6168 = vmatpush2.bf16.msra.mxu0 0
    %6169 = vmatprep.subr.bf16.mxu0 0
    %6170 = vmatpush2.bf16.msra.mxu0 0
    %6171 = vmatprep.subr.bf16.mxu0 0
    %6172 = vmatpush2.bf16.msra.mxu0 0
    %6173 = vmatprep.subr.bf16.mxu0 0
    %6174 = vmatpush2.bf16.msra.mxu0 0
    %6175 = vmatprep.subr.bf16.mxu0 0
    %6176 = vmatpush2.bf16.msra.mxu0 0
    %6177 = vmatprep.subr.bf16.mxu0 0
    %6178 = vmatpush2.bf16.msra.mxu0 0
    %6179 = vmatprep.subr.bf16.mxu0 0
    %6180 = vmatpush2.bf16.msra.mxu0 0
    %6181 = vmatprep.subr.bf16.mxu0 0
    %6182 = vmatpush2.bf16.msra.mxu0 0
    %6183 = vmatprep.mubr.bf16.mxu0 0
    %6184 = vmatmul.mubr.bf16.gmra.mxu0 %v6146
    %v6185 = vpop.f32.mrf.mxu0
    %v6186 = vadd.f32 0.0, %v6185
    %v6187 = vpop.f32.mrf.mxu0
    %v6188 = vpop.f32.mrf.mxu0
    %v6189 = vpop.f32.mrf.mxu0
    %6190 = vdwg.mxu0
    %v6192 = vsel %vm484, %v5905, 0
    %v6195 = vsel %vm1416, %v4968, 0
    %6197 = vmatprep.subr.bf16.mxu0 0
    %6198 = vmatpush1.bf16.msra.mxu0 0
    %6199 = vmatprep.subr.bf16.mxu0 0
    %6200 = vmatpush1.bf16.msra.mxu0 0
    %6201 = vmatprep.subr.bf16.mxu0 0
    %6202 = vmatpush1.bf16.msra.mxu0 0
    %6203 = vmatprep.subr.bf16.mxu0 0
    %6204 = vmatpush1.bf16.msra.mxu0 0
    %6205 = vmatprep.subr.bf16.mxu0 0
    %6206 = vmatpush1.bf16.msra.mxu0 0
    %6207 = vmatprep.subr.bf16.mxu0 0
    %6208 = vmatpush1.bf16.msra.mxu0 0
    %6209 = vmatprep.subr.bf16.mxu0 0
    %6210 = vmatpush1.bf16.msra.mxu0 0
    %6211 = vmatprep.subr.bf16.mxu0 0
    %6212 = vmatpush1.bf16.msra.mxu0 %v6195
    %6213 = vmatprep.subr.bf16.mxu0 0
    %6214 = vmatpush2.bf16.msra.mxu0 0
    %6215 = vmatprep.subr.bf16.mxu0 0
    %6216 = vmatpush2.bf16.msra.mxu0 0
    %6217 = vmatprep.subr.bf16.mxu0 0
    %6218 = vmatpush2.bf16.msra.mxu0 0
    %6219 = vmatprep.subr.bf16.mxu0 0
    %6220 = vmatpush2.bf16.msra.mxu0 0
    %6221 = vmatprep.subr.bf16.mxu0 0
    %6222 = vmatpush2.bf16.msra.mxu0 0
    %6223 = vmatprep.subr.bf16.mxu0 0
    %6224 = vmatpush2.bf16.msra.mxu0 0
    %6225 = vmatprep.subr.bf16.mxu0 0
    %6226 = vmatpush2.bf16.msra.mxu0 0
    %6227 = vmatprep.subr.bf16.mxu0 0
    %6228 = vmatpush2.bf16.msra.mxu0 0
    %6229 = vmatprep.mubr.bf16.mxu0 0
    %6230 = vmatmul.mubr.bf16.gmra.mxu0 %v6192
    %v6231 = vpop.f32.mrf.mxu0
    %v6232 = vadd.f32 0.0, %v6231
    %v6233 = vpop.f32.mrf.mxu0
    %v6234 = vpop.f32.mrf.mxu0
    %v6235 = vpop.f32.mrf.mxu0
    %6236 = vdwg.mxu0
    %v6238 = vsel %vm484, %v5906, 0
    %v6241 = vsel %vm1416, %v4970, 0
    %6243 = vmatprep.subr.bf16.mxu0 0
    %6244 = vmatpush1.bf16.msra.mxu0 0
    %6245 = vmatprep.subr.bf16.mxu0 0
    %6246 = vmatpush1.bf16.msra.mxu0 0
    %6247 = vmatprep.subr.bf16.mxu0 0
    %6248 = vmatpush1.bf16.msra.mxu0 0
    %6249 = vmatprep.subr.bf16.mxu0 0
    %6250 = vmatpush1.bf16.msra.mxu0 0
    %6251 = vmatprep.subr.bf16.mxu0 0
    %6252 = vmatpush1.bf16.msra.mxu0 0
    %6253 = vmatprep.subr.bf16.mxu0 0
    %6254 = vmatpush1.bf16.msra.mxu0 0
    %6255 = vmatprep.subr.bf16.mxu0 0
    %6256 = vmatpush1.bf16.msra.mxu0 0
    %6257 = vmatprep.subr.bf16.mxu0 0
    %6258 = vmatpush1.bf16.msra.mxu0 %v6241
    %6259 = vmatprep.subr.bf16.mxu0 0
    %6260 = vmatpush2.bf16.msra.mxu0 0
    %6261 = vmatprep.subr.bf16.mxu0 0
    %6262 = vmatpush2.bf16.msra.mxu0 0
    %6263 = vmatprep.subr.bf16.mxu0 0
    %6264 = vmatpush2.bf16.msra.mxu0 0
    %6265 = vmatprep.subr.bf16.mxu0 0
    %6266 = vmatpush2.bf16.msra.mxu0 0
    %6267 = vmatprep.subr.bf16.mxu0 0
    %6268 = vmatpush2.bf16.msra.mxu0 0
    %6269 = vmatprep.subr.bf16.mxu0 0
    %6270 = vmatpush2.bf16.msra.mxu0 0
    %6271 = vmatprep.subr.bf16.mxu0 0
    %6272 = vmatpush2.bf16.msra.mxu0 0
    %6273 = vmatprep.subr.bf16.mxu0 0
    %6274 = vmatpush2.bf16.msra.mxu0 0
    %6275 = vmatprep.mubr.bf16.mxu0 0
    %6276 = vmatmul.mubr.bf16.gmra.mxu0 %v6238
    %v6277 = vpop.f32.mrf.mxu0
    %v6278 = vadd.f32 0.0, %v6277
    %v6279 = vpop.f32.mrf.mxu0
    %v6280 = vpop.f32.mrf.mxu0
    %v6281 = vpop.f32.mrf.mxu0
    %6282 = vdwg.mxu0
    %v6284 = vsel %vm484, %v5907, 0
    %v6287 = vsel %vm1416, %v4972, 0
    %6289 = vmatprep.subr.bf16.mxu0 0
    %6290 = vmatpush1.bf16.msra.mxu0 0
    %6291 = vmatprep.subr.bf16.mxu0 0
    %6292 = vmatpush1.bf16.msra.mxu0 0
    %6293 = vmatprep.subr.bf16.mxu0 0
    %6294 = vmatpush1.bf16.msra.mxu0 0
    %6295 = vmatprep.subr.bf16.mxu0 0
    %6296 = vmatpush1.bf16.msra.mxu0 0
    %6297 = vmatprep.subr.bf16.mxu0 0
    %6298 = vmatpush1.bf16.msra.mxu0 0
    %6299 = vmatprep.subr.bf16.mxu0 0
    %6300 = vmatpush1.bf16.msra.mxu0 0
    %6301 = vmatprep.subr.bf16.mxu0 0
    %6302 = vmatpush1.bf16.msra.mxu0 0
    %6303 = vmatprep.subr.bf16.mxu0 0
    %6304 = vmatpush1.bf16.msra.mxu0 %v6287
    %6305 = vmatprep.subr.bf16.mxu0 0
    %6306 = vmatpush2.bf16.msra.mxu0 0
    %6307 = vmatprep.subr.bf16.mxu0 0
    %6308 = vmatpush2.bf16.msra.mxu0 0
    %6309 = vmatprep.subr.bf16.mxu0 0
    %6310 = vmatpush2.bf16.msra.mxu0 0
    %6311 = vmatprep.subr.bf16.mxu0 0
    %6312 = vmatpush2.bf16.msra.mxu0 0
    %6313 = vmatprep.subr.bf16.mxu0 0
    %6314 = vmatpush2.bf16.msra.mxu0 0
    %6315 = vmatprep.subr.bf16.mxu0 0
    %6316 = vmatpush2.bf16.msra.mxu0 0
    %6317 = vmatprep.subr.bf16.mxu0 0
    %6318 = vmatpush2.bf16.msra.mxu0 0
    %6319 = vmatprep.subr.bf16.mxu0 0
    %6320 = vmatpush2.bf16.msra.mxu0 0
    %6321 = vmatprep.mubr.bf16.mxu0 0
    %6322 = vmatmul.mubr.bf16.gmra.mxu0 %v6284
    %v6323 = vpop.f32.mrf.mxu0
    %v6324 = vadd.f32 0.0, %v6323
    %v6325 = vpop.f32.mrf.mxu0
    %v6326 = vpop.f32.mrf.mxu0
    %v6327 = vpop.f32.mrf.mxu0
    %6328 = vdwg.mxu0
    %v6330 = vsel %vm484, %v5908, 0
    %v6333 = vsel %vm1416, %v4974, 0
    %6335 = vmatprep.subr.bf16.mxu0 0
    %6336 = vmatpush1.bf16.msra.mxu0 0
    %6337 = vmatprep.subr.bf16.mxu0 0
    %6338 = vmatpush1.bf16.msra.mxu0 0
    %6339 = vmatprep.subr.bf16.mxu0 0
    %6340 = vmatpush1.bf16.msra.mxu0 0
    %6341 = vmatprep.subr.bf16.mxu0 0
    %6342 = vmatpush1.bf16.msra.mxu0 0
    %6343 = vmatprep.subr.bf16.mxu0 0
    %6344 = vmatpush1.bf16.msra.mxu0 0
    %6345 = vmatprep.subr.bf16.mxu0 0
    %6346 = vmatpush1.bf16.msra.mxu0 0
    %6347 = vmatprep.subr.bf16.mxu0 0
    %6348 = vmatpush1.bf16.msra.mxu0 0
    %6349 = vmatprep.subr.bf16.mxu0 0
    %6350 = vmatpush1.bf16.msra.mxu0 %v6333
    %6351 = vmatprep.subr.bf16.mxu0 0
    %6352 = vmatpush2.bf16.msra.mxu0 0
    %6353 = vmatprep.subr.bf16.mxu0 0
    %6354 = vmatpush2.bf16.msra.mxu0 0
    %6355 = vmatprep.subr.bf16.mxu0 0
    %6356 = vmatpush2.bf16.msra.mxu0 0
    %6357 = vmatprep.subr.bf16.mxu0 0
    %6358 = vmatpush2.bf16.msra.mxu0 0
    %6359 = vmatprep.subr.bf16.mxu0 0
    %6360 = vmatpush2.bf16.msra.mxu0 0
    %6361 = vmatprep.subr.bf16.mxu0 0
    %6362 = vmatpush2.bf16.msra.mxu0 0
    %6363 = vmatprep.subr.bf16.mxu0 0
    %6364 = vmatpush2.bf16.msra.mxu0 0
    %6365 = vmatprep.subr.bf16.mxu0 0
    %6366 = vmatpush2.bf16.msra.mxu0 0
    %6367 = vmatprep.mubr.bf16.mxu0 0
    %6368 = vmatmul.mubr.bf16.gmra.mxu0 %v6330
    %v6369 = vpop.f32.mrf.mxu0
    %v6370 = vadd.f32 0.0, %v6369
    %v6371 = vpop.f32.mrf.mxu0
    %v6372 = vpop.f32.mrf.mxu0
    %v6373 = vpop.f32.mrf.mxu0
    %6374 = vdwg.mxu0
    %v6376 = vsel %vm484, %v5909, 0
    %v6379 = vsel %vm1416, %v4976, 0
    %6381 = vmatprep.subr.bf16.mxu0 0
    %6382 = vmatpush1.bf16.msra.mxu0 0
    %6383 = vmatprep.subr.bf16.mxu0 0
    %6384 = vmatpush1.bf16.msra.mxu0 0
    %6385 = vmatprep.subr.bf16.mxu0 0
    %6386 = vmatpush1.bf16.msra.mxu0 0
    %6387 = vmatprep.subr.bf16.mxu0 0
    %6388 = vmatpush1.bf16.msra.mxu0 0
    %6389 = vmatprep.subr.bf16.mxu0 0
    %6390 = vmatpush1.bf16.msra.mxu0 0
    %6391 = vmatprep.subr.bf16.mxu0 0
    %6392 = vmatpush1.bf16.msra.mxu0 0
    %6393 = vmatprep.subr.bf16.mxu0 0
    %6394 = vmatpush1.bf16.msra.mxu0 0
    %6395 = vmatprep.subr.bf16.mxu0 0
    %6396 = vmatpush1.bf16.msra.mxu0 %v6379
    %6397 = vmatprep.subr.bf16.mxu0 0
    %6398 = vmatpush2.bf16.msra.mxu0 0
    %6399 = vmatprep.subr.bf16.mxu0 0
    %6400 = vmatpush2.bf16.msra.mxu0 0
    %6401 = vmatprep.subr.bf16.mxu0 0
    %6402 = vmatpush2.bf16.msra.mxu0 0
    %6403 = vmatprep.subr.bf16.mxu0 0
    %6404 = vmatpush2.bf16.msra.mxu0 0
    %6405 = vmatprep.subr.bf16.mxu0 0
    %6406 = vmatpush2.bf16.msra.mxu0 0
    %6407 = vmatprep.subr.bf16.mxu0 0
    %6408 = vmatpush2.bf16.msra.mxu0 0
    %6409 = vmatprep.subr.bf16.mxu0 0
    %6410 = vmatpush2.bf16.msra.mxu0 0
    %6411 = vmatprep.subr.bf16.mxu0 0
    %6412 = vmatpush2.bf16.msra.mxu0 0
    %6413 = vmatprep.mubr.bf16.mxu0 0
    %6414 = vmatmul.mubr.bf16.gmra.mxu0 %v6376
    %v6415 = vpop.f32.mrf.mxu0
    %v6416 = vadd.f32 0.0, %v6415
    %v6417 = vpop.f32.mrf.mxu0
    %v6418 = vpop.f32.mrf.mxu0
    %v6419 = vpop.f32.mrf.mxu0
    %6420 = vdwg.mxu0
    %v6422 = vsel %vm484, %v5910, 0
    %v6425 = vsel %vm1416, %v4978, 0
    %6427 = vmatprep.subr.bf16.mxu0 0
    %6428 = vmatpush1.bf16.msra.mxu0 0
    %6429 = vmatprep.subr.bf16.mxu0 0
    %6430 = vmatpush1.bf16.msra.mxu0 0
    %6431 = vmatprep.subr.bf16.mxu0 0
    %6432 = vmatpush1.bf16.msra.mxu0 0
    %6433 = vmatprep.subr.bf16.mxu0 0
    %6434 = vmatpush1.bf16.msra.mxu0 0
    %6435 = vmatprep.subr.bf16.mxu0 0
    %6436 = vmatpush1.bf16.msra.mxu0 0
    %6437 = vmatprep.subr.bf16.mxu0 0
    %6438 = vmatpush1.bf16.msra.mxu0 0
    %6439 = vmatprep.subr.bf16.mxu0 0
    %6440 = vmatpush1.bf16.msra.mxu0 0
    %6441 = vmatprep.subr.bf16.mxu0 0
    %6442 = vmatpush1.bf16.msra.mxu0 %v6425
    %6443 = vmatprep.subr.bf16.mxu0 0
    %6444 = vmatpush2.bf16.msra.mxu0 0
    %6445 = vmatprep.subr.bf16.mxu0 0
    %6446 = vmatpush2.bf16.msra.mxu0 0
    %6447 = vmatprep.subr.bf16.mxu0 0
    %6448 = vmatpush2.bf16.msra.mxu0 0
    %6449 = vmatprep.subr.bf16.mxu0 0
    %6450 = vmatpush2.bf16.msra.mxu0 0
    %6451 = vmatprep.subr.bf16.mxu0 0
    %6452 = vmatpush2.bf16.msra.mxu0 0
    %6453 = vmatprep.subr.bf16.mxu0 0
    %6454 = vmatpush2.bf16.msra.mxu0 0
    %6455 = vmatprep.subr.bf16.mxu0 0
    %6456 = vmatpush2.bf16.msra.mxu0 0
    %6457 = vmatprep.subr.bf16.mxu0 0
    %6458 = vmatpush2.bf16.msra.mxu0 0
    %6459 = vmatprep.mubr.bf16.mxu0 0
    %6460 = vmatmul.mubr.bf16.gmra.mxu0 %v6422
    %v6461 = vpop.f32.mrf.mxu0
    %v6462 = vadd.f32 0.0, %v6461
    %v6463 = vpop.f32.mrf.mxu0
    %v6464 = vpop.f32.mrf.mxu0
    %v6465 = vpop.f32.mrf.mxu0
    %6466 = vdwg.mxu0
    %v6468 = vsel %vm484, %v5911, 0
    %v6471 = vsel %vm1416, %v4980, 0
    %6473 = vmatprep.subr.bf16.mxu0 0
    %6474 = vmatpush1.bf16.msra.mxu0 0
    %6475 = vmatprep.subr.bf16.mxu0 0
    %6476 = vmatpush1.bf16.msra.mxu0 0
    %6477 = vmatprep.subr.bf16.mxu0 0
    %6478 = vmatpush1.bf16.msra.mxu0 0
    %6479 = vmatprep.subr.bf16.mxu0 0
    %6480 = vmatpush1.bf16.msra.mxu0 0
    %6481 = vmatprep.subr.bf16.mxu0 0
    %6482 = vmatpush1.bf16.msra.mxu0 0
    %6483 = vmatprep.subr.bf16.mxu0 0
    %6484 = vmatpush1.bf16.msra.mxu0 0
    %6485 = vmatprep.subr.bf16.mxu0 0
    %6486 = vmatpush1.bf16.msra.mxu0 0
    %6487 = vmatprep.subr.bf16.mxu0 0
    %6488 = vmatpush1.bf16.msra.mxu0 %v6471
    %6489 = vmatprep.subr.bf16.mxu0 0
    %6490 = vmatpush2.bf16.msra.mxu0 0
    %6491 = vmatprep.subr.bf16.mxu0 0
    %6492 = vmatpush2.bf16.msra.mxu0 0
    %6493 = vmatprep.subr.bf16.mxu0 0
    %6494 = vmatpush2.bf16.msra.mxu0 0
    %6495 = vmatprep.subr.bf16.mxu0 0
    %6496 = vmatpush2.bf16.msra.mxu0 0
    %6497 = vmatprep.subr.bf16.mxu0 0
    %6498 = vmatpush2.bf16.msra.mxu0 0
    %6499 = vmatprep.subr.bf16.mxu0 0
    %6500 = vmatpush2.bf16.msra.mxu0 0
    %6501 = vmatprep.subr.bf16.mxu0 0
    %6502 = vmatpush2.bf16.msra.mxu0 0
    %6503 = vmatprep.subr.bf16.mxu0 0
    %6504 = vmatpush2.bf16.msra.mxu0 0
    %6505 = vmatprep.mubr.bf16.mxu0 0
    %6506 = vmatmul.mubr.bf16.gmra.mxu0 %v6468
    %v6507 = vpop.f32.mrf.mxu0
    %v6508 = vadd.f32 0.0, %v6507
    %v6509 = vpop.f32.mrf.mxu0
    %v6510 = vpop.f32.mrf.mxu0
    %v6511 = vpop.f32.mrf.mxu0
    %6512 = vdwg.mxu0
    %v6514 = vsel %vm484, %v5912, 0
    %v6517 = vsel %vm1416, %v4982, 0
    %6519 = vmatprep.subr.bf16.mxu0 0
    %6520 = vmatpush1.bf16.msra.mxu0 0
    %6521 = vmatprep.subr.bf16.mxu0 0
    %6522 = vmatpush1.bf16.msra.mxu0 0
    %6523 = vmatprep.subr.bf16.mxu0 0
    %6524 = vmatpush1.bf16.msra.mxu0 0
    %6525 = vmatprep.subr.bf16.mxu0 0
    %6526 = vmatpush1.bf16.msra.mxu0 0
    %6527 = vmatprep.subr.bf16.mxu0 0
    %6528 = vmatpush1.bf16.msra.mxu0 0
    %6529 = vmatprep.subr.bf16.mxu0 0
    %6530 = vmatpush1.bf16.msra.mxu0 0
    %6531 = vmatprep.subr.bf16.mxu0 0
    %6532 = vmatpush1.bf16.msra.mxu0 0
    %6533 = vmatprep.subr.bf16.mxu0 0
    %6534 = vmatpush1.bf16.msra.mxu0 %v6517
    %6535 = vmatprep.subr.bf16.mxu0 0
    %6536 = vmatpush2.bf16.msra.mxu0 0
    %6537 = vmatprep.subr.bf16.mxu0 0
    %6538 = vmatpush2.bf16.msra.mxu0 0
    %6539 = vmatprep.subr.bf16.mxu0 0
    %6540 = vmatpush2.bf16.msra.mxu0 0
    %6541 = vmatprep.subr.bf16.mxu0 0
    %6542 = vmatpush2.bf16.msra.mxu0 0
    %6543 = vmatprep.subr.bf16.mxu0 0
    %6544 = vmatpush2.bf16.msra.mxu0 0
    %6545 = vmatprep.subr.bf16.mxu0 0
    %6546 = vmatpush2.bf16.msra.mxu0 0
    %6547 = vmatprep.subr.bf16.mxu0 0
    %6548 = vmatpush2.bf16.msra.mxu0 0
    %6549 = vmatprep.subr.bf16.mxu0 0
    %6550 = vmatpush2.bf16.msra.mxu0 0
    %6551 = vmatprep.mubr.bf16.mxu0 0
    %6552 = vmatmul.mubr.bf16.gmra.mxu0 %v6514
    %v6553 = vpop.f32.mrf.mxu0
    %v6554 = vadd.f32 0.0, %v6553
    %v6555 = vpop.f32.mrf.mxu0
    %v6556 = vpop.f32.mrf.mxu0
    %v6557 = vpop.f32.mrf.mxu0
    %6558 = vdwg.mxu0
    %v6560 = vsel %vm484, %v5913, 0
    %v6563 = vsel %vm1416, %v4984, 0
    %6565 = vmatprep.subr.bf16.mxu0 0
    %6566 = vmatpush1.bf16.msra.mxu0 0
    %6567 = vmatprep.subr.bf16.mxu0 0
    %6568 = vmatpush1.bf16.msra.mxu0 0
    %6569 = vmatprep.subr.bf16.mxu0 0
    %6570 = vmatpush1.bf16.msra.mxu0 0
    %6571 = vmatprep.subr.bf16.mxu0 0
    %6572 = vmatpush1.bf16.msra.mxu0 0
    %6573 = vmatprep.subr.bf16.mxu0 0
    %6574 = vmatpush1.bf16.msra.mxu0 0
    %6575 = vmatprep.subr.bf16.mxu0 0
    %6576 = vmatpush1.bf16.msra.mxu0 0
    %6577 = vmatprep.subr.bf16.mxu0 0
    %6578 = vmatpush1.bf16.msra.mxu0 0
    %6579 = vmatprep.subr.bf16.mxu0 0
    %6580 = vmatpush1.bf16.msra.mxu0 %v6563
    %6581 = vmatprep.subr.bf16.mxu0 0
    %6582 = vmatpush2.bf16.msra.mxu0 0
    %6583 = vmatprep.subr.bf16.mxu0 0
    %6584 = vmatpush2.bf16.msra.mxu0 0
    %6585 = vmatprep.subr.bf16.mxu0 0
    %6586 = vmatpush2.bf16.msra.mxu0 0
    %6587 = vmatprep.subr.bf16.mxu0 0
    %6588 = vmatpush2.bf16.msra.mxu0 0
    %6589 = vmatprep.subr.bf16.mxu0 0
    %6590 = vmatpush2.bf16.msra.mxu0 0
    %6591 = vmatprep.subr.bf16.mxu0 0
    %6592 = vmatpush2.bf16.msra.mxu0 0
    %6593 = vmatprep.subr.bf16.mxu0 0
    %6594 = vmatpush2.bf16.msra.mxu0 0
    %6595 = vmatprep.subr.bf16.mxu0 0
    %6596 = vmatpush2.bf16.msra.mxu0 0
    %6597 = vmatprep.mubr.bf16.mxu0 0
    %6598 = vmatmul.mubr.bf16.gmra.mxu0 %v6560
    %v6599 = vpop.f32.mrf.mxu0
    %v6600 = vadd.f32 0.0, %v6599
    %v6601 = vpop.f32.mrf.mxu0
    %v6602 = vpop.f32.mrf.mxu0
    %v6603 = vpop.f32.mrf.mxu0
    %6604 = vdwg.mxu0
    %v6606 = vsel %vm484, %v5914, 0
    %v6609 = vsel %vm1416, %v4986, 0
    %6611 = vmatprep.subr.bf16.mxu0 0
    %6612 = vmatpush1.bf16.msra.mxu0 0
    %6613 = vmatprep.subr.bf16.mxu0 0
    %6614 = vmatpush1.bf16.msra.mxu0 0
    %6615 = vmatprep.subr.bf16.mxu0 0
    %6616 = vmatpush1.bf16.msra.mxu0 0
    %6617 = vmatprep.subr.bf16.mxu0 0
    %6618 = vmatpush1.bf16.msra.mxu0 0
    %6619 = vmatprep.subr.bf16.mxu0 0
    %6620 = vmatpush1.bf16.msra.mxu0 0
    %6621 = vmatprep.subr.bf16.mxu0 0
    %6622 = vmatpush1.bf16.msra.mxu0 0
    %6623 = vmatprep.subr.bf16.mxu0 0
    %6624 = vmatpush1.bf16.msra.mxu0 0
    %6625 = vmatprep.subr.bf16.mxu0 0
    %6626 = vmatpush1.bf16.msra.mxu0 %v6609
    %6627 = vmatprep.subr.bf16.mxu0 0
    %6628 = vmatpush2.bf16.msra.mxu0 0
    %6629 = vmatprep.subr.bf16.mxu0 0
    %6630 = vmatpush2.bf16.msra.mxu0 0
    %6631 = vmatprep.subr.bf16.mxu0 0
    %6632 = vmatpush2.bf16.msra.mxu0 0
    %6633 = vmatprep.subr.bf16.mxu0 0
    %6634 = vmatpush2.bf16.msra.mxu0 0
    %6635 = vmatprep.subr.bf16.mxu0 0
    %6636 = vmatpush2.bf16.msra.mxu0 0
    %6637 = vmatprep.subr.bf16.mxu0 0
    %6638 = vmatpush2.bf16.msra.mxu0 0
    %6639 = vmatprep.subr.bf16.mxu0 0
    %6640 = vmatpush2.bf16.msra.mxu0 0
    %6641 = vmatprep.subr.bf16.mxu0 0
    %6642 = vmatpush2.bf16.msra.mxu0 0
    %6643 = vmatprep.mubr.bf16.mxu0 0
    %6644 = vmatmul.mubr.bf16.gmra.mxu0 %v6606
    %v6645 = vpop.f32.mrf.mxu0
    %v6646 = vadd.f32 0.0, %v6645
    %v6647 = vpop.f32.mrf.mxu0
    %v6648 = vpop.f32.mrf.mxu0
    %v6649 = vpop.f32.mrf.mxu0
    %6650 = vdwg.mxu0
    %6653 = vrot.lane.b32.xlu0 %v6048, 8
    %v6654 = vpop.permute.xlu0 %6653
    %6655 = vrot.lane.b32.xlu0 %v6094, 8
    %v6656 = vpop.permute.xlu0 %6655
    %6661 = vrot.lane.b32.xlu0 %v6140, 16
    %v6662 = vpop.permute.xlu0 %6661
    %6663 = vrot.lane.b32.xlu0 %v6186, 16
    %v6664 = vpop.permute.xlu0 %6663
    %6669 = vrot.lane.b32.xlu0 %v6232, 24
    %v6670 = vpop.permute.xlu0 %6669
    %6671 = vrot.lane.b32.xlu0 %v6278, 24
    %v6672 = vpop.permute.xlu0 %6671
    %6677 = vrot.lane.b32.xlu0 %v6324, 32
    %v6678 = vpop.permute.xlu0 %6677
    %6679 = vrot.lane.b32.xlu0 %v6370, 32
    %v6680 = vpop.permute.xlu0 %6679
    %6685 = vrot.lane.b32.xlu0 %v6416, 40
    %v6686 = vpop.permute.xlu0 %6685
    %6687 = vrot.lane.b32.xlu0 %v6462, 40
    %v6688 = vpop.permute.xlu0 %6687
    %6693 = vrot.lane.b32.xlu0 %v6508, 48
    %v6694 = vpop.permute.xlu0 %6693
    %6695 = vrot.lane.b32.xlu0 %v6554, 48
    %v6696 = vpop.permute.xlu0 %6695
    %6701 = vrot.lane.b32.xlu0 %v6600, 56
    %v6702 = vpop.permute.xlu0 %6701
    %6703 = vrot.lane.b32.xlu0 %v6646, 56
    %v6704 = vpop.permute.xlu0 %6703
    %v6707 = vsel %vm484, %v5956, %v6654
    %v6708 = vsel %vm484, %v6002, %v6656
    %v6709 = vsel %vm92, %v6707, %v6662
    %v6710 = vsel %vm92, %v6708, %v6664
    %v6711 = vsel %vm2210, %v6709, %v6670
    %v6712 = vsel %vm2210, %v6710, %v6672
    %v6713 = vsel %vm2213, %v6711, %v6678
    %v6714 = vsel %vm2213, %v6712, %v6680
    %v6715 = vsel %vm2216, %v6713, %v6686
    %v6716 = vsel %vm2216, %v6714, %v6688
    %v6717 = vsel %vm2219, %v6715, %v6694
    %v6718 = vsel %vm2219, %v6716, %v6696
    %v6719 = vsel %vm2222, %v6717, %v6702
    %v6720 = vsel %vm2222, %v6718, %v6704
    %v6721 = vpack.c.bf16 %v6720, %v6719
    %s6722 = scalar_lea.vmem %s9, 32
    %v6723 = vld [vmem:[%s6722] sm:$0xf]
    %v6724 = vld [vmem:[%s6722 + $0x4] sm:$0xf]
    %v6725 = vld [vmem:[%s6722 + $0x8] sm:$0xf]
    %v6726 = vld [vmem:[%s6722 + $0xc] sm:$0xf]
    %v6727 = vld [vmem:[%s6722 + $0x10] sm:$0xf]
    %v6728 = vld [vmem:[%s6722 + $0x14] sm:$0xf]
    %v6729 = vld [vmem:[%s6722 + $0x18] sm:$0xf]
    %v6730 = vld [vmem:[%s6722 + $0x1c] sm:$0xf]
    %s6731 = scalar_lea.vmem %s10, 1
    %v6732 = vld [vmem:[%s6731] sm:$0x1]
    %v6734 = vlaneseq
    %v6735 = vshrl.u32 %v6734, 7
    %v6736 = vsub.s32 0, %v6735
    %v6737 = vrot.slane %v6732, %v6736
    %v6747 = vunpack.c.l.b16 %v6723
    %v6748 = vunpack.c.l.b16 %v6724
    %v6749 = vunpack.c.l.b16 %v6725
    %v6750 = vunpack.c.l.b16 %v6726
    %v6751 = vunpack.c.l.b16 %v6727
    %v6752 = vunpack.c.l.b16 %v6728
    %v6753 = vunpack.c.l.b16 %v6729
    %v6754 = vunpack.c.l.b16 %v6730
    %v6755 = vpack.c.b16 %v6748, %v6747
    %v6756 = vpack.c.b16 %v6750, %v6749
    %v6757 = vpack.c.b16 %v6752, %v6751
    %v6758 = vpack.c.b16 %v6754, %v6753
    %v6764 = vsel %vm177, %v6721, 0
    %6766 = vmatprep.subr.bf16.mxu0 0
    %6767 = vmatpush1.bf16.msra.mxu0 0
    %6768 = vmatprep.subr.bf16.mxu0 0
    %6769 = vmatpush1.bf16.msra.mxu0 0
    %6770 = vmatprep.subr.bf16.mxu0 0
    %6771 = vmatpush1.bf16.msra.mxu0 0
    %6772 = vmatprep.subr.bf16.mxu0 0
    %6773 = vmatpush1.bf16.msra.mxu0 0
    %6774 = vmatprep.subr.bf16.mxu0 0
    %6775 = vmatpush1.bf16.msra.mxu0 %v6758
    %6776 = vmatprep.subr.bf16.mxu0 0
    %6777 = vmatpush1.bf16.msra.mxu0 %v6757
    %6778 = vmatprep.subr.bf16.mxu0 0
    %6779 = vmatpush1.bf16.msra.mxu0 %v6756
    %6780 = vmatprep.subr.bf16.mxu0 0
    %6781 = vmatpush1.bf16.msra.mxu0 %v6755
    %6782 = vmatprep.subr.bf16.mxu0 0
    %6783 = vmatpush2.bf16.msra.mxu0 0
    %6784 = vmatprep.subr.bf16.mxu0 0
    %6785 = vmatpush2.bf16.msra.mxu0 0
    %6786 = vmatprep.subr.bf16.mxu0 0
    %6787 = vmatpush2.bf16.msra.mxu0 0
    %6788 = vmatprep.subr.bf16.mxu0 0
    %6789 = vmatpush2.bf16.msra.mxu0 0
    %6790 = vmatprep.subr.bf16.mxu0 0
    %6791 = vmatpush2.bf16.msra.mxu0 0
    %6792 = vmatprep.subr.bf16.mxu0 0
    %6793 = vmatpush2.bf16.msra.mxu0 0
    %6794 = vmatprep.subr.bf16.mxu0 0
    %6795 = vmatpush2.bf16.msra.mxu0 0
    %6796 = vmatprep.subr.bf16.mxu0 0
    %6797 = vmatpush2.bf16.msra.mxu0 0
    %6798 = vmatprep.mubr.bf16.mxu0 0
    %6799 = vmatmul.mubr.bf16.gmra.mxu0 %v6764
    %v6800 = vpop.f32.mrf.mxu0
    %v6801 = vadd.f32 %v6737, %v6800
    %v6802 = vpop.f32.mrf.mxu0
    %v6803 = vpop.f32.mrf.mxu0
    %v6804 = vadd.f32 %v6737, %v6803
    %v6805 = vpop.f32.mrf.mxu0
    %6806 = vdwg.mxu0
    %v6807 = vadd.f32 %v4633, %v6801
    %v6808 = vadd.f32 %v4634, %v6804
    %s6809 = scalar_lea.vmem %s15, 1
    %v6810 = vld [vmem:[%s6809] sm:$0x1]
    %s6811 = scalar_lea.vmem %s16, 1
    %v6812 = vld [vmem:[%s6811] sm:$0x1]
    %v6815 = vrot.slane %v6808, 7
    %vm6816 = vcmask 1041409
    %v6817 = vsel %vm6816, %v6815, %v6807
    %vm6819 = vcmask 517120
    %v6820 = vsel %vm6819, %v6817, 0.0
    %6821 = vadd.xlane.f32.xlu0 %v6820
    %v6822 = vpop.xlane.xlu0 %6821
    %v6823 = vmul.f32 %v6822, %v2319
    %v6825 = vrot.slane %v6823, 1
    %v6828 = vsub.f32 %v6807, %v6823
    %v6829 = vsub.f32 %v6808, %v6825
    %v6830 = vmul.f32 %v6828, %v6828
    %v6831 = vmul.f32 %v6829, %v6829
    %v6834 = vrot.slane %v6831, 7
    %v6835 = vsel %vm6816, %v6834, %v6830
    %v6837 = vsel %vm6819, %v6835, 0.0
    %6838 = vadd.xlane.f32.xlu0 %v6837
    %v6839 = vpop.xlane.xlu0 %6838
    %v6840 = vmul.f32 %v6839, %v2319
    %v6841 = vadd.f32 %v6840, 1e-05
    %v6842 = vrsqrt.pop %v6841
    %v6844 = vrot.slane %v6842, 1
    %v6847 = vmul.f32 %v6828, %v6842
    %v6848 = vmul.f32 %v6829, %v6844
    %v6850 = vlaneseq
    %v6851 = vshrl.u32 %v6850, 7
    %v6852 = vsub.s32 0, %v6851
    %v6853 = vrot.slane %v6810, %v6852
    %v6855 = vmul.f32 %v6847, %v6853
    %v6856 = vmul.f32 %v6848, %v6853
    %v6858 = vlaneseq
    %v6859 = vshrl.u32 %v6858, 7
    %v6860 = vsub.s32 0, %v6859
    %v6861 = vrot.slane %v6812, %v6860
    %v6863 = vadd.f32 %v6855, %v6861
    %v6864 = vadd.f32 %v6856, %v6861
    %v6865 = vpack.c.bf16 %v6863, %v6863
    %v6866 = vpack.c.bf16 %v6864, %v6864
    %s6867 = scalar_lea.vmem %s11, 512
    %v6868 = vld [vmem:[%s6867] sm:$0xff]
    %v6869 = vld [vmem:[%s6867 + $0x8] sm:$0xff]
    %v6870 = vld [vmem:[%s6867 + $0x40] sm:$0xff]
    %v6871 = vld [vmem:[%s6867 + $0x48] sm:$0xff]
    %v6872 = vld [vmem:[%s6867 + $0x80] sm:$0xff]
    %v6873 = vld [vmem:[%s6867 + $0x88] sm:$0xff]
    %v6874 = vld [vmem:[%s6867 + $0xc0] sm:$0xff]
    %v6875 = vld [vmem:[%s6867 + $0xc8] sm:$0xff]
    %v6876 = vld [vmem:[%s6867 + $0x100] sm:$0xff]
    %v6877 = vld [vmem:[%s6867 + $0x108] sm:$0xff]
    %v6878 = vld [vmem:[%s6867 + $0x140] sm:$0xff]
    %v6879 = vld [vmem:[%s6867 + $0x148] sm:$0xff]
    %v6880 = vld [vmem:[%s6867 + $0x180] sm:$0xff]
    %v6881 = vld [vmem:[%s6867 + $0x188] sm:$0xff]
    %v6882 = vld [vmem:[%s6867 + $0x1c0] sm:$0xff]
    %v6883 = vld [vmem:[%s6867 + $0x1c8] sm:$0xff]
    %s6884 = scalar_lea.vmem %s12, 16
    %v6885 = vld [vmem:[%s6884] sm:$0xf]
    %v6887 = vlaneseq
    %v6888 = vshrl.u32 %v6887, 7
    %v6889 = vsub.s32 0, %v6888
    %v6890 = vrot.slane %v6885, %v6889
    %v6891 = vlaneseq
    %v6892 = vshrl.u32 %v6891, 7
    %v6893 = vsub.s32 1, %v6892
    %v6894 = vrot.slane %v6885, %v6893
    %v6895 = vlaneseq
    %v6896 = vshrl.u32 %v6895, 7
    %v6897 = vsub.s32 2, %v6896
    %v6898 = vrot.slane %v6885, %v6897
    %v6899 = vlaneseq
    %v6900 = vshrl.u32 %v6899, 7
    %v6901 = vsub.s32 3, %v6900
    %v6902 = vrot.slane %v6885, %v6901
    %v6909 = vunpack.c.l.b16 %v6865
    %v6910 = vunpack.c.l.b16 %v6866
    %v6911 = vrot.slane %v6910, 7
    %v6912 = vsel %vm6816, %v6911, %v6909
    %v6913 = vpack.c.b16 %v6912, %v6912
    %v6930 = vunpack.c.l.b16 %v6868
    %v6931 = vunpack.c.h.b16 %v6868
    %v6932 = vunpack.c.l.b16 %v6869
    %v6933 = vunpack.c.h.b16 %v6869
    %v6934 = vunpack.c.l.b16 %v6870
    %v6935 = vunpack.c.h.b16 %v6870
    %v6936 = vunpack.c.l.b16 %v6871
    %v6937 = vunpack.c.h.b16 %v6871
    %v6938 = vunpack.c.l.b16 %v6872
    %v6939 = vunpack.c.h.b16 %v6872
    %v6940 = vunpack.c.l.b16 %v6873
    %v6941 = vunpack.c.h.b16 %v6873
    %v6942 = vunpack.c.l.b16 %v6874
    %v6943 = vunpack.c.h.b16 %v6874
    %v6944 = vunpack.c.l.b16 %v6875
    %v6945 = vunpack.c.h.b16 %v6875
    %v6946 = vunpack.c.l.b16 %v6876
    %v6947 = vunpack.c.h.b16 %v6876
    %v6948 = vunpack.c.l.b16 %v6877
    %v6949 = vunpack.c.h.b16 %v6877
    %v6950 = vunpack.c.l.b16 %v6878
    %v6951 = vunpack.c.h.b16 %v6878
    %v6952 = vunpack.c.l.b16 %v6879
    %v6953 = vunpack.c.h.b16 %v6879
    %v6954 = vunpack.c.l.b16 %v6880
    %v6955 = vunpack.c.h.b16 %v6880
    %v6956 = vunpack.c.l.b16 %v6881
    %v6957 = vunpack.c.h.b16 %v6881
    %v6958 = vunpack.c.l.b16 %v6882
    %v6959 = vunpack.c.h.b16 %v6882
    %v6960 = vunpack.c.l.b16 %v6883
    %v6961 = vunpack.c.h.b16 %v6883
    %v6962 = vpack.c.b16 %v6934, %v6930
    %v6963 = vpack.c.b16 %v6935, %v6931
    %v6964 = vpack.c.b16 %v6936, %v6932
    %v6965 = vpack.c.b16 %v6937, %v6933
    %v6966 = vpack.c.b16 %v6942, %v6938
    %v6967 = vpack.c.b16 %v6943, %v6939
    %v6968 = vpack.c.b16 %v6944, %v6940
    %v6969 = vpack.c.b16 %v6945, %v6941
    %v6970 = vpack.c.b16 %v6950, %v6946
    %v6971 = vpack.c.b16 %v6951, %v6947
    %v6972 = vpack.c.b16 %v6952, %v6948
    %v6973 = vpack.c.b16 %v6953, %v6949
    %v6974 = vpack.c.b16 %v6958, %v6954
    %v6975 = vpack.c.b16 %v6959, %v6955
    %v6976 = vpack.c.b16 %v6960, %v6956
    %v6977 = vpack.c.b16 %v6961, %v6957
    %v6995 = vsel %vm177, %v6913, 0
    %6997 = vmatprep.subr.bf16.mxu0 0
    %6998 = vmatpush1.bf16.msra.mxu0 0
    %6999 = vmatprep.subr.bf16.mxu0 0
    %7000 = vmatpush1.bf16.msra.mxu0 0
    %7001 = vmatprep.subr.bf16.mxu0 0
    %7002 = vmatpush1.bf16.msra.mxu0 0
    %7003 = vmatprep.subr.bf16.mxu0 0
    %7004 = vmatpush1.bf16.msra.mxu0 0
    %7005 = vmatprep.subr.bf16.mxu0 %v6975
    %7006 = vmatpush1.bf16.msra.mxu0 %v6974
    %7007 = vmatprep.subr.bf16.mxu0 %v6971
    %7008 = vmatpush1.bf16.msra.mxu0 %v6970
    %7009 = vmatprep.subr.bf16.mxu0 %v6967
    %7010 = vmatpush1.bf16.msra.mxu0 %v6966
    %7011 = vmatprep.subr.bf16.mxu0 %v6963
    %7012 = vmatpush1.bf16.msra.mxu0 %v6962
    %7013 = vmatprep.subr.bf16.mxu0 0
    %7014 = vmatpush2.bf16.msra.mxu0 0
    %7015 = vmatprep.subr.bf16.mxu0 0
    %7016 = vmatpush2.bf16.msra.mxu0 0
    %7017 = vmatprep.subr.bf16.mxu0 0
    %7018 = vmatpush2.bf16.msra.mxu0 0
    %7019 = vmatprep.subr.bf16.mxu0 0
    %7020 = vmatpush2.bf16.msra.mxu0 0
    %7021 = vmatprep.subr.bf16.mxu0 0
    %7022 = vmatpush2.bf16.msra.mxu0 0
    %7023 = vmatprep.subr.bf16.mxu0 0
    %7024 = vmatpush2.bf16.msra.mxu0 0
    %7025 = vmatprep.subr.bf16.mxu0 0
    %7026 = vmatpush2.bf16.msra.mxu0 0
    %7027 = vmatprep.subr.bf16.mxu0 0
    %7028 = vmatpush2.bf16.msra.mxu0 0
    %7029 = vmatprep.mubr.bf16.mxu0 0
    %7030 = vmatmul.mubr.bf16.gmra.mxu0 %v6995
    %v7031 = vpop.f32.mrf.mxu0
    %v7032 = vadd.f32 %v6890, %v7031
    %v7033 = vpop.f32.mrf.mxu0
    %v7034 = vadd.f32 %v6894, %v7033
    %v7035 = vpop.f32.mrf.mxu0
    %v7036 = vpop.f32.mrf.mxu0
    %7037 = vdwg.mxu0
    %7038 = vmatprep.subr.bf16.mxu0 0
    %7039 = vmatpush1.bf16.msra.mxu0 0
    %7040 = vmatprep.subr.bf16.mxu0 0
    %7041 = vmatpush1.bf16.msra.mxu0 0
    %7042 = vmatprep.subr.bf16.mxu0 0
    %7043 = vmatpush1.bf16.msra.mxu0 0
    %7044 = vmatprep.subr.bf16.mxu0 0
    %7045 = vmatpush1.bf16.msra.mxu0 0
    %7046 = vmatprep.subr.bf16.mxu0 %v6977
    %7047 = vmatpush1.bf16.msra.mxu0 %v6976
    %7048 = vmatprep.subr.bf16.mxu0 %v6973
    %7049 = vmatpush1.bf16.msra.mxu0 %v6972
    %7050 = vmatprep.subr.bf16.mxu0 %v6969
    %7051 = vmatpush1.bf16.msra.mxu0 %v6968
    %7052 = vmatprep.subr.bf16.mxu0 %v6965
    %7053 = vmatpush1.bf16.msra.mxu0 %v6964
    %7054 = vmatprep.subr.bf16.mxu0 0
    %7055 = vmatpush2.bf16.msra.mxu0 0
    %7056 = vmatprep.subr.bf16.mxu0 0
    %7057 = vmatpush2.bf16.msra.mxu0 0
    %7058 = vmatprep.subr.bf16.mxu0 0
    %7059 = vmatpush2.bf16.msra.mxu0 0
    %7060 = vmatprep.subr.bf16.mxu0 0
    %7061 = vmatpush2.bf16.msra.mxu0 0
    %7062 = vmatprep.subr.bf16.mxu0 0
    %7063 = vmatpush2.bf16.msra.mxu0 0
    %7064 = vmatprep.subr.bf16.mxu0 0
    %7065 = vmatpush2.bf16.msra.mxu0 0
    %7066 = vmatprep.subr.bf16.mxu0 0
    %7067 = vmatpush2.bf16.msra.mxu0 0
    %7068 = vmatprep.subr.bf16.mxu0 0
    %7069 = vmatpush2.bf16.msra.mxu0 0
    %7070 = vmatprep.mubr.bf16.mxu0 0
    %7071 = vmatmul.mubr.bf16.gmra.mxu0 %v6995
    %v7072 = vpop.f32.mrf.mxu0
    %v7073 = vadd.f32 %v6898, %v7072
    %v7074 = vpop.f32.mrf.mxu0
    %v7075 = vadd.f32 %v6902, %v7074
    %v7076 = vpop.f32.mrf.mxu0
    %v7077 = vpop.f32.mrf.mxu0
    %7078 = vdwg.mxu0
    %v7079 = vmax.f32 %v7032, 0.0
    %v7080 = vmax.f32 %v7034, 0.0
    %v7081 = vmax.f32 %v7073, 0.0
    %v7082 = vmax.f32 %v7075, 0.0
    %v7083 = vpack.c.bf16 %v7079, %v7079
    %v7084 = vpack.c.bf16 %v7080, %v7080
    %v7085 = vpack.c.bf16 %v7081, %v7081
    %v7086 = vpack.c.bf16 %v7082, %v7082
    %s7087 = scalar_lea.vmem %s13, 1024
    %v7088 = vld [vmem:[%s7087] sm:$0xf]
    %v7089 = vld [vmem:[%s7087 + $0x4] sm:$0xf]
    %v7090 = vld [vmem:[%s7087 + $0x8] sm:$0xf]
    %v7091 = vld [vmem:[%s7087 + $0xc] sm:$0xf]
    %v7092 = vld [vmem:[%s7087 + $0x10] sm:$0xf]
    %v7093 = vld [vmem:[%s7087 + $0x14] sm:$0xf]
    %v7094 = vld [vmem:[%s7087 + $0x18] sm:$0xf]
    %v7095 = vld [vmem:[%s7087 + $0x1c] sm:$0xf]
    %v7096 = vld [vmem:[%s7087 + $0x20] sm:$0xf]
    %v7097 = vld [vmem:[%s7087 + $0x24] sm:$0xf]
    %v7098 = vld [vmem:[%s7087 + $0x28] sm:$0xf]
    %v7099 = vld [vmem:[%s7087 + $0x2c] sm:$0xf]
    %v7100 = vld [vmem:[%s7087 + $0x30] sm:$0xf]
    %v7101 = vld [vmem:[%s7087 + $0x34] sm:$0xf]
    %v7102 = vld [vmem:[%s7087 + $0x38] sm:$0xf]
    %v7103 = vld [vmem:[%s7087 + $0x3c] sm:$0xf]
    %v7104 = vld [vmem:[%s7087 + $0x40] sm:$0xf]
    %v7105 = vld [vmem:[%s7087 + $0x44] sm:$0xf]
    %v7106 = vld [vmem:[%s7087 + $0x48] sm:$0xf]
    %v7107 = vld [vmem:[%s7087 + $0x4c] sm:$0xf]
    %v7108 = vld [vmem:[%s7087 + $0x50] sm:$0xf]
    %v7109 = vld [vmem:[%s7087 + $0x54] sm:$0xf]
    %v7110 = vld [vmem:[%s7087 + $0x58] sm:$0xf]
    %v7111 = vld [vmem:[%s7087 + $0x5c] sm:$0xf]
    %v7112 = vld [vmem:[%s7087 + $0x60] sm:$0xf]
    %v7113 = vld [vmem:[%s7087 + $0x64] sm:$0xf]
    %v7114 = vld [vmem:[%s7087 + $0x68] sm:$0xf]
    %v7115 = vld [vmem:[%s7087 + $0x6c] sm:$0xf]
    %v7116 = vld [vmem:[%s7087 + $0x70] sm:$0xf]
    %v7117 = vld [vmem:[%s7087 + $0x74] sm:$0xf]
    %v7118 = vld [vmem:[%s7087 + $0x78] sm:$0xf]
    %v7119 = vld [vmem:[%s7087 + $0x7c] sm:$0xf]
    %v7120 = vld [vmem:[%s7087 + $0x80] sm:$0xf]
    %v7121 = vld [vmem:[%s7087 + $0x84] sm:$0xf]
    %v7122 = vld [vmem:[%s7087 + $0x88] sm:$0xf]
    %v7123 = vld [vmem:[%s7087 + $0x8c] sm:$0xf]
    %v7124 = vld [vmem:[%s7087 + $0x90] sm:$0xf]
    %v7125 = vld [vmem:[%s7087 + $0x94] sm:$0xf]
    %v7126 = vld [vmem:[%s7087 + $0x98] sm:$0xf]
    %v7127 = vld [vmem:[%s7087 + $0x9c] sm:$0xf]
    %v7128 = vld [vmem:[%s7087 + $0xa0] sm:$0xf]
    %v7129 = vld [vmem:[%s7087 + $0xa4] sm:$0xf]
    %v7130 = vld [vmem:[%s7087 + $0xa8] sm:$0xf]
    %v7131 = vld [vmem:[%s7087 + $0xac] sm:$0xf]
    %v7132 = vld [vmem:[%s7087 + $0xb0] sm:$0xf]
    %v7133 = vld [vmem:[%s7087 + $0xb4] sm:$0xf]
    %v7134 = vld [vmem:[%s7087 + $0xb8] sm:$0xf]
    %v7135 = vld [vmem:[%s7087 + $0xbc] sm:$0xf]
    %v7136 = vld [vmem:[%s7087 + $0xc0] sm:$0xf]
    %v7137 = vld [vmem:[%s7087 + $0xc4] sm:$0xf]
    %v7138 = vld [vmem:[%s7087 + $0xc8] sm:$0xf]
    %v7139 = vld [vmem:[%s7087 + $0xcc] sm:$0xf]
    %v7140 = vld [vmem:[%s7087 + $0xd0] sm:$0xf]
    %v7141 = vld [vmem:[%s7087 + $0xd4] sm:$0xf]
    %v7142 = vld [vmem:[%s7087 + $0xd8] sm:$0xf]
    %v7143 = vld [vmem:[%s7087 + $0xdc] sm:$0xf]
    %v7144 = vld [vmem:[%s7087 + $0xe0] sm:$0xf]
    %v7145 = vld [vmem:[%s7087 + $0xe4] sm:$0xf]
    %v7146 = vld [vmem:[%s7087 + $0xe8] sm:$0xf]
    %v7147 = vld [vmem:[%s7087 + $0xec] sm:$0xf]
    %v7148 = vld [vmem:[%s7087 + $0xf0] sm:$0xf]
    %v7149 = vld [vmem:[%s7087 + $0xf4] sm:$0xf]
    %v7150 = vld [vmem:[%s7087 + $0xf8] sm:$0xf]
    %v7151 = vld [vmem:[%s7087 + $0xfc] sm:$0xf]
    %v7152 = vld [vmem:[%s6867 + $0x10] sm:$0xff]
    %v7153 = vld [vmem:[%s6867 + $0x18] sm:$0xff]
    %v7154 = vld [vmem:[%s6867 + $0x50] sm:$0xff]
    %v7155 = vld [vmem:[%s6867 + $0x58] sm:$0xff]
    %v7156 = vld [vmem:[%s6867 + $0x90] sm:$0xff]
    %v7157 = vld [vmem:[%s6867 + $0x98] sm:$0xff]
    %v7158 = vld [vmem:[%s6867 + $0xd0] sm:$0xff]
    %v7159 = vld [vmem:[%s6867 + $0xd8] sm:$0xff]
    %v7160 = vld [vmem:[%s6867 + $0x110] sm:$0xff]
    %v7161 = vld [vmem:[%s6867 + $0x118] sm:$0xff]
    %v7162 = vld [vmem:[%s6867 + $0x150] sm:$0xff]
    %v7163 = vld [vmem:[%s6867 + $0x158] sm:$0xff]
    %v7164 = vld [vmem:[%s6867 + $0x190] sm:$0xff]
    %v7165 = vld [vmem:[%s6867 + $0x198] sm:$0xff]
    %v7166 = vld [vmem:[%s6867 + $0x1d0] sm:$0xff]
    %v7167 = vld [vmem:[%s6867 + $0x1d8] sm:$0xff]
    %v7168 = vld [vmem:[%s6884 + $0x4] sm:$0xf]
    %v7170 = vlaneseq
    %v7171 = vshrl.u32 %v7170, 7
    %v7172 = vsub.s32 0, %v7171
    %v7173 = vrot.slane %v7168, %v7172
    %v7174 = vlaneseq
    %v7175 = vshrl.u32 %v7174, 7
    %v7176 = vsub.s32 1, %v7175
    %v7177 = vrot.slane %v7168, %v7176
    %v7178 = vlaneseq
    %v7179 = vshrl.u32 %v7178, 7
    %v7180 = vsub.s32 2, %v7179
    %v7181 = vrot.slane %v7168, %v7180
    %v7182 = vlaneseq
    %v7183 = vshrl.u32 %v7182, 7
    %v7184 = vsub.s32 3, %v7183
    %v7185 = vrot.slane %v7168, %v7184
    %v7206 = vunpack.c.l.b16 %v7152
    %v7207 = vunpack.c.h.b16 %v7152
    %v7208 = vunpack.c.l.b16 %v7153
    %v7209 = vunpack.c.h.b16 %v7153
    %v7210 = vunpack.c.l.b16 %v7154
    %v7211 = vunpack.c.h.b16 %v7154
    %v7212 = vunpack.c.l.b16 %v7155
    %v7213 = vunpack.c.h.b16 %v7155
    %v7214 = vunpack.c.l.b16 %v7156
    %v7215 = vunpack.c.h.b16 %v7156
    %v7216 = vunpack.c.l.b16 %v7157
    %v7217 = vunpack.c.h.b16 %v7157
    %v7218 = vunpack.c.l.b16 %v7158
    %v7219 = vunpack.c.h.b16 %v7158
    %v7220 = vunpack.c.l.b16 %v7159
    %v7221 = vunpack.c.h.b16 %v7159
    %v7222 = vunpack.c.l.b16 %v7160
    %v7223 = vunpack.c.h.b16 %v7160
    %v7224 = vunpack.c.l.b16 %v7161
    %v7225 = vunpack.c.h.b16 %v7161
    %v7226 = vunpack.c.l.b16 %v7162
    %v7227 = vunpack.c.h.b16 %v7162
    %v7228 = vunpack.c.l.b16 %v7163
    %v7229 = vunpack.c.h.b16 %v7163
    %v7230 = vunpack.c.l.b16 %v7164
    %v7231 = vunpack.c.h.b16 %v7164
    %v7232 = vunpack.c.l.b16 %v7165
    %v7233 = vunpack.c.h.b16 %v7165
    %v7234 = vunpack.c.l.b16 %v7166
    %v7235 = vunpack.c.h.b16 %v7166
    %v7236 = vunpack.c.l.b16 %v7167
    %v7237 = vunpack.c.h.b16 %v7167
    %v7238 = vpack.c.b16 %v7210, %v7206
    %v7239 = vpack.c.b16 %v7211, %v7207
    %v7240 = vpack.c.b16 %v7212, %v7208
    %v7241 = vpack.c.b16 %v7213, %v7209
    %v7242 = vpack.c.b16 %v7218, %v7214
    %v7243 = vpack.c.b16 %v7219, %v7215
    %v7244 = vpack.c.b16 %v7220, %v7216
    %v7245 = vpack.c.b16 %v7221, %v7217
    %v7246 = vpack.c.b16 %v7226, %v7222
    %v7247 = vpack.c.b16 %v7227, %v7223
    %v7248 = vpack.c.b16 %v7228, %v7224
    %v7249 = vpack.c.b16 %v7229, %v7225
    %v7250 = vpack.c.b16 %v7234, %v7230
    %v7251 = vpack.c.b16 %v7235, %v7231
    %v7252 = vpack.c.b16 %v7236, %v7232
    %v7253 = vpack.c.b16 %v7237, %v7233
    %7270 = vmatprep.subr.bf16.mxu0 0
    %7271 = vmatpush1.bf16.msra.mxu0 0
    %7272 = vmatprep.subr.bf16.mxu0 0
    %7273 = vmatpush1.bf16.msra.mxu0 0
    %7274 = vmatprep.subr.bf16.mxu0 0
    %7275 = vmatpush1.bf16.msra.mxu0 0
    %7276 = vmatprep.subr.bf16.mxu0 0
    %7277 = vmatpush1.bf16.msra.mxu0 0
    %7278 = vmatprep.subr.bf16.mxu0 %v7251
    %7279 = vmatpush1.bf16.msra.mxu0 %v7250
    %7280 = vmatprep.subr.bf16.mxu0 %v7247
    %7281 = vmatpush1.bf16.msra.mxu0 %v7246
    %7282 = vmatprep.subr.bf16.mxu0 %v7243
    %7283 = vmatpush1.bf16.msra.mxu0 %v7242
    %7284 = vmatprep.subr.bf16.mxu0 %v7239
    %7285 = vmatpush1.bf16.msra.mxu0 %v7238
    %7286 = vmatprep.subr.bf16.mxu0 0
    %7287 = vmatpush2.bf16.msra.mxu0 0
    %7288 = vmatprep.subr.bf16.mxu0 0
    %7289 = vmatpush2.bf16.msra.mxu0 0
    %7290 = vmatprep.subr.bf16.mxu0 0
    %7291 = vmatpush2.bf16.msra.mxu0 0
    %7292 = vmatprep.subr.bf16.mxu0 0
    %7293 = vmatpush2.bf16.msra.mxu0 0
    %7294 = vmatprep.subr.bf16.mxu0 0
    %7295 = vmatpush2.bf16.msra.mxu0 0
    %7296 = vmatprep.subr.bf16.mxu0 0
    %7297 = vmatpush2.bf16.msra.mxu0 0
    %7298 = vmatprep.subr.bf16.mxu0 0
    %7299 = vmatpush2.bf16.msra.mxu0 0
    %7300 = vmatprep.subr.bf16.mxu0 0
    %7301 = vmatpush2.bf16.msra.mxu0 0
    %7302 = vmatprep.mubr.bf16.mxu0 0
    %7303 = vmatmul.mubr.bf16.gmra.mxu0 %v6995
    %v7304 = vpop.f32.mrf.mxu0
    %v7305 = vadd.f32 %v7173, %v7304
    %v7306 = vpop.f32.mrf.mxu0
    %v7307 = vadd.f32 %v7177, %v7306
    %v7308 = vpop.f32.mrf.mxu0
    %v7309 = vpop.f32.mrf.mxu0
    %7310 = vdwg.mxu0
    %7311 = vmatprep.subr.bf16.mxu0 0
    %7312 = vmatpush1.bf16.msra.mxu0 0
    %7313 = vmatprep.subr.bf16.mxu0 0
    %7314 = vmatpush1.bf16.msra.mxu0 0
    %7315 = vmatprep.subr.bf16.mxu0 0
    %7316 = vmatpush1.bf16.msra.mxu0 0
    %7317 = vmatprep.subr.bf16.mxu0 0
    %7318 = vmatpush1.bf16.msra.mxu0 0
    %7319 = vmatprep.subr.bf16.mxu0 %v7253
    %7320 = vmatpush1.bf16.msra.mxu0 %v7252
    %7321 = vmatprep.subr.bf16.mxu0 %v7249
    %7322 = vmatpush1.bf16.msra.mxu0 %v7248
    %7323 = vmatprep.subr.bf16.mxu0 %v7245
    %7324 = vmatpush1.bf16.msra.mxu0 %v7244
    %7325 = vmatprep.subr.bf16.mxu0 %v7241
    %7326 = vmatpush1.bf16.msra.mxu0 %v7240
    %7327 = vmatprep.subr.bf16.mxu0 0
    %7328 = vmatpush2.bf16.msra.mxu0 0
    %7329 = vmatprep.subr.bf16.mxu0 0
    %7330 = vmatpush2.bf16.msra.mxu0 0
    %7331 = vmatprep.subr.bf16.mxu0 0
    %7332 = vmatpush2.bf16.msra.mxu0 0
    %7333 = vmatprep.subr.bf16.mxu0 0
    %7334 = vmatpush2.bf16.msra.mxu0 0
    %7335 = vmatprep.subr.bf16.mxu0 0
    %7336 = vmatpush2.bf16.msra.mxu0 0
    %7337 = vmatprep.subr.bf16.mxu0 0
    %7338 = vmatpush2.bf16.msra.mxu0 0
    %7339 = vmatprep.subr.bf16.mxu0 0
    %7340 = vmatpush2.bf16.msra.mxu0 0
    %7341 = vmatprep.subr.bf16.mxu0 0
    %7342 = vmatpush2.bf16.msra.mxu0 0
    %7343 = vmatprep.mubr.bf16.mxu0 0
    %7344 = vmatmul.mubr.bf16.gmra.mxu0 %v6995
    %v7345 = vpop.f32.mrf.mxu0
    %v7346 = vadd.f32 %v7181, %v7345
    %v7347 = vpop.f32.mrf.mxu0
    %v7348 = vadd.f32 %v7185, %v7347
    %v7349 = vpop.f32.mrf.mxu0
    %v7350 = vpop.f32.mrf.mxu0
    %7351 = vdwg.mxu0
    %v7352 = vmax.f32 %v7305, 0.0
    %v7353 = vmax.f32 %v7307, 0.0
    %v7354 = vmax.f32 %v7346, 0.0
    %v7355 = vmax.f32 %v7348, 0.0
    %v7356 = vpack.c.bf16 %v7352, %v7352
    %v7357 = vpack.c.bf16 %v7353, %v7353
    %v7358 = vpack.c.bf16 %v7354, %v7354
    %v7359 = vpack.c.bf16 %v7355, %v7355
    %v7360 = vld [vmem:[%s7087 + $0x100] sm:$0xf]
    %v7361 = vld [vmem:[%s7087 + $0x104] sm:$0xf]
    %v7362 = vld [vmem:[%s7087 + $0x108] sm:$0xf]
    %v7363 = vld [vmem:[%s7087 + $0x10c] sm:$0xf]
    %v7364 = vld [vmem:[%s7087 + $0x110] sm:$0xf]
    %v7365 = vld [vmem:[%s7087 + $0x114] sm:$0xf]
    %v7366 = vld [vmem:[%s7087 + $0x118] sm:$0xf]
    %v7367 = vld [vmem:[%s7087 + $0x11c] sm:$0xf]
    %v7368 = vld [vmem:[%s7087 + $0x120] sm:$0xf]
    %v7369 = vld [vmem:[%s7087 + $0x124] sm:$0xf]
    %v7370 = vld [vmem:[%s7087 + $0x128] sm:$0xf]
    %v7371 = vld [vmem:[%s7087 + $0x12c] sm:$0xf]
    %v7372 = vld [vmem:[%s7087 + $0x130] sm:$0xf]
    %v7373 = vld [vmem:[%s7087 + $0x134] sm:$0xf]
    %v7374 = vld [vmem:[%s7087 + $0x138] sm:$0xf]
    %v7375 = vld [vmem:[%s7087 + $0x13c] sm:$0xf]
    %v7376 = vld [vmem:[%s7087 + $0x140] sm:$0xf]
    %v7377 = vld [vmem:[%s7087 + $0x144] sm:$0xf]
    %v7378 = vld [vmem:[%s7087 + $0x148] sm:$0xf]
    %v7379 = vld [vmem:[%s7087 + $0x14c] sm:$0xf]
    %v7380 = vld [vmem:[%s7087 + $0x150] sm:$0xf]
    %v7381 = vld [vmem:[%s7087 + $0x154] sm:$0xf]
    %v7382 = vld [vmem:[%s7087 + $0x158] sm:$0xf]
    %v7383 = vld [vmem:[%s7087 + $0x15c] sm:$0xf]
    %v7384 = vld [vmem:[%s7087 + $0x160] sm:$0xf]
    %v7385 = vld [vmem:[%s7087 + $0x164] sm:$0xf]
    %v7386 = vld [vmem:[%s7087 + $0x168] sm:$0xf]
    %v7387 = vld [vmem:[%s7087 + $0x16c] sm:$0xf]
    %v7388 = vld [vmem:[%s7087 + $0x170] sm:$0xf]
    %v7389 = vld [vmem:[%s7087 + $0x174] sm:$0xf]
    %v7390 = vld [vmem:[%s7087 + $0x178] sm:$0xf]
    %v7391 = vld [vmem:[%s7087 + $0x17c] sm:$0xf]
    %v7392 = vld [vmem:[%s7087 + $0x180] sm:$0xf]
    %v7393 = vld [vmem:[%s7087 + $0x184] sm:$0xf]
    %v7394 = vld [vmem:[%s7087 + $0x188] sm:$0xf]
    %v7395 = vld [vmem:[%s7087 + $0x18c] sm:$0xf]
    %v7396 = vld [vmem:[%s7087 + $0x190] sm:$0xf]
    %v7397 = vld [vmem:[%s7087 + $0x194] sm:$0xf]
    %v7398 = vld [vmem:[%s7087 + $0x198] sm:$0xf]
    %v7399 = vld [vmem:[%s7087 + $0x19c] sm:$0xf]
    %v7400 = vld [vmem:[%s7087 + $0x1a0] sm:$0xf]
    %v7401 = vld [vmem:[%s7087 + $0x1a4] sm:$0xf]
    %v7402 = vld [vmem:[%s7087 + $0x1a8] sm:$0xf]
    %v7403 = vld [vmem:[%s7087 + $0x1ac] sm:$0xf]
    %v7404 = vld [vmem:[%s7087 + $0x1b0] sm:$0xf]
    %v7405 = vld [vmem:[%s7087 + $0x1b4] sm:$0xf]
    %v7406 = vld [vmem:[%s7087 + $0x1b8] sm:$0xf]
    %v7407 = vld [vmem:[%s7087 + $0x1bc] sm:$0xf]
    %v7408 = vld [vmem:[%s7087 + $0x1c0] sm:$0xf]
    %v7409 = vld [vmem:[%s7087 + $0x1c4] sm:$0xf]
    %v7410 = vld [vmem:[%s7087 + $0x1c8] sm:$0xf]
    %v7411 = vld [vmem:[%s7087 + $0x1cc] sm:$0xf]
    %v7412 = vld [vmem:[%s7087 + $0x1d0] sm:$0xf]
    %v7413 = vld [vmem:[%s7087 + $0x1d4] sm:$0xf]
    %v7414 = vld [vmem:[%s7087 + $0x1d8] sm:$0xf]
    %v7415 = vld [vmem:[%s7087 + $0x1dc] sm:$0xf]
    %v7416 = vld [vmem:[%s7087 + $0x1e0] sm:$0xf]
    %v7417 = vld [vmem:[%s7087 + $0x1e4] sm:$0xf]
    %v7418 = vld [vmem:[%s7087 + $0x1e8] sm:$0xf]
    %v7419 = vld [vmem:[%s7087 + $0x1ec] sm:$0xf]
    %v7420 = vld [vmem:[%s7087 + $0x1f0] sm:$0xf]
    %v7421 = vld [vmem:[%s7087 + $0x1f4] sm:$0xf]
    %v7422 = vld [vmem:[%s7087 + $0x1f8] sm:$0xf]
    %v7423 = vld [vmem:[%s7087 + $0x1fc] sm:$0xf]
    %v7488 = vunpack.c.l.b16 %v7360
    %v7489 = vunpack.c.l.b16 %v7361
    %v7490 = vunpack.c.l.b16 %v7362
    %v7491 = vunpack.c.l.b16 %v7363
    %v7492 = vunpack.c.l.b16 %v7364
    %v7493 = vunpack.c.l.b16 %v7365
    %v7494 = vunpack.c.l.b16 %v7366
    %v7495 = vunpack.c.l.b16 %v7367
    %v7496 = vunpack.c.l.b16 %v7368
    %v7497 = vunpack.c.l.b16 %v7369
    %v7498 = vunpack.c.l.b16 %v7370
    %v7499 = vunpack.c.l.b16 %v7371
    %v7500 = vunpack.c.l.b16 %v7372
    %v7501 = vunpack.c.l.b16 %v7373
    %v7502 = vunpack.c.l.b16 %v7374
    %v7503 = vunpack.c.l.b16 %v7375
    %v7504 = vunpack.c.l.b16 %v7376
    %v7505 = vunpack.c.l.b16 %v7377
    %v7506 = vunpack.c.l.b16 %v7378
    %v7507 = vunpack.c.l.b16 %v7379
    %v7508 = vunpack.c.l.b16 %v7380
    %v7509 = vunpack.c.l.b16 %v7381
    %v7510 = vunpack.c.l.b16 %v7382
    %v7511 = vunpack.c.l.b16 %v7383
    %v7512 = vunpack.c.l.b16 %v7384
    %v7513 = vunpack.c.l.b16 %v7385
    %v7514 = vunpack.c.l.b16 %v7386
    %v7515 = vunpack.c.l.b16 %v7387
    %v7516 = vunpack.c.l.b16 %v7388
    %v7517 = vunpack.c.l.b16 %v7389
    %v7518 = vunpack.c.l.b16 %v7390
    %v7519 = vunpack.c.l.b16 %v7391
    %v7520 = vunpack.c.l.b16 %v7392
    %v7521 = vunpack.c.l.b16 %v7393
    %v7522 = vunpack.c.l.b16 %v7394
    %v7523 = vunpack.c.l.b16 %v7395
    %v7524 = vunpack.c.l.b16 %v7396
    %v7525 = vunpack.c.l.b16 %v7397
    %v7526 = vunpack.c.l.b16 %v7398
    %v7527 = vunpack.c.l.b16 %v7399
    %v7528 = vunpack.c.l.b16 %v7400
    %v7529 = vunpack.c.l.b16 %v7401
    %v7530 = vunpack.c.l.b16 %v7402
    %v7531 = vunpack.c.l.b16 %v7403
    %v7532 = vunpack.c.l.b16 %v7404
    %v7533 = vunpack.c.l.b16 %v7405
    %v7534 = vunpack.c.l.b16 %v7406
    %v7535 = vunpack.c.l.b16 %v7407
    %v7536 = vunpack.c.l.b16 %v7408
    %v7537 = vunpack.c.l.b16 %v7409
    %v7538 = vunpack.c.l.b16 %v7410
    %v7539 = vunpack.c.l.b16 %v7411
    %v7540 = vunpack.c.l.b16 %v7412
    %v7541 = vunpack.c.l.b16 %v7413
    %v7542 = vunpack.c.l.b16 %v7414
    %v7543 = vunpack.c.l.b16 %v7415
    %v7544 = vunpack.c.l.b16 %v7416
    %v7545 = vunpack.c.l.b16 %v7417
    %v7546 = vunpack.c.l.b16 %v7418
    %v7547 = vunpack.c.l.b16 %v7419
    %v7548 = vunpack.c.l.b16 %v7420
    %v7549 = vunpack.c.l.b16 %v7421
    %v7550 = vunpack.c.l.b16 %v7422
    %v7551 = vunpack.c.l.b16 %v7423
    %v7552 = vpack.c.b16 %v7489, %v7488
    %v7553 = vpack.c.b16 %v7491, %v7490
    %v7554 = vpack.c.b16 %v7493, %v7492
    %v7555 = vpack.c.b16 %v7495, %v7494
    %v7556 = vpack.c.b16 %v7497, %v7496
    %v7557 = vpack.c.b16 %v7499, %v7498
    %v7558 = vpack.c.b16 %v7501, %v7500
    %v7559 = vpack.c.b16 %v7503, %v7502
    %v7560 = vpack.c.b16 %v7505, %v7504
    %v7561 = vpack.c.b16 %v7507, %v7506
    %v7562 = vpack.c.b16 %v7509, %v7508
    %v7563 = vpack.c.b16 %v7511, %v7510
    %v7564 = vpack.c.b16 %v7513, %v7512
    %v7565 = vpack.c.b16 %v7515, %v7514
    %v7566 = vpack.c.b16 %v7517, %v7516
    %v7567 = vpack.c.b16 %v7519, %v7518
    %v7568 = vpack.c.b16 %v7521, %v7520
    %v7569 = vpack.c.b16 %v7523, %v7522
    %v7570 = vpack.c.b16 %v7525, %v7524
    %v7571 = vpack.c.b16 %v7527, %v7526
    %v7572 = vpack.c.b16 %v7529, %v7528
    %v7573 = vpack.c.b16 %v7531, %v7530
    %v7574 = vpack.c.b16 %v7533, %v7532
    %v7575 = vpack.c.b16 %v7535, %v7534
    %v7576 = vpack.c.b16 %v7537, %v7536
    %v7577 = vpack.c.b16 %v7539, %v7538
    %v7578 = vpack.c.b16 %v7541, %v7540
    %v7579 = vpack.c.b16 %v7543, %v7542
    %v7580 = vpack.c.b16 %v7545, %v7544
    %v7581 = vpack.c.b16 %v7547, %v7546
    %v7582 = vpack.c.b16 %v7549, %v7548
    %v7583 = vpack.c.b16 %v7551, %v7550
    %7616 = vmatprep.subr.bf16.mxu0 0
    %7617 = vmatpush1.bf16.msra.mxu0 %v7559
    %7618 = vmatprep.subr.bf16.mxu0 0
    %7619 = vmatpush1.bf16.msra.mxu0 %v7558
    %7620 = vmatprep.subr.bf16.mxu0 0
    %7621 = vmatpush1.bf16.msra.mxu0 %v7557
    %7622 = vmatprep.subr.bf16.mxu0 0
    %7623 = vmatpush1.bf16.msra.mxu0 %v7556
    %7624 = vmatprep.subr.bf16.mxu0 0
    %7625 = vmatpush1.bf16.msra.mxu0 %v7555
    %7626 = vmatprep.subr.bf16.mxu0 0
    %7627 = vmatpush1.bf16.msra.mxu0 %v7554
    %7628 = vmatprep.subr.bf16.mxu0 0
    %7629 = vmatpush1.bf16.msra.mxu0 %v7553
    %7630 = vmatprep.subr.bf16.mxu0 0
    %7631 = vmatpush1.bf16.msra.mxu0 %v7552
    %7632 = vmatprep.subr.bf16.mxu0 0
    %7633 = vmatpush2.bf16.msra.mxu0 %v7567
    %7634 = vmatprep.subr.bf16.mxu0 0
    %7635 = vmatpush2.bf16.msra.mxu0 %v7566
    %7636 = vmatprep.subr.bf16.mxu0 0
    %7637 = vmatpush2.bf16.msra.mxu0 %v7565
    %7638 = vmatprep.subr.bf16.mxu0 0
    %7639 = vmatpush2.bf16.msra.mxu0 %v7564
    %7640 = vmatprep.subr.bf16.mxu0 0
    %7641 = vmatpush2.bf16.msra.mxu0 %v7563
    %7642 = vmatprep.subr.bf16.mxu0 0
    %7643 = vmatpush2.bf16.msra.mxu0 %v7562
    %7644 = vmatprep.subr.bf16.mxu0 0
    %7645 = vmatpush2.bf16.msra.mxu0 %v7561
    %7646 = vmatprep.subr.bf16.mxu0 0
    %7647 = vmatpush2.bf16.msra.mxu0 %v7560
    %7648 = vmatprep.mubr.bf16.mxu0 %v7357
    %7649 = vmatmul.mubr.bf16.gmra.mxu0 %v7356
    %v7650 = vpop.f32.mrf.mxu0
    %v7651 = vadd.f32 0.0, %v7650
    %v7652 = vpop.f32.mrf.mxu0
    %v7653 = vpop.f32.mrf.mxu0
    %v7654 = vpop.f32.mrf.mxu0
    %7655 = vdwg.mxu0
    %7656 = vmatprep.subr.bf16.mxu0 0
    %7657 = vmatpush1.bf16.msra.mxu0 %v7575
    %7658 = vmatprep.subr.bf16.mxu0 0
    %7659 = vmatpush1.bf16.msra.mxu0 %v7574
    %7660 = vmatprep.subr.bf16.mxu0 0
    %7661 = vmatpush1.bf16.msra.mxu0 %v7573
    %7662 = vmatprep.subr.bf16.mxu0 0
    %7663 = vmatpush1.bf16.msra.mxu0 %v7572
    %7664 = vmatprep.subr.bf16.mxu0 0
    %7665 = vmatpush1.bf16.msra.mxu0 %v7571
    %7666 = vmatprep.subr.bf16.mxu0 0
    %7667 = vmatpush1.bf16.msra.mxu0 %v7570
    %7668 = vmatprep.subr.bf16.mxu0 0
    %7669 = vmatpush1.bf16.msra.mxu0 %v7569
    %7670 = vmatprep.subr.bf16.mxu0 0
    %7671 = vmatpush1.bf16.msra.mxu0 %v7568
    %7672 = vmatprep.subr.bf16.mxu0 0
    %7673 = vmatpush2.bf16.msra.mxu0 %v7583
    %7674 = vmatprep.subr.bf16.mxu0 0
    %7675 = vmatpush2.bf16.msra.mxu0 %v7582
    %7676 = vmatprep.subr.bf16.mxu0 0
    %7677 = vmatpush2.bf16.msra.mxu0 %v7581
    %7678 = vmatprep.subr.bf16.mxu0 0
    %7679 = vmatpush2.bf16.msra.mxu0 %v7580
    %7680 = vmatprep.subr.bf16.mxu0 0
    %7681 = vmatpush2.bf16.msra.mxu0 %v7579
    %7682 = vmatprep.subr.bf16.mxu0 0
    %7683 = vmatpush2.bf16.msra.mxu0 %v7578
    %7684 = vmatprep.subr.bf16.mxu0 0
    %7685 = vmatpush2.bf16.msra.mxu0 %v7577
    %7686 = vmatprep.subr.bf16.mxu0 0
    %7687 = vmatpush2.bf16.msra.mxu0 %v7576
    %7688 = vmatprep.mubr.bf16.mxu0 %v7359
    %7689 = vmatmul.mubr.bf16.gmra.mxu0 %v7358
    %v7690 = vpop.f32.mrf.mxu0
    %v7691 = vadd.f32 %v7651, %v7690
    %v7692 = vpop.f32.mrf.mxu0
    %v7693 = vpop.f32.mrf.mxu0
    %v7694 = vpop.f32.mrf.mxu0
    %7695 = vdwg.mxu0
    %v7760 = vunpack.c.l.b16 %v7088
    %v7761 = vunpack.c.l.b16 %v7089
    %v7762 = vunpack.c.l.b16 %v7090
    %v7763 = vunpack.c.l.b16 %v7091
    %v7764 = vunpack.c.l.b16 %v7092
    %v7765 = vunpack.c.l.b16 %v7093
    %v7766 = vunpack.c.l.b16 %v7094
    %v7767 = vunpack.c.l.b16 %v7095
    %v7768 = vunpack.c.l.b16 %v7096
    %v7769 = vunpack.c.l.b16 %v7097
    %v7770 = vunpack.c.l.b16 %v7098
    %v7771 = vunpack.c.l.b16 %v7099
    %v7772 = vunpack.c.l.b16 %v7100
    %v7773 = vunpack.c.l.b16 %v7101
    %v7774 = vunpack.c.l.b16 %v7102
    %v7775 = vunpack.c.l.b16 %v7103
    %v7776 = vunpack.c.l.b16 %v7104
    %v7777 = vunpack.c.l.b16 %v7105
    %v7778 = vunpack.c.l.b16 %v7106
    %v7779 = vunpack.c.l.b16 %v7107
    %v7780 = vunpack.c.l.b16 %v7108
    %v7781 = vunpack.c.l.b16 %v7109
    %v7782 = vunpack.c.l.b16 %v7110
    %v7783 = vunpack.c.l.b16 %v7111
    %v7784 = vunpack.c.l.b16 %v7112
    %v7785 = vunpack.c.l.b16 %v7113
    %v7786 = vunpack.c.l.b16 %v7114
    %v7787 = vunpack.c.l.b16 %v7115
    %v7788 = vunpack.c.l.b16 %v7116
    %v7789 = vunpack.c.l.b16 %v7117
    %v7790 = vunpack.c.l.b16 %v7118
    %v7791 = vunpack.c.l.b16 %v7119
    %v7792 = vunpack.c.l.b16 %v7120
    %v7793 = vunpack.c.l.b16 %v7121
    %v7794 = vunpack.c.l.b16 %v7122
    %v7795 = vunpack.c.l.b16 %v7123
    %v7796 = vunpack.c.l.b16 %v7124
    %v7797 = vunpack.c.l.b16 %v7125
    %v7798 = vunpack.c.l.b16 %v7126
    %v7799 = vunpack.c.l.b16 %v7127
    %v7800 = vunpack.c.l.b16 %v7128
    %v7801 = vunpack.c.l.b16 %v7129
    %v7802 = vunpack.c.l.b16 %v7130
    %v7803 = vunpack.c.l.b16 %v7131
    %v7804 = vunpack.c.l.b16 %v7132
    %v7805 = vunpack.c.l.b16 %v7133
    %v7806 = vunpack.c.l.b16 %v7134
    %v7807 = vunpack.c.l.b16 %v7135
    %v7808 = vunpack.c.l.b16 %v7136
    %v7809 = vunpack.c.l.b16 %v7137
    %v7810 = vunpack.c.l.b16 %v7138
    %v7811 = vunpack.c.l.b16 %v7139
    %v7812 = vunpack.c.l.b16 %v7140
    %v7813 = vunpack.c.l.b16 %v7141
    %v7814 = vunpack.c.l.b16 %v7142
    %v7815 = vunpack.c.l.b16 %v7143
    %v7816 = vunpack.c.l.b16 %v7144
    %v7817 = vunpack.c.l.b16 %v7145
    %v7818 = vunpack.c.l.b16 %v7146
    %v7819 = vunpack.c.l.b16 %v7147
    %v7820 = vunpack.c.l.b16 %v7148
    %v7821 = vunpack.c.l.b16 %v7149
    %v7822 = vunpack.c.l.b16 %v7150
    %v7823 = vunpack.c.l.b16 %v7151
    %v7824 = vpack.c.b16 %v7761, %v7760
    %v7825 = vpack.c.b16 %v7763, %v7762
    %v7826 = vpack.c.b16 %v7765, %v7764
    %v7827 = vpack.c.b16 %v7767, %v7766
    %v7828 = vpack.c.b16 %v7769, %v7768
    %v7829 = vpack.c.b16 %v7771, %v7770
    %v7830 = vpack.c.b16 %v7773, %v7772
    %v7831 = vpack.c.b16 %v7775, %v7774
    %v7832 = vpack.c.b16 %v7777, %v7776
    %v7833 = vpack.c.b16 %v7779, %v7778
    %v7834 = vpack.c.b16 %v7781, %v7780
    %v7835 = vpack.c.b16 %v7783, %v7782
    %v7836 = vpack.c.b16 %v7785, %v7784
    %v7837 = vpack.c.b16 %v7787, %v7786
    %v7838 = vpack.c.b16 %v7789, %v7788
    %v7839 = vpack.c.b16 %v7791, %v7790
    %v7840 = vpack.c.b16 %v7793, %v7792
    %v7841 = vpack.c.b16 %v7795, %v7794
    %v7842 = vpack.c.b16 %v7797, %v7796
    %v7843 = vpack.c.b16 %v7799, %v7798
    %v7844 = vpack.c.b16 %v7801, %v7800
    %v7845 = vpack.c.b16 %v7803, %v7802
    %v7846 = vpack.c.b16 %v7805, %v7804
    %v7847 = vpack.c.b16 %v7807, %v7806
    %v7848 = vpack.c.b16 %v7809, %v7808
    %v7849 = vpack.c.b16 %v7811, %v7810
    %v7850 = vpack.c.b16 %v7813, %v7812
    %v7851 = vpack.c.b16 %v7815, %v7814
    %v7852 = vpack.c.b16 %v7817, %v7816
    %v7853 = vpack.c.b16 %v7819, %v7818
    %v7854 = vpack.c.b16 %v7821, %v7820
    %v7855 = vpack.c.b16 %v7823, %v7822
    %7888 = vmatprep.subr.bf16.mxu0 0
    %7889 = vmatpush1.bf16.msra.mxu0 %v7831
    %7890 = vmatprep.subr.bf16.mxu0 0
    %7891 = vmatpush1.bf16.msra.mxu0 %v7830
    %7892 = vmatprep.subr.bf16.mxu0 0
    %7893 = vmatpush1.bf16.msra.mxu0 %v7829
    %7894 = vmatprep.subr.bf16.mxu0 0
    %7895 = vmatpush1.bf16.msra.mxu0 %v7828
    %7896 = vmatprep.subr.bf16.mxu0 0
    %7897 = vmatpush1.bf16.msra.mxu0 %v7827
    %7898 = vmatprep.subr.bf16.mxu0 0
    %7899 = vmatpush1.bf16.msra.mxu0 %v7826
    %7900 = vmatprep.subr.bf16.mxu0 0
    %7901 = vmatpush1.bf16.msra.mxu0 %v7825
    %7902 = vmatprep.subr.bf16.mxu0 0
    %7903 = vmatpush1.bf16.msra.mxu0 %v7824
    %7904 = vmatprep.subr.bf16.mxu0 0
    %7905 = vmatpush2.bf16.msra.mxu0 %v7839
    %7906 = vmatprep.subr.bf16.mxu0 0
    %7907 = vmatpush2.bf16.msra.mxu0 %v7838
    %7908 = vmatprep.subr.bf16.mxu0 0
    %7909 = vmatpush2.bf16.msra.mxu0 %v7837
    %7910 = vmatprep.subr.bf16.mxu0 0
    %7911 = vmatpush2.bf16.msra.mxu0 %v7836
    %7912 = vmatprep.subr.bf16.mxu0 0
    %7913 = vmatpush2.bf16.msra.mxu0 %v7835
    %7914 = vmatprep.subr.bf16.mxu0 0
    %7915 = vmatpush2.bf16.msra.mxu0 %v7834
    %7916 = vmatprep.subr.bf16.mxu0 0
    %7917 = vmatpush2.bf16.msra.mxu0 %v7833
    %7918 = vmatprep.subr.bf16.mxu0 0
    %7919 = vmatpush2.bf16.msra.mxu0 %v7832
    %7920 = vmatprep.mubr.bf16.mxu0 %v7084
    %7921 = vmatmul.mubr.bf16.gmra.mxu0 %v7083
    %v7922 = vpop.f32.mrf.mxu0
    %v7923 = vadd.f32 %v7691, %v7922
    %v7924 = vpop.f32.mrf.mxu0
    %v7925 = vpop.f32.mrf.mxu0
    %v7926 = vpop.f32.mrf.mxu0
    %7927 = vdwg.mxu0
    %7928 = vmatprep.subr.bf16.mxu0 0
    %7929 = vmatpush1.bf16.msra.mxu0 %v7847
    %7930 = vmatprep.subr.bf16.mxu0 0
    %7931 = vmatpush1.bf16.msra.mxu0 %v7846
    %7932 = vmatprep.subr.bf16.mxu0 0
    %7933 = vmatpush1.bf16.msra.mxu0 %v7845
    %7934 = vmatprep.subr.bf16.mxu0 0
    %7935 = vmatpush1.bf16.msra.mxu0 %v7844
    %7936 = vmatprep.subr.bf16.mxu0 0
    %7937 = vmatpush1.bf16.msra.mxu0 %v7843
    %7938 = vmatprep.subr.bf16.mxu0 0
    %7939 = vmatpush1.bf16.msra.mxu0 %v7842
    %7940 = vmatprep.subr.bf16.mxu0 0
    %7941 = vmatpush1.bf16.msra.mxu0 %v7841
    %7942 = vmatprep.subr.bf16.mxu0 0
    %7943 = vmatpush1.bf16.msra.mxu0 %v7840
    %7944 = vmatprep.subr.bf16.mxu0 0
    %7945 = vmatpush2.bf16.msra.mxu0 %v7855
    %7946 = vmatprep.subr.bf16.mxu0 0
    %7947 = vmatpush2.bf16.msra.mxu0 %v7854
    %7948 = vmatprep.subr.bf16.mxu0 0
    %7949 = vmatpush2.bf16.msra.mxu0 %v7853
    %7950 = vmatprep.subr.bf16.mxu0 0
    %7951 = vmatpush2.bf16.msra.mxu0 %v7852
    %7952 = vmatprep.subr.bf16.mxu0 0
    %7953 = vmatpush2.bf16.msra.mxu0 %v7851
    %7954 = vmatprep.subr.bf16.mxu0 0
    %7955 = vmatpush2.bf16.msra.mxu0 %v7850
    %7956 = vmatprep.subr.bf16.mxu0 0
    %7957 = vmatpush2.bf16.msra.mxu0 %v7849
    %7958 = vmatprep.subr.bf16.mxu0 0
    %7959 = vmatpush2.bf16.msra.mxu0 %v7848
    %7960 = vmatprep.mubr.bf16.mxu0 %v7086
    %7961 = vmatmul.mubr.bf16.gmra.mxu0 %v7085
    %v7962 = vpop.f32.mrf.mxu0
    %v7963 = vadd.f32 %v7923, %v7962
    %v7964 = vpop.f32.mrf.mxu0
    %v7965 = vpop.f32.mrf.mxu0
    %v7966 = vpop.f32.mrf.mxu0
    %7967 = vdwg.mxu0
    %v7968 = vld [vmem:[%s6867 + $0x20] sm:$0xff]
    %v7969 = vld [vmem:[%s6867 + $0x28] sm:$0xff]
    %v7970 = vld [vmem:[%s6867 + $0x60] sm:$0xff]
    %v7971 = vld [vmem:[%s6867 + $0x68] sm:$0xff]
    %v7972 = vld [vmem:[%s6867 + $0xa0] sm:$0xff]
    %v7973 = vld [vmem:[%s6867 + $0xa8] sm:$0xff]
    %v7974 = vld [vmem:[%s6867 + $0xe0] sm:$0xff]
    %v7975 = vld [vmem:[%s6867 + $0xe8] sm:$0xff]
    %v7976 = vld [vmem:[%s6867 + $0x120] sm:$0xff]
    %v7977 = vld [vmem:[%s6867 + $0x128] sm:$0xff]
    %v7978 = vld [vmem:[%s6867 + $0x160] sm:$0xff]
    %v7979 = vld [vmem:[%s6867 + $0x168] sm:$0xff]
    %v7980 = vld [vmem:[%s6867 + $0x1a0] sm:$0xff]
    %v7981 = vld [vmem:[%s6867 + $0x1a8] sm:$0xff]
    %v7982 = vld [vmem:[%s6867 + $0x1e0] sm:$0xff]
    %v7983 = vld [vmem:[%s6867 + $0x1e8] sm:$0xff]
    %v7984 = vld [vmem:[%s6884 + $0x8] sm:$0xf]
    %v7986 = vlaneseq
    %v7987 = vshrl.u32 %v7986, 7
    %v7988 = vsub.s32 0, %v7987
    %v7989 = vrot.slane %v7984, %v7988
    %v7990 = vlaneseq
    %v7991 = vshrl.u32 %v7990, 7
    %v7992 = vsub.s32 1, %v7991
    %v7993 = vrot.slane %v7984, %v7992
    %v7994 = vlaneseq
    %v7995 = vshrl.u32 %v7994, 7
    %v7996 = vsub.s32 2, %v7995
    %v7997 = vrot.slane %v7984, %v7996
    %v7998 = vlaneseq
    %v7999 = vshrl.u32 %v7998, 7
    %v8000 = vsub.s32 3, %v7999
    %v8001 = vrot.slane %v7984, %v8000
    %v8022 = vunpack.c.l.b16 %v7968
    %v8023 = vunpack.c.h.b16 %v7968
    %v8024 = vunpack.c.l.b16 %v7969
    %v8025 = vunpack.c.h.b16 %v7969
    %v8026 = vunpack.c.l.b16 %v7970
    %v8027 = vunpack.c.h.b16 %v7970
    %v8028 = vunpack.c.l.b16 %v7971
    %v8029 = vunpack.c.h.b16 %v7971
    %v8030 = vunpack.c.l.b16 %v7972
    %v8031 = vunpack.c.h.b16 %v7972
    %v8032 = vunpack.c.l.b16 %v7973
    %v8033 = vunpack.c.h.b16 %v7973
    %v8034 = vunpack.c.l.b16 %v7974
    %v8035 = vunpack.c.h.b16 %v7974
    %v8036 = vunpack.c.l.b16 %v7975
    %v8037 = vunpack.c.h.b16 %v7975
    %v8038 = vunpack.c.l.b16 %v7976
    %v8039 = vunpack.c.h.b16 %v7976
    %v8040 = vunpack.c.l.b16 %v7977
    %v8041 = vunpack.c.h.b16 %v7977
    %v8042 = vunpack.c.l.b16 %v7978
    %v8043 = vunpack.c.h.b16 %v7978
    %v8044 = vunpack.c.l.b16 %v7979
    %v8045 = vunpack.c.h.b16 %v7979
    %v8046 = vunpack.c.l.b16 %v7980
    %v8047 = vunpack.c.h.b16 %v7980
    %v8048 = vunpack.c.l.b16 %v7981
    %v8049 = vunpack.c.h.b16 %v7981
    %v8050 = vunpack.c.l.b16 %v7982
    %v8051 = vunpack.c.h.b16 %v7982
    %v8052 = vunpack.c.l.b16 %v7983
    %v8053 = vunpack.c.h.b16 %v7983
    %v8054 = vpack.c.b16 %v8026, %v8022
    %v8055 = vpack.c.b16 %v8027, %v8023
    %v8056 = vpack.c.b16 %v8028, %v8024
    %v8057 = vpack.c.b16 %v8029, %v8025
    %v8058 = vpack.c.b16 %v8034, %v8030
    %v8059 = vpack.c.b16 %v8035, %v8031
    %v8060 = vpack.c.b16 %v8036, %v8032
    %v8061 = vpack.c.b16 %v8037, %v8033
    %v8062 = vpack.c.b16 %v8042, %v8038
    %v8063 = vpack.c.b16 %v8043, %v8039
    %v8064 = vpack.c.b16 %v8044, %v8040
    %v8065 = vpack.c.b16 %v8045, %v8041
    %v8066 = vpack.c.b16 %v8050, %v8046
    %v8067 = vpack.c.b16 %v8051, %v8047
    %v8068 = vpack.c.b16 %v8052, %v8048
    %v8069 = vpack.c.b16 %v8053, %v8049
    %8086 = vmatprep.subr.bf16.mxu0 0
    %8087 = vmatpush1.bf16.msra.mxu0 0
    %8088 = vmatprep.subr.bf16.mxu0 0
    %8089 = vmatpush1.bf16.msra.mxu0 0
    %8090 = vmatprep.subr.bf16.mxu0 0
    %8091 = vmatpush1.bf16.msra.mxu0 0
    %8092 = vmatprep.subr.bf16.mxu0 0
    %8093 = vmatpush1.bf16.msra.mxu0 0
    %8094 = vmatprep.subr.bf16.mxu0 %v8067
    %8095 = vmatpush1.bf16.msra.mxu0 %v8066
    %8096 = vmatprep.subr.bf16.mxu0 %v8063
    %8097 = vmatpush1.bf16.msra.mxu0 %v8062
    %8098 = vmatprep.subr.bf16.mxu0 %v8059
    %8099 = vmatpush1.bf16.msra.mxu0 %v8058
    %8100 = vmatprep.subr.bf16.mxu0 %v8055
    %8101 = vmatpush1.bf16.msra.mxu0 %v8054
    %8102 = vmatprep.subr.bf16.mxu0 0
    %8103 = vmatpush2.bf16.msra.mxu0 0
    %8104 = vmatprep.subr.bf16.mxu0 0
    %8105 = vmatpush2.bf16.msra.mxu0 0
    %8106 = vmatprep.subr.bf16.mxu0 0
    %8107 = vmatpush2.bf16.msra.mxu0 0
    %8108 = vmatprep.subr.bf16.mxu0 0
    %8109 = vmatpush2.bf16.msra.mxu0 0
    %8110 = vmatprep.subr.bf16.mxu0 0
    %8111 = vmatpush2.bf16.msra.mxu0 0
    %8112 = vmatprep.subr.bf16.mxu0 0
    %8113 = vmatpush2.bf16.msra.mxu0 0
    %8114 = vmatprep.subr.bf16.mxu0 0
    %8115 = vmatpush2.bf16.msra.mxu0 0
    %8116 = vmatprep.subr.bf16.mxu0 0
    %8117 = vmatpush2.bf16.msra.mxu0 0
    %8118 = vmatprep.mubr.bf16.mxu0 0
    %8119 = vmatmul.mubr.bf16.gmra.mxu0 %v6995
    %v8120 = vpop.f32.mrf.mxu0
    %v8121 = vadd.f32 %v7989, %v8120
    %v8122 = vpop.f32.mrf.mxu0
    %v8123 = vadd.f32 %v7993, %v8122
    %v8124 = vpop.f32.mrf.mxu0
    %v8125 = vpop.f32.mrf.mxu0
    %8126 = vdwg.mxu0
    %8127 = vmatprep.subr.bf16.mxu0 0
    %8128 = vmatpush1.bf16.msra.mxu0 0
    %8129 = vmatprep.subr.bf16.mxu0 0
    %8130 = vmatpush1.bf16.msra.mxu0 0
    %8131 = vmatprep.subr.bf16.mxu0 0
    %8132 = vmatpush1.bf16.msra.mxu0 0
    %8133 = vmatprep.subr.bf16.mxu0 0
    %8134 = vmatpush1.bf16.msra.mxu0 0
    %8135 = vmatprep.subr.bf16.mxu0 %v8069
    %8136 = vmatpush1.bf16.msra.mxu0 %v8068
    %8137 = vmatprep.subr.bf16.mxu0 %v8065
    %8138 = vmatpush1.bf16.msra.mxu0 %v8064
    %8139 = vmatprep.subr.bf16.mxu0 %v8061
    %8140 = vmatpush1.bf16.msra.mxu0 %v8060
    %8141 = vmatprep.subr.bf16.mxu0 %v8057
    %8142 = vmatpush1.bf16.msra.mxu0 %v8056
    %8143 = vmatprep.subr.bf16.mxu0 0
    %8144 = vmatpush2.bf16.msra.mxu0 0
    %8145 = vmatprep.subr.bf16.mxu0 0
    %8146 = vmatpush2.bf16.msra.mxu0 0
    %8147 = vmatprep.subr.bf16.mxu0 0
    %8148 = vmatpush2.bf16.msra.mxu0 0
    %8149 = vmatprep.subr.bf16.mxu0 0
    %8150 = vmatpush2.bf16.msra.mxu0 0
    %8151 = vmatprep.subr.bf16.mxu0 0
    %8152 = vmatpush2.bf16.msra.mxu0 0
    %8153 = vmatprep.subr.bf16.mxu0 0
    %8154 = vmatpush2.bf16.msra.mxu0 0
    %8155 = vmatprep.subr.bf16.mxu0 0
    %8156 = vmatpush2.bf16.msra.mxu0 0
    %8157 = vmatprep.subr.bf16.mxu0 0
    %8158 = vmatpush2.bf16.msra.mxu0 0
    %8159 = vmatprep.mubr.bf16.mxu0 0
    %8160 = vmatmul.mubr.bf16.gmra.mxu0 %v6995
    %v8161 = vpop.f32.mrf.mxu0
    %v8162 = vadd.f32 %v7997, %v8161
    %v8163 = vpop.f32.mrf.mxu0
    %v8164 = vadd.f32 %v8001, %v8163
    %v8165 = vpop.f32.mrf.mxu0
    %v8166 = vpop.f32.mrf.mxu0
    %8167 = vdwg.mxu0
    %v8168 = vmax.f32 %v8121, 0.0
    %v8169 = vmax.f32 %v8123, 0.0
    %v8170 = vmax.f32 %v8162, 0.0
    %v8171 = vmax.f32 %v8164, 0.0
    %v8172 = vpack.c.bf16 %v8168, %v8168
    %v8173 = vpack.c.bf16 %v8169, %v8169
    %v8174 = vpack.c.bf16 %v8170, %v8170
    %v8175 = vpack.c.bf16 %v8171, %v8171
    %v8176 = vld [vmem:[%s7087 + $0x200] sm:$0xf]
    %v8177 = vld [vmem:[%s7087 + $0x204] sm:$0xf]
    %v8178 = vld [vmem:[%s7087 + $0x208] sm:$0xf]
    %v8179 = vld [vmem:[%s7087 + $0x20c] sm:$0xf]
    %v8180 = vld [vmem:[%s7087 + $0x210] sm:$0xf]
    %v8181 = vld [vmem:[%s7087 + $0x214] sm:$0xf]
    %v8182 = vld [vmem:[%s7087 + $0x218] sm:$0xf]
    %v8183 = vld [vmem:[%s7087 + $0x21c] sm:$0xf]
    %v8184 = vld [vmem:[%s7087 + $0x220] sm:$0xf]
    %v8185 = vld [vmem:[%s7087 + $0x224] sm:$0xf]
    %v8186 = vld [vmem:[%s7087 + $0x228] sm:$0xf]
    %v8187 = vld [vmem:[%s7087 + $0x22c] sm:$0xf]
    %v8188 = vld [vmem:[%s7087 + $0x230] sm:$0xf]
    %v8189 = vld [vmem:[%s7087 + $0x234] sm:$0xf]
    %v8190 = vld [vmem:[%s7087 + $0x238] sm:$0xf]
    %v8191 = vld [vmem:[%s7087 + $0x23c] sm:$0xf]
    %v8192 = vld [vmem:[%s7087 + $0x240] sm:$0xf]
    %v8193 = vld [vmem:[%s7087 + $0x244] sm:$0xf]
    %v8194 = vld [vmem:[%s7087 + $0x248] sm:$0xf]
    %v8195 = vld [vmem:[%s7087 + $0x24c] sm:$0xf]
    %v8196 = vld [vmem:[%s7087 + $0x250] sm:$0xf]
    %v8197 = vld [vmem:[%s7087 + $0x254] sm:$0xf]
    %v8198 = vld [vmem:[%s7087 + $0x258] sm:$0xf]
    %v8199 = vld [vmem:[%s7087 + $0x25c] sm:$0xf]
    %v8200 = vld [vmem:[%s7087 + $0x260] sm:$0xf]
    %v8201 = vld [vmem:[%s7087 + $0x264] sm:$0xf]
    %v8202 = vld [vmem:[%s7087 + $0x268] sm:$0xf]
    %v8203 = vld [vmem:[%s7087 + $0x26c] sm:$0xf]
    %v8204 = vld [vmem:[%s7087 + $0x270] sm:$0xf]
    %v8205 = vld [vmem:[%s7087 + $0x274] sm:$0xf]
    %v8206 = vld [vmem:[%s7087 + $0x278] sm:$0xf]
    %v8207 = vld [vmem:[%s7087 + $0x27c] sm:$0xf]
    %v8208 = vld [vmem:[%s7087 + $0x280] sm:$0xf]
    %v8209 = vld [vmem:[%s7087 + $0x284] sm:$0xf]
    %v8210 = vld [vmem:[%s7087 + $0x288] sm:$0xf]
    %v8211 = vld [vmem:[%s7087 + $0x28c] sm:$0xf]
    %v8212 = vld [vmem:[%s7087 + $0x290] sm:$0xf]
    %v8213 = vld [vmem:[%s7087 + $0x294] sm:$0xf]
    %v8214 = vld [vmem:[%s7087 + $0x298] sm:$0xf]
    %v8215 = vld [vmem:[%s7087 + $0x29c] sm:$0xf]
    %v8216 = vld [vmem:[%s7087 + $0x2a0] sm:$0xf]
    %v8217 = vld [vmem:[%s7087 + $0x2a4] sm:$0xf]
    %v8218 = vld [vmem:[%s7087 + $0x2a8] sm:$0xf]
    %v8219 = vld [vmem:[%s7087 + $0x2ac] sm:$0xf]
    %v8220 = vld [vmem:[%s7087 + $0x2b0] sm:$0xf]
    %v8221 = vld [vmem:[%s7087 + $0x2b4] sm:$0xf]
    %v8222 = vld [vmem:[%s7087 + $0x2b8] sm:$0xf]
    %v8223 = vld [vmem:[%s7087 + $0x2bc] sm:$0xf]
    %v8224 = vld [vmem:[%s7087 + $0x2c0] sm:$0xf]
    %v8225 = vld [vmem:[%s7087 + $0x2c4] sm:$0xf]
    %v8226 = vld [vmem:[%s7087 + $0x2c8] sm:$0xf]
    %v8227 = vld [vmem:[%s7087 + $0x2cc] sm:$0xf]
    %v8228 = vld [vmem:[%s7087 + $0x2d0] sm:$0xf]
    %v8229 = vld [vmem:[%s7087 + $0x2d4] sm:$0xf]
    %v8230 = vld [vmem:[%s7087 + $0x2d8] sm:$0xf]
    %v8231 = vld [vmem:[%s7087 + $0x2dc] sm:$0xf]
    %v8232 = vld [vmem:[%s7087 + $0x2e0] sm:$0xf]
    %v8233 = vld [vmem:[%s7087 + $0x2e4] sm:$0xf]
    %v8234 = vld [vmem:[%s7087 + $0x2e8] sm:$0xf]
    %v8235 = vld [vmem:[%s7087 + $0x2ec] sm:$0xf]
    %v8236 = vld [vmem:[%s7087 + $0x2f0] sm:$0xf]
    %v8237 = vld [vmem:[%s7087 + $0x2f4] sm:$0xf]
    %v8238 = vld [vmem:[%s7087 + $0x2f8] sm:$0xf]
    %v8239 = vld [vmem:[%s7087 + $0x2fc] sm:$0xf]
    %v8304 = vunpack.c.l.b16 %v8176
    %v8305 = vunpack.c.l.b16 %v8177
    %v8306 = vunpack.c.l.b16 %v8178
    %v8307 = vunpack.c.l.b16 %v8179
    %v8308 = vunpack.c.l.b16 %v8180
    %v8309 = vunpack.c.l.b16 %v8181
    %v8310 = vunpack.c.l.b16 %v8182
    %v8311 = vunpack.c.l.b16 %v8183
    %v8312 = vunpack.c.l.b16 %v8184
    %v8313 = vunpack.c.l.b16 %v8185
    %v8314 = vunpack.c.l.b16 %v8186
    %v8315 = vunpack.c.l.b16 %v8187
    %v8316 = vunpack.c.l.b16 %v8188
    %v8317 = vunpack.c.l.b16 %v8189
    %v8318 = vunpack.c.l.b16 %v8190
    %v8319 = vunpack.c.l.b16 %v8191
    %v8320 = vunpack.c.l.b16 %v8192
    %v8321 = vunpack.c.l.b16 %v8193
    %v8322 = vunpack.c.l.b16 %v8194
    %v8323 = vunpack.c.l.b16 %v8195
    %v8324 = vunpack.c.l.b16 %v8196
    %v8325 = vunpack.c.l.b16 %v8197
    %v8326 = vunpack.c.l.b16 %v8198
    %v8327 = vunpack.c.l.b16 %v8199
    %v8328 = vunpack.c.l.b16 %v8200
    %v8329 = vunpack.c.l.b16 %v8201
    %v8330 = vunpack.c.l.b16 %v8202
    %v8331 = vunpack.c.l.b16 %v8203
    %v8332 = vunpack.c.l.b16 %v8204
    %v8333 = vunpack.c.l.b16 %v8205
    %v8334 = vunpack.c.l.b16 %v8206
    %v8335 = vunpack.c.l.b16 %v8207
    %v8336 = vunpack.c.l.b16 %v8208
    %v8337 = vunpack.c.l.b16 %v8209
    %v8338 = vunpack.c.l.b16 %v8210
    %v8339 = vunpack.c.l.b16 %v8211
    %v8340 = vunpack.c.l.b16 %v8212
    %v8341 = vunpack.c.l.b16 %v8213
    %v8342 = vunpack.c.l.b16 %v8214
    %v8343 = vunpack.c.l.b16 %v8215
    %v8344 = vunpack.c.l.b16 %v8216
    %v8345 = vunpack.c.l.b16 %v8217
    %v8346 = vunpack.c.l.b16 %v8218
    %v8347 = vunpack.c.l.b16 %v8219
    %v8348 = vunpack.c.l.b16 %v8220
    %v8349 = vunpack.c.l.b16 %v8221
    %v8350 = vunpack.c.l.b16 %v8222
    %v8351 = vunpack.c.l.b16 %v8223
    %v8352 = vunpack.c.l.b16 %v8224
    %v8353 = vunpack.c.l.b16 %v8225
    %v8354 = vunpack.c.l.b16 %v8226
    %v8355 = vunpack.c.l.b16 %v8227
    %v8356 = vunpack.c.l.b16 %v8228
    %v8357 = vunpack.c.l.b16 %v8229
    %v8358 = vunpack.c.l.b16 %v8230
    %v8359 = vunpack.c.l.b16 %v8231
    %v8360 = vunpack.c.l.b16 %v8232
    %v8361 = vunpack.c.l.b16 %v8233
    %v8362 = vunpack.c.l.b16 %v8234
    %v8363 = vunpack.c.l.b16 %v8235
    %v8364 = vunpack.c.l.b16 %v8236
    %v8365 = vunpack.c.l.b16 %v8237
    %v8366 = vunpack.c.l.b16 %v8238
    %v8367 = vunpack.c.l.b16 %v8239
    %v8368 = vpack.c.b16 %v8305, %v8304
    %v8369 = vpack.c.b16 %v8307, %v8306
    %v8370 = vpack.c.b16 %v8309, %v8308
    %v8371 = vpack.c.b16 %v8311, %v8310
    %v8372 = vpack.c.b16 %v8313, %v8312
    %v8373 = vpack.c.b16 %v8315, %v8314
    %v8374 = vpack.c.b16 %v8317, %v8316
    %v8375 = vpack.c.b16 %v8319, %v8318
    %v8376 = vpack.c.b16 %v8321, %v8320
    %v8377 = vpack.c.b16 %v8323, %v8322
    %v8378 = vpack.c.b16 %v8325, %v8324
    %v8379 = vpack.c.b16 %v8327, %v8326
    %v8380 = vpack.c.b16 %v8329, %v8328
    %v8381 = vpack.c.b16 %v8331, %v8330
    %v8382 = vpack.c.b16 %v8333, %v8332
    %v8383 = vpack.c.b16 %v8335, %v8334
    %v8384 = vpack.c.b16 %v8337, %v8336
    %v8385 = vpack.c.b16 %v8339, %v8338
    %v8386 = vpack.c.b16 %v8341, %v8340
    %v8387 = vpack.c.b16 %v8343, %v8342
    %v8388 = vpack.c.b16 %v8345, %v8344
    %v8389 = vpack.c.b16 %v8347, %v8346
    %v8390 = vpack.c.b16 %v8349, %v8348
    %v8391 = vpack.c.b16 %v8351, %v8350
    %v8392 = vpack.c.b16 %v8353, %v8352
    %v8393 = vpack.c.b16 %v8355, %v8354
    %v8394 = vpack.c.b16 %v8357, %v8356
    %v8395 = vpack.c.b16 %v8359, %v8358
    %v8396 = vpack.c.b16 %v8361, %v8360
    %v8397 = vpack.c.b16 %v8363, %v8362
    %v8398 = vpack.c.b16 %v8365, %v8364
    %v8399 = vpack.c.b16 %v8367, %v8366
    %8432 = vmatprep.subr.bf16.mxu0 0
    %8433 = vmatpush1.bf16.msra.mxu0 %v8375
    %8434 = vmatprep.subr.bf16.mxu0 0
    %8435 = vmatpush1.bf16.msra.mxu0 %v8374
    %8436 = vmatprep.subr.bf16.mxu0 0
    %8437 = vmatpush1.bf16.msra.mxu0 %v8373
    %8438 = vmatprep.subr.bf16.mxu0 0
    %8439 = vmatpush1.bf16.msra.mxu0 %v8372
    %8440 = vmatprep.subr.bf16.mxu0 0
    %8441 = vmatpush1.bf16.msra.mxu0 %v8371
    %8442 = vmatprep.subr.bf16.mxu0 0
    %8443 = vmatpush1.bf16.msra.mxu0 %v8370
    %8444 = vmatprep.subr.bf16.mxu0 0
    %8445 = vmatpush1.bf16.msra.mxu0 %v8369
    %8446 = vmatprep.subr.bf16.mxu0 0
    %8447 = vmatpush1.bf16.msra.mxu0 %v8368
    %8448 = vmatprep.subr.bf16.mxu0 0
    %8449 = vmatpush2.bf16.msra.mxu0 %v8383
    %8450 = vmatprep.subr.bf16.mxu0 0
    %8451 = vmatpush2.bf16.msra.mxu0 %v8382
    %8452 = vmatprep.subr.bf16.mxu0 0
    %8453 = vmatpush2.bf16.msra.mxu0 %v8381
    %8454 = vmatprep.subr.bf16.mxu0 0
    %8455 = vmatpush2.bf16.msra.mxu0 %v8380
    %8456 = vmatprep.subr.bf16.mxu0 0
    %8457 = vmatpush2.bf16.msra.mxu0 %v8379
    %8458 = vmatprep.subr.bf16.mxu0 0
    %8459 = vmatpush2.bf16.msra.mxu0 %v8378
    %8460 = vmatprep.subr.bf16.mxu0 0
    %8461 = vmatpush2.bf16.msra.mxu0 %v8377
    %8462 = vmatprep.subr.bf16.mxu0 0
    %8463 = vmatpush2.bf16.msra.mxu0 %v8376
    %8464 = vmatprep.mubr.bf16.mxu0 %v8173
    %8465 = vmatmul.mubr.bf16.gmra.mxu0 %v8172
    %v8466 = vpop.f32.mrf.mxu0
    %v8467 = vadd.f32 0.0, %v8466
    %v8468 = vpop.f32.mrf.mxu0
    %v8469 = vpop.f32.mrf.mxu0
    %v8470 = vpop.f32.mrf.mxu0
    %8471 = vdwg.mxu0
    %8472 = vmatprep.subr.bf16.mxu0 0
    %8473 = vmatpush1.bf16.msra.mxu0 %v8391
    %8474 = vmatprep.subr.bf16.mxu0 0
    %8475 = vmatpush1.bf16.msra.mxu0 %v8390
    %8476 = vmatprep.subr.bf16.mxu0 0
    %8477 = vmatpush1.bf16.msra.mxu0 %v8389
    %8478 = vmatprep.subr.bf16.mxu0 0
    %8479 = vmatpush1.bf16.msra.mxu0 %v8388
    %8480 = vmatprep.subr.bf16.mxu0 0
    %8481 = vmatpush1.bf16.msra.mxu0 %v8387
    %8482 = vmatprep.subr.bf16.mxu0 0
    %8483 = vmatpush1.bf16.msra.mxu0 %v8386
    %8484 = vmatprep.subr.bf16.mxu0 0
    %8485 = vmatpush1.bf16.msra.mxu0 %v8385
    %8486 = vmatprep.subr.bf16.mxu0 0
    %8487 = vmatpush1.bf16.msra.mxu0 %v8384
    %8488 = vmatprep.subr.bf16.mxu0 0
    %8489 = vmatpush2.bf16.msra.mxu0 %v8399
    %8490 = vmatprep.subr.bf16.mxu0 0
    %8491 = vmatpush2.bf16.msra.mxu0 %v8398
    %8492 = vmatprep.subr.bf16.mxu0 0
    %8493 = vmatpush2.bf16.msra.mxu0 %v8397
    %8494 = vmatprep.subr.bf16.mxu0 0
    %8495 = vmatpush2.bf16.msra.mxu0 %v8396
    %8496 = vmatprep.subr.bf16.mxu0 0
    %8497 = vmatpush2.bf16.msra.mxu0 %v8395
    %8498 = vmatprep.subr.bf16.mxu0 0
    %8499 = vmatpush2.bf16.msra.mxu0 %v8394
    %8500 = vmatprep.subr.bf16.mxu0 0
    %8501 = vmatpush2.bf16.msra.mxu0 %v8393
    %8502 = vmatprep.subr.bf16.mxu0 0
    %8503 = vmatpush2.bf16.msra.mxu0 %v8392
    %8504 = vmatprep.mubr.bf16.mxu0 %v8175
    %8505 = vmatmul.mubr.bf16.gmra.mxu0 %v8174
    %v8506 = vpop.f32.mrf.mxu0
    %v8507 = vadd.f32 %v8467, %v8506
    %v8508 = vpop.f32.mrf.mxu0
    %v8509 = vpop.f32.mrf.mxu0
    %v8510 = vpop.f32.mrf.mxu0
    %8511 = vdwg.mxu0
    %v8512 = vadd.f32 %v7963, %v8507
    %v8513 = vld [vmem:[%s6867 + $0x30] sm:$0xff]
    %v8514 = vld [vmem:[%s6867 + $0x38] sm:$0xff]
    %v8515 = vld [vmem:[%s6867 + $0x70] sm:$0xff]
    %v8516 = vld [vmem:[%s6867 + $0x78] sm:$0xff]
    %v8517 = vld [vmem:[%s6867 + $0xb0] sm:$0xff]
    %v8518 = vld [vmem:[%s6867 + $0xb8] sm:$0xff]
    %v8519 = vld [vmem:[%s6867 + $0xf0] sm:$0xff]
    %v8520 = vld [vmem:[%s6867 + $0xf8] sm:$0xff]
    %v8521 = vld [vmem:[%s6867 + $0x130] sm:$0xff]
    %v8522 = vld [vmem:[%s6867 + $0x138] sm:$0xff]
    %v8523 = vld [vmem:[%s6867 + $0x170] sm:$0xff]
    %v8524 = vld [vmem:[%s6867 + $0x178] sm:$0xff]
    %v8525 = vld [vmem:[%s6867 + $0x1b0] sm:$0xff]
    %v8526 = vld [vmem:[%s6867 + $0x1b8] sm:$0xff]
    %v8527 = vld [vmem:[%s6867 + $0x1f0] sm:$0xff]
    %v8528 = vld [vmem:[%s6867 + $0x1f8] sm:$0xff]
    %v8529 = vld [vmem:[%s6884 + $0xc] sm:$0xf]
    %v8531 = vlaneseq
    %v8532 = vshrl.u32 %v8531, 7
    %v8533 = vsub.s32 0, %v8532
    %v8534 = vrot.slane %v8529, %v8533
    %v8535 = vlaneseq
    %v8536 = vshrl.u32 %v8535, 7
    %v8537 = vsub.s32 1, %v8536
    %v8538 = vrot.slane %v8529, %v8537
    %v8539 = vlaneseq
    %v8540 = vshrl.u32 %v8539, 7
    %v8541 = vsub.s32 2, %v8540
    %v8542 = vrot.slane %v8529, %v8541
    %v8543 = vlaneseq
    %v8544 = vshrl.u32 %v8543, 7
    %v8545 = vsub.s32 3, %v8544
    %v8546 = vrot.slane %v8529, %v8545
    %v8567 = vunpack.c.l.b16 %v8513
    %v8568 = vunpack.c.h.b16 %v8513
    %v8569 = vunpack.c.l.b16 %v8514
    %v8570 = vunpack.c.h.b16 %v8514
    %v8571 = vunpack.c.l.b16 %v8515
    %v8572 = vunpack.c.h.b16 %v8515
    %v8573 = vunpack.c.l.b16 %v8516
    %v8574 = vunpack.c.h.b16 %v8516
    %v8575 = vunpack.c.l.b16 %v8517
    %v8576 = vunpack.c.h.b16 %v8517
    %v8577 = vunpack.c.l.b16 %v8518
    %v8578 = vunpack.c.h.b16 %v8518
    %v8579 = vunpack.c.l.b16 %v8519
    %v8580 = vunpack.c.h.b16 %v8519
    %v8581 = vunpack.c.l.b16 %v8520
    %v8582 = vunpack.c.h.b16 %v8520
    %v8583 = vunpack.c.l.b16 %v8521
    %v8584 = vunpack.c.h.b16 %v8521
    %v8585 = vunpack.c.l.b16 %v8522
    %v8586 = vunpack.c.h.b16 %v8522
    %v8587 = vunpack.c.l.b16 %v8523
    %v8588 = vunpack.c.h.b16 %v8523
    %v8589 = vunpack.c.l.b16 %v8524
    %v8590 = vunpack.c.h.b16 %v8524
    %v8591 = vunpack.c.l.b16 %v8525
    %v8592 = vunpack.c.h.b16 %v8525
    %v8593 = vunpack.c.l.b16 %v8526
    %v8594 = vunpack.c.h.b16 %v8526
    %v8595 = vunpack.c.l.b16 %v8527
    %v8596 = vunpack.c.h.b16 %v8527
    %v8597 = vunpack.c.l.b16 %v8528
    %v8598 = vunpack.c.h.b16 %v8528
    %v8599 = vpack.c.b16 %v8571, %v8567
    %v8600 = vpack.c.b16 %v8572, %v8568
    %v8601 = vpack.c.b16 %v8573, %v8569
    %v8602 = vpack.c.b16 %v8574, %v8570
    %v8603 = vpack.c.b16 %v8579, %v8575
    %v8604 = vpack.c.b16 %v8580, %v8576
    %v8605 = vpack.c.b16 %v8581, %v8577
    %v8606 = vpack.c.b16 %v8582, %v8578
    %v8607 = vpack.c.b16 %v8587, %v8583
    %v8608 = vpack.c.b16 %v8588, %v8584
    %v8609 = vpack.c.b16 %v8589, %v8585
    %v8610 = vpack.c.b16 %v8590, %v8586
    %v8611 = vpack.c.b16 %v8595, %v8591
    %v8612 = vpack.c.b16 %v8596, %v8592
    %v8613 = vpack.c.b16 %v8597, %v8593
    %v8614 = vpack.c.b16 %v8598, %v8594
    %8631 = vmatprep.subr.bf16.mxu0 0
    %8632 = vmatpush1.bf16.msra.mxu0 0
    %8633 = vmatprep.subr.bf16.mxu0 0
    %8634 = vmatpush1.bf16.msra.mxu0 0
    %8635 = vmatprep.subr.bf16.mxu0 0
    %8636 = vmatpush1.bf16.msra.mxu0 0
    %8637 = vmatprep.subr.bf16.mxu0 0
    %8638 = vmatpush1.bf16.msra.mxu0 0
    %8639 = vmatprep.subr.bf16.mxu0 %v8612
    %8640 = vmatpush1.bf16.msra.mxu0 %v8611
    %8641 = vmatprep.subr.bf16.mxu0 %v8608
    %8642 = vmatpush1.bf16.msra.mxu0 %v8607
    %8643 = vmatprep.subr.bf16.mxu0 %v8604
    %8644 = vmatpush1.bf16.msra.mxu0 %v8603
    %8645 = vmatprep.subr.bf16.mxu0 %v8600
    %8646 = vmatpush1.bf16.msra.mxu0 %v8599
    %8647 = vmatprep.subr.bf16.mxu0 0
    %8648 = vmatpush2.bf16.msra.mxu0 0
    %8649 = vmatprep.subr.bf16.mxu0 0
    %8650 = vmatpush2.bf16.msra.mxu0 0
    %8651 = vmatprep.subr.bf16.mxu0 0
    %8652 = vmatpush2.bf16.msra.mxu0 0
    %8653 = vmatprep.subr.bf16.mxu0 0
    %8654 = vmatpush2.bf16.msra.mxu0 0
    %8655 = vmatprep.subr.bf16.mxu0 0
    %8656 = vmatpush2.bf16.msra.mxu0 0
    %8657 = vmatprep.subr.bf16.mxu0 0
    %8658 = vmatpush2.bf16.msra.mxu0 0
    %8659 = vmatprep.subr.bf16.mxu0 0
    %8660 = vmatpush2.bf16.msra.mxu0 0
    %8661 = vmatprep.subr.bf16.mxu0 0
    %8662 = vmatpush2.bf16.msra.mxu0 0
    %8663 = vmatprep.mubr.bf16.mxu0 0
    %8664 = vmatmul.mubr.bf16.gmra.mxu0 %v6995
    %v8665 = vpop.f32.mrf.mxu0
    %v8666 = vadd.f32 %v8534, %v8665
    %v8667 = vpop.f32.mrf.mxu0
    %v8668 = vadd.f32 %v8538, %v8667
    %v8669 = vpop.f32.mrf.mxu0
    %v8670 = vpop.f32.mrf.mxu0
    %8671 = vdwg.mxu0
    %8672 = vmatprep.subr.bf16.mxu0 0
    %8673 = vmatpush1.bf16.msra.mxu0 0
    %8674 = vmatprep.subr.bf16.mxu0 0
    %8675 = vmatpush1.bf16.msra.mxu0 0
    %8676 = vmatprep.subr.bf16.mxu0 0
    %8677 = vmatpush1.bf16.msra.mxu0 0
    %8678 = vmatprep.subr.bf16.mxu0 0
    %8679 = vmatpush1.bf16.msra.mxu0 0
    %8680 = vmatprep.subr.bf16.mxu0 %v8614
    %8681 = vmatpush1.bf16.msra.mxu0 %v8613
    %8682 = vmatprep.subr.bf16.mxu0 %v8610
    %8683 = vmatpush1.bf16.msra.mxu0 %v8609
    %8684 = vmatprep.subr.bf16.mxu0 %v8606
    %8685 = vmatpush1.bf16.msra.mxu0 %v8605
    %8686 = vmatprep.subr.bf16.mxu0 %v8602
    %8687 = vmatpush1.bf16.msra.mxu0 %v8601
    %8688 = vmatprep.subr.bf16.mxu0 0
    %8689 = vmatpush2.bf16.msra.mxu0 0
    %8690 = vmatprep.subr.bf16.mxu0 0
    %8691 = vmatpush2.bf16.msra.mxu0 0
    %8692 = vmatprep.subr.bf16.mxu0 0
    %8693 = vmatpush2.bf16.msra.mxu0 0
    %8694 = vmatprep.subr.bf16.mxu0 0
    %8695 = vmatpush2.bf16.msra.mxu0 0
    %8696 = vmatprep.subr.bf16.mxu0 0
    %8697 = vmatpush2.bf16.msra.mxu0 0
    %8698 = vmatprep.subr.bf16.mxu0 0
    %8699 = vmatpush2.bf16.msra.mxu0 0
    %8700 = vmatprep.subr.bf16.mxu0 0
    %8701 = vmatpush2.bf16.msra.mxu0 0
    %8702 = vmatprep.subr.bf16.mxu0 0
    %8703 = vmatpush2.bf16.msra.mxu0 0
    %8704 = vmatprep.mubr.bf16.mxu0 0
    %8705 = vmatmul.mubr.bf16.gmra.mxu0 %v6995
    %v8706 = vpop.f32.mrf.mxu0
    %v8707 = vadd.f32 %v8542, %v8706
    %v8708 = vpop.f32.mrf.mxu0
    %v8709 = vadd.f32 %v8546, %v8708
    %v8710 = vpop.f32.mrf.mxu0
    %v8711 = vpop.f32.mrf.mxu0
    %8712 = vdwg.mxu0
    %v8713 = vmax.f32 %v8666, 0.0
    %v8714 = vmax.f32 %v8668, 0.0
    %v8715 = vmax.f32 %v8707, 0.0
    %v8716 = vmax.f32 %v8709, 0.0
    %v8717 = vpack.c.bf16 %v8713, %v8713
    %v8718 = vpack.c.bf16 %v8714, %v8714
    %v8719 = vpack.c.bf16 %v8715, %v8715
    %v8720 = vpack.c.bf16 %v8716, %v8716
    %v8721 = vld [vmem:[%s7087 + $0x300] sm:$0xf]
    %v8722 = vld [vmem:[%s7087 + $0x304] sm:$0xf]
    %v8723 = vld [vmem:[%s7087 + $0x308] sm:$0xf]
    %v8724 = vld [vmem:[%s7087 + $0x30c] sm:$0xf]
    %v8725 = vld [vmem:[%s7087 + $0x310] sm:$0xf]
    %v8726 = vld [vmem:[%s7087 + $0x314] sm:$0xf]
    %v8727 = vld [vmem:[%s7087 + $0x318] sm:$0xf]
    %v8728 = vld [vmem:[%s7087 + $0x31c] sm:$0xf]
    %v8729 = vld [vmem:[%s7087 + $0x320] sm:$0xf]
    %v8730 = vld [vmem:[%s7087 + $0x324] sm:$0xf]
    %v8731 = vld [vmem:[%s7087 + $0x328] sm:$0xf]
    %v8732 = vld [vmem:[%s7087 + $0x32c] sm:$0xf]
    %v8733 = vld [vmem:[%s7087 + $0x330] sm:$0xf]
    %v8734 = vld [vmem:[%s7087 + $0x334] sm:$0xf]
    %v8735 = vld [vmem:[%s7087 + $0x338] sm:$0xf]
    %v8736 = vld [vmem:[%s7087 + $0x33c] sm:$0xf]
    %v8737 = vld [vmem:[%s7087 + $0x340] sm:$0xf]
    %v8738 = vld [vmem:[%s7087 + $0x344] sm:$0xf]
    %v8739 = vld [vmem:[%s7087 + $0x348] sm:$0xf]
    %v8740 = vld [vmem:[%s7087 + $0x34c] sm:$0xf]
    %v8741 = vld [vmem:[%s7087 + $0x350] sm:$0xf]
    %v8742 = vld [vmem:[%s7087 + $0x354] sm:$0xf]
    %v8743 = vld [vmem:[%s7087 + $0x358] sm:$0xf]
    %v8744 = vld [vmem:[%s7087 + $0x35c] sm:$0xf]
    %v8745 = vld [vmem:[%s7087 + $0x360] sm:$0xf]
    %v8746 = vld [vmem:[%s7087 + $0x364] sm:$0xf]
    %v8747 = vld [vmem:[%s7087 + $0x368] sm:$0xf]
    %v8748 = vld [vmem:[%s7087 + $0x36c] sm:$0xf]
    %v8749 = vld [vmem:[%s7087 + $0x370] sm:$0xf]
    %v8750 = vld [vmem:[%s7087 + $0x374] sm:$0xf]
    %v8751 = vld [vmem:[%s7087 + $0x378] sm:$0xf]
    %v8752 = vld [vmem:[%s7087 + $0x37c] sm:$0xf]
    %v8753 = vld [vmem:[%s7087 + $0x380] sm:$0xf]
    %v8754 = vld [vmem:[%s7087 + $0x384] sm:$0xf]
    %v8755 = vld [vmem:[%s7087 + $0x388] sm:$0xf]
    %v8756 = vld [vmem:[%s7087 + $0x38c] sm:$0xf]
    %v8757 = vld [vmem:[%s7087 + $0x390] sm:$0xf]
    %v8758 = vld [vmem:[%s7087 + $0x394] sm:$0xf]
    %v8759 = vld [vmem:[%s7087 + $0x398] sm:$0xf]
    %v8760 = vld [vmem:[%s7087 + $0x39c] sm:$0xf]
    %v8761 = vld [vmem:[%s7087 + $0x3a0] sm:$0xf]
    %v8762 = vld [vmem:[%s7087 + $0x3a4] sm:$0xf]
    %v8763 = vld [vmem:[%s7087 + $0x3a8] sm:$0xf]
    %v8764 = vld [vmem:[%s7087 + $0x3ac] sm:$0xf]
    %v8765 = vld [vmem:[%s7087 + $0x3b0] sm:$0xf]
    %v8766 = vld [vmem:[%s7087 + $0x3b4] sm:$0xf]
    %v8767 = vld [vmem:[%s7087 + $0x3b8] sm:$0xf]
    %v8768 = vld [vmem:[%s7087 + $0x3bc] sm:$0xf]
    %v8769 = vld [vmem:[%s7087 + $0x3c0] sm:$0xf]
    %v8770 = vld [vmem:[%s7087 + $0x3c4] sm:$0xf]
    %v8771 = vld [vmem:[%s7087 + $0x3c8] sm:$0xf]
    %v8772 = vld [vmem:[%s7087 + $0x3cc] sm:$0xf]
    %v8773 = vld [vmem:[%s7087 + $0x3d0] sm:$0xf]
    %v8774 = vld [vmem:[%s7087 + $0x3d4] sm:$0xf]
    %v8775 = vld [vmem:[%s7087 + $0x3d8] sm:$0xf]
    %v8776 = vld [vmem:[%s7087 + $0x3dc] sm:$0xf]
    %v8777 = vld [vmem:[%s7087 + $0x3e0] sm:$0xf]
    %v8778 = vld [vmem:[%s7087 + $0x3e4] sm:$0xf]
    %v8779 = vld [vmem:[%s7087 + $0x3e8] sm:$0xf]
    %v8780 = vld [vmem:[%s7087 + $0x3ec] sm:$0xf]
    %v8781 = vld [vmem:[%s7087 + $0x3f0] sm:$0xf]
    %v8782 = vld [vmem:[%s7087 + $0x3f4] sm:$0xf]
    %v8783 = vld [vmem:[%s7087 + $0x3f8] sm:$0xf]
    %v8784 = vld [vmem:[%s7087 + $0x3fc] sm:$0xf]
    %v8849 = vunpack.c.l.b16 %v8721
    %v8850 = vunpack.c.l.b16 %v8722
    %v8851 = vunpack.c.l.b16 %v8723
    %v8852 = vunpack.c.l.b16 %v8724
    %v8853 = vunpack.c.l.b16 %v8725
    %v8854 = vunpack.c.l.b16 %v8726
    %v8855 = vunpack.c.l.b16 %v8727
    %v8856 = vunpack.c.l.b16 %v8728
    %v8857 = vunpack.c.l.b16 %v8729
    %v8858 = vunpack.c.l.b16 %v8730
    %v8859 = vunpack.c.l.b16 %v8731
    %v8860 = vunpack.c.l.b16 %v8732
    %v8861 = vunpack.c.l.b16 %v8733
    %v8862 = vunpack.c.l.b16 %v8734
    %v8863 = vunpack.c.l.b16 %v8735
    %v8864 = vunpack.c.l.b16 %v8736
    %v8865 = vunpack.c.l.b16 %v8737
    %v8866 = vunpack.c.l.b16 %v8738
    %v8867 = vunpack.c.l.b16 %v8739
    %v8868 = vunpack.c.l.b16 %v8740
    %v8869 = vunpack.c.l.b16 %v8741
    %v8870 = vunpack.c.l.b16 %v8742
    %v8871 = vunpack.c.l.b16 %v8743
    %v8872 = vunpack.c.l.b16 %v8744
    %v8873 = vunpack.c.l.b16 %v8745
    %v8874 = vunpack.c.l.b16 %v8746
    %v8875 = vunpack.c.l.b16 %v8747
    %v8876 = vunpack.c.l.b16 %v8748
    %v8877 = vunpack.c.l.b16 %v8749
    %v8878 = vunpack.c.l.b16 %v8750
    %v8879 = vunpack.c.l.b16 %v8751
    %v8880 = vunpack.c.l.b16 %v8752
    %v8881 = vunpack.c.l.b16 %v8753
    %v8882 = vunpack.c.l.b16 %v8754
    %v8883 = vunpack.c.l.b16 %v8755
    %v8884 = vunpack.c.l.b16 %v8756
    %v8885 = vunpack.c.l.b16 %v8757
    %v8886 = vunpack.c.l.b16 %v8758
    %v8887 = vunpack.c.l.b16 %v8759
    %v8888 = vunpack.c.l.b16 %v8760
    %v8889 = vunpack.c.l.b16 %v8761
    %v8890 = vunpack.c.l.b16 %v8762
    %v8891 = vunpack.c.l.b16 %v8763
    %v8892 = vunpack.c.l.b16 %v8764
    %v8893 = vunpack.c.l.b16 %v8765
    %v8894 = vunpack.c.l.b16 %v8766
    %v8895 = vunpack.c.l.b16 %v8767
    %v8896 = vunpack.c.l.b16 %v8768
    %v8897 = vunpack.c.l.b16 %v8769
    %v8898 = vunpack.c.l.b16 %v8770
    %v8899 = vunpack.c.l.b16 %v8771
    %v8900 = vunpack.c.l.b16 %v8772
    %v8901 = vunpack.c.l.b16 %v8773
    %v8902 = vunpack.c.l.b16 %v8774
    %v8903 = vunpack.c.l.b16 %v8775
    %v8904 = vunpack.c.l.b16 %v8776
    %v8905 = vunpack.c.l.b16 %v8777
    %v8906 = vunpack.c.l.b16 %v8778
    %v8907 = vunpack.c.l.b16 %v8779
    %v8908 = vunpack.c.l.b16 %v8780
    %v8909 = vunpack.c.l.b16 %v8781
    %v8910 = vunpack.c.l.b16 %v8782
    %v8911 = vunpack.c.l.b16 %v8783
    %v8912 = vunpack.c.l.b16 %v8784
    %v8913 = vpack.c.b16 %v8850, %v8849
    %v8914 = vpack.c.b16 %v8852, %v8851
    %v8915 = vpack.c.b16 %v8854, %v8853
    %v8916 = vpack.c.b16 %v8856, %v8855
    %v8917 = vpack.c.b16 %v8858, %v8857
    %v8918 = vpack.c.b16 %v8860, %v8859
    %v8919 = vpack.c.b16 %v8862, %v8861
    %v8920 = vpack.c.b16 %v8864, %v8863
    %v8921 = vpack.c.b16 %v8866, %v8865
    %v8922 = vpack.c.b16 %v8868, %v8867
    %v8923 = vpack.c.b16 %v8870, %v8869
    %v8924 = vpack.c.b16 %v8872, %v8871
    %v8925 = vpack.c.b16 %v8874, %v8873
    %v8926 = vpack.c.b16 %v8876, %v8875
    %v8927 = vpack.c.b16 %v8878, %v8877
    %v8928 = vpack.c.b16 %v8880, %v8879
    %v8929 = vpack.c.b16 %v8882, %v8881
    %v8930 = vpack.c.b16 %v8884, %v8883
    %v8931 = vpack.c.b16 %v8886, %v8885
    %v8932 = vpack.c.b16 %v8888, %v8887
    %v8933 = vpack.c.b16 %v8890, %v8889
    %v8934 = vpack.c.b16 %v8892, %v8891
    %v8935 = vpack.c.b16 %v8894, %v8893
    %v8936 = vpack.c.b16 %v8896, %v8895
    %v8937 = vpack.c.b16 %v8898, %v8897
    %v8938 = vpack.c.b16 %v8900, %v8899
    %v8939 = vpack.c.b16 %v8902, %v8901
    %v8940 = vpack.c.b16 %v8904, %v8903
    %v8941 = vpack.c.b16 %v8906, %v8905
    %v8942 = vpack.c.b16 %v8908, %v8907
    %v8943 = vpack.c.b16 %v8910, %v8909
    %v8944 = vpack.c.b16 %v8912, %v8911
    %8977 = vmatprep.subr.bf16.mxu0 0
    %8978 = vmatpush1.bf16.msra.mxu0 %v8920
    %8979 = vmatprep.subr.bf16.mxu0 0
    %8980 = vmatpush1.bf16.msra.mxu0 %v8919
    %8981 = vmatprep.subr.bf16.mxu0 0
    %8982 = vmatpush1.bf16.msra.mxu0 %v8918
    %8983 = vmatprep.subr.bf16.mxu0 0
    %8984 = vmatpush1.bf16.msra.mxu0 %v8917
    %8985 = vmatprep.subr.bf16.mxu0 0
    %8986 = vmatpush1.bf16.msra.mxu0 %v8916
    %8987 = vmatprep.subr.bf16.mxu0 0
    %8988 = vmatpush1.bf16.msra.mxu0 %v8915
    %8989 = vmatprep.subr.bf16.mxu0 0
    %8990 = vmatpush1.bf16.msra.mxu0 %v8914
    %8991 = vmatprep.subr.bf16.mxu0 0
    %8992 = vmatpush1.bf16.msra.mxu0 %v8913
    %8993 = vmatprep.subr.bf16.mxu0 0
    %8994 = vmatpush2.bf16.msra.mxu0 %v8928
    %8995 = vmatprep.subr.bf16.mxu0 0
    %8996 = vmatpush2.bf16.msra.mxu0 %v8927
    %8997 = vmatprep.subr.bf16.mxu0 0
    %8998 = vmatpush2.bf16.msra.mxu0 %v8926
    %8999 = vmatprep.subr.bf16.mxu0 0
    %9000 = vmatpush2.bf16.msra.mxu0 %v8925
    %9001 = vmatprep.subr.bf16.mxu0 0
    %9002 = vmatpush2.bf16.msra.mxu0 %v8924
    %9003 = vmatprep.subr.bf16.mxu0 0
    %9004 = vmatpush2.bf16.msra.mxu0 %v8923
    %9005 = vmatprep.subr.bf16.mxu0 0
    %9006 = vmatpush2.bf16.msra.mxu0 %v8922
    %9007 = vmatprep.subr.bf16.mxu0 0
    %9008 = vmatpush2.bf16.msra.mxu0 %v8921
    %9009 = vmatprep.mubr.bf16.mxu0 %v8718
    %9010 = vmatmul.mubr.bf16.gmra.mxu0 %v8717
    %v9011 = vpop.f32.mrf.mxu0
    %v9012 = vadd.f32 0.0, %v9011
    %v9013 = vpop.f32.mrf.mxu0
    %v9014 = vpop.f32.mrf.mxu0
    %v9015 = vpop.f32.mrf.mxu0
    %9016 = vdwg.mxu0
    %9017 = vmatprep.subr.bf16.mxu0 0
    %9018 = vmatpush1.bf16.msra.mxu0 %v8936
    %9019 = vmatprep.subr.bf16.mxu0 0
    %9020 = vmatpush1.bf16.msra.mxu0 %v8935
    %9021 = vmatprep.subr.bf16.mxu0 0
    %9022 = vmatpush1.bf16.msra.mxu0 %v8934
    %9023 = vmatprep.subr.bf16.mxu0 0
    %9024 = vmatpush1.bf16.msra.mxu0 %v8933
    %9025 = vmatprep.subr.bf16.mxu0 0
    %9026 = vmatpush1.bf16.msra.mxu0 %v8932
    %9027 = vmatprep.subr.bf16.mxu0 0
    %9028 = vmatpush1.bf16.msra.mxu0 %v8931
    %9029 = vmatprep.subr.bf16.mxu0 0
    %9030 = vmatpush1.bf16.msra.mxu0 %v8930
    %9031 = vmatprep.subr.bf16.mxu0 0
    %9032 = vmatpush1.bf16.msra.mxu0 %v8929
    %9033 = vmatprep.subr.bf16.mxu0 0
    %9034 = vmatpush2.bf16.msra.mxu0 %v8944
    %9035 = vmatprep.subr.bf16.mxu0 0
    %9036 = vmatpush2.bf16.msra.mxu0 %v8943
    %9037 = vmatprep.subr.bf16.mxu0 0
    %9038 = vmatpush2.bf16.msra.mxu0 %v8942
    %9039 = vmatprep.subr.bf16.mxu0 0
    %9040 = vmatpush2.bf16.msra.mxu0 %v8941
    %9041 = vmatprep.subr.bf16.mxu0 0
    %9042 = vmatpush2.bf16.msra.mxu0 %v8940
    %9043 = vmatprep.subr.bf16.mxu0 0
    %9044 = vmatpush2.bf16.msra.mxu0 %v8939
    %9045 = vmatprep.subr.bf16.mxu0 0
    %9046 = vmatpush2.bf16.msra.mxu0 %v8938
    %9047 = vmatprep.subr.bf16.mxu0 0
    %9048 = vmatpush2.bf16.msra.mxu0 %v8937
    %9049 = vmatprep.mubr.bf16.mxu0 %v8720
    %9050 = vmatmul.mubr.bf16.gmra.mxu0 %v8719
    %v9051 = vpop.f32.mrf.mxu0
    %v9052 = vadd.f32 %v9012, %v9051
    %v9053 = vpop.f32.mrf.mxu0
    %v9054 = vpop.f32.mrf.mxu0
    %v9055 = vpop.f32.mrf.mxu0
    %9056 = vdwg.mxu0
    %v9057 = vadd.f32 %v8512, %v9052
    %s9058 = scalar_lea.vmem %s14, 1
    %v9059 = vld [vmem:[%s9058] sm:$0x1]
    %v9061 = vlaneseq
    %v9062 = vshrl.u32 %v9061, 7
    %v9063 = vsub.s32 0, %v9062
    %v9064 = vrot.slane %v9059, %v9063
    %v9066 = vadd.f32 %v9057, %v9064
    %v9068 = vrot.slane %v9066, 1
    %v9071 = vadd.f32 %v6863, %v9066
    %v9072 = vadd.f32 %v6864, %v9068
    %s9073 = scalar_lea.vmem %s17, 1
    %v9074 = vld [vmem:[%s9073] sm:$0x1]
    %s9075 = scalar_lea.vmem %s18, 1
    %v9076 = vld [vmem:[%s9075] sm:$0x1]
    %v9079 = vrot.slane %v9072, 7
    %v9080 = vsel %vm6816, %v9079, %v9071
    %v9082 = vsel %vm6819, %v9080, 0.0
    %9083 = vadd.xlane.f32.xlu0 %v9082
    %v9084 = vpop.xlane.xlu0 %9083
    %v9085 = vmul.f32 %v9084, %v2319
    %v9087 = vrot.slane %v9085, 1
    %v9090 = vsub.f32 %v9071, %v9085
    %v9091 = vsub.f32 %v9072, %v9087
    %v9092 = vmul.f32 %v9090, %v9090
    %v9093 = vmul.f32 %v9091, %v9091
    %v9096 = vrot.slane %v9093, 7
    %v9097 = vsel %vm6816, %v9096, %v9092
    %v9099 = vsel %vm6819, %v9097, 0.0
    %9100 = vadd.xlane.f32.xlu0 %v9099
    %v9101 = vpop.xlane.xlu0 %9100
    %v9102 = vmul.f32 %v9101, %v2319
    %v9103 = vadd.f32 %v9102, 1e-05
    %v9104 = vrsqrt.pop %v9103
    %v9106 = vrot.slane %v9104, 1
    %v9109 = vmul.f32 %v9090, %v9104
    %v9110 = vmul.f32 %v9091, %v9106
    %v9112 = vlaneseq
    %v9113 = vshrl.u32 %v9112, 7
    %v9114 = vsub.s32 0, %v9113
    %v9115 = vrot.slane %v9074, %v9114
    %v9117 = vmul.f32 %v9109, %v9115
    %v9118 = vmul.f32 %v9110, %v9115
    %v9120 = vlaneseq
    %v9121 = vshrl.u32 %v9120, 7
    %v9122 = vsub.s32 0, %v9121
    %v9123 = vrot.slane %v9076, %v9122
    %v9125 = vadd.f32 %v9117, %v9123
    %v9126 = vadd.f32 %v9118, %v9123
    %v9127 = vpack.c.bf16 %v9125, %v9125
    %v9128 = vpack.c.bf16 %v9126, %v9126
    %v9129 = vld [vmem:[%s19] sm:$0xf]
    %v9130 = vld [vmem:[%s19 + $0x4] sm:$0xf]
    %v9131 = vld [vmem:[%s19 + $0x8] sm:$0xf]
    %v9132 = vld [vmem:[%s19 + $0xc] sm:$0xf]
    %v9133 = vld [vmem:[%s19 + $0x10] sm:$0xf]
    %v9134 = vld [vmem:[%s19 + $0x14] sm:$0xf]
    %v9135 = vld [vmem:[%s19 + $0x18] sm:$0xf]
    %v9136 = vld [vmem:[%s19 + $0x1c] sm:$0xf]
    %v9137 = vld [vmem:[%s20] sm:$0x1]
    %v9139 = vlaneseq
    %v9140 = vshrl.u32 %v9139, 7
    %v9141 = vsub.s32 0, %v9140
    %v9142 = vrot.slane %v9137, %v9141
    %v9146 = vunpack.c.l.b16 %v9127
    %v9147 = vunpack.c.l.b16 %v9128
    %v9148 = vrot.slane %v9147, 7
    %v9149 = vsel %vm6816, %v9148, %v9146
    %v9150 = vpack.c.b16 %v9149, %v9149
    %v9159 = vunpack.c.l.b16 %v9129
    %v9160 = vunpack.c.l.b16 %v9130
    %v9161 = vunpack.c.l.b16 %v9131
    %v9162 = vunpack.c.l.b16 %v9132
    %v9163 = vunpack.c.l.b16 %v9133
    %v9164 = vunpack.c.l.b16 %v9134
    %v9165 = vunpack.c.l.b16 %v9135
    %v9166 = vunpack.c.l.b16 %v9136
    %v9167 = vpack.c.b16 %v9160, %v9159
    %v9168 = vpack.c.b16 %v9162, %v9161
    %v9169 = vpack.c.b16 %v9164, %v9163
    %v9170 = vpack.c.b16 %v9166, %v9165
    %v9176 = vsel %vm177, %v9150, 0
    %9178 = vmatprep.subr.bf16.mxu0 0
    %9179 = vmatpush1.bf16.msra.mxu0 0
    %9180 = vmatprep.subr.bf16.mxu0 0
    %9181 = vmatpush1.bf16.msra.mxu0 0
    %9182 = vmatprep.subr.bf16.mxu0 0
    %9183 = vmatpush1.bf16.msra.mxu0 0
    %9184 = vmatprep.subr.bf16.mxu0 0
    %9185 = vmatpush1.bf16.msra.mxu0 0
    %9186 = vmatprep.subr.bf16.mxu0 0
    %9187 = vmatpush1.bf16.msra.mxu0 %v9170
    %9188 = vmatprep.subr.bf16.mxu0 0
    %9189 = vmatpush1.bf16.msra.mxu0 %v9169
    %9190 = vmatprep.subr.bf16.mxu0 0
    %9191 = vmatpush1.bf16.msra.mxu0 %v9168
    %9192 = vmatprep.subr.bf16.mxu0 0
    %9193 = vmatpush1.bf16.msra.mxu0 %v9167
    %9194 = vmatprep.subr.bf16.mxu0 0
    %9195 = vmatpush2.bf16.msra.mxu0 0
    %9196 = vmatprep.subr.bf16.mxu0 0
    %9197 = vmatpush2.bf16.msra.mxu0 0
    %9198 = vmatprep.subr.bf16.mxu0 0
    %9199 = vmatpush2.bf16.msra.mxu0 0
    %9200 = vmatprep.subr.bf16.mxu0 0
    %9201 = vmatpush2.bf16.msra.mxu0 0
    %9202 = vmatprep.subr.bf16.mxu0 0
    %9203 = vmatpush2.bf16.msra.mxu0 0
    %9204 = vmatprep.subr.bf16.mxu0 0
    %9205 = vmatpush2.bf16.msra.mxu0 0
    %9206 = vmatprep.subr.bf16.mxu0 0
    %9207 = vmatpush2.bf16.msra.mxu0 0
    %9208 = vmatprep.subr.bf16.mxu0 0
    %9209 = vmatpush2.bf16.msra.mxu0 0
    %9210 = vmatprep.mubr.bf16.mxu0 0
    %9211 = vmatmul.mubr.bf16.gmra.mxu0 %v9176
    %v9212 = vpop.f32.mrf.mxu0
    %v9213 = vadd.f32 %v9142, %v9212
    %v9214 = vpop.f32.mrf.mxu0
    %v9215 = vpop.f32.mrf.mxu0
    %v9216 = vpop.f32.mrf.mxu0
    %9217 = vdwg.mxu0
    %vm9218 = vcmask 58368
    %9219 = vst.msk [vmem:[#allocation2] sm:$0x3] %vm9218, %v9213
    // Predicated region
    $region86: #{tpu_custom_call.1} parent=1 // pred_check
      _
    $region87: #{tpu_custom_call.1} parent=1 // pred_check_branch
      %9221 = sbr.rel (0) target = $region89
    $region88: #{tpu_custom_call.1} parent=1 // pred_region
      %s9223 = ssub.s32 32, 32
      %9224 = vsyncadd [#allocation3], %s9223
      %s9226 = sshll.u32 [#allocation2], 4
      %s9227 = int_to_ptr.vmem [resolvable:$true] %s9226
      %9229 = dma.vmem_to_hbm [thread:$0]  %s9227, 32, %s21, [#allocation3]
    $region89: #{tpu_custom_call.1} parent=1 // pred_fallthru
      _
    // Predicated region
    $region90: #{tpu_custom_call.1} parent=1 // pred_check
      _
    $region91: #{tpu_custom_call.1} parent=1 // pred_check_branch
      %9231 = sbr.rel (0) target = $region93
    $region92: #{tpu_custom_call.1} parent=1 // pred_region
      %9232 = dma.done [#allocation3], 32
    $region93: #{tpu_custom_call.1} parent=1 // pred_fallthru
      _
    %9233 = vsyncpa [#allocation3], 1

</llo_original>
